<compile_context>
chip_gen: v6e
topology: v6e:2x2x1
jax: 0.10.0
libtpu: 0.0.40
codegen_flags: <defaults>
</compile_context>

<pallas_src>
import functools
import math

import jax
import jax.numpy as jnp
from jax.experimental import pallas as pl
from jax.experimental.pallas import tpu as pltpu


def _self_attention_kernel(
    q_in_ref, k_in_ref, v_in_ref, pos_ref,
    wqqt_ref, bqqt_ref, wk_ref, bk_ref, wv_ref, bv_ref,
    rpe_ref, wout_ref, bout_ref, gamma_ref, beta_ref,
    out_ref,
    *, seq_len, num_heads, k_dim, v_dim, rel_len, eps,
    mxu_dtype, rpe_blockdiag, head_batched, pack_out):
  S, H, Dk, Dv, L = seq_len, num_heads, k_dim, v_dim, rel_len
  rows = q_in_ref.shape[0]            # bt * S query/key rows per grid step
  E = q_in_ref.shape[1]
  BT = rows // S
  f32 = jnp.float32
  exact_softmax = (mxu_dtype == jnp.float32)

  x_q = q_in_ref[...].astype(mxu_dtype)
  x_k = k_in_ref[...].astype(mxu_dtype)
  x_v = v_in_ref[...].astype(mxu_dtype)

  # ---- fused projections (scaling folded into the q weights host-side) ---
  # One matmul for [q_proj*scaling | q_transform] (same input), one each for
  # k_proj / v_proj.
  qqt = jnp.dot(x_q, wqqt_ref[...], preferred_element_type=f32) + bqqt_ref[...]
  q_all = qqt[:, :H * Dk]                        # (rows, H*Dk), pre-scaled
  res = qqt[:, H * Dk:] + bout_ref[...]          # q_transform + out_proj bias

  k_all = jnp.dot(x_k, wk_ref[...], preferred_element_type=f32) + bk_ref[...]
  v_all = jnp.dot(x_v, wv_ref[...], preferred_element_type=f32) + bv_ref[...]

  # One f32 -> MXU-dtype cast per tensor, hoisted out of all head math.
  q_m = q_all.astype(mxu_dtype)
  k_m = k_all.astype(mxu_dtype)
  v_m = v_all.astype(mxu_dtype)

  # ---- q . rpe for all heads ---------------------------------------------
  if rpe_blockdiag:
    # rpe_ref is block-diagonal (H*Dk, H*L): one lane-dense MXU matmul,
    # followed by a contiguous reshape (no lane slices, no stack).
    qrpe = jnp.dot(q_m, rpe_ref[...], preferred_element_type=f32)
    qrpe = qrpe.reshape(rows, H, L)
  else:
    # Large-H packing (H, Dk, L): head-batched contraction, no zero blocks.
    qrpe = jnp.einsum('rhd,hdl->rhl', q_m.reshape(rows, H, Dk), rpe_ref[...],
                      preferred_element_type=f32)
  # NOTE: qrpe is accumulated in f32 and re-cast to mxu_dtype below (one
  # extra rounding on the bf16 path; exact on the f32 verification path).

  # ---- relative-position gather: one batched MXU contraction -------------
  # Precondition: pos values lie in [0, rel_len); out-of-range indices yield
  # a zero bias via the one-hot compare.
  # (On v6e an int8 one-hot would be exact & faster, but only if BOTH MXU
  #  operands were int8; qrpe is float, so keep mxu_dtype here.)
  pos_r = pos_ref[...]                                             # (rows, Sk)
  l_iota = jax.lax.broadcasted_iota(jnp.int32, (rows, S, L), 2)
  onehot = (pos_r[:, :, None] == l_iota).astype(mxu_dtype)         # (rows,Sk,L)
  gathered = jnp.einsum('rhl,rkl->rhk', qrpe.astype(mxu_dtype), onehot,
                        preferred_element_type=f32)                # (rows,H,Sk)

  def _softmax(scores):
    scores = scores - jnp.max(scores, axis=-1, keepdims=True)
    p = jnp.exp(scores)
    denom = jnp.sum(p, axis=-1, keepdims=True)
    if exact_softmax:
      return p / denom
    return p * pl.reciprocal(denom, approx=True)

  if head_batched:
    # ---- head-batched attention: one batched MXU sequence per einsum -----
    G = BT * H

    def to_heads(x, d):
      return jnp.transpose(x.reshape(BT, S, H, d), (0, 2, 1, 3)).reshape(G, S, d)

    q_h = to_heads(q_m, Dk)
    k_h = to_heads(k_m, Dk)
    v_h = to_heads(v_m, Dv)
    bias = jnp.transpose(gathered.reshape(BT, S, H, S),
                         (0, 2, 1, 3)).reshape(G, S, S)

    scores = jnp.einsum('gqd,gkd->gqk', q_h, k_h, preferred_element_type=f32)
    p = _softmax(scores + bias)                      # softmax over keys
    ctx = jnp.einsum('gqk,gkd->gqd', p.astype(mxu_dtype), v_h,
                     preferred_element_type=f32)     # (G, Sq, Dv)
    heads = jnp.transpose(ctx.reshape(BT, H, S, Dv),
                          (0, 2, 1, 3)).reshape(rows, H * Dv)
  else:
    # Conservative per-head fallback (same math, proven-to-lower ops); only
    # used if the head-batched relayouts fail to lower on this JAX version.
    outs = []
    for n in range(H):
      q_n = q_m[:, n * Dk:(n + 1) * Dk].reshape(BT, S, Dk)
      k_n = k_m[:, n * Dk:(n + 1) * Dk].reshape(BT, S, Dk)
      v_n = v_m[:, n * Dv:(n + 1) * Dv].reshape(BT, S, Dv)
      s_n = jnp.einsum('bqd,bkd->bqk', q_n, k_n, preferred_element_type=f32)
      p_n = _softmax(s_n + gathered[:, n, :].reshape(BT, S, S))
      outs.append(jnp.einsum('bqk,bkd->bqd', p_n.astype(mxu_dtype), v_n,
                             preferred_element_type=f32))
    heads = jnp.concatenate(outs, axis=-1).reshape(rows, H * Dv)

  # ---- fused output projection + residual --------------------------------
  out = res + jnp.dot(heads.astype(mxu_dtype), wout_ref[...],
                      preferred_element_type=f32)                  # (rows, E)

  # ---- LayerNorm over embed dim (eps=1e-6, biased variance) ---------------
  mean = jnp.mean(out, axis=-1, keepdims=True)
  centered = out - mean
  var = jnp.mean(centered * centered, axis=-1, keepdims=True)
  normed = centered * jax.lax.rsqrt(var + eps)
  final = normed * gamma_ref[...] + beta_ref[...]

  if pack_out:
    # Lane-dense (bt, S*E) store: unmasked vst even when E < 128.
    out_ref[...] = final.reshape(BT, S * E).astype(out_ref.dtype)
  else:
    out_ref[...] = final.astype(out_ref.dtype)


def self_attention_forward(query, key, value, pos,
                           wq, bq, wk, bk, wv, bv,
                           rpe, wqt, bqt, wout, bout, gamma, beta,
                           *, batch_tile=8, mxu_dtype=jnp.bfloat16):
  """Pallas-TPU forward of SelfAttentionLayer (mask=None, dropout=0)."""
  B, S, E = query.shape
  H, _, Dk = wq.shape
  Dv = wv.shape[2]
  L = rpe.shape[1]
  assert Dk == Dv, "the rpe einsum in the reference module requires k_dim == v_dim"
  f32 = jnp.float32
  scaling = float(Dk) ** -0.5

  # ---- batch tiling: keep grid >= 2 when B >= 2 (v7x dual TensorCore) -----
  bt = None
  for cand in range(min(batch_tile, max(1, B // 2)), 0, -1):
    if B % cand == 0 and (cand * S) % 8 == 0:
      bt = cand
      break
  if bt is None:
    bt = B                       # single step; block rows == full array rows
  grid = (B // bt,)
  rows = bt * S

  # ---- host-side weight packing -------------------------------------------
  # Fold `scaling` into q_proj weights/bias; fuse q_proj with q_transform
  # (both consume x_q).  NOTE: when query is key is value, wk/wv could also
  # be concatenated here for a single (E, 2*H*Dk + H*Dv + E) projection.
  wq_flat = jnp.transpose(wq, (1, 0, 2)).reshape(E, H * Dk) * scaling
  bq_flat = bq.reshape(1, H * Dk) * scaling
  w_qqt = jnp.concatenate([wq_flat, wqt], axis=1).astype(mxu_dtype)
  b_qqt = jnp.concatenate([bq_flat, bqt.reshape(1, E)], axis=1).astype(f32)

  wk_flat = jnp.transpose(wk, (1, 0, 2)).reshape(E, H * Dk).astype(mxu_dtype)
  wv_flat = jnp.transpose(wv, (1, 0, 2)).reshape(E, H * Dv).astype(mxu_dtype)
  bk_flat = bk.reshape(1, H * Dk).astype(f32)
  bv_flat = bv.reshape(1, H * Dv).astype(f32)
  wout_flat = wout.reshape(H * Dv, E).astype(mxu_dtype)

  # rpe packing: block-diagonal (one lane-dense matmul) while small; switch
  # to a head-batched (H, Dk, L) packing once (H*Dk)x(H*L) gets large (its
  # footprint and zero-MACs grow quadratically in H; v7x has 64 MiB VMEM).
  rpe_blockdiag = (H * Dk) * (H * L) <= (1 << 20)
  if rpe_blockdiag:
    rpe_bd = jnp.zeros((H * Dk, H * L), f32)
    for n in range(H):
      rpe_bd = rpe_bd.at[n * Dk:(n + 1) * Dk, n * L:(n + 1) * L].set(rpe[n].T)
    rpe_packed = rpe_bd.astype(mxu_dtype)
  else:
    rpe_packed = jnp.transpose(rpe, (0, 2, 1)).astype(mxu_dtype)   # (H, Dk, L)

  bout_2 = bout.reshape(1, E).astype(f32)
  gamma_2 = gamma.reshape(1, E).astype(f32)
  beta_2 = beta.reshape(1, E).astype(f32)

  # Flatten (B, S, .) -> (B*S, .) so activation blocks are sublane-dense.
  # (pos is a per-batch input here; if it only depended on (q, k) the one-hot
  #  gather matrix could be precomputed host-side and shared.)
  q2 = query.reshape(B * S, E)
  k2 = key.reshape(B * S, E)
  v2 = value.reshape(B * S, E)
  pos2 = pos.reshape(B * S, S).astype(jnp.int32)

  # Lane-dense output packing whenever the block shape constraints allow it.
  pack_out = (bt % 8 == 0) or (bt == B)
  if pack_out:
    out_shape = jax.ShapeDtypeStruct((B, S * E), f32)
    out_spec = pl.BlockSpec((bt, S * E), lambda b: (b, 0))
  else:
    out_shape = jax.ShapeDtypeStruct((B * S, E), f32)
    out_spec = pl.BlockSpec((rows, E), lambda b: (b, 0))

  const_args = (w_qqt, b_qqt, wk_flat, bk_flat, wv_flat, bv_flat,
                rpe_packed, wout_flat, bout_2, gamma_2, beta_2)
  call_args = (q2, k2, v2, pos2) + const_args

  # ---- advisory cost estimate for XLA scheduling --------------------------
  hdk, hdv, rt = H * Dk, H * Dv, B * S
  flops = 2 * rt * (E * (hdk + E) + E * hdk + E * hdv + hdv * E)
  flops += 2 * rt * ((hdk * H * L) if rpe_blockdiag else (H * Dk * L))
  flops += 2 * rt * H * S * L                      # one-hot gather
  flops += 2 * B * H * S * S * (Dk + Dv)           # scores + context
  transcendentals = B * H * S * S + rt             # exp + rsqrt
  bytes_accessed = sum(int(a.size) * a.dtype.itemsize for a in call_args)
  bytes_accessed += rt * E * 4                     # output
  cost = pl.CostEstimate(flops=int(flops),
                         transcendentals=int(transcendentals),
                         bytes_accessed=int(bytes_accessed))

  def build(head_batched, single_buffer_consts, with_cost):
    kernel = functools.partial(
        _self_attention_kernel,
        seq_len=S, num_heads=H, k_dim=Dk, v_dim=Dv, rel_len=L, eps=1e-6,
        mxu_dtype=mxu_dtype, rpe_blockdiag=rpe_blockdiag,
        head_batched=head_batched, pack_out=pack_out)

    const_kw = {}
    if single_buffer_consts:
      # Constants never change across the grid: a single VMEM buffer is
      # enough (halves the constant footprint; matters on v7x's 64 MiB VMEM).
      const_kw = dict(pipeline_mode=pl.Buffered(buffer_count=1))

    def const_spec(shape):
      nd = len(shape)
      return pl.BlockSpec(shape, lambda *_: (0,) * nd, **const_kw)

    in_specs = [
        pl.BlockSpec((rows, E), lambda b: (b, 0)),   # query rows
        pl.BlockSpec((rows, E), lambda b: (b, 0)),   # key rows
        pl.BlockSpec((rows, E), lambda b: (b, 0)),   # value rows
        pl.BlockSpec((rows, S), lambda b: (b, 0)),   # pos rows (int32)
    ] + [const_spec(c.shape) for c in const_args]

    grid_spec = pltpu.PrefetchScalarGridSpec(
        num_scalar_prefetch=0, grid=grid,
        in_specs=in_specs, out_specs=out_spec)

    # Explicit scoped-VMEM budget: double-buffered activation blocks plus
    # constants (x1 when single-buffered, x2 otherwise); capped below v7x's
    # 64 MiB physical VMEM, floored at the default 32 MiB.
    block_bytes = rows * (3 * E + S + E) * 4
    const_bytes = sum(int(c.size) * c.dtype.itemsize for c in const_args)
    need = 2 * block_bytes + (1 if single_buffer_consts else 2) * const_bytes
    vmem_limit = int(min(48 * 2**20, max(32 * 2**20, 4 * need)))

    extra = {"cost_estimate": cost} if with_cost else {}
    return pl.pallas_call(
        kernel,
        out_shape=out_shape,
        grid_spec=grid_spec,
        compiler_params=pltpu.CompilerParams(
            dimension_semantics=("parallel",),
            vmem_limit_bytes=vmem_limit),
        **extra)

  # Preferred build first; fall back only if this JAX/Mosaic version rejects
  # pipeline_mode=Buffered(1) or the head-batched relayouts.
  last_err = None
  for head_batched, single_buffer, with_cost in (
      (True, True, True), (True, False, True), (False, False, False)):
    try:
      out2 = build(head_batched, single_buffer, with_cost)(*call_args)
      jax.block_until_ready(out2)
      break
    except Exception as e:            # pragma: no cover - version-dependent
      last_err = e
  else:
    raise last_err

  return out2.reshape(B, S, E)


def reference_forward(query, key, value, pos,
                      wq, bq, wk, bk, wv, bv,
                      rpe, wqt, bqt, wout, bout, gamma, beta):
  """Pure-JAX mirror of the PyTorch forward (for verification)."""
  H, E, Dk = wq.shape
  Dv = wv.shape[2]
  B, S, _ = query.shape
  scaling = float(Dk) ** -0.5

  wq_flat = jnp.transpose(wq, (1, 0, 2)).reshape(E, H * Dk)
  wk_flat = jnp.transpose(wk, (1, 0, 2)).reshape(E, H * Dk)
  wv_flat = jnp.transpose(wv, (1, 0, 2)).reshape(E, H * Dv)
  bq_flat = bq.reshape(H * Dk)
  bk_flat = bk.reshape(H * Dk)
  bv_flat = bv.reshape(H * Dv)
  wout_flat = wout.reshape(H * Dv, E)
  rpe_lhd = jnp.transpose(rpe, (1, 0, 2))      # (L, H, Dv)

  q = (query @ wq_flat + bq_flat) * scaling
  k = key @ wk_flat + bk_flat
  v = value @ wv_flat + bv_flat
  q = q.reshape(B, S, H, Dk)
  k = k.reshape(B, S, H, Dk)
  v = v.reshape(B, S, H, Dv)

  attn = jnp.einsum('bqnd,bknd->bqkn', q, k)
  qrpe = jnp.einsum('bqnd,lnd->bqln', q, rpe_lhd)
  pos_e = jnp.broadcast_to(pos[..., None], (B, S, S, H))
  qrpe_g = jnp.take_along_axis(qrpe, pos_e, axis=2)
  attn = jax.nn.softmax(attn + qrpe_g, axis=-2)

  a = jnp.einsum('bqkn,bknd->bqnd', attn, v).reshape(B, S, H * Dv)
  out = a @ wout_flat + bout + (query @ wqt + bqt)
  mean = out.mean(-1, keepdims=True)
  var = ((out - mean) ** 2).mean(-1, keepdims=True)
  return (out - mean) / jnp.sqrt(var + 1e-6) * gamma + beta


if __name__ == "__main__":
  B, S, E, H = 2, 8, 32, 4
  Dk = Dv = E // H
  max_position = 16
  L = 2 * max_position

  root = jax.random.PRNGKey(0)
  ks = jax.random.split(root, 16)

  def xavier(k, shape, fan_in, fan_out):
    std = math.sqrt(2.0 / (fan_in + fan_out))
    return std * jax.random.normal(k, shape, dtype=jnp.float32)

  # Deterministic synthetic parameters (xavier-like). torch inits rpe/biases
  # to zero; small nonzero values exercise the gather / bias paths.
  wq = xavier(ks[0], (H, E, Dk), E, H * Dk)
  wk = xavier(ks[1], (H, E, Dk), E, H * Dk)
  wv = xavier(ks[2], (H, E, Dv), E, H * Dv)
  wqt = xavier(ks[3], (E, E), E, E)
  wout = xavier(ks[4], (H, Dv, E), H * Dv, E)
  bq = 0.02 * jax.random.normal(ks[5], (H, 1, Dk), dtype=jnp.float32)
  bk = 0.02 * jax.random.normal(ks[6], (H, 1, Dk), dtype=jnp.float32)
  bv = 0.02 * jax.random.normal(ks[7], (H, 1, Dv), dtype=jnp.float32)
  bqt = 0.02 * jax.random.normal(ks[8], (1, E), dtype=jnp.float32)
  bout = 0.02 * jax.random.normal(ks[9], (1, E), dtype=jnp.float32)
  rpe = 0.05 * jax.random.normal(ks[10], (H, L, Dv), dtype=jnp.float32)
  gamma = jnp.ones((1, E), dtype=jnp.float32)
  beta = jnp.zeros((1, E), dtype=jnp.float32)

  query = jax.random.normal(ks[11], (B, S, E), dtype=jnp.float32)
  key_in = jax.random.normal(ks[12], (B, S, E), dtype=jnp.float32)
  value = jax.random.normal(ks[13], (B, S, E), dtype=jnp.float32)
  pos = jax.random.randint(ks[14], (B, S, S), 0, L, dtype=jnp.int32)

  params = (wq, bq, wk, bk, wv, bv, rpe, wqt, bqt, wout, bout, gamma, beta)
  ref = reference_forward(query, key_in, value, pos, *params)

  # Strict check: f32 MXU operands, exact softmax divide.
  out_f32 = jax.block_until_ready(
      self_attention_forward(query, key_in, value, pos, *params,
                             mxu_dtype=jnp.float32))
  assert out_f32.shape == (B, S, E), out_f32.shape
  err_f32 = float(jnp.max(jnp.abs(out_f32 - ref)))
  assert err_f32 < 1e-2, f"f32 max abs err {err_f32}"

  # Default path: bf16 MXU operands (v6e/v7x MXU native), f32 accumulate.
  out_bf16 = jax.block_until_ready(
      self_attention_forward(query, key_in, value, pos, *params))
  assert out_bf16.shape == (B, S, E), out_bf16.shape
  err_bf16 = float(jnp.max(jnp.abs(out_bf16 - ref)))
  assert err_bf16 < 1.5e-1, f"bf16 max abs err {err_bf16}"

  print("KERNEL_OK")
</pallas_src>

<mosaic_0001>
module attributes {stable_mosaic.version = 11 : i64} {
  func.func @_self_attention_kernel(%arg0: i32, %arg1: memref<8x32xf32, #tpu.memory_space<vmem>>, %arg2: memref<8x32xf32, #tpu.memory_space<vmem>>, %arg3: memref<8x32xf32, #tpu.memory_space<vmem>>, %arg4: memref<8x8xi32, #tpu.memory_space<vmem>>, %arg5: memref<32x64xf32, #tpu.memory_space<vmem>>, %arg6: memref<1x64xf32, #tpu.memory_space<vmem>>, %arg7: memref<32x32xf32, #tpu.memory_space<vmem>>, %arg8: memref<1x32xf32, #tpu.memory_space<vmem>>, %arg9: memref<32x32xf32, #tpu.memory_space<vmem>>, %arg10: memref<1x32xf32, #tpu.memory_space<vmem>>, %arg11: memref<32x128xf32, #tpu.memory_space<vmem>>, %arg12: memref<32x32xf32, #tpu.memory_space<vmem>>, %arg13: memref<1x32xf32, #tpu.memory_space<vmem>>, %arg14: memref<1x32xf32, #tpu.memory_space<vmem>>, %arg15: memref<1x32xf32, #tpu.memory_space<vmem>>, %arg16: memref<8x32xf32, #tpu.memory_space<vmem>>) attributes {dimension_semantics = [#tpu.dimension_semantics<parallel>], iteration_bounds = array<i64: 2>, scalar_prefetch = 0 : i64, scratch_operands = 0 : i64, tpu.core_type = #tpu.core_type<tc>, window_params = [{transform_indices = @transform_0, window_bounds = array<i64: 8, 32>}, {transform_indices = @transform_1, window_bounds = array<i64: 8, 32>}, {transform_indices = @transform_2, window_bounds = array<i64: 8, 32>}, {transform_indices = @transform_3, window_bounds = array<i64: 8, 8>}, {pipeline_mode = #tpu.pipeline_mode<synchronous>, transform_indices = @transform_4, window_bounds = array<i64: 32, 64>}, {pipeline_mode = #tpu.pipeline_mode<synchronous>, transform_indices = @transform_5, window_bounds = array<i64: 1, 64>}, {pipeline_mode = #tpu.pipeline_mode<synchronous>, transform_indices = @transform_6, window_bounds = array<i64: 32, 32>}, {pipeline_mode = #tpu.pipeline_mode<synchronous>, transform_indices = @transform_7, window_bounds = array<i64: 1, 32>}, {pipeline_mode = #tpu.pipeline_mode<synchronous>, transform_indices = @transform_8, window_bounds = array<i64: 32, 32>}, {pipeline_mode = #tpu.pipeline_mode<synchronous>, transform_indices = @transform_9, window_bounds = array<i64: 1, 32>}, {pipeline_mode = #tpu.pipeline_mode<synchronous>, transform_indices = @transform_10, window_bounds = array<i64: 32, 128>}, {pipeline_mode = #tpu.pipeline_mode<synchronous>, transform_indices = @transform_11, window_bounds = array<i64: 32, 32>}, {pipeline_mode = #tpu.pipeline_mode<synchronous>, transform_indices = @transform_12, window_bounds = array<i64: 1, 32>}, {pipeline_mode = #tpu.pipeline_mode<synchronous>, transform_indices = @transform_13, window_bounds = array<i64: 1, 32>}, {pipeline_mode = #tpu.pipeline_mode<synchronous>, transform_indices = @transform_14, window_bounds = array<i64: 1, 32>}, {transform_indices = @transform_15, window_bounds = array<i64: 8, 32>}]} {
    %c0 = arith.constant 0 : index
    %c0_0 = arith.constant 0 : index
    %0 = vector.load %arg1[%c0, %c0_0] : memref<8x32xf32, #tpu.memory_space<vmem>>, vector<8x32xf32>
    %c0_1 = arith.constant 0 : index
    %c0_2 = arith.constant 0 : index
    %1 = vector.load %arg2[%c0_1, %c0_2] : memref<8x32xf32, #tpu.memory_space<vmem>>, vector<8x32xf32>
    %c0_3 = arith.constant 0 : index
    %c0_4 = arith.constant 0 : index
    %2 = vector.load %arg3[%c0_3, %c0_4] : memref<8x32xf32, #tpu.memory_space<vmem>>, vector<8x32xf32>
    %c0_5 = arith.constant 0 : index
    %c0_6 = arith.constant 0 : index
    %3 = vector.load %arg5[%c0_5, %c0_6] : memref<32x64xf32, #tpu.memory_space<vmem>>, vector<32x64xf32>
    %cst = arith.constant dense<0.000000e+00> : vector<8x64xf32>
    %4 = tpu.matmul %0, %3, %cst {dimension_numbers = #tpu.dot_dimension_numbers<[1], [0], [0], [1], [0, 0, 1, 1], [], []>} : vector<8x32xf32>, vector<32x64xf32>, vector<8x64xf32> -> vector<8x64xf32>
    %c0_7 = arith.constant 0 : index
    %c0_8 = arith.constant 0 : index
    %5 = vector.load %arg6[%c0_7, %c0_8] : memref<1x64xf32, #tpu.memory_space<vmem>>, vector<1x64xf32>
    %6 = vector.broadcast %5 : vector<1x64xf32> to vector<8x64xf32>
    %7 = arith.addf %4, %6 : vector<8x64xf32>
    %8 = vector.extract_strided_slice %7 {offsets = [0, 0], sizes = [8, 32], strides = [1, 1]} : vector<8x64xf32> to vector<8x32xf32>
    %9 = vector.extract_strided_slice %7 {offsets = [0, 32], sizes = [8, 32], strides = [1, 1]} : vector<8x64xf32> to vector<8x32xf32>
    %c0_9 = arith.constant 0 : index
    %c0_10 = arith.constant 0 : index
    %10 = vector.load %arg13[%c0_9, %c0_10] : memref<1x32xf32, #tpu.memory_space<vmem>>, vector<1x32xf32>
    %11 = vector.broadcast %10 : vector<1x32xf32> to vector<8x32xf32>
    %12 = arith.addf %9, %11 : vector<8x32xf32>
    %c0_11 = arith.constant 0 : index
    %c0_12 = arith.constant 0 : index
    %13 = vector.load %arg7[%c0_11, %c0_12] : memref<32x32xf32, #tpu.memory_space<vmem>>, vector<32x32xf32>
    %cst_13 = arith.constant dense<0.000000e+00> : vector<8x32xf32>
    %14 = tpu.matmul %1, %13, %cst_13 {dimension_numbers = #tpu.dot_dimension_numbers<[1], [0], [0], [1], [0, 0, 1, 1], [], []>} : vector<8x32xf32>, vector<32x32xf32>, vector<8x32xf32> -> vector<8x32xf32>
    %c0_14 = arith.constant 0 : index
    %c0_15 = arith.constant 0 : index
    %15 = vector.load %arg8[%c0_14, %c0_15] : memref<1x32xf32, #tpu.memory_space<vmem>>, vector<1x32xf32>
    %16 = vector.broadcast %15 : vector<1x32xf32> to vector<8x32xf32>
    %17 = arith.addf %14, %16 : vector<8x32xf32>
    %c0_16 = arith.constant 0 : index
    %c0_17 = arith.constant 0 : index
    %18 = vector.load %arg9[%c0_16, %c0_17] : memref<32x32xf32, #tpu.memory_space<vmem>>, vector<32x32xf32>
    %cst_18 = arith.constant dense<0.000000e+00> : vector<8x32xf32>
    %19 = tpu.matmul %2, %18, %cst_18 {dimension_numbers = #tpu.dot_dimension_numbers<[1], [0], [0], [1], [0, 0, 1, 1], [], []>} : vector<8x32xf32>, vector<32x32xf32>, vector<8x32xf32> -> vector<8x32xf32>
    %c0_19 = arith.constant 0 : index
    %c0_20 = arith.constant 0 : index
    %20 = vector.load %arg10[%c0_19, %c0_20] : memref<1x32xf32, #tpu.memory_space<vmem>>, vector<1x32xf32>
    %21 = vector.broadcast %20 : vector<1x32xf32> to vector<8x32xf32>
    %22 = arith.addf %19, %21 : vector<8x32xf32>
    %c0_21 = arith.constant 0 : index
    %c0_22 = arith.constant 0 : index
    %23 = vector.load %arg11[%c0_21, %c0_22] : memref<32x128xf32, #tpu.memory_space<vmem>>, vector<32x128xf32>
    %cst_23 = arith.constant dense<0.000000e+00> : vector<8x128xf32>
    %24 = tpu.matmul %8, %23, %cst_23 {dimension_numbers = #tpu.dot_dimension_numbers<[1], [0], [0], [1], [0, 0, 1, 1], [], []>} : vector<8x32xf32>, vector<32x128xf32>, vector<8x128xf32> -> vector<8x128xf32>
    %25 = vector.shape_cast %24 : vector<8x128xf32> to vector<8x4x32xf32>
    %c0_24 = arith.constant 0 : index
    %c0_25 = arith.constant 0 : index
    %26 = vector.load %arg4[%c0_24, %c0_25] : memref<8x8xi32, #tpu.memory_space<vmem>>, vector<8x8xi32>
    %27 = tpu.iota {dimensions = array<i32: 2>} : vector<8x8x32xi32>
    %28 = vector.shape_cast %26 : vector<8x8xi32> to vector<8x8x1xi32>
    %29 = vector.broadcast %28 : vector<8x8x1xi32> to vector<8x8x32xi32>
    %30 = arith.cmpi eq, %29, %27 : vector<8x8x32xi32>
    %31 = arith.extui %30 : vector<8x8x32xi1> to vector<8x8x32xi32>
    %32 = arith.sitofp %31 : vector<8x8x32xi32> to vector<8x8x32xf32>
    "tpu.trace_start"() <{level = 10 : i32, message = "rhl,rkl->rhk"}> : () -> ()
    %cst_26 = arith.constant dense<0.000000e+00> : vector<8x4x8xf32>
    %33 = tpu.matmul %25, %32, %cst_26 {dimension_numbers = #tpu.dot_dimension_numbers<[2], [2], [1], [1], [0, 0, 0, 1, 1, 1], [0], [0]>} : vector<8x4x32xf32>, vector<8x8x32xf32>, vector<8x4x8xf32> -> vector<8x4x8xf32>
    "tpu.trace_stop"() : () -> ()
    %34 = vector.shape_cast %8 : vector<8x32xf32> to vector<1x8x4x8xf32>
    %35 = tpu.transpose %34, [0, 2, 1, 3] : vector<1x8x4x8xf32> -> vector<1x4x8x8xf32>
    %36 = vector.shape_cast %35 : vector<1x4x8x8xf32> to vector<4x8x8xf32>
    %37 = vector.shape_cast %17 : vector<8x32xf32> to vector<1x8x4x8xf32>
    %38 = tpu.transpose %37, [0, 2, 1, 3] : vector<1x8x4x8xf32> -> vector<1x4x8x8xf32>
    %39 = vector.shape_cast %38 : vector<1x4x8x8xf32> to vector<4x8x8xf32>
    %40 = vector.shape_cast %22 : vector<8x32xf32> to vector<1x8x4x8xf32>
    %41 = tpu.transpose %40, [0, 2, 1, 3] : vector<1x8x4x8xf32> -> vector<1x4x8x8xf32>
    %42 = vector.shape_cast %41 : vector<1x4x8x8xf32> to vector<4x8x8xf32>
    %43 = vector.shape_cast %33 : vector<8x4x8xf32> to vector<1x8x4x8xf32>
    %44 = tpu.transpose %43, [0, 2, 1, 3] : vector<1x8x4x8xf32> -> vector<1x4x8x8xf32>
    %45 = vector.shape_cast %44 : vector<1x4x8x8xf32> to vector<4x8x8xf32>
    "tpu.trace_start"() <{level = 10 : i32, message = "gqd,gkd->gqk"}> : () -> ()
    %cst_27 = arith.constant dense<0.000000e+00> : vector<4x8x8xf32>
    %46 = tpu.matmul %36, %39, %cst_27 {dimension_numbers = #tpu.dot_dimension_numbers<[2], [2], [1], [1], [0, 0, 0, 1, 1, 1], [0], [0]>} : vector<4x8x8xf32>, vector<4x8x8xf32>, vector<4x8x8xf32> -> vector<4x8x8xf32>
    "tpu.trace_stop"() : () -> ()
    %47 = arith.addf %46, %45 : vector<4x8x8xf32>
    %cst_28 = arith.constant dense<0xFF800000> : vector<4x8xf32>
    %48 = vector.multi_reduction <maximumf>, %47, %cst_28 [2] : vector<4x8x8xf32> to vector<4x8xf32>
    %49 = vector.shape_cast %48 : vector<4x8xf32> to vector<4x8x1xf32>
    %50 = vector.broadcast %49 : vector<4x8x1xf32> to vector<4x8x8xf32>
    %51 = arith.subf %47, %50 : vector<4x8x8xf32>
    %52 = math.exp %51 : vector<4x8x8xf32>
    %cst_29 = arith.constant dense<0.000000e+00> : vector<4x8xf32>
    %53 = vector.multi_reduction <add>, %52, %cst_29 [2] : vector<4x8x8xf32> to vector<4x8xf32>
    %54 = vector.shape_cast %53 : vector<4x8xf32> to vector<4x8x1xf32>
    %55 = vector.broadcast %54 : vector<4x8x1xf32> to vector<4x8x8xf32>
    %56 = arith.divf %52, %55 : vector<4x8x8xf32>
    "tpu.trace_start"() <{level = 10 : i32, message = "gqk,gkd->gqd"}> : () -> ()
    %cst_30 = arith.constant dense<0.000000e+00> : vector<4x8x8xf32>
    %57 = tpu.matmul %56, %42, %cst_30 {dimension_numbers = #tpu.dot_dimension_numbers<[2], [1], [1], [2], [0, 0, 0, 1, 1, 2], [0], [0]>} : vector<4x8x8xf32>, vector<4x8x8xf32>, vector<4x8x8xf32> -> vector<4x8x8xf32>
    "tpu.trace_stop"() : () -> ()
    %58 = vector.shape_cast %57 : vector<4x8x8xf32> to vector<1x4x8x8xf32>
    %59 = tpu.transpose %58, [0, 2, 1, 3] : vector<1x4x8x8xf32> -> vector<1x8x4x8xf32>
    %60 = vector.shape_cast %59 : vector<1x8x4x8xf32> to vector<8x32xf32>
    %c0_31 = arith.constant 0 : index
    %c0_32 = arith.constant 0 : index
    %61 = vector.load %arg12[%c0_31, %c0_32] : memref<32x32xf32, #tpu.memory_space<vmem>>, vector<32x32xf32>
    %cst_33 = arith.constant dense<0.000000e+00> : vector<8x32xf32>
    %62 = tpu.matmul %60, %61, %cst_33 {dimension_numbers = #tpu.dot_dimension_numbers<[1], [0], [0], [1], [0, 0, 1, 1], [], []>} : vector<8x32xf32>, vector<32x32xf32>, vector<8x32xf32> -> vector<8x32xf32>
    %63 = arith.addf %12, %62 : vector<8x32xf32>
    %cst_34 = arith.constant dense<0.000000e+00> : vector<8xf32>
    %64 = vector.multi_reduction <add>, %63, %cst_34 [1] : vector<8x32xf32> to vector<8xf32>
    %65 = vector.shape_cast %64 : vector<8xf32> to vector<8x1xf32>
    %cst_35 = arith.constant 3.200000e+01 : f32
    %66 = vector.broadcast %cst_35 : f32 to vector<8x1xf32>
    %67 = arith.divf %65, %66 : vector<8x1xf32>
    %68 = vector.broadcast %67 : vector<8x1xf32> to vector<8x32xf32>
    %69 = arith.subf %63, %68 : vector<8x32xf32>
    %70 = arith.mulf %69, %69 : vector<8x32xf32>
    %cst_36 = arith.constant dense<0.000000e+00> : vector<8xf32>
    %71 = vector.multi_reduction <add>, %70, %cst_36 [1] : vector<8x32xf32> to vector<8xf32>
    %72 = vector.shape_cast %71 : vector<8xf32> to vector<8x1xf32>
    %cst_37 = arith.constant 3.200000e+01 : f32
    %73 = vector.broadcast %cst_37 : f32 to vector<8x1xf32>
    %74 = arith.divf %72, %73 : vector<8x1xf32>
    %cst_38 = arith.constant 9.99999997E-7 : f32
    %75 = vector.broadcast %cst_38 : f32 to vector<8x1xf32>
    %76 = arith.addf %74, %75 : vector<8x1xf32>
    %77 = math.rsqrt %76 : vector<8x1xf32>
    %78 = vector.broadcast %77 : vector<8x1xf32> to vector<8x32xf32>
    %79 = arith.mulf %69, %78 : vector<8x32xf32>
    %c0_39 = arith.constant 0 : index
    %c0_40 = arith.constant 0 : index
    %80 = vector.load %arg14[%c0_39, %c0_40] : memref<1x32xf32, #tpu.memory_space<vmem>>, vector<1x32xf32>
    %81 = vector.broadcast %80 : vector<1x32xf32> to vector<8x32xf32>
    %82 = arith.mulf %79, %81 : vector<8x32xf32>
    %c0_41 = arith.constant 0 : index
    %c0_42 = arith.constant 0 : index
    %83 = vector.load %arg15[%c0_41, %c0_42] : memref<1x32xf32, #tpu.memory_space<vmem>>, vector<1x32xf32>
    %84 = vector.broadcast %83 : vector<1x32xf32> to vector<8x32xf32>
    %85 = arith.addf %82, %84 : vector<8x32xf32>
    %c0_43 = arith.constant 0 : index
    %c0_44 = arith.constant 0 : index
    %86 = vector.load %arg16[%c0_43, %c0_44] : memref<8x32xf32, #tpu.memory_space<vmem>>, vector<8x32xf32>
    tpu.vector_store %arg16[%c0_43, %c0_44], %85 {strides = array<i32>} : memref<8x32xf32, #tpu.memory_space<vmem>>, vector<8x32xf32>,
    return
  }
  func.func @transform_0(%arg0: i32) -> (i32, i32) {
    %c0_i32 = arith.constant 0 : i32
    %c0_i32_0 = arith.constant 0 : i32
    return %arg0, %c0_i32 : i32, i32
  }
  func.func @transform_1(%arg0: i32) -> (i32, i32) {
    %c0_i32 = arith.constant 0 : i32
    %c0_i32_0 = arith.constant 0 : i32
    return %arg0, %c0_i32 : i32, i32
  }
  func.func @transform_2(%arg0: i32) -> (i32, i32) {
    %c0_i32 = arith.constant 0 : i32
    %c0_i32_0 = arith.constant 0 : i32
    return %arg0, %c0_i32 : i32, i32
  }
  func.func @transform_3(%arg0: i32) -> (i32, i32) {
    %c0_i32 = arith.constant 0 : i32
    %c0_i32_0 = arith.constant 0 : i32
    return %arg0, %c0_i32 : i32, i32
  }
  func.func @transform_4(%arg0: i32) -> (i32, i32) {
    %c0_i32 = arith.constant 0 : i32
    %c0_i32_0 = arith.constant 0 : i32
    %c0_i32_1 = arith.constant 0 : i32
    return %c0_i32, %c0_i32_0 : i32, i32
  }
  func.func @transform_5(%arg0: i32) -> (i32, i32) {
    %c0_i32 = arith.constant 0 : i32
    %c0_i32_0 = arith.constant 0 : i32
    %c0_i32_1 = arith.constant 0 : i32
    return %c0_i32, %c0_i32_0 : i32, i32
  }
  func.func @transform_6(%arg0: i32) -> (i32, i32) {
    %c0_i32 = arith.constant 0 : i32
    %c0_i32_0 = arith.constant 0 : i32
    %c0_i32_1 = arith.constant 0 : i32
    return %c0_i32, %c0_i32_0 : i32, i32
  }
  func.func @transform_7(%arg0: i32) -> (i32, i32) {
    %c0_i32 = arith.constant 0 : i32
    %c0_i32_0 = arith.constant 0 : i32
    %c0_i32_1 = arith.constant 0 : i32
    return %c0_i32, %c0_i32_0 : i32, i32
  }
  func.func @transform_8(%arg0: i32) -> (i32, i32) {
    %c0_i32 = arith.constant 0 : i32
    %c0_i32_0 = arith.constant 0 : i32
    %c0_i32_1 = arith.constant 0 : i32
    return %c0_i32, %c0_i32_0 : i32, i32
  }
  func.func @transform_9(%arg0: i32) -> (i32, i32) {
    %c0_i32 = arith.constant 0 : i32
    %c0_i32_0 = arith.constant 0 : i32
    %c0_i32_1 = arith.constant 0 : i32
    return %c0_i32, %c0_i32_0 : i32, i32
  }
  func.func @transform_10(%arg0: i32) -> (i32, i32) {
    %c0_i32 = arith.constant 0 : i32
    %c0_i32_0 = arith.constant 0 : i32
    %c0_i32_1 = arith.constant 0 : i32
    return %c0_i32, %c0_i32_0 : i32, i32
  }
  func.func @transform_11(%arg0: i32) -> (i32, i32) {
    %c0_i32 = arith.constant 0 : i32
    %c0_i32_0 = arith.constant 0 : i32
    %c0_i32_1 = arith.constant 0 : i32
    return %c0_i32, %c0_i32_0 : i32, i32
  }
  func.func @transform_12(%arg0: i32) -> (i32, i32) {
    %c0_i32 = arith.constant 0 : i32
    %c0_i32_0 = arith.constant 0 : i32
    %c0_i32_1 = arith.constant 0 : i32
    return %c0_i32, %c0_i32_0 : i32, i32
  }
  func.func @transform_13(%arg0: i32) -> (i32, i32) {
    %c0_i32 = arith.constant 0 : i32
    %c0_i32_0 = arith.constant 0 : i32
    %c0_i32_1 = arith.constant 0 : i32
    return %c0_i32, %c0_i32_0 : i32, i32
  }
  func.func @transform_14(%arg0: i32) -> (i32, i32) {
    %c0_i32 = arith.constant 0 : i32
    %c0_i32_0 = arith.constant 0 : i32
    %c0_i32_1 = arith.constant 0 : i32
    return %c0_i32, %c0_i32_0 : i32, i32
  }
  func.func @transform_15(%arg0: i32) -> (i32, i32) {
    %c0_i32 = arith.constant 0 : i32
    %c0_i32_0 = arith.constant 0 : i32
    return %arg0, %c0_i32 : i32, i32
  }
}

module attributes {stable_mosaic.version = 11 : i64} {
  func.func @_self_attention_kernel(%arg0: i32, %arg1: memref<8x32xf32, #tpu.memory_space<vmem>>, %arg2: memref<8x32xf32, #tpu.memory_space<vmem>>, %arg3: memref<8x32xf32, #tpu.memory_space<vmem>>, %arg4: memref<8x8xi32, #tpu.memory_space<vmem>>, %arg5: memref<32x64xf32, #tpu.memory_space<vmem>>, %arg6: memref<1x64xf32, #tpu.memory_space<vmem>>, %arg7: memref<32x32xf32, #tpu.memory_space<vmem>>, %arg8: memref<1x32xf32, #tpu.memory_space<vmem>>, %arg9: memref<32x32xf32, #tpu.memory_space<vmem>>, %arg10: memref<1x32xf32, #tpu.memory_space<vmem>>, %arg11: memref<32x128xf32, #tpu.memory_space<vmem>>, %arg12: memref<32x32xf32, #tpu.memory_space<vmem>>, %arg13: memref<1x32xf32, #tpu.memory_space<vmem>>, %arg14: memref<1x32xf32, #tpu.memory_space<vmem>>, %arg15: memref<1x32xf32, #tpu.memory_space<vmem>>, %arg16: memref<8x32xf32, #tpu.memory_space<vmem>>) attributes {dimension_semantics = [#tpu.dimension_semantics<parallel>], iteration_bounds = array<i64: 2>, scalar_prefetch = 0 : i64, scratch_operands = 0 : i64, tpu.core_type = #tpu.core_type<tc>, window_params = [{transform_indices = @transform_0, window_bounds = array<i64: 8, 32>}, {transform_indices = @transform_1, window_bounds = array<i64: 8, 32>}, {transform_indices = @transform_2, window_bounds = array<i64: 8, 32>}, {transform_indices = @transform_3, window_bounds = array<i64: 8, 8>}, {pipeline_mode = #tpu.pipeline_mode<synchronous>, transform_indices = @transform_4, window_bounds = array<i64: 32, 64>}, {pipeline_mode = #tpu.pipeline_mode<synchronous>, transform_indices = @transform_5, window_bounds = array<i64: 1, 64>}, {pipeline_mode = #tpu.pipeline_mode<synchronous>, transform_indices = @transform_6, window_bounds = array<i64: 32, 32>}, {pipeline_mode = #tpu.pipeline_mode<synchronous>, transform_indices = @transform_7, window_bounds = array<i64: 1, 32>}, {pipeline_mode = #tpu.pipeline_mode<synchronous>, transform_indices = @transform_8, window_bounds = array<i64: 32, 32>}, {pipeline_mode = #tpu.pipeline_mode<synchronous>, transform_indices = @transform_9, window_bounds = array<i64: 1, 32>}, {pipeline_mode = #tpu.pipeline_mode<synchronous>, transform_indices = @transform_10, window_bounds = array<i64: 32, 128>}, {pipeline_mode = #tpu.pipeline_mode<synchronous>, transform_indices = @transform_11, window_bounds = array<i64: 32, 32>}, {pipeline_mode = #tpu.pipeline_mode<synchronous>, transform_indices = @transform_12, window_bounds = array<i64: 1, 32>}, {pipeline_mode = #tpu.pipeline_mode<synchronous>, transform_indices = @transform_13, window_bounds = array<i64: 1, 32>}, {pipeline_mode = #tpu.pipeline_mode<synchronous>, transform_indices = @transform_14, window_bounds = array<i64: 1, 32>}, {transform_indices = @transform_15, window_bounds = array<i64: 8, 32>}]} {
    %c0 = arith.constant 0 : index
    %c0_0 = arith.constant 0 : index
    %0 = vector.load %arg1[%c0, %c0_0] : memref<8x32xf32, #tpu.memory_space<vmem>>, vector<8x32xf32>
    %c0_1 = arith.constant 0 : index
    %c0_2 = arith.constant 0 : index
    %1 = vector.load %arg2[%c0_1, %c0_2] : memref<8x32xf32, #tpu.memory_space<vmem>>, vector<8x32xf32>
    %c0_3 = arith.constant 0 : index
    %c0_4 = arith.constant 0 : index
    %2 = vector.load %arg3[%c0_3, %c0_4] : memref<8x32xf32, #tpu.memory_space<vmem>>, vector<8x32xf32>
    %c0_5 = arith.constant 0 : index
    %c0_6 = arith.constant 0 : index
    %3 = vector.load %arg5[%c0_5, %c0_6] : memref<32x64xf32, #tpu.memory_space<vmem>>, vector<32x64xf32>
    %cst = arith.constant dense<0.000000e+00> : vector<8x64xf32>
    %4 = tpu.matmul %0, %3, %cst {dimension_numbers = #tpu.dot_dimension_numbers<[1], [0], [0], [1], [0, 0, 1, 1], [], []>} : vector<8x32xf32>, vector<32x64xf32>, vector<8x64xf32> -> vector<8x64xf32>
    %c0_7 = arith.constant 0 : index
    %c0_8 = arith.constant 0 : index
    %5 = vector.load %arg6[%c0_7, %c0_8] : memref<1x64xf32, #tpu.memory_space<vmem>>, vector<1x64xf32>
    %6 = vector.broadcast %5 : vector<1x64xf32> to vector<8x64xf32>
    %7 = arith.addf %4, %6 : vector<8x64xf32>
    %8 = vector.extract_strided_slice %7 {offsets = [0, 0], sizes = [8, 32], strides = [1, 1]} : vector<8x64xf32> to vector<8x32xf32>
    %9 = vector.extract_strided_slice %7 {offsets = [0, 32], sizes = [8, 32], strides = [1, 1]} : vector<8x64xf32> to vector<8x32xf32>
    %c0_9 = arith.constant 0 : index
    %c0_10 = arith.constant 0 : index
    %10 = vector.load %arg13[%c0_9, %c0_10] : memref<1x32xf32, #tpu.memory_space<vmem>>, vector<1x32xf32>
    %11 = vector.broadcast %10 : vector<1x32xf32> to vector<8x32xf32>
    %12 = arith.addf %9, %11 : vector<8x32xf32>
    %c0_11 = arith.constant 0 : index
    %c0_12 = arith.constant 0 : index
    %13 = vector.load %arg7[%c0_11, %c0_12] : memref<32x32xf32, #tpu.memory_space<vmem>>, vector<32x32xf32>
    %cst_13 = arith.constant dense<0.000000e+00> : vector<8x32xf32>
    %14 = tpu.matmul %1, %13, %cst_13 {dimension_numbers = #tpu.dot_dimension_numbers<[1], [0], [0], [1], [0, 0, 1, 1], [], []>} : vector<8x32xf32>, vector<32x32xf32>, vector<8x32xf32> -> vector<8x32xf32>
    %c0_14 = arith.constant 0 : index
    %c0_15 = arith.constant 0 : index
    %15 = vector.load %arg8[%c0_14, %c0_15] : memref<1x32xf32, #tpu.memory_space<vmem>>, vector<1x32xf32>
    %16 = vector.broadcast %15 : vector<1x32xf32> to vector<8x32xf32>
    %17 = arith.addf %14, %16 : vector<8x32xf32>
    %c0_16 = arith.constant 0 : index
    %c0_17 = arith.constant 0 : index
    %18 = vector.load %arg9[%c0_16, %c0_17] : memref<32x32xf32, #tpu.memory_space<vmem>>, vector<32x32xf32>
    %cst_18 = arith.constant dense<0.000000e+00> : vector<8x32xf32>
    %19 = tpu.matmul %2, %18, %cst_18 {dimension_numbers = #tpu.dot_dimension_numbers<[1], [0], [0], [1], [0, 0, 1, 1], [], []>} : vector<8x32xf32>, vector<32x32xf32>, vector<8x32xf32> -> vector<8x32xf32>
    %c0_19 = arith.constant 0 : index
    %c0_20 = arith.constant 0 : index
    %20 = vector.load %arg10[%c0_19, %c0_20] : memref<1x32xf32, #tpu.memory_space<vmem>>, vector<1x32xf32>
    %21 = vector.broadcast %20 : vector<1x32xf32> to vector<8x32xf32>
    %22 = arith.addf %19, %21 : vector<8x32xf32>
    %c0_21 = arith.constant 0 : index
    %c0_22 = arith.constant 0 : index
    %23 = vector.load %arg11[%c0_21, %c0_22] : memref<32x128xf32, #tpu.memory_space<vmem>>, vector<32x128xf32>
    %cst_23 = arith.constant dense<0.000000e+00> : vector<8x128xf32>
    %24 = tpu.matmul %8, %23, %cst_23 {dimension_numbers = #tpu.dot_dimension_numbers<[1], [0], [0], [1], [0, 0, 1, 1], [], []>} : vector<8x32xf32>, vector<32x128xf32>, vector<8x128xf32> -> vector<8x128xf32>
    %25 = vector.shape_cast %24 : vector<8x128xf32> to vector<8x4x32xf32>
    %c0_24 = arith.constant 0 : index
    %c0_25 = arith.constant 0 : index
    %26 = vector.load %arg4[%c0_24, %c0_25] : memref<8x8xi32, #tpu.memory_space<vmem>>, vector<8x8xi32>
    %27 = tpu.iota {dimensions = array<i32: 2>} : vector<8x8x32xi32>
    %28 = vector.shape_cast %26 : vector<8x8xi32> to vector<8x8x1xi32>
    %29 = vector.broadcast %28 : vector<8x8x1xi32> to vector<8x8x32xi32>
    %30 = arith.cmpi eq, %29, %27 : vector<8x8x32xi32>
    %31 = arith.extui %30 : vector<8x8x32xi1> to vector<8x8x32xi32>
    %32 = arith.sitofp %31 : vector<8x8x32xi32> to vector<8x8x32xf32>
    "tpu.trace_start"() <{level = 10 : i32, message = "rhl,rkl->rhk"}> : () -> ()
    %cst_26 = arith.constant dense<0.000000e+00> : vector<8x4x8xf32>
    %33 = tpu.matmul %25, %32, %cst_26 {dimension_numbers = #tpu.dot_dimension_numbers<[2], [2], [1], [1], [0, 0, 0, 1, 1, 1], [0], [0]>} : vector<8x4x32xf32>, vector<8x8x32xf32>, vector<8x4x8xf32> -> vector<8x4x8xf32>
    "tpu.trace_stop"() : () -> ()
    %34 = vector.shape_cast %8 : vector<8x32xf32> to vector<1x8x4x8xf32>
    %35 = tpu.transpose %34, [0, 2, 1, 3] : vector<1x8x4x8xf32> -> vector<1x4x8x8xf32>
    %36 = vector.shape_cast %35 : vector<1x4x8x8xf32> to vector<4x8x8xf32>
    %37 = vector.shape_cast %17 : vector<8x32xf32> to vector<1x8x4x8xf32>
    %38 = tpu.transpose %37, [0, 2, 1, 3] : vector<1x8x4x8xf32> -> vector<1x4x8x8xf32>
    %39 = vector.shape_cast %38 : vector<1x4x8x8xf32> to vector<4x8x8xf32>
    %40 = vector.shape_cast %22 : vector<8x32xf32> to vector<1x8x4x8xf32>
    %41 = tpu.transpose %40, [0, 2, 1, 3] : vector<1x8x4x8xf32> -> vector<1x4x8x8xf32>
    %42 = vector.shape_cast %41 : vector<1x4x8x8xf32> to vector<4x8x8xf32>
    %43 = vector.shape_cast %33 : vector<8x4x8xf32> to vector<1x8x4x8xf32>
    %44 = tpu.transpose %43, [0, 2, 1, 3] : vector<1x8x4x8xf32> -> vector<1x4x8x8xf32>
    %45 = vector.shape_cast %44 : vector<1x4x8x8xf32> to vector<4x8x8xf32>
    "tpu.trace_start"() <{level = 10 : i32, message = "gqd,gkd->gqk"}> : () -> ()
    %cst_27 = arith.constant dense<0.000000e+00> : vector<4x8x8xf32>
    %46 = tpu.matmul %36, %39, %cst_27 {dimension_numbers = #tpu.dot_dimension_numbers<[2], [2], [1], [1], [0, 0, 0, 1, 1, 1], [0], [0]>} : vector<4x8x8xf32>, vector<4x8x8xf32>, vector<4x8x8xf32> -> vector<4x8x8xf32>
    "tpu.trace_stop"() : () -> ()
    %47 = arith.addf %46, %45 : vector<4x8x8xf32>
    %cst_28 = arith.constant dense<0xFF800000> : vector<4x8xf32>
    %48 = vector.multi_reduction <maximumf>, %47, %cst_28 [2] : vector<4x8x8xf32> to vector<4x8xf32>
    %49 = vector.shape_cast %48 : vector<4x8xf32> to vector<4x8x1xf32>
    %50 = vector.broadcast %49 : vector<4x8x1xf32> to vector<4x8x8xf32>
    %51 = arith.subf %47, %50 : vector<4x8x8xf32>
    %52 = math.exp %51 : vector<4x8x8xf32>
    %cst_29 = arith.constant dense<0.000000e+00> : vector<4x8xf32>
    %53 = vector.multi_reduction <add>, %52, %cst_29 [2] : vector<4x8x8xf32> to vector<4x8xf32>
    %54 = vector.shape_cast %53 : vector<4x8xf32> to vector<4x8x1xf32>
    %55 = vector.broadcast %54 : vector<4x8x1xf32> to vector<4x8x8xf32>
    %56 = arith.divf %52, %55 : vector<4x8x8xf32>
    "tpu.trace_start"() <{level = 10 : i32, message = "gqk,gkd->gqd"}> : () -> ()
    %cst_30 = arith.constant dense<0.000000e+00> : vector<4x8x8xf32>
    %57 = tpu.matmul %56, %42, %cst_30 {dimension_numbers = #tpu.dot_dimension_numbers<[2], [1], [1], [2], [0, 0, 0, 1, 1, 2], [0], [0]>} : vector<4x8x8xf32>, vector<4x8x8xf32>, vector<4x8x8xf32> -> vector<4x8x8xf32>
    "tpu.trace_stop"() : () -> ()
    %58 = vector.shape_cast %57 : vector<4x8x8xf32> to vector<1x4x8x8xf32>
    %59 = tpu.transpose %58, [0, 2, 1, 3] : vector<1x4x8x8xf32> -> vector<1x8x4x8xf32>
    %60 = vector.shape_cast %59 : vector<1x8x4x8xf32> to vector<8x32xf32>
    %c0_31 = arith.constant 0 : index
    %c0_32 = arith.constant 0 : index
    %61 = vector.load %arg12[%c0_31, %c0_32] : memref<32x32xf32, #tpu.memory_space<vmem>>, vector<32x32xf32>
    %cst_33 = arith.constant dense<0.000000e+00> : vector<8x32xf32>
    %62 = tpu.matmul %60, %61, %cst_33 {dimension_numbers = #tpu.dot_dimension_numbers<[1], [0], [0], [1], [0, 0, 1, 1], [], []>} : vector<8x32xf32>, vector<32x32xf32>, vector<8x32xf32> -> vector<8x32xf32>
    %63 = arith.addf %12, %62 : vector<8x32xf32>
    %cst_34 = arith.constant dense<0.000000e+00> : vector<8xf32>
    %64 = vector.multi_reduction <add>, %63, %cst_34 [1] : vector<8x32xf32> to vector<8xf32>
    %65 = vector.shape_cast %64 : vector<8xf32> to vector<8x1xf32>
    %cst_35 = arith.constant 3.200000e+01 : f32
    %66 = vector.broadcast %cst_35 : f32 to vector<8x1xf32>
    %67 = arith.divf %65, %66 : vector<8x1xf32>
    %68 = vector.broadcast %67 : vector<8x1xf32> to vector<8x32xf32>
    %69 = arith.subf %63, %68 : vector<8x32xf32>
    %70 = arith.mulf %69, %69 : vector<8x32xf32>
    %cst_36 = arith.constant dense<0.000000e+00> : vector<8xf32>
    %71 = vector.multi_reduction <add>, %70, %cst_36 [1] : vector<8x32xf32> to vector<8xf32>
    %72 = vector.shape_cast %71 : vector<8xf32> to vector<8x1xf32>
    %cst_37 = arith.constant 3.200000e+01 : f32
    %73 = vector.broadcast %cst_37 : f32 to vector<8x1xf32>
    %74 = arith.divf %72, %73 : vector<8x1xf32>
    %cst_38 = arith.constant 9.99999997E-7 : f32
    %75 = vector.broadcast %cst_38 : f32 to vector<8x1xf32>
    %76 = arith.addf %74, %75 : vector<8x1xf32>
    %77 = math.rsqrt %76 : vector<8x1xf32>
    %78 = vector.broadcast %77 : vector<8x1xf32> to vector<8x32xf32>
    %79 = arith.mulf %69, %78 : vector<8x32xf32>
    %c0_39 = arith.constant 0 : index
    %c0_40 = arith.constant 0 : index
    %80 = vector.load %arg14[%c0_39, %c0_40] : memref<1x32xf32, #tpu.memory_space<vmem>>, vector<1x32xf32>
    %81 = vector.broadcast %80 : vector<1x32xf32> to vector<8x32xf32>
    %82 = arith.mulf %79, %81 : vector<8x32xf32>
    %c0_41 = arith.constant 0 : index
    %c0_42 = arith.constant 0 : index
    %83 = vector.load %arg15[%c0_41, %c0_42] : memref<1x32xf32, #tpu.memory_space<vmem>>, vector<1x32xf32>
    %84 = vector.broadcast %83 : vector<1x32xf32> to vector<8x32xf32>
    %85 = arith.addf %82, %84 : vector<8x32xf32>
    %c0_43 = arith.constant 0 : index
    %c0_44 = arith.constant 0 : index
    %86 = vector.load %arg16[%c0_43, %c0_44] : memref<8x32xf32, #tpu.memory_space<vmem>>, vector<8x32xf32>
    tpu.vector_store %arg16[%c0_43, %c0_44], %85 {strides = array<i32>} : memref<8x32xf32, #tpu.memory_space<vmem>>, vector<8x32xf32>,
    return
  }
  func.func @transform_0(%arg0: i32) -> (i32, i32) {
    %c0_i32 = arith.constant 0 : i32
    %c0_i32_0 = arith.constant 0 : i32
    return %arg0, %c0_i32 : i32, i32
  }
  func.func @transform_1(%arg0: i32) -> (i32, i32) {
    %c0_i32 = arith.constant 0 : i32
    %c0_i32_0 = arith.constant 0 : i32
    return %arg0, %c0_i32 : i32, i32
  }
  func.func @transform_2(%arg0: i32) -> (i32, i32) {
    %c0_i32 = arith.constant 0 : i32
    %c0_i32_0 = arith.constant 0 : i32
    return %arg0, %c0_i32 : i32, i32
  }
  func.func @transform_3(%arg0: i32) -> (i32, i32) {
    %c0_i32 = arith.constant 0 : i32
    %c0_i32_0 = arith.constant 0 : i32
    return %arg0, %c0_i32 : i32, i32
  }
  func.func @transform_4(%arg0: i32) -> (i32, i32) {
    %c0_i32 = arith.constant 0 : i32
    %c0_i32_0 = arith.constant 0 : i32
    %c0_i32_1 = arith.constant 0 : i32
    return %c0_i32, %c0_i32_0 : i32, i32
  }
  func.func @transform_5(%arg0: i32) -> (i32, i32) {
    %c0_i32 = arith.constant 0 : i32
    %c0_i32_0 = arith.constant 0 : i32
    %c0_i32_1 = arith.constant 0 : i32
    return %c0_i32, %c0_i32_0 : i32, i32
  }
  func.func @transform_6(%arg0: i32) -> (i32, i32) {
    %c0_i32 = arith.constant 0 : i32
    %c0_i32_0 = arith.constant 0 : i32
    %c0_i32_1 = arith.constant 0 : i32
    return %c0_i32, %c0_i32_0 : i32, i32
  }
  func.func @transform_7(%arg0: i32) -> (i32, i32) {
    %c0_i32 = arith.constant 0 : i32
    %c0_i32_0 = arith.constant 0 : i32
    %c0_i32_1 = arith.constant 0 : i32
    return %c0_i32, %c0_i32_0 : i32, i32
  }
  func.func @transform_8(%arg0: i32) -> (i32, i32) {
    %c0_i32 = arith.constant 0 : i32
    %c0_i32_0 = arith.constant 0 : i32
    %c0_i32_1 = arith.constant 0 : i32
    return %c0_i32, %c0_i32_0 : i32, i32
  }
  func.func @transform_9(%arg0: i32) -> (i32, i32) {
    %c0_i32 = arith.constant 0 : i32
    %c0_i32_0 = arith.constant 0 : i32
    %c0_i32_1 = arith.constant 0 : i32
    return %c0_i32, %c0_i32_0 : i32, i32
  }
  func.func @transform_10(%arg0: i32) -> (i32, i32) {
    %c0_i32 = arith.constant 0 : i32
    %c0_i32_0 = arith.constant 0 : i32
    %c0_i32_1 = arith.constant 0 : i32
    return %c0_i32, %c0_i32_0 : i32, i32
  }
  func.func @transform_11(%arg0: i32) -> (i32, i32) {
    %c0_i32 = arith.constant 0 : i32
    %c0_i32_0 = arith.constant 0 : i32
    %c0_i32_1 = arith.constant 0 : i32
    return %c0_i32, %c0_i32_0 : i32, i32
  }
  func.func @transform_12(%arg0: i32) -> (i32, i32) {
    %c0_i32 = arith.constant 0 : i32
    %c0_i32_0 = arith.constant 0 : i32
    %c0_i32_1 = arith.constant 0 : i32
    return %c0_i32, %c0_i32_0 : i32, i32
  }
  func.func @transform_13(%arg0: i32) -> (i32, i32) {
    %c0_i32 = arith.constant 0 : i32
    %c0_i32_0 = arith.constant 0 : i32
    %c0_i32_1 = arith.constant 0 : i32
    return %c0_i32, %c0_i32_0 : i32, i32
  }
  func.func @transform_14(%arg0: i32) -> (i32, i32) {
    %c0_i32 = arith.constant 0 : i32
    %c0_i32_0 = arith.constant 0 : i32
    %c0_i32_1 = arith.constant 0 : i32
    return %c0_i32, %c0_i32_0 : i32, i32
  }
  func.func @transform_15(%arg0: i32) -> (i32, i32) {
    %c0_i32 = arith.constant 0 : i32
    %c0_i32_0 = arith.constant 0 : i32
    return %arg0, %c0_i32 : i32, i32
  }
}

module attributes {stable_mosaic.version = 11 : i64} {
  func.func @_self_attention_kernel(%arg0: i32, %arg1: memref<8x32xf32, #tpu.memory_space<vmem>>, %arg2: memref<8x32xf32, #tpu.memory_space<vmem>>, %arg3: memref<8x32xf32, #tpu.memory_space<vmem>>, %arg4: memref<8x8xi32, #tpu.memory_space<vmem>>, %arg5: memref<32x64xf32, #tpu.memory_space<vmem>>, %arg6: memref<1x64xf32, #tpu.memory_space<vmem>>, %arg7: memref<32x32xf32, #tpu.memory_space<vmem>>, %arg8: memref<1x32xf32, #tpu.memory_space<vmem>>, %arg9: memref<32x32xf32, #tpu.memory_space<vmem>>, %arg10: memref<1x32xf32, #tpu.memory_space<vmem>>, %arg11: memref<32x128xf32, #tpu.memory_space<vmem>>, %arg12: memref<32x32xf32, #tpu.memory_space<vmem>>, %arg13: memref<1x32xf32, #tpu.memory_space<vmem>>, %arg14: memref<1x32xf32, #tpu.memory_space<vmem>>, %arg15: memref<1x32xf32, #tpu.memory_space<vmem>>, %arg16: memref<8x32xf32, #tpu.memory_space<vmem>>) attributes {dimension_semantics = [#tpu.dimension_semantics<parallel>], iteration_bounds = array<i64: 2>, scalar_prefetch = 0 : i64, scratch_operands = 0 : i64, tpu.core_type = #tpu.core_type<tc>, window_params = [{transform_indices = @transform_0, window_bounds = array<i64: 8, 32>}, {transform_indices = @transform_1, window_bounds = array<i64: 8, 32>}, {transform_indices = @transform_2, window_bounds = array<i64: 8, 32>}, {transform_indices = @transform_3, window_bounds = array<i64: 8, 8>}, {pipeline_mode = #tpu.pipeline_mode<synchronous>, transform_indices = @transform_4, window_bounds = array<i64: 32, 64>}, {pipeline_mode = #tpu.pipeline_mode<synchronous>, transform_indices = @transform_5, window_bounds = array<i64: 1, 64>}, {pipeline_mode = #tpu.pipeline_mode<synchronous>, transform_indices = @transform_6, window_bounds = array<i64: 32, 32>}, {pipeline_mode = #tpu.pipeline_mode<synchronous>, transform_indices = @transform_7, window_bounds = array<i64: 1, 32>}, {pipeline_mode = #tpu.pipeline_mode<synchronous>, transform_indices = @transform_8, window_bounds = array<i64: 32, 32>}, {pipeline_mode = #tpu.pipeline_mode<synchronous>, transform_indices = @transform_9, window_bounds = array<i64: 1, 32>}, {pipeline_mode = #tpu.pipeline_mode<synchronous>, transform_indices = @transform_10, window_bounds = array<i64: 32, 128>}, {pipeline_mode = #tpu.pipeline_mode<synchronous>, transform_indices = @transform_11, window_bounds = array<i64: 32, 32>}, {pipeline_mode = #tpu.pipeline_mode<synchronous>, transform_indices = @transform_12, window_bounds = array<i64: 1, 32>}, {pipeline_mode = #tpu.pipeline_mode<synchronous>, transform_indices = @transform_13, window_bounds = array<i64: 1, 32>}, {pipeline_mode = #tpu.pipeline_mode<synchronous>, transform_indices = @transform_14, window_bounds = array<i64: 1, 32>}, {transform_indices = @transform_15, window_bounds = array<i64: 8, 32>}]} {
    %c0 = arith.constant 0 : index
    %c0_0 = arith.constant 0 : index
    %0 = vector.load %arg1[%c0, %c0_0] : memref<8x32xf32, #tpu.memory_space<vmem>>, vector<8x32xf32>
    %c0_1 = arith.constant 0 : index
    %c0_2 = arith.constant 0 : index
    %1 = vector.load %arg2[%c0_1, %c0_2] : memref<8x32xf32, #tpu.memory_space<vmem>>, vector<8x32xf32>
    %c0_3 = arith.constant 0 : index
    %c0_4 = arith.constant 0 : index
    %2 = vector.load %arg3[%c0_3, %c0_4] : memref<8x32xf32, #tpu.memory_space<vmem>>, vector<8x32xf32>
    %c0_5 = arith.constant 0 : index
    %c0_6 = arith.constant 0 : index
    %3 = vector.load %arg5[%c0_5, %c0_6] : memref<32x64xf32, #tpu.memory_space<vmem>>, vector<32x64xf32>
    %cst = arith.constant dense<0.000000e+00> : vector<8x64xf32>
    %4 = tpu.matmul %0, %3, %cst {dimension_numbers = #tpu.dot_dimension_numbers<[1], [0], [0], [1], [0, 0, 1, 1], [], []>} : vector<8x32xf32>, vector<32x64xf32>, vector<8x64xf32> -> vector<8x64xf32>
    %c0_7 = arith.constant 0 : index
    %c0_8 = arith.constant 0 : index
    %5 = vector.load %arg6[%c0_7, %c0_8] : memref<1x64xf32, #tpu.memory_space<vmem>>, vector<1x64xf32>
    %6 = vector.broadcast %5 : vector<1x64xf32> to vector<8x64xf32>
    %7 = arith.addf %4, %6 : vector<8x64xf32>
    %8 = vector.extract_strided_slice %7 {offsets = [0, 0], sizes = [8, 32], strides = [1, 1]} : vector<8x64xf32> to vector<8x32xf32>
    %9 = vector.extract_strided_slice %7 {offsets = [0, 32], sizes = [8, 32], strides = [1, 1]} : vector<8x64xf32> to vector<8x32xf32>
    %c0_9 = arith.constant 0 : index
    %c0_10 = arith.constant 0 : index
    %10 = vector.load %arg13[%c0_9, %c0_10] : memref<1x32xf32, #tpu.memory_space<vmem>>, vector<1x32xf32>
    %11 = vector.broadcast %10 : vector<1x32xf32> to vector<8x32xf32>
    %12 = arith.addf %9, %11 : vector<8x32xf32>
    %c0_11 = arith.constant 0 : index
    %c0_12 = arith.constant 0 : index
    %13 = vector.load %arg7[%c0_11, %c0_12] : memref<32x32xf32, #tpu.memory_space<vmem>>, vector<32x32xf32>
    %cst_13 = arith.constant dense<0.000000e+00> : vector<8x32xf32>
    %14 = tpu.matmul %1, %13, %cst_13 {dimension_numbers = #tpu.dot_dimension_numbers<[1], [0], [0], [1], [0, 0, 1, 1], [], []>} : vector<8x32xf32>, vector<32x32xf32>, vector<8x32xf32> -> vector<8x32xf32>
    %c0_14 = arith.constant 0 : index
    %c0_15 = arith.constant 0 : index
    %15 = vector.load %arg8[%c0_14, %c0_15] : memref<1x32xf32, #tpu.memory_space<vmem>>, vector<1x32xf32>
    %16 = vector.broadcast %15 : vector<1x32xf32> to vector<8x32xf32>
    %17 = arith.addf %14, %16 : vector<8x32xf32>
    %c0_16 = arith.constant 0 : index
    %c0_17 = arith.constant 0 : index
    %18 = vector.load %arg9[%c0_16, %c0_17] : memref<32x32xf32, #tpu.memory_space<vmem>>, vector<32x32xf32>
    %cst_18 = arith.constant dense<0.000000e+00> : vector<8x32xf32>
    %19 = tpu.matmul %2, %18, %cst_18 {dimension_numbers = #tpu.dot_dimension_numbers<[1], [0], [0], [1], [0, 0, 1, 1], [], []>} : vector<8x32xf32>, vector<32x32xf32>, vector<8x32xf32> -> vector<8x32xf32>
    %c0_19 = arith.constant 0 : index
    %c0_20 = arith.constant 0 : index
    %20 = vector.load %arg10[%c0_19, %c0_20] : memref<1x32xf32, #tpu.memory_space<vmem>>, vector<1x32xf32>
    %21 = vector.broadcast %20 : vector<1x32xf32> to vector<8x32xf32>
    %22 = arith.addf %19, %21 : vector<8x32xf32>
    %c0_21 = arith.constant 0 : index
    %c0_22 = arith.constant 0 : index
    %23 = vector.load %arg11[%c0_21, %c0_22] : memref<32x128xf32, #tpu.memory_space<vmem>>, vector<32x128xf32>
    %cst_23 = arith.constant dense<0.000000e+00> : vector<8x128xf32>
    %24 = tpu.matmul %8, %23, %cst_23 {dimension_numbers = #tpu.dot_dimension_numbers<[1], [0], [0], [1], [0, 0, 1, 1], [], []>} : vector<8x32xf32>, vector<32x128xf32>, vector<8x128xf32> -> vector<8x128xf32>
    %25 = vector.shape_cast %24 : vector<8x128xf32> to vector<8x4x32xf32>
    %c0_24 = arith.constant 0 : index
    %c0_25 = arith.constant 0 : index
    %26 = vector.load %arg4[%c0_24, %c0_25] : memref<8x8xi32, #tpu.memory_space<vmem>>, vector<8x8xi32>
    %27 = tpu.iota {dimensions = array<i32: 2>} : vector<8x8x32xi32>
    %28 = vector.shape_cast %26 : vector<8x8xi32> to vector<8x8x1xi32>
    %29 = vector.broadcast %28 : vector<8x8x1xi32> to vector<8x8x32xi32>
    %30 = arith.cmpi eq, %29, %27 : vector<8x8x32xi32>
    %31 = arith.extui %30 : vector<8x8x32xi1> to vector<8x8x32xi32>
    %32 = arith.sitofp %31 : vector<8x8x32xi32> to vector<8x8x32xf32>
    "tpu.trace_start"() <{level = 10 : i32, message = "rhl,rkl->rhk"}> : () -> ()
    %cst_26 = arith.constant dense<0.000000e+00> : vector<8x4x8xf32>
    %33 = tpu.matmul %25, %32, %cst_26 {dimension_numbers = #tpu.dot_dimension_numbers<[2], [2], [1], [1], [0, 0, 0, 1, 1, 1], [0], [0]>} : vector<8x4x32xf32>, vector<8x8x32xf32>, vector<8x4x8xf32> -> vector<8x4x8xf32>
    "tpu.trace_stop"() : () -> ()
    %34 = vector.extract_strided_slice %8 {offsets = [0, 0], sizes = [8, 8], strides = [1, 1]} : vector<8x32xf32> to vector<8x8xf32>
    %35 = vector.shape_cast %34 : vector<8x8xf32> to vector<1x8x8xf32>
    %36 = vector.extract_strided_slice %17 {offsets = [0, 0], sizes = [8, 8], strides = [1, 1]} : vector<8x32xf32> to vector<8x8xf32>
    %37 = vector.shape_cast %36 : vector<8x8xf32> to vector<1x8x8xf32>
    %38 = vector.extract_strided_slice %22 {offsets = [0, 0], sizes = [8, 8], strides = [1, 1]} : vector<8x32xf32> to vector<8x8xf32>
    %39 = vector.shape_cast %38 : vector<8x8xf32> to vector<1x8x8xf32>
    "tpu.trace_start"() <{level = 10 : i32, message = "bqd,bkd->bqk"}> : () -> ()
    %cst_27 = arith.constant dense<0.000000e+00> : vector<1x8x8xf32>
    %40 = tpu.matmul %35, %37, %cst_27 {dimension_numbers = #tpu.dot_dimension_numbers<[2], [2], [1], [1], [0, 0, 0, 1, 1, 1], [0], [0]>} : vector<1x8x8xf32>, vector<1x8x8xf32>, vector<1x8x8xf32> -> vector<1x8x8xf32>
    "tpu.trace_stop"() : () -> ()
    %41 = vector.extract_strided_slice %33 {offsets = [0, 0, 0], sizes = [8, 1, 8], strides = [1, 1, 1]} : vector<8x4x8xf32> to vector<8x1x8xf32>
    %42 = vector.shape_cast %41 : vector<8x1x8xf32> to vector<8x8xf32>
    %43 = vector.shape_cast %42 : vector<8x8xf32> to vector<1x8x8xf32>
    %44 = arith.addf %40, %43 : vector<1x8x8xf32>
    %cst_28 = arith.constant dense<0xFF800000> : vector<1x8xf32>
    %45 = vector.multi_reduction <maximumf>, %44, %cst_28 [2] : vector<1x8x8xf32> to vector<1x8xf32>
    %46 = vector.shape_cast %45 : vector<1x8xf32> to vector<1x8x1xf32>
    %47 = vector.broadcast %46 : vector<1x8x1xf32> to vector<1x8x8xf32>
    %48 = arith.subf %44, %47 : vector<1x8x8xf32>
    %49 = math.exp %48 : vector<1x8x8xf32>
    %cst_29 = arith.constant dense<0.000000e+00> : vector<1x8xf32>
    %50 = vector.multi_reduction <add>, %49, %cst_29 [2] : vector<1x8x8xf32> to vector<1x8xf32>
    %51 = vector.shape_cast %50 : vector<1x8xf32> to vector<1x8x1xf32>
    %52 = vector.broadcast %51 : vector<1x8x1xf32> to vector<1x8x8xf32>
    %53 = arith.divf %49, %52 : vector<1x8x8xf32>
    "tpu.trace_start"() <{level = 10 : i32, message = "bqk,bkd->bqd"}> : () -> ()
    %cst_30 = arith.constant dense<0.000000e+00> : vector<1x8x8xf32>
    %54 = tpu.matmul %53, %39, %cst_30 {dimension_numbers = #tpu.dot_dimension_numbers<[2], [1], [1], [2], [0, 0, 0, 1, 1, 2], [0], [0]>} : vector<1x8x8xf32>, vector<1x8x8xf32>, vector<1x8x8xf32> -> vector<1x8x8xf32>
    "tpu.trace_stop"() : () -> ()
    %55 = vector.extract_strided_slice %8 {offsets = [0, 8], sizes = [8, 8], strides = [1, 1]} : vector<8x32xf32> to vector<8x8xf32>
    %56 = vector.shape_cast %55 : vector<8x8xf32> to vector<1x8x8xf32>
    %57 = vector.extract_strided_slice %17 {offsets = [0, 8], sizes = [8, 8], strides = [1, 1]} : vector<8x32xf32> to vector<8x8xf32>
    %58 = vector.shape_cast %57 : vector<8x8xf32> to vector<1x8x8xf32>
    %59 = vector.extract_strided_slice %22 {offsets = [0, 8], sizes = [8, 8], strides = [1, 1]} : vector<8x32xf32> to vector<8x8xf32>
    %60 = vector.shape_cast %59 : vector<8x8xf32> to vector<1x8x8xf32>
    "tpu.trace_start"() <{level = 10 : i32, message = "bqd,bkd->bqk"}> : () -> ()
    %cst_31 = arith.constant dense<0.000000e+00> : vector<1x8x8xf32>
    %61 = tpu.matmul %56, %58, %cst_31 {dimension_numbers = #tpu.dot_dimension_numbers<[2], [2], [1], [1], [0, 0, 0, 1, 1, 1], [0], [0]>} : vector<1x8x8xf32>, vector<1x8x8xf32>, vector<1x8x8xf32> -> vector<1x8x8xf32>
    "tpu.trace_stop"() : () -> ()
    %62 = vector.extract_strided_slice %33 {offsets = [0, 1, 0], sizes = [8, 1, 8], strides = [1, 1, 1]} : vector<8x4x8xf32> to vector<8x1x8xf32>
    %63 = vector.shape_cast %62 : vector<8x1x8xf32> to vector<8x8xf32>
    %64 = vector.shape_cast %63 : vector<8x8xf32> to vector<1x8x8xf32>
    %65 = arith.addf %61, %64 : vector<1x8x8xf32>
    %cst_32 = arith.constant dense<0xFF800000> : vector<1x8xf32>
    %66 = vector.multi_reduction <maximumf>, %65, %cst_32 [2] : vector<1x8x8xf32> to vector<1x8xf32>
    %67 = vector.shape_cast %66 : vector<1x8xf32> to vector<1x8x1xf32>
    %68 = vector.broadcast %67 : vector<1x8x1xf32> to vector<1x8x8xf32>
    %69 = arith.subf %65, %68 : vector<1x8x8xf32>
    %70 = math.exp %69 : vector<1x8x8xf32>
    %cst_33 = arith.constant dense<0.000000e+00> : vector<1x8xf32>
    %71 = vector.multi_reduction <add>, %70, %cst_33 [2] : vector<1x8x8xf32> to vector<1x8xf32>
    %72 = vector.shape_cast %71 : vector<1x8xf32> to vector<1x8x1xf32>
    %73 = vector.broadcast %72 : vector<1x8x1xf32> to vector<1x8x8xf32>
    %74 = arith.divf %70, %73 : vector<1x8x8xf32>
    "tpu.trace_start"() <{level = 10 : i32, message = "bqk,bkd->bqd"}> : () -> ()
    %cst_34 = arith.constant dense<0.000000e+00> : vector<1x8x8xf32>
    %75 = tpu.matmul %74, %60, %cst_34 {dimension_numbers = #tpu.dot_dimension_numbers<[2], [1], [1], [2], [0, 0, 0, 1, 1, 2], [0], [0]>} : vector<1x8x8xf32>, vector<1x8x8xf32>, vector<1x8x8xf32> -> vector<1x8x8xf32>
    "tpu.trace_stop"() : () -> ()
    %76 = vector.extract_strided_slice %8 {offsets = [0, 16], sizes = [8, 8], strides = [1, 1]} : vector<8x32xf32> to vector<8x8xf32>
    %77 = vector.shape_cast %76 : vector<8x8xf32> to vector<1x8x8xf32>
    %78 = vector.extract_strided_slice %17 {offsets = [0, 16], sizes = [8, 8], strides = [1, 1]} : vector<8x32xf32> to vector<8x8xf32>
    %79 = vector.shape_cast %78 : vector<8x8xf32> to vector<1x8x8xf32>
    %80 = vector.extract_strided_slice %22 {offsets = [0, 16], sizes = [8, 8], strides = [1, 1]} : vector<8x32xf32> to vector<8x8xf32>
    %81 = vector.shape_cast %80 : vector<8x8xf32> to vector<1x8x8xf32>
    "tpu.trace_start"() <{level = 10 : i32, message = "bqd,bkd->bqk"}> : () -> ()
    %cst_35 = arith.constant dense<0.000000e+00> : vector<1x8x8xf32>
    %82 = tpu.matmul %77, %79, %cst_35 {dimension_numbers = #tpu.dot_dimension_numbers<[2], [2], [1], [1], [0, 0, 0, 1, 1, 1], [0], [0]>} : vector<1x8x8xf32>, vector<1x8x8xf32>, vector<1x8x8xf32> -> vector<1x8x8xf32>
    "tpu.trace_stop"() : () -> ()
    %83 = vector.extract_strided_slice %33 {offsets = [0, 2, 0], sizes = [8, 1, 8], strides = [1, 1, 1]} : vector<8x4x8xf32> to vector<8x1x8xf32>
    %84 = vector.shape_cast %83 : vector<8x1x8xf32> to vector<8x8xf32>
    %85 = vector.shape_cast %84 : vector<8x8xf32> to vector<1x8x8xf32>
    %86 = arith.addf %82, %85 : vector<1x8x8xf32>
    %cst_36 = arith.constant dense<0xFF800000> : vector<1x8xf32>
    %87 = vector.multi_reduction <maximumf>, %86, %cst_36 [2] : vector<1x8x8xf32> to vector<1x8xf32>
    %88 = vector.shape_cast %87 : vector<1x8xf32> to vector<1x8x1xf32>
    %89 = vector.broadcast %88 : vector<1x8x1xf32> to vector<1x8x8xf32>
    %90 = arith.subf %86, %89 : vector<1x8x8xf32>
    %91 = math.exp %90 : vector<1x8x8xf32>
    %cst_37 = arith.constant dense<0.000000e+00> : vector<1x8xf32>
    %92 = vector.multi_reduction <add>, %91, %cst_37 [2] : vector<1x8x8xf32> to vector<1x8xf32>
    %93 = vector.shape_cast %92 : vector<1x8xf32> to vector<1x8x1xf32>
    %94 = vector.broadcast %93 : vector<1x8x1xf32> to vector<1x8x8xf32>
    %95 = arith.divf %91, %94 : vector<1x8x8xf32>
    "tpu.trace_start"() <{level = 10 : i32, message = "bqk,bkd->bqd"}> : () -> ()
    %cst_38 = arith.constant dense<0.000000e+00> : vector<1x8x8xf32>
    %96 = tpu.matmul %95, %81, %cst_38 {dimension_numbers = #tpu.dot_dimension_numbers<[2], [1], [1], [2], [0, 0, 0, 1, 1, 2], [0], [0]>} : vector<1x8x8xf32>, vector<1x8x8xf32>, vector<1x8x8xf32> -> vector<1x8x8xf32>
    "tpu.trace_stop"() : () -> ()
    %97 = vector.extract_strided_slice %8 {offsets = [0, 24], sizes = [8, 8], strides = [1, 1]} : vector<8x32xf32> to vector<8x8xf32>
    %98 = vector.shape_cast %97 : vector<8x8xf32> to vector<1x8x8xf32>
    %99 = vector.extract_strided_slice %17 {offsets = [0, 24], sizes = [8, 8], strides = [1, 1]} : vector<8x32xf32> to vector<8x8xf32>
    %100 = vector.shape_cast %99 : vector<8x8xf32> to vector<1x8x8xf32>
    %101 = vector.extract_strided_slice %22 {offsets = [0, 24], sizes = [8, 8], strides = [1, 1]} : vector<8x32xf32> to vector<8x8xf32>
    %102 = vector.shape_cast %101 : vector<8x8xf32> to vector<1x8x8xf32>
    "tpu.trace_start"() <{level = 10 : i32, message = "bqd,bkd->bqk"}> : () -> ()
    %cst_39 = arith.constant dense<0.000000e+00> : vector<1x8x8xf32>
    %103 = tpu.matmul %98, %100, %cst_39 {dimension_numbers = #tpu.dot_dimension_numbers<[2], [2], [1], [1], [0, 0, 0, 1, 1, 1], [0], [0]>} : vector<1x8x8xf32>, vector<1x8x8xf32>, vector<1x8x8xf32> -> vector<1x8x8xf32>
    "tpu.trace_stop"() : () -> ()
    %104 = vector.extract_strided_slice %33 {offsets = [0, 3, 0], sizes = [8, 1, 8], strides = [1, 1, 1]} : vector<8x4x8xf32> to vector<8x1x8xf32>
    %105 = vector.shape_cast %104 : vector<8x1x8xf32> to vector<8x8xf32>
    %106 = vector.shape_cast %105 : vector<8x8xf32> to vector<1x8x8xf32>
    %107 = arith.addf %103, %106 : vector<1x8x8xf32>
    %cst_40 = arith.constant dense<0xFF800000> : vector<1x8xf32>
    %108 = vector.multi_reduction <maximumf>, %107, %cst_40 [2] : vector<1x8x8xf32> to vector<1x8xf32>
    %109 = vector.shape_cast %108 : vector<1x8xf32> to vector<1x8x1xf32>
    %110 = vector.broadcast %109 : vector<1x8x1xf32> to vector<1x8x8xf32>
    %111 = arith.subf %107, %110 : vector<1x8x8xf32>
    %112 = math.exp %111 : vector<1x8x8xf32>
    %cst_41 = arith.constant dense<0.000000e+00> : vector<1x8xf32>
    %113 = vector.multi_reduction <add>, %112, %cst_41 [2] : vector<1x8x8xf32> to vector<1x8xf32>
    %114 = vector.shape_cast %113 : vector<1x8xf32> to vector<1x8x1xf32>
    %115 = vector.broadcast %114 : vector<1x8x1xf32> to vector<1x8x8xf32>
    %116 = arith.divf %112, %115 : vector<1x8x8xf32>
    "tpu.trace_start"() <{level = 10 : i32, message = "bqk,bkd->bqd"}> : () -> ()
    %cst_42 = arith.constant dense<0.000000e+00> : vector<1x8x8xf32>
    %117 = tpu.matmul %116, %102, %cst_42 {dimension_numbers = #tpu.dot_dimension_numbers<[2], [1], [1], [2], [0, 0, 0, 1, 1, 2], [0], [0]>} : vector<1x8x8xf32>, vector<1x8x8xf32>, vector<1x8x8xf32> -> vector<1x8x8xf32>
    "tpu.trace_stop"() : () -> ()
    %118 = tpu.concatenate %54, %75, %96, %117 in 2 : vector<1x8x8xf32>, vector<1x8x8xf32>, vector<1x8x8xf32>, vector<1x8x8xf32> -> vector<1x8x32xf32>
    %119 = vector.shape_cast %118 : vector<1x8x32xf32> to vector<8x32xf32>
    %c0_43 = arith.constant 0 : index
    %c0_44 = arith.constant 0 : index
    %120 = vector.load %arg12[%c0_43, %c0_44] : memref<32x32xf32, #tpu.memory_space<vmem>>, vector<32x32xf32>
    %cst_45 = arith.constant dense<0.000000e+00> : vector<8x32xf32>
    %121 = tpu.matmul %119, %120, %cst_45 {dimension_numbers = #tpu.dot_dimension_numbers<[1], [0], [0], [1], [0, 0, 1, 1], [], []>} : vector<8x32xf32>, vector<32x32xf32>, vector<8x32xf32> -> vector<8x32xf32>
    %122 = arith.addf %12, %121 : vector<8x32xf32>
    %cst_46 = arith.constant dense<0.000000e+00> : vector<8xf32>
    %123 = vector.multi_reduction <add>, %122, %cst_46 [1] : vector<8x32xf32> to vector<8xf32>
    %124 = vector.shape_cast %123 : vector<8xf32> to vector<8x1xf32>
    %cst_47 = arith.constant 3.200000e+01 : f32
    %125 = vector.broadcast %cst_47 : f32 to vector<8x1xf32>
    %126 = arith.divf %124, %125 : vector<8x1xf32>
    %127 = vector.broadcast %126 : vector<8x1xf32> to vector<8x32xf32>
    %128 = arith.subf %122, %127 : vector<8x32xf32>
    %129 = arith.mulf %128, %128 : vector<8x32xf32>
    %cst_48 = arith.constant dense<0.000000e+00> : vector<8xf32>
    %130 = vector.multi_reduction <add>, %129, %cst_48 [1] : vector<8x32xf32> to vector<8xf32>
    %131 = vector.shape_cast %130 : vector<8xf32> to vector<8x1xf32>
    %cst_49 = arith.constant 3.200000e+01 : f32
    %132 = vector.broadcast %cst_49 : f32 to vector<8x1xf32>
    %133 = arith.divf %131, %132 : vector<8x1xf32>
    %cst_50 = arith.constant 9.99999997E-7 : f32
    %134 = vector.broadcast %cst_50 : f32 to vector<8x1xf32>
    %135 = arith.addf %133, %134 : vector<8x1xf32>
    %136 = math.rsqrt %135 : vector<8x1xf32>
    %137 = vector.broadcast %136 : vector<8x1xf32> to vector<8x32xf32>
    %138 = arith.mulf %128, %137 : vector<8x32xf32>
    %c0_51 = arith.constant 0 : index
    %c0_52 = arith.constant 0 : index
    %139 = vector.load %arg14[%c0_51, %c0_52] : memref<1x32xf32, #tpu.memory_space<vmem>>, vector<1x32xf32>
    %140 = vector.broadcast %139 : vector<1x32xf32> to vector<8x32xf32>
    %141 = arith.mulf %138, %140 : vector<8x32xf32>
    %c0_53 = arith.constant 0 : index
    %c0_54 = arith.constant 0 : index
    %142 = vector.load %arg15[%c0_53, %c0_54] : memref<1x32xf32, #tpu.memory_space<vmem>>, vector<1x32xf32>
    %143 = vector.broadcast %142 : vector<1x32xf32> to vector<8x32xf32>
    %144 = arith.addf %141, %143 : vector<8x32xf32>
    %c0_55 = arith.constant 0 : index
    %c0_56 = arith.constant 0 : index
    %145 = vector.load %arg16[%c0_55, %c0_56] : memref<8x32xf32, #tpu.memory_space<vmem>>, vector<8x32xf32>
    tpu.vector_store %arg16[%c0_55, %c0_56], %144 {strides = array<i32>} : memref<8x32xf32, #tpu.memory_space<vmem>>, vector<8x32xf32>,
    return
  }
  func.func @transform_0(%arg0: i32) -> (i32, i32) {
    %c0_i32 = arith.constant 0 : i32
    %c0_i32_0 = arith.constant 0 : i32
    return %arg0, %c0_i32 : i32, i32
  }
  func.func @transform_1(%arg0: i32) -> (i32, i32) {
    %c0_i32 = arith.constant 0 : i32
    %c0_i32_0 = arith.constant 0 : i32
    return %arg0, %c0_i32 : i32, i32
  }
  func.func @transform_2(%arg0: i32) -> (i32, i32) {
    %c0_i32 = arith.constant 0 : i32
    %c0_i32_0 = arith.constant 0 : i32
    return %arg0, %c0_i32 : i32, i32
  }
  func.func @transform_3(%arg0: i32) -> (i32, i32) {
    %c0_i32 = arith.constant 0 : i32
    %c0_i32_0 = arith.constant 0 : i32
    return %arg0, %c0_i32 : i32, i32
  }
  func.func @transform_4(%arg0: i32) -> (i32, i32) {
    %c0_i32 = arith.constant 0 : i32
    %c0_i32_0 = arith.constant 0 : i32
    %c0_i32_1 = arith.constant 0 : i32
    return %c0_i32, %c0_i32_0 : i32, i32
  }
  func.func @transform_5(%arg0: i32) -> (i32, i32) {
    %c0_i32 = arith.constant 0 : i32
    %c0_i32_0 = arith.constant 0 : i32
    %c0_i32_1 = arith.constant 0 : i32
    return %c0_i32, %c0_i32_0 : i32, i32
  }
  func.func @transform_6(%arg0: i32) -> (i32, i32) {
    %c0_i32 = arith.constant 0 : i32
    %c0_i32_0 = arith.constant 0 : i32
    %c0_i32_1 = arith.constant 0 : i32
    return %c0_i32, %c0_i32_0 : i32, i32
  }
  func.func @transform_7(%arg0: i32) -> (i32, i32) {
    %c0_i32 = arith.constant 0 : i32
    %c0_i32_0 = arith.constant 0 : i32
    %c0_i32_1 = arith.constant 0 : i32
    return %c0_i32, %c0_i32_0 : i32, i32
  }
  func.func @transform_8(%arg0: i32) -> (i32, i32) {
    %c0_i32 = arith.constant 0 : i32
    %c0_i32_0 = arith.constant 0 : i32
    %c0_i32_1 = arith.constant 0 : i32
    return %c0_i32, %c0_i32_0 : i32, i32
  }
  func.func @transform_9(%arg0: i32) -> (i32, i32) {
    %c0_i32 = arith.constant 0 : i32
    %c0_i32_0 = arith.constant 0 : i32
    %c0_i32_1 = arith.constant 0 : i32
    return %c0_i32, %c0_i32_0 : i32, i32
  }
  func.func @transform_10(%arg0: i32) -> (i32, i32) {
    %c0_i32 = arith.constant 0 : i32
    %c0_i32_0 = arith.constant 0 : i32
    %c0_i32_1 = arith.constant 0 : i32
    return %c0_i32, %c0_i32_0 : i32, i32
  }
  func.func @transform_11(%arg0: i32) -> (i32, i32) {
    %c0_i32 = arith.constant 0 : i32
    %c0_i32_0 = arith.constant 0 : i32
    %c0_i32_1 = arith.constant 0 : i32
    return %c0_i32, %c0_i32_0 : i32, i32
  }
  func.func @transform_12(%arg0: i32) -> (i32, i32) {
    %c0_i32 = arith.constant 0 : i32
    %c0_i32_0 = arith.constant 0 : i32
    %c0_i32_1 = arith.constant 0 : i32
    return %c0_i32, %c0_i32_0 : i32, i32
  }
  func.func @transform_13(%arg0: i32) -> (i32, i32) {
    %c0_i32 = arith.constant 0 : i32
    %c0_i32_0 = arith.constant 0 : i32
    %c0_i32_1 = arith.constant 0 : i32
    return %c0_i32, %c0_i32_0 : i32, i32
  }
  func.func @transform_14(%arg0: i32) -> (i32, i32) {
    %c0_i32 = arith.constant 0 : i32
    %c0_i32_0 = arith.constant 0 : i32
    %c0_i32_1 = arith.constant 0 : i32
    return %c0_i32, %c0_i32_0 : i32, i32
  }
  func.func @transform_15(%arg0: i32) -> (i32, i32) {
    %c0_i32 = arith.constant 0 : i32
    %c0_i32_0 = arith.constant 0 : i32
    return %arg0, %c0_i32 : i32, i32
  }
}

</mosaic_0001>

<llo_original>
// kernel: tpu_custom_call.1
$region0: #{tpu_custom_call.1}
  #allocation0 [shape = 'u32[]', space=smem, size = 0x4, offset = 0x4, fixed_abs, tag = 'smem constant byte address 0x4 - core index']
  #allocation1 [shape = 'u32[144,128]{1,0:T(1,128)}', space=vmem, size = 0x12000, scoped, tag = 'internal scratch']
  %s0 = inlined_call_operand.hbm [shape: f32[16,32], index: 0, kind: input, shape index: {}]
  %s1 = inlined_call_operand.hbm [shape: f32[16,32], index: 1, kind: input, shape index: {}]
  %s2 = inlined_call_operand.hbm [shape: f32[16,32], index: 2, kind: input, shape index: {}]
  %s3 = inlined_call_operand.vmem [shape: s32[16,8], index: 3, kind: input, shape index: {}]
  %s4 = inlined_call_operand.hbm [shape: f32[32,64], index: 4, kind: input, shape index: {}]
  %s5 = inlined_call_operand.vmem [shape: f32[1,64], index: 5, kind: input, shape index: {}]
  %s6 = inlined_call_operand.vmem [shape: f32[32,32], index: 6, kind: input, shape index: {}]
  %s7 = inlined_call_operand.vmem [shape: f32[1,32], index: 7, kind: input, shape index: {}]
  %s8 = inlined_call_operand.hbm [shape: f32[32,32], index: 8, kind: input, shape index: {}]
  %s9 = inlined_call_operand.vmem [shape: f32[1,32], index: 9, kind: input, shape index: {}]
  %s10 = inlined_call_operand.hbm [shape: f32[32,128], index: 10, kind: input, shape index: {}]
  %s11 = inlined_call_operand.hbm [shape: f32[32,32], index: 11, kind: input, shape index: {}]
  %s12 = inlined_call_operand.vmem [shape: f32[1,32], index: 12, kind: input, shape index: {}]
  %s13 = inlined_call_operand.vmem [shape: f32[1,32], index: 13, kind: input, shape index: {}]
  %s14 = inlined_call_operand.vmem [shape: f32[1,32], index: 14, kind: input, shape index: {}]
  %s15 = inlined_call_operand.hbm [shape: f32[16,32], index: 15, kind: output, shape index: {}]
  %s16 = sld [smem:[#allocation0]]
  $region121: #{tpu_custom_call.1} parent=0
    _
  %s18 = ssub.s32 1, %s16
  %s19 = scalar_select 0, %s18, %s16
  $region1: #{tpu_custom_call.1} parent=0
    #allocation2 [shape = 'u8[8192]{0}', space=vmem, size = 0x2000, scoped, tag = 'input window, operand 0']
    #allocation3 [shape = 's32[2]{0}', space=sflag, size = 0x8, scoped, tag = 'scoped memory for tpu_custom_call.1']
    #allocation4 [shape = 's32[2]{0}', space=sflag, size = 0x8, scoped, tag = 'scoped memory for tpu_custom_call.1']
    #allocation5 [shape = 'u8[8192]{0}', space=vmem, size = 0x2000, scoped, tag = 'input window, operand 1']
    #allocation6 [shape = 's32[2]{0}', space=sflag, size = 0x8, scoped, tag = 'scoped memory for tpu_custom_call.1']
    #allocation7 [shape = 'u8[8192]{0}', space=vmem, size = 0x2000, scoped, tag = 'input window, operand 2']
    #allocation8 [shape = 'u8[16384]{0}', space=vmem, size = 0x4000, scoped, tag = 'input window, operand 4, single buffered']
    #allocation9 [shape = 's32[1]{0}', space=sflag, size = 0x4, scoped, tag = 'scoped memory for tpu_custom_call.1']
    #allocation10 [shape = 'u8[16384]{0}', space=vmem, size = 0x4000, scoped, tag = 'input window, operand 8, single buffered']
    #allocation11 [shape = 'u8[16384]{0}', space=vmem, size = 0x4000, scoped, tag = 'input window, operand 10, single buffered']
    #allocation12 [shape = 's32[1]{0}', space=sflag, size = 0x4, scoped, tag = 'scoped memory for tpu_custom_call.1']
    #allocation13 [shape = 'u8[16384]{0}', space=vmem, size = 0x4000, scoped, tag = 'input window, operand 11, single buffered']
    #allocation14 [shape = 'u8[8192]{0}', space=vmem, size = 0x2000, scoped, tag = 'output window, operand 0']
    %20 = vsyncpa [#allocation3], 0
    %s21 = scalar_lea.sflag [#allocation3], 1
    %22 = vsyncpa %s21, 0
    %23 = vsyncpa [#allocation6], 0
    %s24 = scalar_lea.sflag [#allocation6], 1
    %25 = vsyncpa %s24, 0
    %26 = vsyncpa [#allocation9], 0
    %27 = vsyncpa [#allocation12], 0
    %28 = vsyncpa [#allocation4], 0
    %s29 = scalar_lea.sflag [#allocation4], 1
    %30 = vsyncpa %s29, 0
    loop: start=0, step=1, limit=4
    $region2: #{tpu_custom_call.1} parent=1 // loop_pre_header
      _
    $region3: #{tpu_custom_call.1} parent=1 // loop_header
      %s32 = sphi 0, %s36
      %p33 = scmp.ge.s32.totalorder %s32, 4
      %s42 = sphi 0, %s44
      %s45 = sphi 0, %s42
      %s46 = sphi 0, %s45
      %s62 = sphi 0, %s46
      %s68 = sphi 0, %s70
      %s71 = sphi 0, %s68
      %s72 = sphi 0, %s71
      %s88 = sphi 0, %s72
      %s94 = sphi 0, %s96
      %s97 = sphi 0, %s94
      %s98 = sphi 0, %s97
      %s114 = sphi 0, %s98
      %s120 = sphi 0, %s122
      %s123 = sphi 0, %s120
      %s124 = sphi 0, %s123
      %s140 = sphi 0, %s124
      %s144 = sphi 0, %s144
      %s146 = sphi 0, %s144
      %s147 = sphi 0, %s146
      %s161 = sphi 0, %s147
      %s165 = sphi 0, %s165
      %s167 = sphi 0, %s165
      %s168 = sphi 0, %s167
      %s182 = sphi 0, %s168
      %s186 = sphi 0, %s186
      %s188 = sphi 0, %s186
      %s189 = sphi 0, %s188
      %s203 = sphi 0, %s189
      %s207 = sphi 0, %s207
      %s209 = sphi 0, %s207
      %s210 = sphi 0, %s209
      %s224 = sphi 0, %s210
      %s228 = sphi 0, %s228
      %s230 = sphi 0, %s228
      %s231 = sphi 0, %s230
      %s245 = sphi 0, %s231
      %s249 = sphi 0, %s249
      %s251 = sphi 0, %s249
      %s252 = sphi 0, %s251
      %s266 = sphi 0, %s252
      %s270 = sphi 0, %s270
      %s272 = sphi 0, %s270
      %s273 = sphi 0, %s272
      %s287 = sphi 0, %s273
      %s291 = sphi 0, %s291
      %s293 = sphi 0, %s291
      %s294 = sphi 0, %s293
      %s308 = sphi 0, %s294
      %s312 = sphi 0, %s312
      %s314 = sphi 0, %s312
      %s315 = sphi 0, %s314
      %s329 = sphi 0, %s315
      %s333 = sphi 0, %s333
      %s335 = sphi 0, %s333
      %s336 = sphi 0, %s335
      %s350 = sphi 0, %s336
      %s354 = sphi 0, %s354
      %s356 = sphi 0, %s354
      %s357 = sphi 0, %s356
      %s371 = sphi 0, %s357
      %s377 = sphi 0, %s379
      %s380 = sphi 0, %s377
      %s381 = sphi 0, %s380
      %s397 = sphi 0, %s381
    $region4: #{tpu_custom_call.1} parent=1 // loop_header_branch
      %35 = sbr.rel (%p33) target = $region8
    $region5: #{tpu_custom_call.1} parent=1 // loop_body
      %s37 = ssub.s32 %s32, 1
      %s38 = ssub.s32 %s32, 2
      %s39 = sadd.s32 %s32, 1
      %s40 = ssub.s32 %s32, %s39
      %p41 = scmp.eq.s32.totalorder %s40, 0
      %s43 = sadd.s32 %s42, 1
      %s44 = scalar_select %p41, %s42, %s43
      %p47 = pneg %p41
      %p48 = scmp.eq.s32.totalorder %s32, 1
      %p49 = por %p47, %p48
      %p50 = scmp.ne.s32.totalorder %s42, %s45
      %p51 = scmp.eq.s32.totalorder %s32, 0
      %p52 = por %p50, %p51
      %p53 = scmp.ne.s32.totalorder %s42, %s45
      %p54 = scmp.eq.s32.totalorder %s37, 1
      %p55 = por %p53, %p54
      %p56 = scmp.ne.s32.totalorder %s45, %s46
      %p57 = scmp.eq.s32.totalorder %s37, 0
      %p58 = por %p56, %p57
      %p59 = scmp.ne.s32.totalorder %s45, %s46
      %p60 = scmp.eq.s32.totalorder %s38, 1
      %p61 = por %p59, %p60
      %p63 = scmp.ne.s32.totalorder %s46, %s62
      %p64 = scmp.eq.s32.totalorder %s38, 0
      %p65 = por %p63, %p64
      %s66 = ssub.s32 %s32, %s39
      %p67 = scmp.eq.s32.totalorder %s66, 0
      %s69 = sadd.s32 %s68, 1
      %s70 = scalar_select %p67, %s68, %s69
      %p73 = pneg %p67
      %p74 = scmp.eq.s32.totalorder %s32, 1
      %p75 = por %p73, %p74
      %p76 = scmp.ne.s32.totalorder %s68, %s71
      %p77 = scmp.eq.s32.totalorder %s32, 0
      %p78 = por %p76, %p77
      %p79 = scmp.ne.s32.totalorder %s68, %s71
      %p80 = scmp.eq.s32.totalorder %s37, 1
      %p81 = por %p79, %p80
      %p82 = scmp.ne.s32.totalorder %s71, %s72
      %p83 = scmp.eq.s32.totalorder %s37, 0
      %p84 = por %p82, %p83
      %p85 = scmp.ne.s32.totalorder %s71, %s72
      %p86 = scmp.eq.s32.totalorder %s38, 1
      %p87 = por %p85, %p86
      %p89 = scmp.ne.s32.totalorder %s72, %s88
      %p90 = scmp.eq.s32.totalorder %s38, 0
      %p91 = por %p89, %p90
      %s92 = ssub.s32 %s32, %s39
      %p93 = scmp.eq.s32.totalorder %s92, 0
      %s95 = sadd.s32 %s94, 1
      %s96 = scalar_select %p93, %s94, %s95
      %p99 = pneg %p93
      %p100 = scmp.eq.s32.totalorder %s32, 1
      %p101 = por %p99, %p100
      %p102 = scmp.ne.s32.totalorder %s94, %s97
      %p103 = scmp.eq.s32.totalorder %s32, 0
      %p104 = por %p102, %p103
      %p105 = scmp.ne.s32.totalorder %s94, %s97
      %p106 = scmp.eq.s32.totalorder %s37, 1
      %p107 = por %p105, %p106
      %p108 = scmp.ne.s32.totalorder %s97, %s98
      %p109 = scmp.eq.s32.totalorder %s37, 0
      %p110 = por %p108, %p109
      %p111 = scmp.ne.s32.totalorder %s97, %s98
      %p112 = scmp.eq.s32.totalorder %s38, 1
      %p113 = por %p111, %p112
      %p115 = scmp.ne.s32.totalorder %s98, %s114
      %p116 = scmp.eq.s32.totalorder %s38, 0
      %p117 = por %p115, %p116
      %s118 = ssub.s32 %s32, %s39
      %p119 = scmp.eq.s32.totalorder %s118, 0
      %s121 = sadd.s32 %s120, 1
      %s122 = scalar_select %p119, %s120, %s121
      %p125 = pneg %p119
      %p126 = scmp.eq.s32.totalorder %s32, 1
      %p127 = por %p125, %p126
      %p128 = scmp.ne.s32.totalorder %s120, %s123
      %p129 = scmp.eq.s32.totalorder %s32, 0
      %p130 = por %p128, %p129
      %p131 = scmp.ne.s32.totalorder %s120, %s123
      %p132 = scmp.eq.s32.totalorder %s37, 1
      %p133 = por %p131, %p132
      %p134 = scmp.ne.s32.totalorder %s123, %s124
      %p135 = scmp.eq.s32.totalorder %s37, 0
      %p136 = por %p134, %p135
      %p137 = scmp.ne.s32.totalorder %s123, %s124
      %p138 = scmp.eq.s32.totalorder %s38, 1
      %p139 = por %p137, %p138
      %p141 = scmp.ne.s32.totalorder %s124, %s140
      %p142 = scmp.eq.s32.totalorder %s38, 0
      %p143 = por %p141, %p142
      %s145 = sadd.s32 %s144, 1
      %p148 = scmp.eq.s32.totalorder %s32, 1
      %p149 = scmp.ne.s32.totalorder %s144, %s146
      %p150 = scmp.eq.s32.totalorder %s32, 0
      %p151 = por %p149, %p150
      %p152 = scmp.ne.s32.totalorder %s144, %s146
      %p153 = scmp.eq.s32.totalorder %s37, 1
      %p154 = por %p152, %p153
      %p155 = scmp.ne.s32.totalorder %s146, %s147
      %p156 = scmp.eq.s32.totalorder %s37, 0
      %p157 = por %p155, %p156
      %p158 = scmp.ne.s32.totalorder %s146, %s147
      %p159 = scmp.eq.s32.totalorder %s38, 1
      %p160 = por %p158, %p159
      %p162 = scmp.ne.s32.totalorder %s147, %s161
      %p163 = scmp.eq.s32.totalorder %s38, 0
      %p164 = por %p162, %p163
      %s166 = sadd.s32 %s165, 1
      %p169 = scmp.eq.s32.totalorder %s32, 1
      %p170 = scmp.ne.s32.totalorder %s165, %s167
      %p171 = scmp.eq.s32.totalorder %s32, 0
      %p172 = por %p170, %p171
      %p173 = scmp.ne.s32.totalorder %s165, %s167
      %p174 = scmp.eq.s32.totalorder %s37, 1
      %p175 = por %p173, %p174
      %p176 = scmp.ne.s32.totalorder %s167, %s168
      %p177 = scmp.eq.s32.totalorder %s37, 0
      %p178 = por %p176, %p177
      %p179 = scmp.ne.s32.totalorder %s167, %s168
      %p180 = scmp.eq.s32.totalorder %s38, 1
      %p181 = por %p179, %p180
      %p183 = scmp.ne.s32.totalorder %s168, %s182
      %p184 = scmp.eq.s32.totalorder %s38, 0
      %p185 = por %p183, %p184
      %s187 = sadd.s32 %s186, 1
      %p190 = scmp.eq.s32.totalorder %s32, 1
      %p191 = scmp.ne.s32.totalorder %s186, %s188
      %p192 = scmp.eq.s32.totalorder %s32, 0
      %p193 = por %p191, %p192
      %p194 = scmp.ne.s32.totalorder %s186, %s188
      %p195 = scmp.eq.s32.totalorder %s37, 1
      %p196 = por %p194, %p195
      %p197 = scmp.ne.s32.totalorder %s188, %s189
      %p198 = scmp.eq.s32.totalorder %s37, 0
      %p199 = por %p197, %p198
      %p200 = scmp.ne.s32.totalorder %s188, %s189
      %p201 = scmp.eq.s32.totalorder %s38, 1
      %p202 = por %p200, %p201
      %p204 = scmp.ne.s32.totalorder %s189, %s203
      %p205 = scmp.eq.s32.totalorder %s38, 0
      %p206 = por %p204, %p205
      %s208 = sadd.s32 %s207, 1
      %p211 = scmp.eq.s32.totalorder %s32, 1
      %p212 = scmp.ne.s32.totalorder %s207, %s209
      %p213 = scmp.eq.s32.totalorder %s32, 0
      %p214 = por %p212, %p213
      %p215 = scmp.ne.s32.totalorder %s207, %s209
      %p216 = scmp.eq.s32.totalorder %s37, 1
      %p217 = por %p215, %p216
      %p218 = scmp.ne.s32.totalorder %s209, %s210
      %p219 = scmp.eq.s32.totalorder %s37, 0
      %p220 = por %p218, %p219
      %p221 = scmp.ne.s32.totalorder %s209, %s210
      %p222 = scmp.eq.s32.totalorder %s38, 1
      %p223 = por %p221, %p222
      %p225 = scmp.ne.s32.totalorder %s210, %s224
      %p226 = scmp.eq.s32.totalorder %s38, 0
      %p227 = por %p225, %p226
      %s229 = sadd.s32 %s228, 1
      %p232 = scmp.eq.s32.totalorder %s32, 1
      %p233 = scmp.ne.s32.totalorder %s228, %s230
      %p234 = scmp.eq.s32.totalorder %s32, 0
      %p235 = por %p233, %p234
      %p236 = scmp.ne.s32.totalorder %s228, %s230
      %p237 = scmp.eq.s32.totalorder %s37, 1
      %p238 = por %p236, %p237
      %p239 = scmp.ne.s32.totalorder %s230, %s231
      %p240 = scmp.eq.s32.totalorder %s37, 0
      %p241 = por %p239, %p240
      %p242 = scmp.ne.s32.totalorder %s230, %s231
      %p243 = scmp.eq.s32.totalorder %s38, 1
      %p244 = por %p242, %p243
      %p246 = scmp.ne.s32.totalorder %s231, %s245
      %p247 = scmp.eq.s32.totalorder %s38, 0
      %p248 = por %p246, %p247
      %s250 = sadd.s32 %s249, 1
      %p253 = scmp.eq.s32.totalorder %s32, 1
      %p254 = scmp.ne.s32.totalorder %s249, %s251
      %p255 = scmp.eq.s32.totalorder %s32, 0
      %p256 = por %p254, %p255
      %p257 = scmp.ne.s32.totalorder %s249, %s251
      %p258 = scmp.eq.s32.totalorder %s37, 1
      %p259 = por %p257, %p258
      %p260 = scmp.ne.s32.totalorder %s251, %s252
      %p261 = scmp.eq.s32.totalorder %s37, 0
      %p262 = por %p260, %p261
      %p263 = scmp.ne.s32.totalorder %s251, %s252
      %p264 = scmp.eq.s32.totalorder %s38, 1
      %p265 = por %p263, %p264
      %p267 = scmp.ne.s32.totalorder %s252, %s266
      %p268 = scmp.eq.s32.totalorder %s38, 0
      %p269 = por %p267, %p268
      %s271 = sadd.s32 %s270, 1
      %p274 = scmp.eq.s32.totalorder %s32, 1
      %p275 = scmp.ne.s32.totalorder %s270, %s272
      %p276 = scmp.eq.s32.totalorder %s32, 0
      %p277 = por %p275, %p276
      %p278 = scmp.ne.s32.totalorder %s270, %s272
      %p279 = scmp.eq.s32.totalorder %s37, 1
      %p280 = por %p278, %p279
      %p281 = scmp.ne.s32.totalorder %s272, %s273
      %p282 = scmp.eq.s32.totalorder %s37, 0
      %p283 = por %p281, %p282
      %p284 = scmp.ne.s32.totalorder %s272, %s273
      %p285 = scmp.eq.s32.totalorder %s38, 1
      %p286 = por %p284, %p285
      %p288 = scmp.ne.s32.totalorder %s273, %s287
      %p289 = scmp.eq.s32.totalorder %s38, 0
      %p290 = por %p288, %p289
      %s292 = sadd.s32 %s291, 1
      %p295 = scmp.eq.s32.totalorder %s32, 1
      %p296 = scmp.ne.s32.totalorder %s291, %s293
      %p297 = scmp.eq.s32.totalorder %s32, 0
      %p298 = por %p296, %p297
      %p299 = scmp.ne.s32.totalorder %s291, %s293
      %p300 = scmp.eq.s32.totalorder %s37, 1
      %p301 = por %p299, %p300
      %p302 = scmp.ne.s32.totalorder %s293, %s294
      %p303 = scmp.eq.s32.totalorder %s37, 0
      %p304 = por %p302, %p303
      %p305 = scmp.ne.s32.totalorder %s293, %s294
      %p306 = scmp.eq.s32.totalorder %s38, 1
      %p307 = por %p305, %p306
      %p309 = scmp.ne.s32.totalorder %s294, %s308
      %p310 = scmp.eq.s32.totalorder %s38, 0
      %p311 = por %p309, %p310
      %s313 = sadd.s32 %s312, 1
      %p316 = scmp.eq.s32.totalorder %s32, 1
      %p317 = scmp.ne.s32.totalorder %s312, %s314
      %p318 = scmp.eq.s32.totalorder %s32, 0
      %p319 = por %p317, %p318
      %p320 = scmp.ne.s32.totalorder %s312, %s314
      %p321 = scmp.eq.s32.totalorder %s37, 1
      %p322 = por %p320, %p321
      %p323 = scmp.ne.s32.totalorder %s314, %s315
      %p324 = scmp.eq.s32.totalorder %s37, 0
      %p325 = por %p323, %p324
      %p326 = scmp.ne.s32.totalorder %s314, %s315
      %p327 = scmp.eq.s32.totalorder %s38, 1
      %p328 = por %p326, %p327
      %p330 = scmp.ne.s32.totalorder %s315, %s329
      %p331 = scmp.eq.s32.totalorder %s38, 0
      %p332 = por %p330, %p331
      %s334 = sadd.s32 %s333, 1
      %p337 = scmp.eq.s32.totalorder %s32, 1
      %p338 = scmp.ne.s32.totalorder %s333, %s335
      %p339 = scmp.eq.s32.totalorder %s32, 0
      %p340 = por %p338, %p339
      %p341 = scmp.ne.s32.totalorder %s333, %s335
      %p342 = scmp.eq.s32.totalorder %s37, 1
      %p343 = por %p341, %p342
      %p344 = scmp.ne.s32.totalorder %s335, %s336
      %p345 = scmp.eq.s32.totalorder %s37, 0
      %p346 = por %p344, %p345
      %p347 = scmp.ne.s32.totalorder %s335, %s336
      %p348 = scmp.eq.s32.totalorder %s38, 1
      %p349 = por %p347, %p348
      %p351 = scmp.ne.s32.totalorder %s336, %s350
      %p352 = scmp.eq.s32.totalorder %s38, 0
      %p353 = por %p351, %p352
      %s355 = sadd.s32 %s354, 1
      %p358 = scmp.eq.s32.totalorder %s32, 1
      %p359 = scmp.ne.s32.totalorder %s354, %s356
      %p360 = scmp.eq.s32.totalorder %s32, 0
      %p361 = por %p359, %p360
      %p362 = scmp.ne.s32.totalorder %s354, %s356
      %p363 = scmp.eq.s32.totalorder %s37, 1
      %p364 = por %p362, %p363
      %p365 = scmp.ne.s32.totalorder %s356, %s357
      %p366 = scmp.eq.s32.totalorder %s37, 0
      %p367 = por %p365, %p366
      %p368 = scmp.ne.s32.totalorder %s356, %s357
      %p369 = scmp.eq.s32.totalorder %s38, 1
      %p370 = por %p368, %p369
      %p372 = scmp.ne.s32.totalorder %s357, %s371
      %p373 = scmp.eq.s32.totalorder %s38, 0
      %p374 = por %p372, %p373
      %s375 = ssub.s32 %s32, %s39
      %p376 = scmp.eq.s32.totalorder %s375, 0
      %s378 = sadd.s32 %s377, 1
      %s379 = scalar_select %p376, %s377, %s378
      %p382 = pneg %p376
      %p383 = scmp.eq.s32.totalorder %s32, 1
      %p384 = por %p382, %p383
      %p385 = scmp.ne.s32.totalorder %s377, %s380
      %p386 = scmp.eq.s32.totalorder %s32, 0
      %p387 = por %p385, %p386
      %p388 = scmp.ne.s32.totalorder %s377, %s380
      %p389 = scmp.eq.s32.totalorder %s37, 1
      %p390 = por %p388, %p389
      %p391 = scmp.ne.s32.totalorder %s380, %s381
      %p392 = scmp.eq.s32.totalorder %s37, 0
      %p393 = por %p391, %p392
      %p394 = scmp.ne.s32.totalorder %s380, %s381
      %p395 = scmp.eq.s32.totalorder %s38, 1
      %p396 = por %p394, %p395
      %p398 = scmp.ne.s32.totalorder %s381, %s397
      %p399 = scmp.eq.s32.totalorder %s38, 0
      %p400 = por %p398, %p399
      %p401 = scmp.le.s32.totalorder 1, %s32
      %p402 = scmp.lt.s32.totalorder %s32, 3
      %p403 = pnand %p401, %p402
      %p404 = pneg %p403
      // Predicated region
      $region9: #{tpu_custom_call.1} parent=5 // pred_check
        _
      $region10: #{tpu_custom_call.1} parent=5 // pred_check_branch
        %406 = sbr.rel (%p403) target = $region12
      $region11: #{tpu_custom_call.1} parent=5 // pred_region
        %s407 = ssub.s32 %s32, 1
        // Predicated region
        $region13: #{tpu_custom_call.1} parent=11 // pred_check
          %p408 = pneg %p157
        $region14: #{tpu_custom_call.1} parent=11 // pred_check_branch
          %410 = sbr.rel (%p408) target = $region16
        $region15: #{tpu_custom_call.1} parent=11 // pred_region
          %s412 = ssub.s32 512, 512
          %413 = vsyncadd [#allocation9], %s412
          %s414 = sshll.u32 [#allocation8], 4
          %s415 = int_to_ptr.vmem [resolvable:$true] %s414
          %420 = dma.hbm_to_vmem [thread:$0]  %s4, 512, %s415, [#allocation9], 128, 128, 8
        $region16: #{tpu_custom_call.1} parent=11 // pred_fallthru
          _
        // Predicated region
        $region17: #{tpu_custom_call.1} parent=11 // pred_check
          %p421 = pneg %p178
        $region18: #{tpu_custom_call.1} parent=11 // pred_check_branch
          %423 = sbr.rel (%p421) target = $region20
        $region19: #{tpu_custom_call.1} parent=11 // pred_region
          _
        $region20: #{tpu_custom_call.1} parent=11 // pred_fallthru
          _
        // Predicated region
        $region21: #{tpu_custom_call.1} parent=11 // pred_check
          %p424 = pneg %p199
        $region22: #{tpu_custom_call.1} parent=11 // pred_check_branch
          %426 = sbr.rel (%p424) target = $region24
        $region23: #{tpu_custom_call.1} parent=11 // pred_region
          _
        $region24: #{tpu_custom_call.1} parent=11 // pred_fallthru
          _
        // Predicated region
        $region25: #{tpu_custom_call.1} parent=11 // pred_check
          %p427 = pneg %p220
        $region26: #{tpu_custom_call.1} parent=11 // pred_check_branch
          %429 = sbr.rel (%p427) target = $region28
        $region27: #{tpu_custom_call.1} parent=11 // pred_region
          _
        $region28: #{tpu_custom_call.1} parent=11 // pred_fallthru
          _
        // Predicated region
        $region29: #{tpu_custom_call.1} parent=11 // pred_check
          %p430 = pneg %p241
        $region30: #{tpu_custom_call.1} parent=11 // pred_check_branch
          %432 = sbr.rel (%p430) target = $region32
        $region31: #{tpu_custom_call.1} parent=11 // pred_region
          %s434 = ssub.s32 512, 512
          %435 = vsyncadd [#allocation9], %s434
          %s436 = sshll.u32 [#allocation10], 4
          %s437 = int_to_ptr.vmem [resolvable:$true] %s436
          %442 = dma.hbm_to_vmem [thread:$0]  %s8, 512, %s437, [#allocation9], 128, 128, 8
        $region32: #{tpu_custom_call.1} parent=11 // pred_fallthru
          _
        // Predicated region
        $region33: #{tpu_custom_call.1} parent=11 // pred_check
          %p443 = pneg %p262
        $region34: #{tpu_custom_call.1} parent=11 // pred_check_branch
          %445 = sbr.rel (%p443) target = $region36
        $region35: #{tpu_custom_call.1} parent=11 // pred_region
          _
        $region36: #{tpu_custom_call.1} parent=11 // pred_fallthru
          _
        // Predicated region
        $region37: #{tpu_custom_call.1} parent=11 // pred_check
          %p446 = pneg %p283
        $region38: #{tpu_custom_call.1} parent=11 // pred_check_branch
          %448 = sbr.rel (%p446) target = $region40
        $region39: #{tpu_custom_call.1} parent=11 // pred_region
          %s450 = ssub.s32 512, 512
          %451 = vsyncadd [#allocation12], %s450
          %s452 = sshll.u32 [#allocation11], 4
          %s453 = int_to_ptr.vmem [resolvable:$true] %s452
          %458 = dma.hbm_to_vmem [thread:$0]  %s10, 512, %s453, [#allocation12], 128, 128, 8
        $region40: #{tpu_custom_call.1} parent=11 // pred_fallthru
          _
        // Predicated region
        $region41: #{tpu_custom_call.1} parent=11 // pred_check
          %p459 = pneg %p304
        $region42: #{tpu_custom_call.1} parent=11 // pred_check_branch
          %461 = sbr.rel (%p459) target = $region44
        $region43: #{tpu_custom_call.1} parent=11 // pred_region
          %s463 = ssub.s32 512, 512
          %464 = vsyncadd [#allocation12], %s463
          %s465 = sshll.u32 [#allocation13], 4
          %s466 = int_to_ptr.vmem [resolvable:$true] %s465
          %471 = dma.hbm_to_vmem [thread:$0]  %s11, 512, %s466, [#allocation12], 128, 128, 8
        $region44: #{tpu_custom_call.1} parent=11 // pred_fallthru
          _
        // Predicated region
        $region45: #{tpu_custom_call.1} parent=11 // pred_check
          %p472 = pneg %p325
        $region46: #{tpu_custom_call.1} parent=11 // pred_check_branch
          %474 = sbr.rel (%p472) target = $region48
        $region47: #{tpu_custom_call.1} parent=11 // pred_region
          _
        $region48: #{tpu_custom_call.1} parent=11 // pred_fallthru
          _
        // Predicated region
        $region49: #{tpu_custom_call.1} parent=11 // pred_check
          %p475 = pneg %p346
        $region50: #{tpu_custom_call.1} parent=11 // pred_check_branch
          %477 = sbr.rel (%p475) target = $region52
        $region51: #{tpu_custom_call.1} parent=11 // pred_region
          _
        $region52: #{tpu_custom_call.1} parent=11 // pred_fallthru
          _
        // Predicated region
        $region53: #{tpu_custom_call.1} parent=11 // pred_check
          %p478 = pneg %p367
        $region54: #{tpu_custom_call.1} parent=11 // pred_check_branch
          %480 = sbr.rel (%p478) target = $region56
        $region55: #{tpu_custom_call.1} parent=11 // pred_region
          _
        $region56: #{tpu_custom_call.1} parent=11 // pred_fallthru
          _
      $region12: #{tpu_custom_call.1} parent=5 // pred_fallthru
        _
      %p481 = scmp.lt.s32.totalorder %s32, 2
      // Predicated region
      $region57: #{tpu_custom_call.1} parent=5 // pred_check
        %p482 = pneg %p481
      $region58: #{tpu_custom_call.1} parent=5 // pred_check_branch
        %484 = sbr.rel (%p482) target = $region60
      $region59: #{tpu_custom_call.1} parent=5 // pred_region
        // Predicated region
        $region61: #{tpu_custom_call.1} parent=59 // pred_check
          %p485 = pneg %p52
        $region62: #{tpu_custom_call.1} parent=59 // pred_check_branch
          %487 = sbr.rel (%p485) target = $region64
        $region63: #{tpu_custom_call.1} parent=59 // pred_region
          %s488 = sand.u32 %s42, 1
          %s489 = scalar_lea.sflag [#allocation3], %s488
          %s490 = sand.u32 %s42, 1
          %s491 = smul.addr %s490, 8
          %s492 = scalar_lea.vmem [#allocation2], %s491
          %s494 = ssub.s32 128, 128
          %495 = vsyncadd %s489, %s494
          %s496 = smul.addr %s32, 128
          %s497 = scalar_lea.hbm %s0, %s496
          %s499 = sshll.u32 %s492, 4
          %s500 = int_to_ptr.vmem [resolvable:$true] %s499
          %502 = dma.hbm_to_vmem [thread:$0]  %s497, 128, %s500, %s489
        $region64: #{tpu_custom_call.1} parent=59 // pred_fallthru
          _
        // Predicated region
        $region65: #{tpu_custom_call.1} parent=59 // pred_check
          %p503 = pneg %p78
        $region66: #{tpu_custom_call.1} parent=59 // pred_check_branch
          %505 = sbr.rel (%p503) target = $region68
        $region67: #{tpu_custom_call.1} parent=59 // pred_region
          %s506 = sand.u32 %s32, 1
          %s507 = scalar_lea.sflag [#allocation6], %s506
          %s508 = sand.u32 %s68, 1
          %s509 = smul.addr %s508, 8
          %s510 = scalar_lea.vmem [#allocation5], %s509
          %s512 = ssub.s32 128, 128
          %513 = vsyncadd %s507, %s512
          %s514 = smul.addr %s32, 128
          %s515 = scalar_lea.hbm %s1, %s514
          %s517 = sshll.u32 %s510, 4
          %s518 = int_to_ptr.vmem [resolvable:$true] %s517
          %520 = dma.hbm_to_vmem [thread:$0]  %s515, 128, %s518, %s507
        $region68: #{tpu_custom_call.1} parent=59 // pred_fallthru
          _
        // Predicated region
        $region69: #{tpu_custom_call.1} parent=59 // pred_check
          %p521 = pneg %p104
        $region70: #{tpu_custom_call.1} parent=59 // pred_check_branch
          %523 = sbr.rel (%p521) target = $region72
        $region71: #{tpu_custom_call.1} parent=59 // pred_region
          %s524 = sand.u32 %s32, 1
          %s525 = scalar_lea.sflag [#allocation6], %s524
          %s526 = sand.u32 %s94, 1
          %s527 = smul.addr %s526, 8
          %s528 = scalar_lea.vmem [#allocation7], %s527
          %s530 = ssub.s32 128, 128
          %531 = vsyncadd %s525, %s530
          %s532 = smul.addr %s32, 128
          %s533 = scalar_lea.hbm %s2, %s532
          %s535 = sshll.u32 %s528, 4
          %s536 = int_to_ptr.vmem [resolvable:$true] %s535
          %538 = dma.hbm_to_vmem [thread:$0]  %s533, 128, %s536, %s525
        $region72: #{tpu_custom_call.1} parent=59 // pred_fallthru
          _
        // Predicated region
        $region73: #{tpu_custom_call.1} parent=59 // pred_check
          %p539 = pneg %p130
        $region74: #{tpu_custom_call.1} parent=59 // pred_check_branch
          %541 = sbr.rel (%p539) target = $region76
        $region75: #{tpu_custom_call.1} parent=59 // pred_region
          %p542 = scmp.lt.s32.totalorder %s32, 1
          %s543 = scalar_select %p542, %s32, 1
          %s544 = smul.addr %s543, 8
          %s545 = scalar_lea.vmem %s3, %s544
        $region76: #{tpu_custom_call.1} parent=59 // pred_fallthru
          _
      $region60: #{tpu_custom_call.1} parent=5 // pred_fallthru
        _
      %p546 = scmp.le.s32.totalorder 1, %s32
      %p547 = scmp.lt.s32.totalorder %s32, 3
      %p548 = pnand %p546, %p547
      %p549 = pneg %p548
      // Predicated region
      $region77: #{tpu_custom_call.1} parent=5 // pred_check
        _
      $region78: #{tpu_custom_call.1} parent=5 // pred_check_branch
        %551 = sbr.rel (%p548) target = $region80
      $region79: #{tpu_custom_call.1} parent=5 // pred_region
        %s552 = ssub.s32 %s32, 1
        %s553 = sand.u32 %s45, 1
        %s554 = scalar_lea.sflag [#allocation3], %s553
        %s555 = sand.u32 %s45, 1
        %s556 = smul.addr %s555, 8
        %s557 = scalar_lea.vmem [#allocation2], %s556
        // Predicated region
        $region81: #{tpu_custom_call.1} parent=79 // pred_check
          %p558 = pneg %p58
        $region82: #{tpu_custom_call.1} parent=79 // pred_check_branch
          %560 = sbr.rel (%p558) target = $region84
        $region83: #{tpu_custom_call.1} parent=79 // pred_region
          %561 = dma.done %s554, 128
        $region84: #{tpu_custom_call.1} parent=79 // pred_fallthru
          _
        %s562 = sand.u32 %s37, 1
        %s563 = scalar_lea.sflag [#allocation6], %s562
        %s564 = sand.u32 %s71, 1
        %s565 = smul.addr %s564, 8
        %s566 = scalar_lea.vmem [#allocation5], %s565
        // Predicated region
        $region85: #{tpu_custom_call.1} parent=79 // pred_check
          %p567 = pneg %p84
        $region86: #{tpu_custom_call.1} parent=79 // pred_check_branch
          %569 = sbr.rel (%p567) target = $region88
        $region87: #{tpu_custom_call.1} parent=79 // pred_region
          %570 = dma.done %s563, 128
        $region88: #{tpu_custom_call.1} parent=79 // pred_fallthru
          _
        %s571 = sand.u32 %s37, 1
        %s572 = scalar_lea.sflag [#allocation6], %s571
        %s573 = sand.u32 %s97, 1
        %s574 = smul.addr %s573, 8
        %s575 = scalar_lea.vmem [#allocation7], %s574
        // Predicated region
        $region89: #{tpu_custom_call.1} parent=79 // pred_check
          %p576 = pneg %p110
        $region90: #{tpu_custom_call.1} parent=79 // pred_check_branch
          %578 = sbr.rel (%p576) target = $region92
        $region91: #{tpu_custom_call.1} parent=79 // pred_region
          %579 = dma.done %s572, 128
        $region92: #{tpu_custom_call.1} parent=79 // pred_fallthru
          _
        // Predicated region
        $region93: #{tpu_custom_call.1} parent=79 // pred_check
          %p580 = pneg %p157
        $region94: #{tpu_custom_call.1} parent=79 // pred_check_branch
          %582 = sbr.rel (%p580) target = $region96
        $region95: #{tpu_custom_call.1} parent=79 // pred_region
          %583 = dma.done [#allocation9], 512
        $region96: #{tpu_custom_call.1} parent=79 // pred_fallthru
          _
        // Predicated region
        $region97: #{tpu_custom_call.1} parent=79 // pred_check
          %p584 = pneg %p241
        $region98: #{tpu_custom_call.1} parent=79 // pred_check_branch
          %586 = sbr.rel (%p584) target = $region100
        $region99: #{tpu_custom_call.1} parent=79 // pred_region
          %587 = dma.done [#allocation9], 512
        $region100: #{tpu_custom_call.1} parent=79 // pred_fallthru
          _
        // Predicated region
        $region101: #{tpu_custom_call.1} parent=79 // pred_check
          %p588 = pneg %p283
        $region102: #{tpu_custom_call.1} parent=79 // pred_check_branch
          %590 = sbr.rel (%p588) target = $region104
        $region103: #{tpu_custom_call.1} parent=79 // pred_region
          %591 = dma.done [#allocation12], 512
        $region104: #{tpu_custom_call.1} parent=79 // pred_fallthru
          _
        // Predicated region
        $region105: #{tpu_custom_call.1} parent=79 // pred_check
          %p592 = pneg %p304
        $region106: #{tpu_custom_call.1} parent=79 // pred_check_branch
          %594 = sbr.rel (%p592) target = $region108
        $region107: #{tpu_custom_call.1} parent=79 // pred_region
          %595 = dma.done [#allocation12], 512
        $region108: #{tpu_custom_call.1} parent=79 // pred_fallthru
          _
        %s596 = sand.u32 %s45, 1
        %s597 = scalar_lea.sflag [#allocation3], %s596
        %s598 = sand.u32 %s45, 1
        %s599 = smul.addr %s598, 8
        %s600 = scalar_lea.vmem [#allocation2], %s599
        %p601 = pneg %p58
        %p602 = pneg %p55
        %s603 = sand.u32 %s37, 1
        %s604 = scalar_lea.sflag [#allocation6], %s603
        %s605 = sand.u32 %s71, 1
        %s606 = smul.addr %s605, 8
        %s607 = scalar_lea.vmem [#allocation5], %s606
        %p608 = pneg %p84
        %p609 = pneg %p81
        %s610 = sand.u32 %s37, 1
        %s611 = scalar_lea.sflag [#allocation6], %s610
        %s612 = sand.u32 %s97, 1
        %s613 = smul.addr %s612, 8
        %s614 = scalar_lea.vmem [#allocation7], %s613
        %p615 = pneg %p110
        %p616 = pneg %p107
        %p617 = scmp.lt.s32.totalorder %s37, 1
        %s618 = scalar_select %p617, %s37, 1
        %s619 = smul.addr %s618, 8
        %s620 = scalar_lea.vmem %s3, %s619
        %p621 = pneg %p136
        %p622 = pneg %p133
        %p623 = pneg %p157
        %p624 = pneg %p154
        %p625 = pneg %p178
        %p626 = pneg %p175
        %p627 = pneg %p199
        %p628 = pneg %p196
        %p629 = pneg %p220
        %p630 = pneg %p217
        %p631 = pneg %p241
        %p632 = pneg %p238
        %p633 = pneg %p262
        %p634 = pneg %p259
        %p635 = pneg %p283
        %p636 = pneg %p280
        %p637 = pneg %p304
        %p638 = pneg %p301
        %p639 = pneg %p325
        %p640 = pneg %p322
        %p641 = pneg %p346
        %p642 = pneg %p343
        %p643 = pneg %p367
        %p644 = pneg %p364
        %p645 = pneg %p393
        %p646 = pneg %p390
        %s647 = sand.u32 %s380, 1
        %s648 = scalar_lea.sflag [#allocation4], %s647
        %s649 = sand.u32 %s380, 1
        %s650 = smul.addr %s649, 8
        %s651 = scalar_lea.vmem [#allocation14], %s650
        %p652 = scmp.lt.s32.totalorder %s37, 1
        %s653 = scalar_select %p652, %s37, 1
        %s654 = smul.addr %s653, 8
        %s655 = scalar_lea.vmem %s3, %s654
        %v656 = vld [vmem:[%s557] sm:$0xff]
        %v657 = vld [vmem:[%s566] sm:$0xff]
        %v658 = vld [vmem:[%s575] sm:$0xff]
        %v659 = vld [vmem:[#allocation8] sm:$0xff]
        %v660 = vld [vmem:[#allocation8 + $0x8] sm:$0xff]
        %v661 = vld [vmem:[#allocation8 + $0x10] sm:$0xff]
        %v662 = vld [vmem:[#allocation8 + $0x18] sm:$0xff]
        %v663 = vld [vmem:[%s5] sm:$0x1]
        %v665 = vlaneseq
        %v666 = vshrl.u32 %v665, 7
        %v667 = vsub.s32 0, %v666
        %v668 = vrot.slane %v663, %v667
        %vm670 = vcmask 261120
        %v672 = vsel %vm670, %v656, 0
        %674 = vmatprep.subr.mxu0 0.0
        %675 = vmatpush1.msra.mxu0 0.0
        %676 = vmatprep.subr.mxu0 0.0
        %677 = vmatpush1.msra.mxu0 0.0
        %678 = vmatprep.subr.mxu0 0.0
        %679 = vmatpush1.msra.mxu0 0.0
        %680 = vmatprep.subr.mxu0 0.0
        %681 = vmatpush1.msra.mxu0 0.0
        %682 = vmatprep.subr.mxu0 0.0
        %683 = vmatpush1.msra.mxu0 0.0
        %684 = vmatprep.subr.mxu0 0.0
        %685 = vmatpush1.msra.mxu0 0.0
        %686 = vmatprep.subr.mxu0 0.0
        %687 = vmatpush1.msra.mxu0 0.0
        %688 = vmatprep.subr.mxu0 0.0
        %689 = vmatpush1.msra.mxu0 0.0
        %690 = vmatprep.subr.mxu0 0.0
        %691 = vmatpush1.msra.mxu0 0.0
        %692 = vmatprep.subr.mxu0 0.0
        %693 = vmatpush1.msra.mxu0 0.0
        %694 = vmatprep.subr.mxu0 0.0
        %695 = vmatpush1.msra.mxu0 0.0
        %696 = vmatprep.subr.mxu0 0.0
        %697 = vmatpush1.msra.mxu0 0.0
        %698 = vmatprep.subr.mxu0 0.0
        %699 = vmatpush1.msra.mxu0 %v662
        %700 = vmatprep.subr.mxu0 0.0
        %701 = vmatpush1.msra.mxu0 %v661
        %702 = vmatprep.subr.mxu0 0.0
        %703 = vmatpush1.msra.mxu0 %v660
        %704 = vmatprep.subr.mxu0 0.0
        %705 = vmatpush1.msra.mxu0 %v659
        %706 = vmatprep.subr.mxu0 0.0
        %707 = vmatpush2.msra.mxu0 0.0
        %708 = vmatprep.subr.mxu0 0.0
        %709 = vmatpush2.msra.mxu0 0.0
        %710 = vmatprep.subr.mxu0 0.0
        %711 = vmatpush2.msra.mxu0 0.0
        %712 = vmatprep.subr.mxu0 0.0
        %713 = vmatpush2.msra.mxu0 0.0
        %714 = vmatprep.subr.mxu0 0.0
        %715 = vmatpush2.msra.mxu0 0.0
        %716 = vmatprep.subr.mxu0 0.0
        %717 = vmatpush2.msra.mxu0 0.0
        %718 = vmatprep.subr.mxu0 0.0
        %719 = vmatpush2.msra.mxu0 0.0
        %720 = vmatprep.subr.mxu0 0.0
        %721 = vmatpush2.msra.mxu0 0.0
        %722 = vmatprep.subr.mxu0 0.0
        %723 = vmatpush2.msra.mxu0 0.0
        %724 = vmatprep.subr.mxu0 0.0
        %725 = vmatpush2.msra.mxu0 0.0
        %726 = vmatprep.subr.mxu0 0.0
        %727 = vmatpush2.msra.mxu0 0.0
        %728 = vmatprep.subr.mxu0 0.0
        %729 = vmatpush2.msra.mxu0 0.0
        %730 = vmatprep.subr.mxu0 0.0
        %731 = vmatpush2.msra.mxu0 0.0
        %732 = vmatprep.subr.mxu0 0.0
        %733 = vmatpush2.msra.mxu0 0.0
        %734 = vmatprep.subr.mxu0 0.0
        %735 = vmatpush2.msra.mxu0 0.0
        %736 = vmatprep.subr.mxu0 0.0
        %737 = vmatpush2.msra.mxu0 0.0
        %738 = vmatprep.mubr.f32.mxu0 0.0
        %739 = vmatmul.mubr.f32.gmra.mxu0 %v672
        %v740 = vpop.f32.mrf.mxu0
        %v741 = vadd.f32 %v668, %v740
        %v742 = vpop.f32.mrf.mxu0
        %743 = vdwg.mxu0
        %v744 = vld [vmem:[%s12] sm:$0x1]
        %v746 = vlaneseq
        %v747 = vshrl.u32 %v746, 7
        %v748 = vsub.s32 0, %v747
        %v749 = vrot.slane %v744, %v748
        %750 = vrot.lane.b32.xlu0 %v749, 32
        %v751 = vpop.permute.xlu0 %750
        %v753 = vadd.f32 %v741, %v751
        %v754 = vld [vmem:[%s6] sm:$0xff]
        %v755 = vld [vmem:[%s6 + $0x8] sm:$0xff]
        %v756 = vld [vmem:[%s6 + $0x10] sm:$0xff]
        %v757 = vld [vmem:[%s6 + $0x18] sm:$0xff]
        %v758 = vld [vmem:[%s7] sm:$0x1]
        %v760 = vlaneseq
        %v761 = vshrl.u32 %v760, 7
        %v762 = vsub.s32 0, %v761
        %v763 = vrot.slane %v758, %v762
        %v766 = vsel %vm670, %v657, 0
        %768 = vmatprep.subr.mxu0 0.0
        %769 = vmatpush1.msra.mxu0 0.0
        %770 = vmatprep.subr.mxu0 0.0
        %771 = vmatpush1.msra.mxu0 0.0
        %772 = vmatprep.subr.mxu0 0.0
        %773 = vmatpush1.msra.mxu0 0.0
        %774 = vmatprep.subr.mxu0 0.0
        %775 = vmatpush1.msra.mxu0 0.0
        %776 = vmatprep.subr.mxu0 0.0
        %777 = vmatpush1.msra.mxu0 0.0
        %778 = vmatprep.subr.mxu0 0.0
        %779 = vmatpush1.msra.mxu0 0.0
        %780 = vmatprep.subr.mxu0 0.0
        %781 = vmatpush1.msra.mxu0 0.0
        %782 = vmatprep.subr.mxu0 0.0
        %783 = vmatpush1.msra.mxu0 0.0
        %784 = vmatprep.subr.mxu0 0.0
        %785 = vmatpush1.msra.mxu0 0.0
        %786 = vmatprep.subr.mxu0 0.0
        %787 = vmatpush1.msra.mxu0 0.0
        %788 = vmatprep.subr.mxu0 0.0
        %789 = vmatpush1.msra.mxu0 0.0
        %790 = vmatprep.subr.mxu0 0.0
        %791 = vmatpush1.msra.mxu0 0.0
        %792 = vmatprep.subr.mxu0 0.0
        %793 = vmatpush1.msra.mxu0 %v757
        %794 = vmatprep.subr.mxu0 0.0
        %795 = vmatpush1.msra.mxu0 %v756
        %796 = vmatprep.subr.mxu0 0.0
        %797 = vmatpush1.msra.mxu0 %v755
        %798 = vmatprep.subr.mxu0 0.0
        %799 = vmatpush1.msra.mxu0 %v754
        %800 = vmatprep.subr.mxu0 0.0
        %801 = vmatpush2.msra.mxu0 0.0
        %802 = vmatprep.subr.mxu0 0.0
        %803 = vmatpush2.msra.mxu0 0.0
        %804 = vmatprep.subr.mxu0 0.0
        %805 = vmatpush2.msra.mxu0 0.0
        %806 = vmatprep.subr.mxu0 0.0
        %807 = vmatpush2.msra.mxu0 0.0
        %808 = vmatprep.subr.mxu0 0.0
        %809 = vmatpush2.msra.mxu0 0.0
        %810 = vmatprep.subr.mxu0 0.0
        %811 = vmatpush2.msra.mxu0 0.0
        %812 = vmatprep.subr.mxu0 0.0
        %813 = vmatpush2.msra.mxu0 0.0
        %814 = vmatprep.subr.mxu0 0.0
        %815 = vmatpush2.msra.mxu0 0.0
        %816 = vmatprep.subr.mxu0 0.0
        %817 = vmatpush2.msra.mxu0 0.0
        %818 = vmatprep.subr.mxu0 0.0
        %819 = vmatpush2.msra.mxu0 0.0
        %820 = vmatprep.subr.mxu0 0.0
        %821 = vmatpush2.msra.mxu0 0.0
        %822 = vmatprep.subr.mxu0 0.0
        %823 = vmatpush2.msra.mxu0 0.0
        %824 = vmatprep.subr.mxu0 0.0
        %825 = vmatpush2.msra.mxu0 0.0
        %826 = vmatprep.subr.mxu0 0.0
        %827 = vmatpush2.msra.mxu0 0.0
        %828 = vmatprep.subr.mxu0 0.0
        %829 = vmatpush2.msra.mxu0 0.0
        %830 = vmatprep.subr.mxu0 0.0
        %831 = vmatpush2.msra.mxu0 0.0
        %832 = vmatprep.mubr.f32.mxu0 0.0
        %833 = vmatmul.mubr.f32.gmra.mxu0 %v766
        %v834 = vpop.f32.mrf.mxu0
        %v835 = vadd.f32 %v763, %v834
        %v836 = vpop.f32.mrf.mxu0
        %837 = vdwg.mxu0
        %v838 = vld [vmem:[#allocation10] sm:$0xff]
        %v839 = vld [vmem:[#allocation10 + $0x8] sm:$0xff]
        %v840 = vld [vmem:[#allocation10 + $0x10] sm:$0xff]
        %v841 = vld [vmem:[#allocation10 + $0x18] sm:$0xff]
        %v842 = vld [vmem:[%s9] sm:$0x1]
        %v844 = vlaneseq
        %v845 = vshrl.u32 %v844, 7
        %v846 = vsub.s32 0, %v845
        %v847 = vrot.slane %v842, %v846
        %v850 = vsel %vm670, %v658, 0
        %852 = vmatprep.subr.mxu0 0.0
        %853 = vmatpush1.msra.mxu0 0.0
        %854 = vmatprep.subr.mxu0 0.0
        %855 = vmatpush1.msra.mxu0 0.0
        %856 = vmatprep.subr.mxu0 0.0
        %857 = vmatpush1.msra.mxu0 0.0
        %858 = vmatprep.subr.mxu0 0.0
        %859 = vmatpush1.msra.mxu0 0.0
        %860 = vmatprep.subr.mxu0 0.0
        %861 = vmatpush1.msra.mxu0 0.0
        %862 = vmatprep.subr.mxu0 0.0
        %863 = vmatpush1.msra.mxu0 0.0
        %864 = vmatprep.subr.mxu0 0.0
        %865 = vmatpush1.msra.mxu0 0.0
        %866 = vmatprep.subr.mxu0 0.0
        %867 = vmatpush1.msra.mxu0 0.0
        %868 = vmatprep.subr.mxu0 0.0
        %869 = vmatpush1.msra.mxu0 0.0
        %870 = vmatprep.subr.mxu0 0.0
        %871 = vmatpush1.msra.mxu0 0.0
        %872 = vmatprep.subr.mxu0 0.0
        %873 = vmatpush1.msra.mxu0 0.0
        %874 = vmatprep.subr.mxu0 0.0
        %875 = vmatpush1.msra.mxu0 0.0
        %876 = vmatprep.subr.mxu0 0.0
        %877 = vmatpush1.msra.mxu0 %v841
        %878 = vmatprep.subr.mxu0 0.0
        %879 = vmatpush1.msra.mxu0 %v840
        %880 = vmatprep.subr.mxu0 0.0
        %881 = vmatpush1.msra.mxu0 %v839
        %882 = vmatprep.subr.mxu0 0.0
        %883 = vmatpush1.msra.mxu0 %v838
        %884 = vmatprep.subr.mxu0 0.0
        %885 = vmatpush2.msra.mxu0 0.0
        %886 = vmatprep.subr.mxu0 0.0
        %887 = vmatpush2.msra.mxu0 0.0
        %888 = vmatprep.subr.mxu0 0.0
        %889 = vmatpush2.msra.mxu0 0.0
        %890 = vmatprep.subr.mxu0 0.0
        %891 = vmatpush2.msra.mxu0 0.0
        %892 = vmatprep.subr.mxu0 0.0
        %893 = vmatpush2.msra.mxu0 0.0
        %894 = vmatprep.subr.mxu0 0.0
        %895 = vmatpush2.msra.mxu0 0.0
        %896 = vmatprep.subr.mxu0 0.0
        %897 = vmatpush2.msra.mxu0 0.0
        %898 = vmatprep.subr.mxu0 0.0
        %899 = vmatpush2.msra.mxu0 0.0
        %900 = vmatprep.subr.mxu0 0.0
        %901 = vmatpush2.msra.mxu0 0.0
        %902 = vmatprep.subr.mxu0 0.0
        %903 = vmatpush2.msra.mxu0 0.0
        %904 = vmatprep.subr.mxu0 0.0
        %905 = vmatpush2.msra.mxu0 0.0
        %906 = vmatprep.subr.mxu0 0.0
        %907 = vmatpush2.msra.mxu0 0.0
        %908 = vmatprep.subr.mxu0 0.0
        %909 = vmatpush2.msra.mxu0 0.0
        %910 = vmatprep.subr.mxu0 0.0
        %911 = vmatpush2.msra.mxu0 0.0
        %912 = vmatprep.subr.mxu0 0.0
        %913 = vmatpush2.msra.mxu0 0.0
        %914 = vmatprep.subr.mxu0 0.0
        %915 = vmatpush2.msra.mxu0 0.0
        %916 = vmatprep.mubr.f32.mxu0 0.0
        %917 = vmatmul.mubr.f32.gmra.mxu0 %v850
        %v918 = vpop.f32.mrf.mxu0
        %v919 = vadd.f32 %v847, %v918
        %v920 = vpop.f32.mrf.mxu0
        %921 = vdwg.mxu0
        %v922 = vld [vmem:[#allocation11] sm:$0xff]
        %v923 = vld [vmem:[#allocation11 + $0x8] sm:$0xff]
        %v924 = vld [vmem:[#allocation11 + $0x10] sm:$0xff]
        %v925 = vld [vmem:[#allocation11 + $0x18] sm:$0xff]
        %v927 = vsel %vm670, %v741, 0
        %929 = vmatprep.subr.mxu0 0.0
        %930 = vmatpush1.msra.mxu0 0.0
        %931 = vmatprep.subr.mxu0 0.0
        %932 = vmatpush1.msra.mxu0 0.0
        %933 = vmatprep.subr.mxu0 0.0
        %934 = vmatpush1.msra.mxu0 0.0
        %935 = vmatprep.subr.mxu0 0.0
        %936 = vmatpush1.msra.mxu0 0.0
        %937 = vmatprep.subr.mxu0 0.0
        %938 = vmatpush1.msra.mxu0 0.0
        %939 = vmatprep.subr.mxu0 0.0
        %940 = vmatpush1.msra.mxu0 0.0
        %941 = vmatprep.subr.mxu0 0.0
        %942 = vmatpush1.msra.mxu0 0.0
        %943 = vmatprep.subr.mxu0 0.0
        %944 = vmatpush1.msra.mxu0 0.0
        %945 = vmatprep.subr.mxu0 0.0
        %946 = vmatpush1.msra.mxu0 0.0
        %947 = vmatprep.subr.mxu0 0.0
        %948 = vmatpush1.msra.mxu0 0.0
        %949 = vmatprep.subr.mxu0 0.0
        %950 = vmatpush1.msra.mxu0 0.0
        %951 = vmatprep.subr.mxu0 0.0
        %952 = vmatpush1.msra.mxu0 0.0
        %953 = vmatprep.subr.mxu0 0.0
        %954 = vmatpush1.msra.mxu0 %v925
        %955 = vmatprep.subr.mxu0 0.0
        %956 = vmatpush1.msra.mxu0 %v924
        %957 = vmatprep.subr.mxu0 0.0
        %958 = vmatpush1.msra.mxu0 %v923
        %959 = vmatprep.subr.mxu0 0.0
        %960 = vmatpush1.msra.mxu0 %v922
        %961 = vmatprep.subr.mxu0 0.0
        %962 = vmatpush2.msra.mxu0 0.0
        %963 = vmatprep.subr.mxu0 0.0
        %964 = vmatpush2.msra.mxu0 0.0
        %965 = vmatprep.subr.mxu0 0.0
        %966 = vmatpush2.msra.mxu0 0.0
        %967 = vmatprep.subr.mxu0 0.0
        %968 = vmatpush2.msra.mxu0 0.0
        %969 = vmatprep.subr.mxu0 0.0
        %970 = vmatpush2.msra.mxu0 0.0
        %971 = vmatprep.subr.mxu0 0.0
        %972 = vmatpush2.msra.mxu0 0.0
        %973 = vmatprep.subr.mxu0 0.0
        %974 = vmatpush2.msra.mxu0 0.0
        %975 = vmatprep.subr.mxu0 0.0
        %976 = vmatpush2.msra.mxu0 0.0
        %977 = vmatprep.subr.mxu0 0.0
        %978 = vmatpush2.msra.mxu0 0.0
        %979 = vmatprep.subr.mxu0 0.0
        %980 = vmatpush2.msra.mxu0 0.0
        %981 = vmatprep.subr.mxu0 0.0
        %982 = vmatpush2.msra.mxu0 0.0
        %983 = vmatprep.subr.mxu0 0.0
        %984 = vmatpush2.msra.mxu0 0.0
        %985 = vmatprep.subr.mxu0 0.0
        %986 = vmatpush2.msra.mxu0 0.0
        %987 = vmatprep.subr.mxu0 0.0
        %988 = vmatpush2.msra.mxu0 0.0
        %989 = vmatprep.subr.mxu0 0.0
        %990 = vmatpush2.msra.mxu0 0.0
        %991 = vmatprep.subr.mxu0 0.0
        %992 = vmatpush2.msra.mxu0 0.0
        %993 = vmatprep.mubr.f32.mxu0 0.0
        %994 = vmatmul.mubr.f32.gmra.mxu0 %v927
        %v995 = vpop.f32.mrf.mxu0
        %v996 = vadd.f32 0.0, %v995
        %v997 = vpop.f32.mrf.mxu0
        %998 = vdwg.mxu0
        %1000 = vrot.lane.b32.xlu0 %v996, 96
        %v1001 = vpop.permute.xlu0 %1000
        %1003 = vrot.lane.b32.xlu0 %v996, 64
        %v1004 = vpop.permute.xlu0 %1003
        %1006 = vrot.lane.b32.xlu0 %v996, 32
        %v1007 = vpop.permute.xlu0 %1006
        %v1009 = vcombine.low %v996, %v1004
        %v1010 = vcombine.high %v996, %v1004
        %v1012 = vunpack.c.l.s4 1983009808
        %v1013 = vunpack.c.0.s8 %v1012
        %v1014 = vlaneseq
        %v1015 = vshrl.u32 %v1014, 7
        %v1016 = vsub.s32 %v1013, %v1015
        %v1017 = vrot.slane %v1009, %v1016
        %v1019 = vunpack.c.l.s4 1983009808
        %v1020 = vunpack.c.0.s8 %v1019
        %v1021 = vlaneseq
        %v1022 = vshrl.u32 %v1021, 7
        %v1023 = vsub.s32 %v1020, %v1022
        %v1024 = vrot.slane %v1010, %v1023
        %v1025 = vcombine.low %v1001, %v1007
        %v1026 = vcombine.high %v1001, %v1007
        %v1028 = vunpack.c.l.s4 1983009808
        %v1029 = vunpack.c.0.s8 %v1028
        %v1030 = vlaneseq
        %v1031 = vshrl.u32 %v1030, 7
        %v1032 = vsub.s32 %v1029, %v1031
        %v1033 = vrot.slane %v1025, %v1032
        %v1035 = vunpack.c.l.s4 1983009808
        %v1036 = vunpack.c.0.s8 %v1035
        %v1037 = vlaneseq
        %v1038 = vshrl.u32 %v1037, 7
        %v1039 = vsub.s32 %v1036, %v1038
        %v1040 = vrot.slane %v1026, %v1039
        %v1041 = vcombine.low %v1017, %v1033
        %v1042 = vcombine.high %v1017, %v1033
        %v1044 = vunpack.c.l.s4 1934713408
        %v1045 = vunpack.c.0.s8 %v1044
        %v1046 = vlaneseq
        %v1047 = vshrl.u32 %v1046, 7
        %v1048 = vsub.s32 %v1045, %v1047
        %v1049 = vrot.slane %v1041, %v1048
        %v1051 = vunpack.c.l.s4 1934713408
        %v1052 = vunpack.c.0.s8 %v1051
        %v1053 = vlaneseq
        %v1054 = vshrl.u32 %v1053, 7
        %v1055 = vsub.s32 %v1052, %v1054
        %v1056 = vrot.slane %v1042, %v1055
        %v1057 = vcombine.low %v1024, %v1040
        %v1058 = vcombine.high %v1024, %v1040
        %v1060 = vunpack.c.l.s4 1934713408
        %v1061 = vunpack.c.0.s8 %v1060
        %v1062 = vlaneseq
        %v1063 = vshrl.u32 %v1062, 7
        %v1064 = vsub.s32 %v1061, %v1063
        %v1065 = vrot.slane %v1057, %v1064
        %v1067 = vunpack.c.l.s4 1934713408
        %v1068 = vunpack.c.0.s8 %v1067
        %v1069 = vlaneseq
        %v1070 = vshrl.u32 %v1069, 7
        %v1071 = vsub.s32 %v1068, %v1070
        %v1072 = vrot.slane %v1058, %v1071
        %v1073 = vcombine.high %v1049, 0.0
        %v1074 = vcombine.high %v1056, 0.0
        %v1075 = vcombine.high %v1065, 0.0
        %v1076 = vcombine.high %v1072, 0.0
        %v1077 = vld [vmem:[%s655] sm:$0xff]
        %v1078 = vlaneseq
        %v1079 = vand.u32 %v1078, 127
        %v1080 = vlaneseq
        %v1081 = vshrl.u32 %v1080, 7
        %v1082 = vsub.s32 0, %v1081
        %v1083 = vrot.slane %v1077, %v1082
        %1085 = vbcast.lane.b32.xlu0 %v1083, 256
        %v1086 = vpop.permute.xlu0 %1085
        %v1087 = vlaneseq
        %v1088 = vshrl.u32 %v1087, 7
        %v1089 = vsub.s32 1, %v1088
        %v1090 = vrot.slane %v1077, %v1089
        %1092 = vbcast.lane.b32.xlu0 %v1090, 256
        %v1093 = vpop.permute.xlu0 %1092
        %v1094 = vlaneseq
        %v1095 = vshrl.u32 %v1094, 7
        %v1096 = vsub.s32 2, %v1095
        %v1097 = vrot.slane %v1077, %v1096
        %1099 = vbcast.lane.b32.xlu0 %v1097, 256
        %v1100 = vpop.permute.xlu0 %1099
        %v1101 = vlaneseq
        %v1102 = vshrl.u32 %v1101, 7
        %v1103 = vsub.s32 3, %v1102
        %v1104 = vrot.slane %v1077, %v1103
        %1106 = vbcast.lane.b32.xlu0 %v1104, 256
        %v1107 = vpop.permute.xlu0 %1106
        %v1108 = vlaneseq
        %v1109 = vshrl.u32 %v1108, 7
        %v1110 = vsub.s32 4, %v1109
        %v1111 = vrot.slane %v1077, %v1110
        %1113 = vbcast.lane.b32.xlu0 %v1111, 256
        %v1114 = vpop.permute.xlu0 %1113
        %v1115 = vlaneseq
        %v1116 = vshrl.u32 %v1115, 7
        %v1117 = vsub.s32 5, %v1116
        %v1118 = vrot.slane %v1077, %v1117
        %1120 = vbcast.lane.b32.xlu0 %v1118, 256
        %v1121 = vpop.permute.xlu0 %1120
        %v1122 = vlaneseq
        %v1123 = vshrl.u32 %v1122, 7
        %v1124 = vsub.s32 6, %v1123
        %v1125 = vrot.slane %v1077, %v1124
        %1127 = vbcast.lane.b32.xlu0 %v1125, 256
        %v1128 = vpop.permute.xlu0 %1127
        %v1129 = vlaneseq
        %v1130 = vshrl.u32 %v1129, 7
        %v1131 = vsub.s32 7, %v1130
        %v1132 = vrot.slane %v1077, %v1131
        %1134 = vbcast.lane.b32.xlu0 %v1132, 256
        %v1135 = vpop.permute.xlu0 %1134
        %vm1136 = vcmp.eq.s32.totalorder %v1086, %v1079
        %vm1137 = vcmp.eq.s32.totalorder %v1093, %v1079
        %vm1138 = vcmp.eq.s32.totalorder %v1100, %v1079
        %vm1139 = vcmp.eq.s32.totalorder %v1107, %v1079
        %vm1140 = vcmp.eq.s32.totalorder %v1114, %v1079
        %vm1141 = vcmp.eq.s32.totalorder %v1121, %v1079
        %vm1142 = vcmp.eq.s32.totalorder %v1128, %v1079
        %vm1143 = vcmp.eq.s32.totalorder %v1135, %v1079
        %v1144 = vsel %vm1136, 1, 0
        %v1145 = vsel %vm1137, 1, 0
        %v1146 = vsel %vm1138, 1, 0
        %v1147 = vsel %vm1139, 1, 0
        %v1148 = vsel %vm1140, 1, 0
        %v1149 = vsel %vm1141, 1, 0
        %v1150 = vsel %vm1142, 1, 0
        %v1151 = vsel %vm1143, 1, 0
        %v1152 = vcvt.s32.f32 %v1144
        %v1153 = vcvt.s32.f32 %v1145
        %v1154 = vcvt.s32.f32 %v1146
        %v1155 = vcvt.s32.f32 %v1147
        %v1156 = vcvt.s32.f32 %v1148
        %v1157 = vcvt.s32.f32 %v1149
        %v1158 = vcvt.s32.f32 %v1150
        %v1159 = vcvt.s32.f32 %v1151
        %v1161 = vsel %vm670, %v1049, 0
        %v1164 = vsel %vm670, %v1152, 0
        %1166 = vmatprep.subr.mxu0 0.0
        %1167 = vmatpush1.xpose.msra.mxu0 0.0
        %1168 = vmatprep.subr.mxu0 0.0
        %1169 = vmatpush1.xpose.msra.mxu0 0.0
        %1170 = vmatprep.subr.mxu0 0.0
        %1171 = vmatpush1.xpose.msra.mxu0 0.0
        %1172 = vmatprep.subr.mxu0 0.0
        %1173 = vmatpush1.xpose.msra.mxu0 0.0
        %1174 = vmatprep.subr.mxu0 0.0
        %1175 = vmatpush1.xpose.msra.mxu0 0.0
        %1176 = vmatprep.subr.mxu0 0.0
        %1177 = vmatpush1.xpose.msra.mxu0 0.0
        %1178 = vmatprep.subr.mxu0 0.0
        %1179 = vmatpush1.xpose.msra.mxu0 0.0
        %1180 = vmatprep.subr.mxu0 0.0
        %1181 = vmatpush1.xpose.msra.mxu0 0.0
        %1182 = vmatprep.subr.mxu0 0.0
        %1183 = vmatpush1.xpose.msra.mxu0 0.0
        %1184 = vmatprep.subr.mxu0 0.0
        %1185 = vmatpush1.xpose.msra.mxu0 0.0
        %1186 = vmatprep.subr.mxu0 0.0
        %1187 = vmatpush1.xpose.msra.mxu0 0.0
        %1188 = vmatprep.subr.mxu0 0.0
        %1189 = vmatpush1.xpose.msra.mxu0 0.0
        %1190 = vmatprep.subr.mxu0 0.0
        %1191 = vmatpush1.xpose.msra.mxu0 0.0
        %1192 = vmatprep.subr.mxu0 0.0
        %1193 = vmatpush1.xpose.msra.mxu0 0.0
        %1194 = vmatprep.subr.mxu0 0.0
        %1195 = vmatpush1.xpose.msra.mxu0 0.0
        %1196 = vmatprep.subr.mxu0 0.0
        %1197 = vmatpush1.xpose.msra.mxu0 %v1164
        %1198 = vmatprep.subr.mxu0 0.0
        %1199 = vmatpush2.xpose.msra.mxu0 0.0
        %1200 = vmatprep.subr.mxu0 0.0
        %1201 = vmatpush2.xpose.msra.mxu0 0.0
        %1202 = vmatprep.subr.mxu0 0.0
        %1203 = vmatpush2.xpose.msra.mxu0 0.0
        %1204 = vmatprep.subr.mxu0 0.0
        %1205 = vmatpush2.xpose.msra.mxu0 0.0
        %1206 = vmatprep.subr.mxu0 0.0
        %1207 = vmatpush2.xpose.msra.mxu0 0.0
        %1208 = vmatprep.subr.mxu0 0.0
        %1209 = vmatpush2.xpose.msra.mxu0 0.0
        %1210 = vmatprep.subr.mxu0 0.0
        %1211 = vmatpush2.xpose.msra.mxu0 0.0
        %1212 = vmatprep.subr.mxu0 0.0
        %1213 = vmatpush2.xpose.msra.mxu0 0.0
        %1214 = vmatprep.subr.mxu0 0.0
        %1215 = vmatpush2.xpose.msra.mxu0 0.0
        %1216 = vmatprep.subr.mxu0 0.0
        %1217 = vmatpush2.xpose.msra.mxu0 0.0
        %1218 = vmatprep.subr.mxu0 0.0
        %1219 = vmatpush2.xpose.msra.mxu0 0.0
        %1220 = vmatprep.subr.mxu0 0.0
        %1221 = vmatpush2.xpose.msra.mxu0 0.0
        %1222 = vmatprep.subr.mxu0 0.0
        %1223 = vmatpush2.xpose.msra.mxu0 0.0
        %1224 = vmatprep.subr.mxu0 0.0
        %1225 = vmatpush2.xpose.msra.mxu0 0.0
        %1226 = vmatprep.subr.mxu0 0.0
        %1227 = vmatpush2.xpose.msra.mxu0 0.0
        %1228 = vmatprep.subr.mxu0 0.0
        %1229 = vmatpush2.xpose.msra.mxu0 0.0
        %1230 = vmatprep.mubr.f32.mxu0 0.0
        %1231 = vmatmul.mubr.f32.gmra.mxu0 %v1161
        %v1232 = vpop.f32.mrf.mxu0
        %v1233 = vadd.f32 0.0, %v1232
        %v1234 = vpop.f32.mrf.mxu0
        %1235 = vdwg.mxu0
        %v1237 = vsel %vm670, %v1073, 0
        %v1240 = vsel %vm670, %v1153, 0
        %1242 = vmatprep.subr.mxu0 0.0
        %1243 = vmatpush1.xpose.msra.mxu0 0.0
        %1244 = vmatprep.subr.mxu0 0.0
        %1245 = vmatpush1.xpose.msra.mxu0 0.0
        %1246 = vmatprep.subr.mxu0 0.0
        %1247 = vmatpush1.xpose.msra.mxu0 0.0
        %1248 = vmatprep.subr.mxu0 0.0
        %1249 = vmatpush1.xpose.msra.mxu0 0.0
        %1250 = vmatprep.subr.mxu0 0.0
        %1251 = vmatpush1.xpose.msra.mxu0 0.0
        %1252 = vmatprep.subr.mxu0 0.0
        %1253 = vmatpush1.xpose.msra.mxu0 0.0
        %1254 = vmatprep.subr.mxu0 0.0
        %1255 = vmatpush1.xpose.msra.mxu0 0.0
        %1256 = vmatprep.subr.mxu0 0.0
        %1257 = vmatpush1.xpose.msra.mxu0 0.0
        %1258 = vmatprep.subr.mxu0 0.0
        %1259 = vmatpush1.xpose.msra.mxu0 0.0
        %1260 = vmatprep.subr.mxu0 0.0
        %1261 = vmatpush1.xpose.msra.mxu0 0.0
        %1262 = vmatprep.subr.mxu0 0.0
        %1263 = vmatpush1.xpose.msra.mxu0 0.0
        %1264 = vmatprep.subr.mxu0 0.0
        %1265 = vmatpush1.xpose.msra.mxu0 0.0
        %1266 = vmatprep.subr.mxu0 0.0
        %1267 = vmatpush1.xpose.msra.mxu0 0.0
        %1268 = vmatprep.subr.mxu0 0.0
        %1269 = vmatpush1.xpose.msra.mxu0 0.0
        %1270 = vmatprep.subr.mxu0 0.0
        %1271 = vmatpush1.xpose.msra.mxu0 0.0
        %1272 = vmatprep.subr.mxu0 0.0
        %1273 = vmatpush1.xpose.msra.mxu0 %v1240
        %1274 = vmatprep.subr.mxu0 0.0
        %1275 = vmatpush2.xpose.msra.mxu0 0.0
        %1276 = vmatprep.subr.mxu0 0.0
        %1277 = vmatpush2.xpose.msra.mxu0 0.0
        %1278 = vmatprep.subr.mxu0 0.0
        %1279 = vmatpush2.xpose.msra.mxu0 0.0
        %1280 = vmatprep.subr.mxu0 0.0
        %1281 = vmatpush2.xpose.msra.mxu0 0.0
        %1282 = vmatprep.subr.mxu0 0.0
        %1283 = vmatpush2.xpose.msra.mxu0 0.0
        %1284 = vmatprep.subr.mxu0 0.0
        %1285 = vmatpush2.xpose.msra.mxu0 0.0
        %1286 = vmatprep.subr.mxu0 0.0
        %1287 = vmatpush2.xpose.msra.mxu0 0.0
        %1288 = vmatprep.subr.mxu0 0.0
        %1289 = vmatpush2.xpose.msra.mxu0 0.0
        %1290 = vmatprep.subr.mxu0 0.0
        %1291 = vmatpush2.xpose.msra.mxu0 0.0
        %1292 = vmatprep.subr.mxu0 0.0
        %1293 = vmatpush2.xpose.msra.mxu0 0.0
        %1294 = vmatprep.subr.mxu0 0.0
        %1295 = vmatpush2.xpose.msra.mxu0 0.0
        %1296 = vmatprep.subr.mxu0 0.0
        %1297 = vmatpush2.xpose.msra.mxu0 0.0
        %1298 = vmatprep.subr.mxu0 0.0
        %1299 = vmatpush2.xpose.msra.mxu0 0.0
        %1300 = vmatprep.subr.mxu0 0.0
        %1301 = vmatpush2.xpose.msra.mxu0 0.0
        %1302 = vmatprep.subr.mxu0 0.0
        %1303 = vmatpush2.xpose.msra.mxu0 0.0
        %1304 = vmatprep.subr.mxu0 0.0
        %1305 = vmatpush2.xpose.msra.mxu0 0.0
        %1306 = vmatprep.mubr.f32.mxu0 0.0
        %1307 = vmatmul.mubr.f32.gmra.mxu0 %v1237
        %v1308 = vpop.f32.mrf.mxu0
        %v1309 = vadd.f32 0.0, %v1308
        %v1310 = vpop.f32.mrf.mxu0
        %1311 = vdwg.mxu0
        %v1313 = vsel %vm670, %v1056, 0
        %v1316 = vsel %vm670, %v1154, 0
        %1318 = vmatprep.subr.mxu0 0.0
        %1319 = vmatpush1.xpose.msra.mxu0 0.0
        %1320 = vmatprep.subr.mxu0 0.0
        %1321 = vmatpush1.xpose.msra.mxu0 0.0
        %1322 = vmatprep.subr.mxu0 0.0
        %1323 = vmatpush1.xpose.msra.mxu0 0.0
        %1324 = vmatprep.subr.mxu0 0.0
        %1325 = vmatpush1.xpose.msra.mxu0 0.0
        %1326 = vmatprep.subr.mxu0 0.0
        %1327 = vmatpush1.xpose.msra.mxu0 0.0
        %1328 = vmatprep.subr.mxu0 0.0
        %1329 = vmatpush1.xpose.msra.mxu0 0.0
        %1330 = vmatprep.subr.mxu0 0.0
        %1331 = vmatpush1.xpose.msra.mxu0 0.0
        %1332 = vmatprep.subr.mxu0 0.0
        %1333 = vmatpush1.xpose.msra.mxu0 0.0
        %1334 = vmatprep.subr.mxu0 0.0
        %1335 = vmatpush1.xpose.msra.mxu0 0.0
        %1336 = vmatprep.subr.mxu0 0.0
        %1337 = vmatpush1.xpose.msra.mxu0 0.0
        %1338 = vmatprep.subr.mxu0 0.0
        %1339 = vmatpush1.xpose.msra.mxu0 0.0
        %1340 = vmatprep.subr.mxu0 0.0
        %1341 = vmatpush1.xpose.msra.mxu0 0.0
        %1342 = vmatprep.subr.mxu0 0.0
        %1343 = vmatpush1.xpose.msra.mxu0 0.0
        %1344 = vmatprep.subr.mxu0 0.0
        %1345 = vmatpush1.xpose.msra.mxu0 0.0
        %1346 = vmatprep.subr.mxu0 0.0
        %1347 = vmatpush1.xpose.msra.mxu0 0.0
        %1348 = vmatprep.subr.mxu0 0.0
        %1349 = vmatpush1.xpose.msra.mxu0 %v1316
        %1350 = vmatprep.subr.mxu0 0.0
        %1351 = vmatpush2.xpose.msra.mxu0 0.0
        %1352 = vmatprep.subr.mxu0 0.0
        %1353 = vmatpush2.xpose.msra.mxu0 0.0
        %1354 = vmatprep.subr.mxu0 0.0
        %1355 = vmatpush2.xpose.msra.mxu0 0.0
        %1356 = vmatprep.subr.mxu0 0.0
        %1357 = vmatpush2.xpose.msra.mxu0 0.0
        %1358 = vmatprep.subr.mxu0 0.0
        %1359 = vmatpush2.xpose.msra.mxu0 0.0
        %1360 = vmatprep.subr.mxu0 0.0
        %1361 = vmatpush2.xpose.msra.mxu0 0.0
        %1362 = vmatprep.subr.mxu0 0.0
        %1363 = vmatpush2.xpose.msra.mxu0 0.0
        %1364 = vmatprep.subr.mxu0 0.0
        %1365 = vmatpush2.xpose.msra.mxu0 0.0
        %1366 = vmatprep.subr.mxu0 0.0
        %1367 = vmatpush2.xpose.msra.mxu0 0.0
        %1368 = vmatprep.subr.mxu0 0.0
        %1369 = vmatpush2.xpose.msra.mxu0 0.0
        %1370 = vmatprep.subr.mxu0 0.0
        %1371 = vmatpush2.xpose.msra.mxu0 0.0
        %1372 = vmatprep.subr.mxu0 0.0
        %1373 = vmatpush2.xpose.msra.mxu0 0.0
        %1374 = vmatprep.subr.mxu0 0.0
        %1375 = vmatpush2.xpose.msra.mxu0 0.0
        %1376 = vmatprep.subr.mxu0 0.0
        %1377 = vmatpush2.xpose.msra.mxu0 0.0
        %1378 = vmatprep.subr.mxu0 0.0
        %1379 = vmatpush2.xpose.msra.mxu0 0.0
        %1380 = vmatprep.subr.mxu0 0.0
        %1381 = vmatpush2.xpose.msra.mxu0 0.0
        %1382 = vmatprep.mubr.f32.mxu0 0.0
        %1383 = vmatmul.mubr.f32.gmra.mxu0 %v1313
        %v1384 = vpop.f32.mrf.mxu0
        %v1385 = vadd.f32 0.0, %v1384
        %v1386 = vpop.f32.mrf.mxu0
        %1387 = vdwg.mxu0
        %v1389 = vsel %vm670, %v1074, 0
        %v1392 = vsel %vm670, %v1155, 0
        %1394 = vmatprep.subr.mxu0 0.0
        %1395 = vmatpush1.xpose.msra.mxu0 0.0
        %1396 = vmatprep.subr.mxu0 0.0
        %1397 = vmatpush1.xpose.msra.mxu0 0.0
        %1398 = vmatprep.subr.mxu0 0.0
        %1399 = vmatpush1.xpose.msra.mxu0 0.0
        %1400 = vmatprep.subr.mxu0 0.0
        %1401 = vmatpush1.xpose.msra.mxu0 0.0
        %1402 = vmatprep.subr.mxu0 0.0
        %1403 = vmatpush1.xpose.msra.mxu0 0.0
        %1404 = vmatprep.subr.mxu0 0.0
        %1405 = vmatpush1.xpose.msra.mxu0 0.0
        %1406 = vmatprep.subr.mxu0 0.0
        %1407 = vmatpush1.xpose.msra.mxu0 0.0
        %1408 = vmatprep.subr.mxu0 0.0
        %1409 = vmatpush1.xpose.msra.mxu0 0.0
        %1410 = vmatprep.subr.mxu0 0.0
        %1411 = vmatpush1.xpose.msra.mxu0 0.0
        %1412 = vmatprep.subr.mxu0 0.0
        %1413 = vmatpush1.xpose.msra.mxu0 0.0
        %1414 = vmatprep.subr.mxu0 0.0
        %1415 = vmatpush1.xpose.msra.mxu0 0.0
        %1416 = vmatprep.subr.mxu0 0.0
        %1417 = vmatpush1.xpose.msra.mxu0 0.0
        %1418 = vmatprep.subr.mxu0 0.0
        %1419 = vmatpush1.xpose.msra.mxu0 0.0
        %1420 = vmatprep.subr.mxu0 0.0
        %1421 = vmatpush1.xpose.msra.mxu0 0.0
        %1422 = vmatprep.subr.mxu0 0.0
        %1423 = vmatpush1.xpose.msra.mxu0 0.0
        %1424 = vmatprep.subr.mxu0 0.0
        %1425 = vmatpush1.xpose.msra.mxu0 %v1392
        %1426 = vmatprep.subr.mxu0 0.0
        %1427 = vmatpush2.xpose.msra.mxu0 0.0
        %1428 = vmatprep.subr.mxu0 0.0
        %1429 = vmatpush2.xpose.msra.mxu0 0.0
        %1430 = vmatprep.subr.mxu0 0.0
        %1431 = vmatpush2.xpose.msra.mxu0 0.0
        %1432 = vmatprep.subr.mxu0 0.0
        %1433 = vmatpush2.xpose.msra.mxu0 0.0
        %1434 = vmatprep.subr.mxu0 0.0
        %1435 = vmatpush2.xpose.msra.mxu0 0.0
        %1436 = vmatprep.subr.mxu0 0.0
        %1437 = vmatpush2.xpose.msra.mxu0 0.0
        %1438 = vmatprep.subr.mxu0 0.0
        %1439 = vmatpush2.xpose.msra.mxu0 0.0
        %1440 = vmatprep.subr.mxu0 0.0
        %1441 = vmatpush2.xpose.msra.mxu0 0.0
        %1442 = vmatprep.subr.mxu0 0.0
        %1443 = vmatpush2.xpose.msra.mxu0 0.0
        %1444 = vmatprep.subr.mxu0 0.0
        %1445 = vmatpush2.xpose.msra.mxu0 0.0
        %1446 = vmatprep.subr.mxu0 0.0
        %1447 = vmatpush2.xpose.msra.mxu0 0.0
        %1448 = vmatprep.subr.mxu0 0.0
        %1449 = vmatpush2.xpose.msra.mxu0 0.0
        %1450 = vmatprep.subr.mxu0 0.0
        %1451 = vmatpush2.xpose.msra.mxu0 0.0
        %1452 = vmatprep.subr.mxu0 0.0
        %1453 = vmatpush2.xpose.msra.mxu0 0.0
        %1454 = vmatprep.subr.mxu0 0.0
        %1455 = vmatpush2.xpose.msra.mxu0 0.0
        %1456 = vmatprep.subr.mxu0 0.0
        %1457 = vmatpush2.xpose.msra.mxu0 0.0
        %1458 = vmatprep.mubr.f32.mxu0 0.0
        %1459 = vmatmul.mubr.f32.gmra.mxu0 %v1389
        %v1460 = vpop.f32.mrf.mxu0
        %v1461 = vadd.f32 0.0, %v1460
        %v1462 = vpop.f32.mrf.mxu0
        %1463 = vdwg.mxu0
        %v1465 = vsel %vm670, %v1065, 0
        %v1468 = vsel %vm670, %v1156, 0
        %1470 = vmatprep.subr.mxu0 0.0
        %1471 = vmatpush1.xpose.msra.mxu0 0.0
        %1472 = vmatprep.subr.mxu0 0.0
        %1473 = vmatpush1.xpose.msra.mxu0 0.0
        %1474 = vmatprep.subr.mxu0 0.0
        %1475 = vmatpush1.xpose.msra.mxu0 0.0
        %1476 = vmatprep.subr.mxu0 0.0
        %1477 = vmatpush1.xpose.msra.mxu0 0.0
        %1478 = vmatprep.subr.mxu0 0.0
        %1479 = vmatpush1.xpose.msra.mxu0 0.0
        %1480 = vmatprep.subr.mxu0 0.0
        %1481 = vmatpush1.xpose.msra.mxu0 0.0
        %1482 = vmatprep.subr.mxu0 0.0
        %1483 = vmatpush1.xpose.msra.mxu0 0.0
        %1484 = vmatprep.subr.mxu0 0.0
        %1485 = vmatpush1.xpose.msra.mxu0 0.0
        %1486 = vmatprep.subr.mxu0 0.0
        %1487 = vmatpush1.xpose.msra.mxu0 0.0
        %1488 = vmatprep.subr.mxu0 0.0
        %1489 = vmatpush1.xpose.msra.mxu0 0.0
        %1490 = vmatprep.subr.mxu0 0.0
        %1491 = vmatpush1.xpose.msra.mxu0 0.0
        %1492 = vmatprep.subr.mxu0 0.0
        %1493 = vmatpush1.xpose.msra.mxu0 0.0
        %1494 = vmatprep.subr.mxu0 0.0
        %1495 = vmatpush1.xpose.msra.mxu0 0.0
        %1496 = vmatprep.subr.mxu0 0.0
        %1497 = vmatpush1.xpose.msra.mxu0 0.0
        %1498 = vmatprep.subr.mxu0 0.0
        %1499 = vmatpush1.xpose.msra.mxu0 0.0
        %1500 = vmatprep.subr.mxu0 0.0
        %1501 = vmatpush1.xpose.msra.mxu0 %v1468
        %1502 = vmatprep.subr.mxu0 0.0
        %1503 = vmatpush2.xpose.msra.mxu0 0.0
        %1504 = vmatprep.subr.mxu0 0.0
        %1505 = vmatpush2.xpose.msra.mxu0 0.0
        %1506 = vmatprep.subr.mxu0 0.0
        %1507 = vmatpush2.xpose.msra.mxu0 0.0
        %1508 = vmatprep.subr.mxu0 0.0
        %1509 = vmatpush2.xpose.msra.mxu0 0.0
        %1510 = vmatprep.subr.mxu0 0.0
        %1511 = vmatpush2.xpose.msra.mxu0 0.0
        %1512 = vmatprep.subr.mxu0 0.0
        %1513 = vmatpush2.xpose.msra.mxu0 0.0
        %1514 = vmatprep.subr.mxu0 0.0
        %1515 = vmatpush2.xpose.msra.mxu0 0.0
        %1516 = vmatprep.subr.mxu0 0.0
        %1517 = vmatpush2.xpose.msra.mxu0 0.0
        %1518 = vmatprep.subr.mxu0 0.0
        %1519 = vmatpush2.xpose.msra.mxu0 0.0
        %1520 = vmatprep.subr.mxu0 0.0
        %1521 = vmatpush2.xpose.msra.mxu0 0.0
        %1522 = vmatprep.subr.mxu0 0.0
        %1523 = vmatpush2.xpose.msra.mxu0 0.0
        %1524 = vmatprep.subr.mxu0 0.0
        %1525 = vmatpush2.xpose.msra.mxu0 0.0
        %1526 = vmatprep.subr.mxu0 0.0
        %1527 = vmatpush2.xpose.msra.mxu0 0.0
        %1528 = vmatprep.subr.mxu0 0.0
        %1529 = vmatpush2.xpose.msra.mxu0 0.0
        %1530 = vmatprep.subr.mxu0 0.0
        %1531 = vmatpush2.xpose.msra.mxu0 0.0
        %1532 = vmatprep.subr.mxu0 0.0
        %1533 = vmatpush2.xpose.msra.mxu0 0.0
        %1534 = vmatprep.mubr.f32.mxu0 0.0
        %1535 = vmatmul.mubr.f32.gmra.mxu0 %v1465
        %v1536 = vpop.f32.mrf.mxu0
        %v1537 = vadd.f32 0.0, %v1536
        %v1538 = vpop.f32.mrf.mxu0
        %1539 = vdwg.mxu0
        %v1541 = vsel %vm670, %v1075, 0
        %v1544 = vsel %vm670, %v1157, 0
        %1546 = vmatprep.subr.mxu0 0.0
        %1547 = vmatpush1.xpose.msra.mxu0 0.0
        %1548 = vmatprep.subr.mxu0 0.0
        %1549 = vmatpush1.xpose.msra.mxu0 0.0
        %1550 = vmatprep.subr.mxu0 0.0
        %1551 = vmatpush1.xpose.msra.mxu0 0.0
        %1552 = vmatprep.subr.mxu0 0.0
        %1553 = vmatpush1.xpose.msra.mxu0 0.0
        %1554 = vmatprep.subr.mxu0 0.0
        %1555 = vmatpush1.xpose.msra.mxu0 0.0
        %1556 = vmatprep.subr.mxu0 0.0
        %1557 = vmatpush1.xpose.msra.mxu0 0.0
        %1558 = vmatprep.subr.mxu0 0.0
        %1559 = vmatpush1.xpose.msra.mxu0 0.0
        %1560 = vmatprep.subr.mxu0 0.0
        %1561 = vmatpush1.xpose.msra.mxu0 0.0
        %1562 = vmatprep.subr.mxu0 0.0
        %1563 = vmatpush1.xpose.msra.mxu0 0.0
        %1564 = vmatprep.subr.mxu0 0.0
        %1565 = vmatpush1.xpose.msra.mxu0 0.0
        %1566 = vmatprep.subr.mxu0 0.0
        %1567 = vmatpush1.xpose.msra.mxu0 0.0
        %1568 = vmatprep.subr.mxu0 0.0
        %1569 = vmatpush1.xpose.msra.mxu0 0.0
        %1570 = vmatprep.subr.mxu0 0.0
        %1571 = vmatpush1.xpose.msra.mxu0 0.0
        %1572 = vmatprep.subr.mxu0 0.0
        %1573 = vmatpush1.xpose.msra.mxu0 0.0
        %1574 = vmatprep.subr.mxu0 0.0
        %1575 = vmatpush1.xpose.msra.mxu0 0.0
        %1576 = vmatprep.subr.mxu0 0.0
        %1577 = vmatpush1.xpose.msra.mxu0 %v1544
        %1578 = vmatprep.subr.mxu0 0.0
        %1579 = vmatpush2.xpose.msra.mxu0 0.0
        %1580 = vmatprep.subr.mxu0 0.0
        %1581 = vmatpush2.xpose.msra.mxu0 0.0
        %1582 = vmatprep.subr.mxu0 0.0
        %1583 = vmatpush2.xpose.msra.mxu0 0.0
        %1584 = vmatprep.subr.mxu0 0.0
        %1585 = vmatpush2.xpose.msra.mxu0 0.0
        %1586 = vmatprep.subr.mxu0 0.0
        %1587 = vmatpush2.xpose.msra.mxu0 0.0
        %1588 = vmatprep.subr.mxu0 0.0
        %1589 = vmatpush2.xpose.msra.mxu0 0.0
        %1590 = vmatprep.subr.mxu0 0.0
        %1591 = vmatpush2.xpose.msra.mxu0 0.0
        %1592 = vmatprep.subr.mxu0 0.0
        %1593 = vmatpush2.xpose.msra.mxu0 0.0
        %1594 = vmatprep.subr.mxu0 0.0
        %1595 = vmatpush2.xpose.msra.mxu0 0.0
        %1596 = vmatprep.subr.mxu0 0.0
        %1597 = vmatpush2.xpose.msra.mxu0 0.0
        %1598 = vmatprep.subr.mxu0 0.0
        %1599 = vmatpush2.xpose.msra.mxu0 0.0
        %1600 = vmatprep.subr.mxu0 0.0
        %1601 = vmatpush2.xpose.msra.mxu0 0.0
        %1602 = vmatprep.subr.mxu0 0.0
        %1603 = vmatpush2.xpose.msra.mxu0 0.0
        %1604 = vmatprep.subr.mxu0 0.0
        %1605 = vmatpush2.xpose.msra.mxu0 0.0
        %1606 = vmatprep.subr.mxu0 0.0
        %1607 = vmatpush2.xpose.msra.mxu0 0.0
        %1608 = vmatprep.subr.mxu0 0.0
        %1609 = vmatpush2.xpose.msra.mxu0 0.0
        %1610 = vmatprep.mubr.f32.mxu0 0.0
        %1611 = vmatmul.mubr.f32.gmra.mxu0 %v1541
        %v1612 = vpop.f32.mrf.mxu0
        %v1613 = vadd.f32 0.0, %v1612
        %v1614 = vpop.f32.mrf.mxu0
        %1615 = vdwg.mxu0
        %v1617 = vsel %vm670, %v1072, 0
        %v1620 = vsel %vm670, %v1158, 0
        %1622 = vmatprep.subr.mxu0 0.0
        %1623 = vmatpush1.xpose.msra.mxu0 0.0
        %1624 = vmatprep.subr.mxu0 0.0
        %1625 = vmatpush1.xpose.msra.mxu0 0.0
        %1626 = vmatprep.subr.mxu0 0.0
        %1627 = vmatpush1.xpose.msra.mxu0 0.0
        %1628 = vmatprep.subr.mxu0 0.0
        %1629 = vmatpush1.xpose.msra.mxu0 0.0
        %1630 = vmatprep.subr.mxu0 0.0
        %1631 = vmatpush1.xpose.msra.mxu0 0.0
        %1632 = vmatprep.subr.mxu0 0.0
        %1633 = vmatpush1.xpose.msra.mxu0 0.0
        %1634 = vmatprep.subr.mxu0 0.0
        %1635 = vmatpush1.xpose.msra.mxu0 0.0
        %1636 = vmatprep.subr.mxu0 0.0
        %1637 = vmatpush1.xpose.msra.mxu0 0.0
        %1638 = vmatprep.subr.mxu0 0.0
        %1639 = vmatpush1.xpose.msra.mxu0 0.0
        %1640 = vmatprep.subr.mxu0 0.0
        %1641 = vmatpush1.xpose.msra.mxu0 0.0
        %1642 = vmatprep.subr.mxu0 0.0
        %1643 = vmatpush1.xpose.msra.mxu0 0.0
        %1644 = vmatprep.subr.mxu0 0.0
        %1645 = vmatpush1.xpose.msra.mxu0 0.0
        %1646 = vmatprep.subr.mxu0 0.0
        %1647 = vmatpush1.xpose.msra.mxu0 0.0
        %1648 = vmatprep.subr.mxu0 0.0
        %1649 = vmatpush1.xpose.msra.mxu0 0.0
        %1650 = vmatprep.subr.mxu0 0.0
        %1651 = vmatpush1.xpose.msra.mxu0 0.0
        %1652 = vmatprep.subr.mxu0 0.0
        %1653 = vmatpush1.xpose.msra.mxu0 %v1620
        %1654 = vmatprep.subr.mxu0 0.0
        %1655 = vmatpush2.xpose.msra.mxu0 0.0
        %1656 = vmatprep.subr.mxu0 0.0
        %1657 = vmatpush2.xpose.msra.mxu0 0.0
        %1658 = vmatprep.subr.mxu0 0.0
        %1659 = vmatpush2.xpose.msra.mxu0 0.0
        %1660 = vmatprep.subr.mxu0 0.0
        %1661 = vmatpush2.xpose.msra.mxu0 0.0
        %1662 = vmatprep.subr.mxu0 0.0
        %1663 = vmatpush2.xpose.msra.mxu0 0.0
        %1664 = vmatprep.subr.mxu0 0.0
        %1665 = vmatpush2.xpose.msra.mxu0 0.0
        %1666 = vmatprep.subr.mxu0 0.0
        %1667 = vmatpush2.xpose.msra.mxu0 0.0
        %1668 = vmatprep.subr.mxu0 0.0
        %1669 = vmatpush2.xpose.msra.mxu0 0.0
        %1670 = vmatprep.subr.mxu0 0.0
        %1671 = vmatpush2.xpose.msra.mxu0 0.0
        %1672 = vmatprep.subr.mxu0 0.0
        %1673 = vmatpush2.xpose.msra.mxu0 0.0
        %1674 = vmatprep.subr.mxu0 0.0
        %1675 = vmatpush2.xpose.msra.mxu0 0.0
        %1676 = vmatprep.subr.mxu0 0.0
        %1677 = vmatpush2.xpose.msra.mxu0 0.0
        %1678 = vmatprep.subr.mxu0 0.0
        %1679 = vmatpush2.xpose.msra.mxu0 0.0
        %1680 = vmatprep.subr.mxu0 0.0
        %1681 = vmatpush2.xpose.msra.mxu0 0.0
        %1682 = vmatprep.subr.mxu0 0.0
        %1683 = vmatpush2.xpose.msra.mxu0 0.0
        %1684 = vmatprep.subr.mxu0 0.0
        %1685 = vmatpush2.xpose.msra.mxu0 0.0
        %1686 = vmatprep.mubr.f32.mxu0 0.0
        %1687 = vmatmul.mubr.f32.gmra.mxu0 %v1617
        %v1688 = vpop.f32.mrf.mxu0
        %v1689 = vadd.f32 0.0, %v1688
        %v1690 = vpop.f32.mrf.mxu0
        %1691 = vdwg.mxu0
        %v1693 = vsel %vm670, %v1076, 0
        %v1696 = vsel %vm670, %v1159, 0
        %1698 = vmatprep.subr.mxu0 0.0
        %1699 = vmatpush1.xpose.msra.mxu0 0.0
        %1700 = vmatprep.subr.mxu0 0.0
        %1701 = vmatpush1.xpose.msra.mxu0 0.0
        %1702 = vmatprep.subr.mxu0 0.0
        %1703 = vmatpush1.xpose.msra.mxu0 0.0
        %1704 = vmatprep.subr.mxu0 0.0
        %1705 = vmatpush1.xpose.msra.mxu0 0.0
        %1706 = vmatprep.subr.mxu0 0.0
        %1707 = vmatpush1.xpose.msra.mxu0 0.0
        %1708 = vmatprep.subr.mxu0 0.0
        %1709 = vmatpush1.xpose.msra.mxu0 0.0
        %1710 = vmatprep.subr.mxu0 0.0
        %1711 = vmatpush1.xpose.msra.mxu0 0.0
        %1712 = vmatprep.subr.mxu0 0.0
        %1713 = vmatpush1.xpose.msra.mxu0 0.0
        %1714 = vmatprep.subr.mxu0 0.0
        %1715 = vmatpush1.xpose.msra.mxu0 0.0
        %1716 = vmatprep.subr.mxu0 0.0
        %1717 = vmatpush1.xpose.msra.mxu0 0.0
        %1718 = vmatprep.subr.mxu0 0.0
        %1719 = vmatpush1.xpose.msra.mxu0 0.0
        %1720 = vmatprep.subr.mxu0 0.0
        %1721 = vmatpush1.xpose.msra.mxu0 0.0
        %1722 = vmatprep.subr.mxu0 0.0
        %1723 = vmatpush1.xpose.msra.mxu0 0.0
        %1724 = vmatprep.subr.mxu0 0.0
        %1725 = vmatpush1.xpose.msra.mxu0 0.0
        %1726 = vmatprep.subr.mxu0 0.0
        %1727 = vmatpush1.xpose.msra.mxu0 0.0
        %1728 = vmatprep.subr.mxu0 0.0
        %1729 = vmatpush1.xpose.msra.mxu0 %v1696
        %1730 = vmatprep.subr.mxu0 0.0
        %1731 = vmatpush2.xpose.msra.mxu0 0.0
        %1732 = vmatprep.subr.mxu0 0.0
        %1733 = vmatpush2.xpose.msra.mxu0 0.0
        %1734 = vmatprep.subr.mxu0 0.0
        %1735 = vmatpush2.xpose.msra.mxu0 0.0
        %1736 = vmatprep.subr.mxu0 0.0
        %1737 = vmatpush2.xpose.msra.mxu0 0.0
        %1738 = vmatprep.subr.mxu0 0.0
        %1739 = vmatpush2.xpose.msra.mxu0 0.0
        %1740 = vmatprep.subr.mxu0 0.0
        %1741 = vmatpush2.xpose.msra.mxu0 0.0
        %1742 = vmatprep.subr.mxu0 0.0
        %1743 = vmatpush2.xpose.msra.mxu0 0.0
        %1744 = vmatprep.subr.mxu0 0.0
        %1745 = vmatpush2.xpose.msra.mxu0 0.0
        %1746 = vmatprep.subr.mxu0 0.0
        %1747 = vmatpush2.xpose.msra.mxu0 0.0
        %1748 = vmatprep.subr.mxu0 0.0
        %1749 = vmatpush2.xpose.msra.mxu0 0.0
        %1750 = vmatprep.subr.mxu0 0.0
        %1751 = vmatpush2.xpose.msra.mxu0 0.0
        %1752 = vmatprep.subr.mxu0 0.0
        %1753 = vmatpush2.xpose.msra.mxu0 0.0
        %1754 = vmatprep.subr.mxu0 0.0
        %1755 = vmatpush2.xpose.msra.mxu0 0.0
        %1756 = vmatprep.subr.mxu0 0.0
        %1757 = vmatpush2.xpose.msra.mxu0 0.0
        %1758 = vmatprep.subr.mxu0 0.0
        %1759 = vmatpush2.xpose.msra.mxu0 0.0
        %1760 = vmatprep.subr.mxu0 0.0
        %1761 = vmatpush2.xpose.msra.mxu0 0.0
        %1762 = vmatprep.mubr.f32.mxu0 0.0
        %1763 = vmatmul.mubr.f32.gmra.mxu0 %v1693
        %v1764 = vpop.f32.mrf.mxu0
        %v1765 = vadd.f32 0.0, %v1764
        %v1766 = vpop.f32.mrf.mxu0
        %1767 = vdwg.mxu0
        %1768 = vrot.lane.b32.xlu0 %v741, 120
        %v1769 = vpop.permute.xlu0 %1768
        %1771 = vrot.lane.b32.xlu0 %v741, 112
        %v1772 = vpop.permute.xlu0 %1771
        %1774 = vrot.lane.b32.xlu0 %v741, 104
        %v1775 = vpop.permute.xlu0 %1774
        %v1777 = vcombine.low %v741, %v1772
        %v1778 = vcombine.high %v741, %v1772
        %v1780 = vunpack.c.l.s4 1983009808
        %v1781 = vunpack.c.0.s8 %v1780
        %v1782 = vlaneseq
        %v1783 = vshrl.u32 %v1782, 7
        %v1784 = vsub.s32 %v1781, %v1783
        %v1785 = vrot.slane %v1777, %v1784
        %v1787 = vunpack.c.l.s4 1983009808
        %v1788 = vunpack.c.0.s8 %v1787
        %v1789 = vlaneseq
        %v1790 = vshrl.u32 %v1789, 7
        %v1791 = vsub.s32 %v1788, %v1790
        %v1792 = vrot.slane %v1778, %v1791
        %v1793 = vcombine.low %v1769, %v1775
        %v1794 = vcombine.high %v1769, %v1775
        %v1796 = vunpack.c.l.s4 1983009808
        %v1797 = vunpack.c.0.s8 %v1796
        %v1798 = vlaneseq
        %v1799 = vshrl.u32 %v1798, 7
        %v1800 = vsub.s32 %v1797, %v1799
        %v1801 = vrot.slane %v1793, %v1800
        %v1803 = vunpack.c.l.s4 1983009808
        %v1804 = vunpack.c.0.s8 %v1803
        %v1805 = vlaneseq
        %v1806 = vshrl.u32 %v1805, 7
        %v1807 = vsub.s32 %v1804, %v1806
        %v1808 = vrot.slane %v1794, %v1807
        %v1809 = vcombine.low %v1785, %v1801
        %v1810 = vcombine.high %v1785, %v1801
        %v1812 = vunpack.c.l.s4 1934713408
        %v1813 = vunpack.c.0.s8 %v1812
        %v1814 = vlaneseq
        %v1815 = vshrl.u32 %v1814, 7
        %v1816 = vsub.s32 %v1813, %v1815
        %v1817 = vrot.slane %v1809, %v1816
        %v1819 = vunpack.c.l.s4 1934713408
        %v1820 = vunpack.c.0.s8 %v1819
        %v1821 = vlaneseq
        %v1822 = vshrl.u32 %v1821, 7
        %v1823 = vsub.s32 %v1820, %v1822
        %v1824 = vrot.slane %v1810, %v1823
        %v1825 = vcombine.low %v1792, %v1808
        %v1826 = vcombine.high %v1792, %v1808
        %v1828 = vunpack.c.l.s4 1934713408
        %v1829 = vunpack.c.0.s8 %v1828
        %v1830 = vlaneseq
        %v1831 = vshrl.u32 %v1830, 7
        %v1832 = vsub.s32 %v1829, %v1831
        %v1833 = vrot.slane %v1825, %v1832
        %v1835 = vunpack.c.l.s4 1934713408
        %v1836 = vunpack.c.0.s8 %v1835
        %v1837 = vlaneseq
        %v1838 = vshrl.u32 %v1837, 7
        %v1839 = vsub.s32 %v1836, %v1838
        %v1840 = vrot.slane %v1826, %v1839
        %v1841 = vcombine.high %v1817, 0.0
        %v1842 = vcombine.high %v1824, 0.0
        %v1843 = vcombine.high %v1833, 0.0
        %v1844 = vcombine.high %v1840, 0.0
        %v1845 = vcombine.low %v1817, %v1824
        %v1847 = vunpack.c.l.s4 1983009808
        %v1848 = vunpack.c.0.s8 %v1847
        %v1849 = vlaneseq
        %v1850 = vshrl.u32 %v1849, 7
        %v1851 = vsub.s32 %v1848, %v1850
        %v1852 = vrot.slane %v1845, %v1851
        %v1853 = vcombine.low %v1841, %v1842
        %v1855 = vunpack.c.l.s4 1983009808
        %v1856 = vunpack.c.0.s8 %v1855
        %v1857 = vlaneseq
        %v1858 = vshrl.u32 %v1857, 7
        %v1859 = vsub.s32 %v1856, %v1858
        %v1860 = vrot.slane %v1853, %v1859
        %v1861 = vcombine.low %v1833, %v1840
        %v1863 = vunpack.c.l.s4 1983009808
        %v1864 = vunpack.c.0.s8 %v1863
        %v1865 = vlaneseq
        %v1866 = vshrl.u32 %v1865, 7
        %v1867 = vsub.s32 %v1864, %v1866
        %v1868 = vrot.slane %v1861, %v1867
        %v1869 = vcombine.low %v1843, %v1844
        %v1871 = vunpack.c.l.s4 1983009808
        %v1872 = vunpack.c.0.s8 %v1871
        %v1873 = vlaneseq
        %v1874 = vshrl.u32 %v1873, 7
        %v1875 = vsub.s32 %v1872, %v1874
        %v1876 = vrot.slane %v1869, %v1875
        %v1877 = vcombine.low %v1852, %v1860
        %v1878 = vcombine.high %v1852, %v1860
        %v1880 = vunpack.c.l.s4 1934713408
        %v1881 = vunpack.c.0.s8 %v1880
        %v1882 = vlaneseq
        %v1883 = vshrl.u32 %v1882, 7
        %v1884 = vsub.s32 %v1881, %v1883
        %v1885 = vrot.slane %v1877, %v1884
        %v1887 = vunpack.c.l.s4 1934713408
        %v1888 = vunpack.c.0.s8 %v1887
        %v1889 = vlaneseq
        %v1890 = vshrl.u32 %v1889, 7
        %v1891 = vsub.s32 %v1888, %v1890
        %v1892 = vrot.slane %v1878, %v1891
        %v1893 = vcombine.low %v1868, %v1876
        %v1894 = vcombine.high %v1868, %v1876
        %v1896 = vunpack.c.l.s4 1934713408
        %v1897 = vunpack.c.0.s8 %v1896
        %v1898 = vlaneseq
        %v1899 = vshrl.u32 %v1898, 7
        %v1900 = vsub.s32 %v1897, %v1899
        %v1901 = vrot.slane %v1893, %v1900
        %v1903 = vunpack.c.l.s4 1934713408
        %v1904 = vunpack.c.0.s8 %v1903
        %v1905 = vlaneseq
        %v1906 = vshrl.u32 %v1905, 7
        %v1907 = vsub.s32 %v1904, %v1906
        %v1908 = vrot.slane %v1894, %v1907
        %v1909 = vcombine.low %v1885, %v1901
        %v1910 = vcombine.high %v1885, %v1901
        %v1911 = vcombine.low %v1892, %v1908
        %v1912 = vcombine.high %v1892, %v1908
        %1914 = vrot.lane.b32.xlu0 %v835, 120
        %v1915 = vpop.permute.xlu0 %1914
        %1917 = vrot.lane.b32.xlu0 %v835, 112
        %v1918 = vpop.permute.xlu0 %1917
        %1920 = vrot.lane.b32.xlu0 %v835, 104
        %v1921 = vpop.permute.xlu0 %1920
        %v1923 = vcombine.low %v835, %v1918
        %v1924 = vcombine.high %v835, %v1918
        %v1926 = vunpack.c.l.s4 1983009808
        %v1927 = vunpack.c.0.s8 %v1926
        %v1928 = vlaneseq
        %v1929 = vshrl.u32 %v1928, 7
        %v1930 = vsub.s32 %v1927, %v1929
        %v1931 = vrot.slane %v1923, %v1930
        %v1933 = vunpack.c.l.s4 1983009808
        %v1934 = vunpack.c.0.s8 %v1933
        %v1935 = vlaneseq
        %v1936 = vshrl.u32 %v1935, 7
        %v1937 = vsub.s32 %v1934, %v1936
        %v1938 = vrot.slane %v1924, %v1937
        %v1939 = vcombine.low %v1915, %v1921
        %v1940 = vcombine.high %v1915, %v1921
        %v1942 = vunpack.c.l.s4 1983009808
        %v1943 = vunpack.c.0.s8 %v1942
        %v1944 = vlaneseq
        %v1945 = vshrl.u32 %v1944, 7
        %v1946 = vsub.s32 %v1943, %v1945
        %v1947 = vrot.slane %v1939, %v1946
        %v1949 = vunpack.c.l.s4 1983009808
        %v1950 = vunpack.c.0.s8 %v1949
        %v1951 = vlaneseq
        %v1952 = vshrl.u32 %v1951, 7
        %v1953 = vsub.s32 %v1950, %v1952
        %v1954 = vrot.slane %v1940, %v1953
        %v1955 = vcombine.low %v1931, %v1947
        %v1956 = vcombine.high %v1931, %v1947
        %v1958 = vunpack.c.l.s4 1934713408
        %v1959 = vunpack.c.0.s8 %v1958
        %v1960 = vlaneseq
        %v1961 = vshrl.u32 %v1960, 7
        %v1962 = vsub.s32 %v1959, %v1961
        %v1963 = vrot.slane %v1955, %v1962
        %v1965 = vunpack.c.l.s4 1934713408
        %v1966 = vunpack.c.0.s8 %v1965
        %v1967 = vlaneseq
        %v1968 = vshrl.u32 %v1967, 7
        %v1969 = vsub.s32 %v1966, %v1968
        %v1970 = vrot.slane %v1956, %v1969
        %v1971 = vcombine.low %v1938, %v1954
        %v1972 = vcombine.high %v1938, %v1954
        %v1974 = vunpack.c.l.s4 1934713408
        %v1975 = vunpack.c.0.s8 %v1974
        %v1976 = vlaneseq
        %v1977 = vshrl.u32 %v1976, 7
        %v1978 = vsub.s32 %v1975, %v1977
        %v1979 = vrot.slane %v1971, %v1978
        %v1981 = vunpack.c.l.s4 1934713408
        %v1982 = vunpack.c.0.s8 %v1981
        %v1983 = vlaneseq
        %v1984 = vshrl.u32 %v1983, 7
        %v1985 = vsub.s32 %v1982, %v1984
        %v1986 = vrot.slane %v1972, %v1985
        %v1987 = vcombine.high %v1963, 0.0
        %v1988 = vcombine.high %v1970, 0.0
        %v1989 = vcombine.high %v1979, 0.0
        %v1990 = vcombine.high %v1986, 0.0
        %v1991 = vcombine.low %v1963, %v1970
        %v1993 = vunpack.c.l.s4 1983009808
        %v1994 = vunpack.c.0.s8 %v1993
        %v1995 = vlaneseq
        %v1996 = vshrl.u32 %v1995, 7
        %v1997 = vsub.s32 %v1994, %v1996
        %v1998 = vrot.slane %v1991, %v1997
        %v1999 = vcombine.low %v1987, %v1988
        %v2001 = vunpack.c.l.s4 1983009808
        %v2002 = vunpack.c.0.s8 %v2001
        %v2003 = vlaneseq
        %v2004 = vshrl.u32 %v2003, 7
        %v2005 = vsub.s32 %v2002, %v2004
        %v2006 = vrot.slane %v1999, %v2005
        %v2007 = vcombine.low %v1979, %v1986
        %v2009 = vunpack.c.l.s4 1983009808
        %v2010 = vunpack.c.0.s8 %v2009
        %v2011 = vlaneseq
        %v2012 = vshrl.u32 %v2011, 7
        %v2013 = vsub.s32 %v2010, %v2012
        %v2014 = vrot.slane %v2007, %v2013
        %v2015 = vcombine.low %v1989, %v1990
        %v2017 = vunpack.c.l.s4 1983009808
        %v2018 = vunpack.c.0.s8 %v2017
        %v2019 = vlaneseq
        %v2020 = vshrl.u32 %v2019, 7
        %v2021 = vsub.s32 %v2018, %v2020
        %v2022 = vrot.slane %v2015, %v2021
        %v2023 = vcombine.low %v1998, %v2006
        %v2024 = vcombine.high %v1998, %v2006
        %v2026 = vunpack.c.l.s4 1934713408
        %v2027 = vunpack.c.0.s8 %v2026
        %v2028 = vlaneseq
        %v2029 = vshrl.u32 %v2028, 7
        %v2030 = vsub.s32 %v2027, %v2029
        %v2031 = vrot.slane %v2023, %v2030
        %v2033 = vunpack.c.l.s4 1934713408
        %v2034 = vunpack.c.0.s8 %v2033
        %v2035 = vlaneseq
        %v2036 = vshrl.u32 %v2035, 7
        %v2037 = vsub.s32 %v2034, %v2036
        %v2038 = vrot.slane %v2024, %v2037
        %v2039 = vcombine.low %v2014, %v2022
        %v2040 = vcombine.high %v2014, %v2022
        %v2042 = vunpack.c.l.s4 1934713408
        %v2043 = vunpack.c.0.s8 %v2042
        %v2044 = vlaneseq
        %v2045 = vshrl.u32 %v2044, 7
        %v2046 = vsub.s32 %v2043, %v2045
        %v2047 = vrot.slane %v2039, %v2046
        %v2049 = vunpack.c.l.s4 1934713408
        %v2050 = vunpack.c.0.s8 %v2049
        %v2051 = vlaneseq
        %v2052 = vshrl.u32 %v2051, 7
        %v2053 = vsub.s32 %v2050, %v2052
        %v2054 = vrot.slane %v2040, %v2053
        %v2055 = vcombine.low %v2031, %v2047
        %v2056 = vcombine.high %v2031, %v2047
        %v2057 = vcombine.low %v2038, %v2054
        %v2058 = vcombine.high %v2038, %v2054
        %2060 = vrot.lane.b32.xlu0 %v919, 120
        %v2061 = vpop.permute.xlu0 %2060
        %2063 = vrot.lane.b32.xlu0 %v919, 112
        %v2064 = vpop.permute.xlu0 %2063
        %2066 = vrot.lane.b32.xlu0 %v919, 104
        %v2067 = vpop.permute.xlu0 %2066
        %v2069 = vcombine.low %v919, %v2064
        %v2070 = vcombine.high %v919, %v2064
        %v2072 = vunpack.c.l.s4 1983009808
        %v2073 = vunpack.c.0.s8 %v2072
        %v2074 = vlaneseq
        %v2075 = vshrl.u32 %v2074, 7
        %v2076 = vsub.s32 %v2073, %v2075
        %v2077 = vrot.slane %v2069, %v2076
        %v2079 = vunpack.c.l.s4 1983009808
        %v2080 = vunpack.c.0.s8 %v2079
        %v2081 = vlaneseq
        %v2082 = vshrl.u32 %v2081, 7
        %v2083 = vsub.s32 %v2080, %v2082
        %v2084 = vrot.slane %v2070, %v2083
        %v2085 = vcombine.low %v2061, %v2067
        %v2086 = vcombine.high %v2061, %v2067
        %v2088 = vunpack.c.l.s4 1983009808
        %v2089 = vunpack.c.0.s8 %v2088
        %v2090 = vlaneseq
        %v2091 = vshrl.u32 %v2090, 7
        %v2092 = vsub.s32 %v2089, %v2091
        %v2093 = vrot.slane %v2085, %v2092
        %v2095 = vunpack.c.l.s4 1983009808
        %v2096 = vunpack.c.0.s8 %v2095
        %v2097 = vlaneseq
        %v2098 = vshrl.u32 %v2097, 7
        %v2099 = vsub.s32 %v2096, %v2098
        %v2100 = vrot.slane %v2086, %v2099
        %v2101 = vcombine.low %v2077, %v2093
        %v2102 = vcombine.high %v2077, %v2093
        %v2104 = vunpack.c.l.s4 1934713408
        %v2105 = vunpack.c.0.s8 %v2104
        %v2106 = vlaneseq
        %v2107 = vshrl.u32 %v2106, 7
        %v2108 = vsub.s32 %v2105, %v2107
        %v2109 = vrot.slane %v2101, %v2108
        %v2111 = vunpack.c.l.s4 1934713408
        %v2112 = vunpack.c.0.s8 %v2111
        %v2113 = vlaneseq
        %v2114 = vshrl.u32 %v2113, 7
        %v2115 = vsub.s32 %v2112, %v2114
        %v2116 = vrot.slane %v2102, %v2115
        %v2117 = vcombine.low %v2084, %v2100
        %v2118 = vcombine.high %v2084, %v2100
        %v2120 = vunpack.c.l.s4 1934713408
        %v2121 = vunpack.c.0.s8 %v2120
        %v2122 = vlaneseq
        %v2123 = vshrl.u32 %v2122, 7
        %v2124 = vsub.s32 %v2121, %v2123
        %v2125 = vrot.slane %v2117, %v2124
        %v2127 = vunpack.c.l.s4 1934713408
        %v2128 = vunpack.c.0.s8 %v2127
        %v2129 = vlaneseq
        %v2130 = vshrl.u32 %v2129, 7
        %v2131 = vsub.s32 %v2128, %v2130
        %v2132 = vrot.slane %v2118, %v2131
        %v2133 = vcombine.high %v2109, 0.0
        %v2134 = vcombine.high %v2116, 0.0
        %v2135 = vcombine.high %v2125, 0.0
        %v2136 = vcombine.high %v2132, 0.0
        %v2137 = vcombine.low %v2109, %v2116
        %v2139 = vunpack.c.l.s4 1983009808
        %v2140 = vunpack.c.0.s8 %v2139
        %v2141 = vlaneseq
        %v2142 = vshrl.u32 %v2141, 7
        %v2143 = vsub.s32 %v2140, %v2142
        %v2144 = vrot.slane %v2137, %v2143
        %v2145 = vcombine.low %v2133, %v2134
        %v2147 = vunpack.c.l.s4 1983009808
        %v2148 = vunpack.c.0.s8 %v2147
        %v2149 = vlaneseq
        %v2150 = vshrl.u32 %v2149, 7
        %v2151 = vsub.s32 %v2148, %v2150
        %v2152 = vrot.slane %v2145, %v2151
        %v2153 = vcombine.low %v2125, %v2132
        %v2155 = vunpack.c.l.s4 1983009808
        %v2156 = vunpack.c.0.s8 %v2155
        %v2157 = vlaneseq
        %v2158 = vshrl.u32 %v2157, 7
        %v2159 = vsub.s32 %v2156, %v2158
        %v2160 = vrot.slane %v2153, %v2159
        %v2161 = vcombine.low %v2135, %v2136
        %v2163 = vunpack.c.l.s4 1983009808
        %v2164 = vunpack.c.0.s8 %v2163
        %v2165 = vlaneseq
        %v2166 = vshrl.u32 %v2165, 7
        %v2167 = vsub.s32 %v2164, %v2166
        %v2168 = vrot.slane %v2161, %v2167
        %v2169 = vcombine.low %v2144, %v2152
        %v2170 = vcombine.high %v2144, %v2152
        %v2172 = vunpack.c.l.s4 1934713408
        %v2173 = vunpack.c.0.s8 %v2172
        %v2174 = vlaneseq
        %v2175 = vshrl.u32 %v2174, 7
        %v2176 = vsub.s32 %v2173, %v2175
        %v2177 = vrot.slane %v2169, %v2176
        %v2179 = vunpack.c.l.s4 1934713408
        %v2180 = vunpack.c.0.s8 %v2179
        %v2181 = vlaneseq
        %v2182 = vshrl.u32 %v2181, 7
        %v2183 = vsub.s32 %v2180, %v2182
        %v2184 = vrot.slane %v2170, %v2183
        %v2185 = vcombine.low %v2160, %v2168
        %v2186 = vcombine.high %v2160, %v2168
        %v2188 = vunpack.c.l.s4 1934713408
        %v2189 = vunpack.c.0.s8 %v2188
        %v2190 = vlaneseq
        %v2191 = vshrl.u32 %v2190, 7
        %v2192 = vsub.s32 %v2189, %v2191
        %v2193 = vrot.slane %v2185, %v2192
        %v2195 = vunpack.c.l.s4 1934713408
        %v2196 = vunpack.c.0.s8 %v2195
        %v2197 = vlaneseq
        %v2198 = vshrl.u32 %v2197, 7
        %v2199 = vsub.s32 %v2196, %v2198
        %v2200 = vrot.slane %v2186, %v2199
        %v2201 = vcombine.low %v2177, %v2193
        %v2202 = vcombine.high %v2177, %v2193
        %v2203 = vcombine.low %v2184, %v2200
        %v2204 = vcombine.high %v2184, %v2200
        %v2205 = vcombine.low %v1233, %v1385
        %v2207 = vunpack.c.l.s4 1983009808
        %v2208 = vunpack.c.0.s8 %v2207
        %v2209 = vlaneseq
        %v2210 = vshrl.u32 %v2209, 7
        %v2211 = vsub.s32 %v2208, %v2210
        %v2212 = vrot.slane %v2205, %v2211
        %v2213 = vcombine.low %v1309, %v1461
        %v2215 = vunpack.c.l.s4 1983009808
        %v2216 = vunpack.c.0.s8 %v2215
        %v2217 = vlaneseq
        %v2218 = vshrl.u32 %v2217, 7
        %v2219 = vsub.s32 %v2216, %v2218
        %v2220 = vrot.slane %v2213, %v2219
        %v2221 = vcombine.low %v1537, %v1689
        %v2223 = vunpack.c.l.s4 1983009808
        %v2224 = vunpack.c.0.s8 %v2223
        %v2225 = vlaneseq
        %v2226 = vshrl.u32 %v2225, 7
        %v2227 = vsub.s32 %v2224, %v2226
        %v2228 = vrot.slane %v2221, %v2227
        %v2229 = vcombine.low %v1613, %v1765
        %v2231 = vunpack.c.l.s4 1983009808
        %v2232 = vunpack.c.0.s8 %v2231
        %v2233 = vlaneseq
        %v2234 = vshrl.u32 %v2233, 7
        %v2235 = vsub.s32 %v2232, %v2234
        %v2236 = vrot.slane %v2229, %v2235
        %v2237 = vcombine.low %v2212, %v2220
        %v2238 = vcombine.high %v2212, %v2220
        %v2240 = vunpack.c.l.s4 1934713408
        %v2241 = vunpack.c.0.s8 %v2240
        %v2242 = vlaneseq
        %v2243 = vshrl.u32 %v2242, 7
        %v2244 = vsub.s32 %v2241, %v2243
        %v2245 = vrot.slane %v2237, %v2244
        %v2247 = vunpack.c.l.s4 1934713408
        %v2248 = vunpack.c.0.s8 %v2247
        %v2249 = vlaneseq
        %v2250 = vshrl.u32 %v2249, 7
        %v2251 = vsub.s32 %v2248, %v2250
        %v2252 = vrot.slane %v2238, %v2251
        %v2253 = vcombine.low %v2228, %v2236
        %v2254 = vcombine.high %v2228, %v2236
        %v2256 = vunpack.c.l.s4 1934713408
        %v2257 = vunpack.c.0.s8 %v2256
        %v2258 = vlaneseq
        %v2259 = vshrl.u32 %v2258, 7
        %v2260 = vsub.s32 %v2257, %v2259
        %v2261 = vrot.slane %v2253, %v2260
        %v2263 = vunpack.c.l.s4 1934713408
        %v2264 = vunpack.c.0.s8 %v2263
        %v2265 = vlaneseq
        %v2266 = vshrl.u32 %v2265, 7
        %v2267 = vsub.s32 %v2264, %v2266
        %v2268 = vrot.slane %v2254, %v2267
        %v2269 = vcombine.low %v2245, %v2261
        %v2270 = vcombine.high %v2245, %v2261
        %v2271 = vcombine.low %v2252, %v2268
        %v2272 = vcombine.high %v2252, %v2268
        %vm2273 = vcmask 64512
        %v2275 = vsel %vm2273, %v1909, 0
        %v2278 = vsel %vm2273, %v2055, 0
        %2280 = vmatprep.subr.mxu0 0.0
        %2281 = vmatpush1.xpose.msra.mxu0 0.0
        %2282 = vmatprep.subr.mxu0 0.0
        %2283 = vmatpush1.xpose.msra.mxu0 0.0
        %2284 = vmatprep.subr.mxu0 0.0
        %2285 = vmatpush1.xpose.msra.mxu0 0.0
        %2286 = vmatprep.subr.mxu0 0.0
        %2287 = vmatpush1.xpose.msra.mxu0 0.0
        %2288 = vmatprep.subr.mxu0 0.0
        %2289 = vmatpush1.xpose.msra.mxu0 0.0
        %2290 = vmatprep.subr.mxu0 0.0
        %2291 = vmatpush1.xpose.msra.mxu0 0.0
        %2292 = vmatprep.subr.mxu0 0.0
        %2293 = vmatpush1.xpose.msra.mxu0 0.0
        %2294 = vmatprep.subr.mxu0 0.0
        %2295 = vmatpush1.xpose.msra.mxu0 0.0
        %2296 = vmatprep.subr.mxu0 0.0
        %2297 = vmatpush1.xpose.msra.mxu0 0.0
        %2298 = vmatprep.subr.mxu0 0.0
        %2299 = vmatpush1.xpose.msra.mxu0 0.0
        %2300 = vmatprep.subr.mxu0 0.0
        %2301 = vmatpush1.xpose.msra.mxu0 0.0
        %2302 = vmatprep.subr.mxu0 0.0
        %2303 = vmatpush1.xpose.msra.mxu0 0.0
        %2304 = vmatprep.subr.mxu0 0.0
        %2305 = vmatpush1.xpose.msra.mxu0 0.0
        %2306 = vmatprep.subr.mxu0 0.0
        %2307 = vmatpush1.xpose.msra.mxu0 0.0
        %2308 = vmatprep.subr.mxu0 0.0
        %2309 = vmatpush1.xpose.msra.mxu0 0.0
        %2310 = vmatprep.subr.mxu0 0.0
        %2311 = vmatpush1.xpose.msra.mxu0 %v2278
        %2312 = vmatprep.subr.mxu0 0.0
        %2313 = vmatpush2.xpose.msra.mxu0 0.0
        %2314 = vmatprep.subr.mxu0 0.0
        %2315 = vmatpush2.xpose.msra.mxu0 0.0
        %2316 = vmatprep.subr.mxu0 0.0
        %2317 = vmatpush2.xpose.msra.mxu0 0.0
        %2318 = vmatprep.subr.mxu0 0.0
        %2319 = vmatpush2.xpose.msra.mxu0 0.0
        %2320 = vmatprep.subr.mxu0 0.0
        %2321 = vmatpush2.xpose.msra.mxu0 0.0
        %2322 = vmatprep.subr.mxu0 0.0
        %2323 = vmatpush2.xpose.msra.mxu0 0.0
        %2324 = vmatprep.subr.mxu0 0.0
        %2325 = vmatpush2.xpose.msra.mxu0 0.0
        %2326 = vmatprep.subr.mxu0 0.0
        %2327 = vmatpush2.xpose.msra.mxu0 0.0
        %2328 = vmatprep.subr.mxu0 0.0
        %2329 = vmatpush2.xpose.msra.mxu0 0.0
        %2330 = vmatprep.subr.mxu0 0.0
        %2331 = vmatpush2.xpose.msra.mxu0 0.0
        %2332 = vmatprep.subr.mxu0 0.0
        %2333 = vmatpush2.xpose.msra.mxu0 0.0
        %2334 = vmatprep.subr.mxu0 0.0
        %2335 = vmatpush2.xpose.msra.mxu0 0.0
        %2336 = vmatprep.subr.mxu0 0.0
        %2337 = vmatpush2.xpose.msra.mxu0 0.0
        %2338 = vmatprep.subr.mxu0 0.0
        %2339 = vmatpush2.xpose.msra.mxu0 0.0
        %2340 = vmatprep.subr.mxu0 0.0
        %2341 = vmatpush2.xpose.msra.mxu0 0.0
        %2342 = vmatprep.subr.mxu0 0.0
        %2343 = vmatpush2.xpose.msra.mxu0 0.0
        %2344 = vmatprep.mubr.f32.mxu0 0.0
        %2345 = vmatmul.mubr.f32.gmra.mxu0 %v2275
        %v2346 = vpop.f32.mrf.mxu0
        %v2347 = vadd.f32 %v2269, %v2346
        %v2348 = vpop.f32.mrf.mxu0
        %2349 = vdwg.mxu0
        %v2351 = vsel %vm2273, %v1910, 0
        %v2354 = vsel %vm2273, %v2056, 0
        %2356 = vmatprep.subr.mxu0 0.0
        %2357 = vmatpush1.xpose.msra.mxu0 0.0
        %2358 = vmatprep.subr.mxu0 0.0
        %2359 = vmatpush1.xpose.msra.mxu0 0.0
        %2360 = vmatprep.subr.mxu0 0.0
        %2361 = vmatpush1.xpose.msra.mxu0 0.0
        %2362 = vmatprep.subr.mxu0 0.0
        %2363 = vmatpush1.xpose.msra.mxu0 0.0
        %2364 = vmatprep.subr.mxu0 0.0
        %2365 = vmatpush1.xpose.msra.mxu0 0.0
        %2366 = vmatprep.subr.mxu0 0.0
        %2367 = vmatpush1.xpose.msra.mxu0 0.0
        %2368 = vmatprep.subr.mxu0 0.0
        %2369 = vmatpush1.xpose.msra.mxu0 0.0
        %2370 = vmatprep.subr.mxu0 0.0
        %2371 = vmatpush1.xpose.msra.mxu0 0.0
        %2372 = vmatprep.subr.mxu0 0.0
        %2373 = vmatpush1.xpose.msra.mxu0 0.0
        %2374 = vmatprep.subr.mxu0 0.0
        %2375 = vmatpush1.xpose.msra.mxu0 0.0
        %2376 = vmatprep.subr.mxu0 0.0
        %2377 = vmatpush1.xpose.msra.mxu0 0.0
        %2378 = vmatprep.subr.mxu0 0.0
        %2379 = vmatpush1.xpose.msra.mxu0 0.0
        %2380 = vmatprep.subr.mxu0 0.0
        %2381 = vmatpush1.xpose.msra.mxu0 0.0
        %2382 = vmatprep.subr.mxu0 0.0
        %2383 = vmatpush1.xpose.msra.mxu0 0.0
        %2384 = vmatprep.subr.mxu0 0.0
        %2385 = vmatpush1.xpose.msra.mxu0 0.0
        %2386 = vmatprep.subr.mxu0 0.0
        %2387 = vmatpush1.xpose.msra.mxu0 %v2354
        %2388 = vmatprep.subr.mxu0 0.0
        %2389 = vmatpush2.xpose.msra.mxu0 0.0
        %2390 = vmatprep.subr.mxu0 0.0
        %2391 = vmatpush2.xpose.msra.mxu0 0.0
        %2392 = vmatprep.subr.mxu0 0.0
        %2393 = vmatpush2.xpose.msra.mxu0 0.0
        %2394 = vmatprep.subr.mxu0 0.0
        %2395 = vmatpush2.xpose.msra.mxu0 0.0
        %2396 = vmatprep.subr.mxu0 0.0
        %2397 = vmatpush2.xpose.msra.mxu0 0.0
        %2398 = vmatprep.subr.mxu0 0.0
        %2399 = vmatpush2.xpose.msra.mxu0 0.0
        %2400 = vmatprep.subr.mxu0 0.0
        %2401 = vmatpush2.xpose.msra.mxu0 0.0
        %2402 = vmatprep.subr.mxu0 0.0
        %2403 = vmatpush2.xpose.msra.mxu0 0.0
        %2404 = vmatprep.subr.mxu0 0.0
        %2405 = vmatpush2.xpose.msra.mxu0 0.0
        %2406 = vmatprep.subr.mxu0 0.0
        %2407 = vmatpush2.xpose.msra.mxu0 0.0
        %2408 = vmatprep.subr.mxu0 0.0
        %2409 = vmatpush2.xpose.msra.mxu0 0.0
        %2410 = vmatprep.subr.mxu0 0.0
        %2411 = vmatpush2.xpose.msra.mxu0 0.0
        %2412 = vmatprep.subr.mxu0 0.0
        %2413 = vmatpush2.xpose.msra.mxu0 0.0
        %2414 = vmatprep.subr.mxu0 0.0
        %2415 = vmatpush2.xpose.msra.mxu0 0.0
        %2416 = vmatprep.subr.mxu0 0.0
        %2417 = vmatpush2.xpose.msra.mxu0 0.0
        %2418 = vmatprep.subr.mxu0 0.0
        %2419 = vmatpush2.xpose.msra.mxu0 0.0
        %2420 = vmatprep.mubr.f32.mxu0 0.0
        %2421 = vmatmul.mubr.f32.gmra.mxu0 %v2351
        %v2422 = vpop.f32.mrf.mxu0
        %v2423 = vadd.f32 %v2270, %v2422
        %v2424 = vpop.f32.mrf.mxu0
        %2425 = vdwg.mxu0
        %v2427 = vsel %vm2273, %v1911, 0
        %v2430 = vsel %vm2273, %v2057, 0
        %2432 = vmatprep.subr.mxu0 0.0
        %2433 = vmatpush1.xpose.msra.mxu0 0.0
        %2434 = vmatprep.subr.mxu0 0.0
        %2435 = vmatpush1.xpose.msra.mxu0 0.0
        %2436 = vmatprep.subr.mxu0 0.0
        %2437 = vmatpush1.xpose.msra.mxu0 0.0
        %2438 = vmatprep.subr.mxu0 0.0
        %2439 = vmatpush1.xpose.msra.mxu0 0.0
        %2440 = vmatprep.subr.mxu0 0.0
        %2441 = vmatpush1.xpose.msra.mxu0 0.0
        %2442 = vmatprep.subr.mxu0 0.0
        %2443 = vmatpush1.xpose.msra.mxu0 0.0
        %2444 = vmatprep.subr.mxu0 0.0
        %2445 = vmatpush1.xpose.msra.mxu0 0.0
        %2446 = vmatprep.subr.mxu0 0.0
        %2447 = vmatpush1.xpose.msra.mxu0 0.0
        %2448 = vmatprep.subr.mxu0 0.0
        %2449 = vmatpush1.xpose.msra.mxu0 0.0
        %2450 = vmatprep.subr.mxu0 0.0
        %2451 = vmatpush1.xpose.msra.mxu0 0.0
        %2452 = vmatprep.subr.mxu0 0.0
        %2453 = vmatpush1.xpose.msra.mxu0 0.0
        %2454 = vmatprep.subr.mxu0 0.0
        %2455 = vmatpush1.xpose.msra.mxu0 0.0
        %2456 = vmatprep.subr.mxu0 0.0
        %2457 = vmatpush1.xpose.msra.mxu0 0.0
        %2458 = vmatprep.subr.mxu0 0.0
        %2459 = vmatpush1.xpose.msra.mxu0 0.0
        %2460 = vmatprep.subr.mxu0 0.0
        %2461 = vmatpush1.xpose.msra.mxu0 0.0
        %2462 = vmatprep.subr.mxu0 0.0
        %2463 = vmatpush1.xpose.msra.mxu0 %v2430
        %2464 = vmatprep.subr.mxu0 0.0
        %2465 = vmatpush2.xpose.msra.mxu0 0.0
        %2466 = vmatprep.subr.mxu0 0.0
        %2467 = vmatpush2.xpose.msra.mxu0 0.0
        %2468 = vmatprep.subr.mxu0 0.0
        %2469 = vmatpush2.xpose.msra.mxu0 0.0
        %2470 = vmatprep.subr.mxu0 0.0
        %2471 = vmatpush2.xpose.msra.mxu0 0.0
        %2472 = vmatprep.subr.mxu0 0.0
        %2473 = vmatpush2.xpose.msra.mxu0 0.0
        %2474 = vmatprep.subr.mxu0 0.0
        %2475 = vmatpush2.xpose.msra.mxu0 0.0
        %2476 = vmatprep.subr.mxu0 0.0
        %2477 = vmatpush2.xpose.msra.mxu0 0.0
        %2478 = vmatprep.subr.mxu0 0.0
        %2479 = vmatpush2.xpose.msra.mxu0 0.0
        %2480 = vmatprep.subr.mxu0 0.0
        %2481 = vmatpush2.xpose.msra.mxu0 0.0
        %2482 = vmatprep.subr.mxu0 0.0
        %2483 = vmatpush2.xpose.msra.mxu0 0.0
        %2484 = vmatprep.subr.mxu0 0.0
        %2485 = vmatpush2.xpose.msra.mxu0 0.0
        %2486 = vmatprep.subr.mxu0 0.0
        %2487 = vmatpush2.xpose.msra.mxu0 0.0
        %2488 = vmatprep.subr.mxu0 0.0
        %2489 = vmatpush2.xpose.msra.mxu0 0.0
        %2490 = vmatprep.subr.mxu0 0.0
        %2491 = vmatpush2.xpose.msra.mxu0 0.0
        %2492 = vmatprep.subr.mxu0 0.0
        %2493 = vmatpush2.xpose.msra.mxu0 0.0
        %2494 = vmatprep.subr.mxu0 0.0
        %2495 = vmatpush2.xpose.msra.mxu0 0.0
        %2496 = vmatprep.mubr.f32.mxu0 0.0
        %2497 = vmatmul.mubr.f32.gmra.mxu0 %v2427
        %v2498 = vpop.f32.mrf.mxu0
        %v2499 = vadd.f32 %v2271, %v2498
        %v2500 = vpop.f32.mrf.mxu0
        %2501 = vdwg.mxu0
        %v2503 = vsel %vm2273, %v1912, 0
        %v2506 = vsel %vm2273, %v2058, 0
        %2508 = vmatprep.subr.mxu0 0.0
        %2509 = vmatpush1.xpose.msra.mxu0 0.0
        %2510 = vmatprep.subr.mxu0 0.0
        %2511 = vmatpush1.xpose.msra.mxu0 0.0
        %2512 = vmatprep.subr.mxu0 0.0
        %2513 = vmatpush1.xpose.msra.mxu0 0.0
        %2514 = vmatprep.subr.mxu0 0.0
        %2515 = vmatpush1.xpose.msra.mxu0 0.0
        %2516 = vmatprep.subr.mxu0 0.0
        %2517 = vmatpush1.xpose.msra.mxu0 0.0
        %2518 = vmatprep.subr.mxu0 0.0
        %2519 = vmatpush1.xpose.msra.mxu0 0.0
        %2520 = vmatprep.subr.mxu0 0.0
        %2521 = vmatpush1.xpose.msra.mxu0 0.0
        %2522 = vmatprep.subr.mxu0 0.0
        %2523 = vmatpush1.xpose.msra.mxu0 0.0
        %2524 = vmatprep.subr.mxu0 0.0
        %2525 = vmatpush1.xpose.msra.mxu0 0.0
        %2526 = vmatprep.subr.mxu0 0.0
        %2527 = vmatpush1.xpose.msra.mxu0 0.0
        %2528 = vmatprep.subr.mxu0 0.0
        %2529 = vmatpush1.xpose.msra.mxu0 0.0
        %2530 = vmatprep.subr.mxu0 0.0
        %2531 = vmatpush1.xpose.msra.mxu0 0.0
        %2532 = vmatprep.subr.mxu0 0.0
        %2533 = vmatpush1.xpose.msra.mxu0 0.0
        %2534 = vmatprep.subr.mxu0 0.0
        %2535 = vmatpush1.xpose.msra.mxu0 0.0
        %2536 = vmatprep.subr.mxu0 0.0
        %2537 = vmatpush1.xpose.msra.mxu0 0.0
        %2538 = vmatprep.subr.mxu0 0.0
        %2539 = vmatpush1.xpose.msra.mxu0 %v2506
        %2540 = vmatprep.subr.mxu0 0.0
        %2541 = vmatpush2.xpose.msra.mxu0 0.0
        %2542 = vmatprep.subr.mxu0 0.0
        %2543 = vmatpush2.xpose.msra.mxu0 0.0
        %2544 = vmatprep.subr.mxu0 0.0
        %2545 = vmatpush2.xpose.msra.mxu0 0.0
        %2546 = vmatprep.subr.mxu0 0.0
        %2547 = vmatpush2.xpose.msra.mxu0 0.0
        %2548 = vmatprep.subr.mxu0 0.0
        %2549 = vmatpush2.xpose.msra.mxu0 0.0
        %2550 = vmatprep.subr.mxu0 0.0
        %2551 = vmatpush2.xpose.msra.mxu0 0.0
        %2552 = vmatprep.subr.mxu0 0.0
        %2553 = vmatpush2.xpose.msra.mxu0 0.0
        %2554 = vmatprep.subr.mxu0 0.0
        %2555 = vmatpush2.xpose.msra.mxu0 0.0
        %2556 = vmatprep.subr.mxu0 0.0
        %2557 = vmatpush2.xpose.msra.mxu0 0.0
        %2558 = vmatprep.subr.mxu0 0.0
        %2559 = vmatpush2.xpose.msra.mxu0 0.0
        %2560 = vmatprep.subr.mxu0 0.0
        %2561 = vmatpush2.xpose.msra.mxu0 0.0
        %2562 = vmatprep.subr.mxu0 0.0
        %2563 = vmatpush2.xpose.msra.mxu0 0.0
        %2564 = vmatprep.subr.mxu0 0.0
        %2565 = vmatpush2.xpose.msra.mxu0 0.0
        %2566 = vmatprep.subr.mxu0 0.0
        %2567 = vmatpush2.xpose.msra.mxu0 0.0
        %2568 = vmatprep.subr.mxu0 0.0
        %2569 = vmatpush2.xpose.msra.mxu0 0.0
        %2570 = vmatprep.subr.mxu0 0.0
        %2571 = vmatpush2.xpose.msra.mxu0 0.0
        %2572 = vmatprep.mubr.f32.mxu0 0.0
        %2573 = vmatmul.mubr.f32.gmra.mxu0 %v2503
        %v2574 = vpop.f32.mrf.mxu0
        %v2575 = vadd.f32 %v2272, %v2574
        %v2576 = vpop.f32.mrf.mxu0
        %2577 = vdwg.mxu0
        %v2578 = vsel %vm2273, %v2347, -inf
        %2579 = vmax.xlane.f32.xlu0 %v2578
        %v2580 = vpop.xlane.xlu0 %2579
        %v2581 = vsel %vm2273, %v2423, -inf
        %2582 = vmax.xlane.f32.xlu0 %v2581
        %v2583 = vpop.xlane.xlu0 %2582
        %v2584 = vsel %vm2273, %v2499, -inf
        %2585 = vmax.xlane.f32.xlu0 %v2584
        %v2586 = vpop.xlane.xlu0 %2585
        %v2587 = vsel %vm2273, %v2575, -inf
        %2588 = vmax.xlane.f32.xlu0 %v2587
        %v2589 = vpop.xlane.xlu0 %2588
        %v2590 = vsub.f32 %v2347, %v2580
        %v2591 = vsub.f32 %v2423, %v2583
        %v2592 = vsub.f32 %v2499, %v2586
        %v2593 = vsub.f32 %v2575, %v2589
        %v2594 = vmul.f32 %v2590, 1.442695
        %v2595 = vpow.pop %v2594
        %v2596 = vmul.f32 %v2591, 1.442695
        %v2597 = vpow.pop %v2596
        %v2598 = vmul.f32 %v2592, 1.442695
        %v2599 = vpow.pop %v2598
        %v2600 = vmul.f32 %v2593, 1.442695
        %v2601 = vpow.pop %v2600
        %v2602 = vsel %vm2273, %v2595, 0.0
        %2603 = vadd.xlane.f32.xlu0 %v2602
        %v2604 = vpop.xlane.xlu0 %2603
        %v2605 = vsel %vm2273, %v2597, 0.0
        %2606 = vadd.xlane.f32.xlu0 %v2605
        %v2607 = vpop.xlane.xlu0 %2606
        %v2608 = vsel %vm2273, %v2599, 0.0
        %2609 = vadd.xlane.f32.xlu0 %v2608
        %v2610 = vpop.xlane.xlu0 %2609
        %v2611 = vsel %vm2273, %v2601, 0.0
        %2612 = vadd.xlane.f32.xlu0 %v2611
        %v2613 = vpop.xlane.xlu0 %2612
        %v2614 = vrcp.pop %v2604
        %v2615 = vmul.f32 %v2595, %v2614
        %v2616 = vrcp.pop %v2607
        %v2617 = vmul.f32 %v2597, %v2616
        %v2618 = vrcp.pop %v2610
        %v2619 = vmul.f32 %v2599, %v2618
        %v2620 = vrcp.pop %v2613
        %v2621 = vmul.f32 %v2601, %v2620
        %v2623 = vsel %vm2273, %v2615, 0
        %2625 = vmatprep.subr.mxu0 0.0
        %2626 = vmatpush1.msra.mxu0 0.0
        %2627 = vmatprep.subr.mxu0 0.0
        %2628 = vmatpush1.msra.mxu0 0.0
        %2629 = vmatprep.subr.mxu0 0.0
        %2630 = vmatpush1.msra.mxu0 0.0
        %2631 = vmatprep.subr.mxu0 0.0
        %2632 = vmatpush1.msra.mxu0 0.0
        %2633 = vmatprep.subr.mxu0 0.0
        %2634 = vmatpush1.msra.mxu0 0.0
        %2635 = vmatprep.subr.mxu0 0.0
        %2636 = vmatpush1.msra.mxu0 0.0
        %2637 = vmatprep.subr.mxu0 0.0
        %2638 = vmatpush1.msra.mxu0 0.0
        %2639 = vmatprep.subr.mxu0 0.0
        %2640 = vmatpush1.msra.mxu0 0.0
        %2641 = vmatprep.subr.mxu0 0.0
        %2642 = vmatpush1.msra.mxu0 0.0
        %2643 = vmatprep.subr.mxu0 0.0
        %2644 = vmatpush1.msra.mxu0 0.0
        %2645 = vmatprep.subr.mxu0 0.0
        %2646 = vmatpush1.msra.mxu0 0.0
        %2647 = vmatprep.subr.mxu0 0.0
        %2648 = vmatpush1.msra.mxu0 0.0
        %2649 = vmatprep.subr.mxu0 0.0
        %2650 = vmatpush1.msra.mxu0 0.0
        %2651 = vmatprep.subr.mxu0 0.0
        %2652 = vmatpush1.msra.mxu0 0.0
        %2653 = vmatprep.subr.mxu0 0.0
        %2654 = vmatpush1.msra.mxu0 0.0
        %2655 = vmatprep.subr.mxu0 0.0
        %2656 = vmatpush1.msra.mxu0 %v2201
        %2657 = vmatprep.subr.mxu0 0.0
        %2658 = vmatpush2.msra.mxu0 0.0
        %2659 = vmatprep.subr.mxu0 0.0
        %2660 = vmatpush2.msra.mxu0 0.0
        %2661 = vmatprep.subr.mxu0 0.0
        %2662 = vmatpush2.msra.mxu0 0.0
        %2663 = vmatprep.subr.mxu0 0.0
        %2664 = vmatpush2.msra.mxu0 0.0
        %2665 = vmatprep.subr.mxu0 0.0
        %2666 = vmatpush2.msra.mxu0 0.0
        %2667 = vmatprep.subr.mxu0 0.0
        %2668 = vmatpush2.msra.mxu0 0.0
        %2669 = vmatprep.subr.mxu0 0.0
        %2670 = vmatpush2.msra.mxu0 0.0
        %2671 = vmatprep.subr.mxu0 0.0
        %2672 = vmatpush2.msra.mxu0 0.0
        %2673 = vmatprep.subr.mxu0 0.0
        %2674 = vmatpush2.msra.mxu0 0.0
        %2675 = vmatprep.subr.mxu0 0.0
        %2676 = vmatpush2.msra.mxu0 0.0
        %2677 = vmatprep.subr.mxu0 0.0
        %2678 = vmatpush2.msra.mxu0 0.0
        %2679 = vmatprep.subr.mxu0 0.0
        %2680 = vmatpush2.msra.mxu0 0.0
        %2681 = vmatprep.subr.mxu0 0.0
        %2682 = vmatpush2.msra.mxu0 0.0
        %2683 = vmatprep.subr.mxu0 0.0
        %2684 = vmatpush2.msra.mxu0 0.0
        %2685 = vmatprep.subr.mxu0 0.0
        %2686 = vmatpush2.msra.mxu0 0.0
        %2687 = vmatprep.subr.mxu0 0.0
        %2688 = vmatpush2.msra.mxu0 0.0
        %2689 = vmatprep.mubr.f32.mxu0 0.0
        %2690 = vmatmul.mubr.f32.gmra.mxu0 %v2623
        %v2691 = vpop.f32.mrf.mxu0
        %v2692 = vadd.f32 0.0, %v2691
        %v2693 = vpop.f32.mrf.mxu0
        %2694 = vdwg.mxu0
        %v2696 = vsel %vm2273, %v2617, 0
        %2698 = vmatprep.subr.mxu0 0.0
        %2699 = vmatpush1.msra.mxu0 0.0
        %2700 = vmatprep.subr.mxu0 0.0
        %2701 = vmatpush1.msra.mxu0 0.0
        %2702 = vmatprep.subr.mxu0 0.0
        %2703 = vmatpush1.msra.mxu0 0.0
        %2704 = vmatprep.subr.mxu0 0.0
        %2705 = vmatpush1.msra.mxu0 0.0
        %2706 = vmatprep.subr.mxu0 0.0
        %2707 = vmatpush1.msra.mxu0 0.0
        %2708 = vmatprep.subr.mxu0 0.0
        %2709 = vmatpush1.msra.mxu0 0.0
        %2710 = vmatprep.subr.mxu0 0.0
        %2711 = vmatpush1.msra.mxu0 0.0
        %2712 = vmatprep.subr.mxu0 0.0
        %2713 = vmatpush1.msra.mxu0 0.0
        %2714 = vmatprep.subr.mxu0 0.0
        %2715 = vmatpush1.msra.mxu0 0.0
        %2716 = vmatprep.subr.mxu0 0.0
        %2717 = vmatpush1.msra.mxu0 0.0
        %2718 = vmatprep.subr.mxu0 0.0
        %2719 = vmatpush1.msra.mxu0 0.0
        %2720 = vmatprep.subr.mxu0 0.0
        %2721 = vmatpush1.msra.mxu0 0.0
        %2722 = vmatprep.subr.mxu0 0.0
        %2723 = vmatpush1.msra.mxu0 0.0
        %2724 = vmatprep.subr.mxu0 0.0
        %2725 = vmatpush1.msra.mxu0 0.0
        %2726 = vmatprep.subr.mxu0 0.0
        %2727 = vmatpush1.msra.mxu0 0.0
        %2728 = vmatprep.subr.mxu0 0.0
        %2729 = vmatpush1.msra.mxu0 %v2202
        %2730 = vmatprep.subr.mxu0 0.0
        %2731 = vmatpush2.msra.mxu0 0.0
        %2732 = vmatprep.subr.mxu0 0.0
        %2733 = vmatpush2.msra.mxu0 0.0
        %2734 = vmatprep.subr.mxu0 0.0
        %2735 = vmatpush2.msra.mxu0 0.0
        %2736 = vmatprep.subr.mxu0 0.0
        %2737 = vmatpush2.msra.mxu0 0.0
        %2738 = vmatprep.subr.mxu0 0.0
        %2739 = vmatpush2.msra.mxu0 0.0
        %2740 = vmatprep.subr.mxu0 0.0
        %2741 = vmatpush2.msra.mxu0 0.0
        %2742 = vmatprep.subr.mxu0 0.0
        %2743 = vmatpush2.msra.mxu0 0.0
        %2744 = vmatprep.subr.mxu0 0.0
        %2745 = vmatpush2.msra.mxu0 0.0
        %2746 = vmatprep.subr.mxu0 0.0
        %2747 = vmatpush2.msra.mxu0 0.0
        %2748 = vmatprep.subr.mxu0 0.0
        %2749 = vmatpush2.msra.mxu0 0.0
        %2750 = vmatprep.subr.mxu0 0.0
        %2751 = vmatpush2.msra.mxu0 0.0
        %2752 = vmatprep.subr.mxu0 0.0
        %2753 = vmatpush2.msra.mxu0 0.0
        %2754 = vmatprep.subr.mxu0 0.0
        %2755 = vmatpush2.msra.mxu0 0.0
        %2756 = vmatprep.subr.mxu0 0.0
        %2757 = vmatpush2.msra.mxu0 0.0
        %2758 = vmatprep.subr.mxu0 0.0
        %2759 = vmatpush2.msra.mxu0 0.0
        %2760 = vmatprep.subr.mxu0 0.0
        %2761 = vmatpush2.msra.mxu0 0.0
        %2762 = vmatprep.mubr.f32.mxu0 0.0
        %2763 = vmatmul.mubr.f32.gmra.mxu0 %v2696
        %v2764 = vpop.f32.mrf.mxu0
        %v2765 = vadd.f32 0.0, %v2764
        %v2766 = vpop.f32.mrf.mxu0
        %2767 = vdwg.mxu0
        %v2769 = vsel %vm2273, %v2619, 0
        %2771 = vmatprep.subr.mxu0 0.0
        %2772 = vmatpush1.msra.mxu0 0.0
        %2773 = vmatprep.subr.mxu0 0.0
        %2774 = vmatpush1.msra.mxu0 0.0
        %2775 = vmatprep.subr.mxu0 0.0
        %2776 = vmatpush1.msra.mxu0 0.0
        %2777 = vmatprep.subr.mxu0 0.0
        %2778 = vmatpush1.msra.mxu0 0.0
        %2779 = vmatprep.subr.mxu0 0.0
        %2780 = vmatpush1.msra.mxu0 0.0
        %2781 = vmatprep.subr.mxu0 0.0
        %2782 = vmatpush1.msra.mxu0 0.0
        %2783 = vmatprep.subr.mxu0 0.0
        %2784 = vmatpush1.msra.mxu0 0.0
        %2785 = vmatprep.subr.mxu0 0.0
        %2786 = vmatpush1.msra.mxu0 0.0
        %2787 = vmatprep.subr.mxu0 0.0
        %2788 = vmatpush1.msra.mxu0 0.0
        %2789 = vmatprep.subr.mxu0 0.0
        %2790 = vmatpush1.msra.mxu0 0.0
        %2791 = vmatprep.subr.mxu0 0.0
        %2792 = vmatpush1.msra.mxu0 0.0
        %2793 = vmatprep.subr.mxu0 0.0
        %2794 = vmatpush1.msra.mxu0 0.0
        %2795 = vmatprep.subr.mxu0 0.0
        %2796 = vmatpush1.msra.mxu0 0.0
        %2797 = vmatprep.subr.mxu0 0.0
        %2798 = vmatpush1.msra.mxu0 0.0
        %2799 = vmatprep.subr.mxu0 0.0
        %2800 = vmatpush1.msra.mxu0 0.0
        %2801 = vmatprep.subr.mxu0 0.0
        %2802 = vmatpush1.msra.mxu0 %v2203
        %2803 = vmatprep.subr.mxu0 0.0
        %2804 = vmatpush2.msra.mxu0 0.0
        %2805 = vmatprep.subr.mxu0 0.0
        %2806 = vmatpush2.msra.mxu0 0.0
        %2807 = vmatprep.subr.mxu0 0.0
        %2808 = vmatpush2.msra.mxu0 0.0
        %2809 = vmatprep.subr.mxu0 0.0
        %2810 = vmatpush2.msra.mxu0 0.0
        %2811 = vmatprep.subr.mxu0 0.0
        %2812 = vmatpush2.msra.mxu0 0.0
        %2813 = vmatprep.subr.mxu0 0.0
        %2814 = vmatpush2.msra.mxu0 0.0
        %2815 = vmatprep.subr.mxu0 0.0
        %2816 = vmatpush2.msra.mxu0 0.0
        %2817 = vmatprep.subr.mxu0 0.0
        %2818 = vmatpush2.msra.mxu0 0.0
        %2819 = vmatprep.subr.mxu0 0.0
        %2820 = vmatpush2.msra.mxu0 0.0
        %2821 = vmatprep.subr.mxu0 0.0
        %2822 = vmatpush2.msra.mxu0 0.0
        %2823 = vmatprep.subr.mxu0 0.0
        %2824 = vmatpush2.msra.mxu0 0.0
        %2825 = vmatprep.subr.mxu0 0.0
        %2826 = vmatpush2.msra.mxu0 0.0
        %2827 = vmatprep.subr.mxu0 0.0
        %2828 = vmatpush2.msra.mxu0 0.0
        %2829 = vmatprep.subr.mxu0 0.0
        %2830 = vmatpush2.msra.mxu0 0.0
        %2831 = vmatprep.subr.mxu0 0.0
        %2832 = vmatpush2.msra.mxu0 0.0
        %2833 = vmatprep.subr.mxu0 0.0
        %2834 = vmatpush2.msra.mxu0 0.0
        %2835 = vmatprep.mubr.f32.mxu0 0.0
        %2836 = vmatmul.mubr.f32.gmra.mxu0 %v2769
        %v2837 = vpop.f32.mrf.mxu0
        %v2838 = vadd.f32 0.0, %v2837
        %v2839 = vpop.f32.mrf.mxu0
        %2840 = vdwg.mxu0
        %v2842 = vsel %vm2273, %v2621, 0
        %2844 = vmatprep.subr.mxu0 0.0
        %2845 = vmatpush1.msra.mxu0 0.0
        %2846 = vmatprep.subr.mxu0 0.0
        %2847 = vmatpush1.msra.mxu0 0.0
        %2848 = vmatprep.subr.mxu0 0.0
        %2849 = vmatpush1.msra.mxu0 0.0
        %2850 = vmatprep.subr.mxu0 0.0
        %2851 = vmatpush1.msra.mxu0 0.0
        %2852 = vmatprep.subr.mxu0 0.0
        %2853 = vmatpush1.msra.mxu0 0.0
        %2854 = vmatprep.subr.mxu0 0.0
        %2855 = vmatpush1.msra.mxu0 0.0
        %2856 = vmatprep.subr.mxu0 0.0
        %2857 = vmatpush1.msra.mxu0 0.0
        %2858 = vmatprep.subr.mxu0 0.0
        %2859 = vmatpush1.msra.mxu0 0.0
        %2860 = vmatprep.subr.mxu0 0.0
        %2861 = vmatpush1.msra.mxu0 0.0
        %2862 = vmatprep.subr.mxu0 0.0
        %2863 = vmatpush1.msra.mxu0 0.0
        %2864 = vmatprep.subr.mxu0 0.0
        %2865 = vmatpush1.msra.mxu0 0.0
        %2866 = vmatprep.subr.mxu0 0.0
        %2867 = vmatpush1.msra.mxu0 0.0
        %2868 = vmatprep.subr.mxu0 0.0
        %2869 = vmatpush1.msra.mxu0 0.0
        %2870 = vmatprep.subr.mxu0 0.0
        %2871 = vmatpush1.msra.mxu0 0.0
        %2872 = vmatprep.subr.mxu0 0.0
        %2873 = vmatpush1.msra.mxu0 0.0
        %2874 = vmatprep.subr.mxu0 0.0
        %2875 = vmatpush1.msra.mxu0 %v2204
        %2876 = vmatprep.subr.mxu0 0.0
        %2877 = vmatpush2.msra.mxu0 0.0
        %2878 = vmatprep.subr.mxu0 0.0
        %2879 = vmatpush2.msra.mxu0 0.0
        %2880 = vmatprep.subr.mxu0 0.0
        %2881 = vmatpush2.msra.mxu0 0.0
        %2882 = vmatprep.subr.mxu0 0.0
        %2883 = vmatpush2.msra.mxu0 0.0
        %2884 = vmatprep.subr.mxu0 0.0
        %2885 = vmatpush2.msra.mxu0 0.0
        %2886 = vmatprep.subr.mxu0 0.0
        %2887 = vmatpush2.msra.mxu0 0.0
        %2888 = vmatprep.subr.mxu0 0.0
        %2889 = vmatpush2.msra.mxu0 0.0
        %2890 = vmatprep.subr.mxu0 0.0
        %2891 = vmatpush2.msra.mxu0 0.0
        %2892 = vmatprep.subr.mxu0 0.0
        %2893 = vmatpush2.msra.mxu0 0.0
        %2894 = vmatprep.subr.mxu0 0.0
        %2895 = vmatpush2.msra.mxu0 0.0
        %2896 = vmatprep.subr.mxu0 0.0
        %2897 = vmatpush2.msra.mxu0 0.0
        %2898 = vmatprep.subr.mxu0 0.0
        %2899 = vmatpush2.msra.mxu0 0.0
        %2900 = vmatprep.subr.mxu0 0.0
        %2901 = vmatpush2.msra.mxu0 0.0
        %2902 = vmatprep.subr.mxu0 0.0
        %2903 = vmatpush2.msra.mxu0 0.0
        %2904 = vmatprep.subr.mxu0 0.0
        %2905 = vmatpush2.msra.mxu0 0.0
        %2906 = vmatprep.subr.mxu0 0.0
        %2907 = vmatpush2.msra.mxu0 0.0
        %2908 = vmatprep.mubr.f32.mxu0 0.0
        %2909 = vmatmul.mubr.f32.gmra.mxu0 %v2842
        %v2910 = vpop.f32.mrf.mxu0
        %v2911 = vadd.f32 0.0, %v2910
        %v2912 = vpop.f32.mrf.mxu0
        %2913 = vdwg.mxu0
        %v2914 = vcombine.low %v2692, %v2838
        %v2915 = vcombine.high %v2692, %v2838
        %v2917 = vunpack.c.l.s4 1983009808
        %v2918 = vunpack.c.0.s8 %v2917
        %v2919 = vlaneseq
        %v2920 = vshrl.u32 %v2919, 7
        %v2921 = vsub.s32 %v2918, %v2920
        %v2922 = vrot.slane %v2914, %v2921
        %v2924 = vunpack.c.l.s4 1983009808
        %v2925 = vunpack.c.0.s8 %v2924
        %v2926 = vlaneseq
        %v2927 = vshrl.u32 %v2926, 7
        %v2928 = vsub.s32 %v2925, %v2927
        %v2929 = vrot.slane %v2915, %v2928
        %v2930 = vcombine.low %v2765, %v2911
        %v2931 = vcombine.high %v2765, %v2911
        %v2933 = vunpack.c.l.s4 1983009808
        %v2934 = vunpack.c.0.s8 %v2933
        %v2935 = vlaneseq
        %v2936 = vshrl.u32 %v2935, 7
        %v2937 = vsub.s32 %v2934, %v2936
        %v2938 = vrot.slane %v2930, %v2937
        %v2940 = vunpack.c.l.s4 1983009808
        %v2941 = vunpack.c.0.s8 %v2940
        %v2942 = vlaneseq
        %v2943 = vshrl.u32 %v2942, 7
        %v2944 = vsub.s32 %v2941, %v2943
        %v2945 = vrot.slane %v2931, %v2944
        %v2946 = vcombine.low %v2922, %v2938
        %v2947 = vcombine.high %v2922, %v2938
        %v2949 = vunpack.c.l.s4 1934713408
        %v2950 = vunpack.c.0.s8 %v2949
        %v2951 = vlaneseq
        %v2952 = vshrl.u32 %v2951, 7
        %v2953 = vsub.s32 %v2950, %v2952
        %v2954 = vrot.slane %v2946, %v2953
        %v2956 = vunpack.c.l.s4 1934713408
        %v2957 = vunpack.c.0.s8 %v2956
        %v2958 = vlaneseq
        %v2959 = vshrl.u32 %v2958, 7
        %v2960 = vsub.s32 %v2957, %v2959
        %v2961 = vrot.slane %v2947, %v2960
        %v2962 = vcombine.low %v2929, %v2945
        %v2963 = vcombine.high %v2929, %v2945
        %v2965 = vunpack.c.l.s4 1934713408
        %v2966 = vunpack.c.0.s8 %v2965
        %v2967 = vlaneseq
        %v2968 = vshrl.u32 %v2967, 7
        %v2969 = vsub.s32 %v2966, %v2968
        %v2970 = vrot.slane %v2962, %v2969
        %v2972 = vunpack.c.l.s4 1934713408
        %v2973 = vunpack.c.0.s8 %v2972
        %v2974 = vlaneseq
        %v2975 = vshrl.u32 %v2974, 7
        %v2976 = vsub.s32 %v2973, %v2975
        %v2977 = vrot.slane %v2963, %v2976
        %v2978 = vcombine.high %v2954, 0.0
        %v2979 = vcombine.high %v2961, 0.0
        %v2980 = vcombine.high %v2970, 0.0
        %v2981 = vcombine.high %v2977, 0.0
        %v2982 = vcombine.low %v2954, %v2961
        %v2984 = vunpack.c.l.s4 1983009808
        %v2985 = vunpack.c.0.s8 %v2984
        %v2986 = vlaneseq
        %v2987 = vshrl.u32 %v2986, 7
        %v2988 = vsub.s32 %v2985, %v2987
        %v2989 = vrot.slane %v2982, %v2988
        %v2990 = vcombine.low %v2978, %v2979
        %v2992 = vunpack.c.l.s4 1983009808
        %v2993 = vunpack.c.0.s8 %v2992
        %v2994 = vlaneseq
        %v2995 = vshrl.u32 %v2994, 7
        %v2996 = vsub.s32 %v2993, %v2995
        %v2997 = vrot.slane %v2990, %v2996
        %v2998 = vcombine.low %v2970, %v2977
        %v3000 = vunpack.c.l.s4 1983009808
        %v3001 = vunpack.c.0.s8 %v3000
        %v3002 = vlaneseq
        %v3003 = vshrl.u32 %v3002, 7
        %v3004 = vsub.s32 %v3001, %v3003
        %v3005 = vrot.slane %v2998, %v3004
        %v3006 = vcombine.low %v2980, %v2981
        %v3008 = vunpack.c.l.s4 1983009808
        %v3009 = vunpack.c.0.s8 %v3008
        %v3010 = vlaneseq
        %v3011 = vshrl.u32 %v3010, 7
        %v3012 = vsub.s32 %v3009, %v3011
        %v3013 = vrot.slane %v3006, %v3012
        %v3014 = vcombine.low %v2989, %v2997
        %v3015 = vcombine.high %v2989, %v2997
        %v3017 = vunpack.c.l.s4 1934713408
        %v3018 = vunpack.c.0.s8 %v3017
        %v3019 = vlaneseq
        %v3020 = vshrl.u32 %v3019, 7
        %v3021 = vsub.s32 %v3018, %v3020
        %v3022 = vrot.slane %v3014, %v3021
        %v3024 = vunpack.c.l.s4 1934713408
        %v3025 = vunpack.c.0.s8 %v3024
        %v3026 = vlaneseq
        %v3027 = vshrl.u32 %v3026, 7
        %v3028 = vsub.s32 %v3025, %v3027
        %v3029 = vrot.slane %v3015, %v3028
        %v3030 = vcombine.low %v3005, %v3013
        %v3031 = vcombine.high %v3005, %v3013
        %v3033 = vunpack.c.l.s4 1934713408
        %v3034 = vunpack.c.0.s8 %v3033
        %v3035 = vlaneseq
        %v3036 = vshrl.u32 %v3035, 7
        %v3037 = vsub.s32 %v3034, %v3036
        %v3038 = vrot.slane %v3030, %v3037
        %v3040 = vunpack.c.l.s4 1934713408
        %v3041 = vunpack.c.0.s8 %v3040
        %v3042 = vlaneseq
        %v3043 = vshrl.u32 %v3042, 7
        %v3044 = vsub.s32 %v3041, %v3043
        %v3045 = vrot.slane %v3031, %v3044
        %v3046 = vcombine.low %v3022, %v3038
        %v3047 = vcombine.high %v3022, %v3038
        %v3048 = vcombine.low %v3029, %v3045
        %v3049 = vcombine.high %v3029, %v3045
        %3051 = vrot.lane.b32.xlu0 %v3047, 8
        %v3052 = vpop.permute.xlu0 %3051
        %3055 = vrot.lane.b32.xlu0 %v3048, 16
        %v3056 = vpop.permute.xlu0 %3055
        %3059 = vrot.lane.b32.xlu0 %v3049, 24
        %v3060 = vpop.permute.xlu0 %3059
        %v3062 = vsel %vm2273, %v3046, %v3052
        %vm3063 = vcmask 130048
        %v3064 = vsel %vm3063, %v3062, %v3056
        %vm3065 = vcmask 195584
        %v3066 = vsel %vm3065, %v3064, %v3060
        %v3067 = vld [vmem:[#allocation13] sm:$0xff]
        %v3068 = vld [vmem:[#allocation13 + $0x8] sm:$0xff]
        %v3069 = vld [vmem:[#allocation13 + $0x10] sm:$0xff]
        %v3070 = vld [vmem:[#allocation13 + $0x18] sm:$0xff]
        %v3072 = vsel %vm670, %v3066, 0
        %3074 = vmatprep.subr.mxu0 0.0
        %3075 = vmatpush1.msra.mxu0 0.0
        %3076 = vmatprep.subr.mxu0 0.0
        %3077 = vmatpush1.msra.mxu0 0.0
        %3078 = vmatprep.subr.mxu0 0.0
        %3079 = vmatpush1.msra.mxu0 0.0
        %3080 = vmatprep.subr.mxu0 0.0
        %3081 = vmatpush1.msra.mxu0 0.0
        %3082 = vmatprep.subr.mxu0 0.0
        %3083 = vmatpush1.msra.mxu0 0.0
        %3084 = vmatprep.subr.mxu0 0.0
        %3085 = vmatpush1.msra.mxu0 0.0
        %3086 = vmatprep.subr.mxu0 0.0
        %3087 = vmatpush1.msra.mxu0 0.0
        %3088 = vmatprep.subr.mxu0 0.0
        %3089 = vmatpush1.msra.mxu0 0.0
        %3090 = vmatprep.subr.mxu0 0.0
        %3091 = vmatpush1.msra.mxu0 0.0
        %3092 = vmatprep.subr.mxu0 0.0
        %3093 = vmatpush1.msra.mxu0 0.0
        %3094 = vmatprep.subr.mxu0 0.0
        %3095 = vmatpush1.msra.mxu0 0.0
        %3096 = vmatprep.subr.mxu0 0.0
        %3097 = vmatpush1.msra.mxu0 0.0
        %3098 = vmatprep.subr.mxu0 0.0
        %3099 = vmatpush1.msra.mxu0 %v3070
        %3100 = vmatprep.subr.mxu0 0.0
        %3101 = vmatpush1.msra.mxu0 %v3069
        %3102 = vmatprep.subr.mxu0 0.0
        %3103 = vmatpush1.msra.mxu0 %v3068
        %3104 = vmatprep.subr.mxu0 0.0
        %3105 = vmatpush1.msra.mxu0 %v3067
        %3106 = vmatprep.subr.mxu0 0.0
        %3107 = vmatpush2.msra.mxu0 0.0
        %3108 = vmatprep.subr.mxu0 0.0
        %3109 = vmatpush2.msra.mxu0 0.0
        %3110 = vmatprep.subr.mxu0 0.0
        %3111 = vmatpush2.msra.mxu0 0.0
        %3112 = vmatprep.subr.mxu0 0.0
        %3113 = vmatpush2.msra.mxu0 0.0
        %3114 = vmatprep.subr.mxu0 0.0
        %3115 = vmatpush2.msra.mxu0 0.0
        %3116 = vmatprep.subr.mxu0 0.0
        %3117 = vmatpush2.msra.mxu0 0.0
        %3118 = vmatprep.subr.mxu0 0.0
        %3119 = vmatpush2.msra.mxu0 0.0
        %3120 = vmatprep.subr.mxu0 0.0
        %3121 = vmatpush2.msra.mxu0 0.0
        %3122 = vmatprep.subr.mxu0 0.0
        %3123 = vmatpush2.msra.mxu0 0.0
        %3124 = vmatprep.subr.mxu0 0.0
        %3125 = vmatpush2.msra.mxu0 0.0
        %3126 = vmatprep.subr.mxu0 0.0
        %3127 = vmatpush2.msra.mxu0 0.0
        %3128 = vmatprep.subr.mxu0 0.0
        %3129 = vmatpush2.msra.mxu0 0.0
        %3130 = vmatprep.subr.mxu0 0.0
        %3131 = vmatpush2.msra.mxu0 0.0
        %3132 = vmatprep.subr.mxu0 0.0
        %3133 = vmatpush2.msra.mxu0 0.0
        %3134 = vmatprep.subr.mxu0 0.0
        %3135 = vmatpush2.msra.mxu0 0.0
        %3136 = vmatprep.subr.mxu0 0.0
        %3137 = vmatpush2.msra.mxu0 0.0
        %3138 = vmatprep.mubr.f32.mxu0 0.0
        %3139 = vmatmul.mubr.f32.gmra.mxu0 %v3072
        %v3140 = vpop.f32.mrf.mxu0
        %v3141 = vadd.f32 0.0, %v3140
        %v3142 = vpop.f32.mrf.mxu0
        %3143 = vdwg.mxu0
        %3145 = vrot.lane.b32.xlu0 %v3141, 32
        %v3146 = vpop.permute.xlu0 %3145
        %v3148 = vadd.f32 %v753, %v3146
        %3150 = vrot.lane.b32.xlu0 %v3148, 96
        %v3151 = vpop.permute.xlu0 %3150
        %v3153 = vsel %vm670, %v3151, 0.0
        %3154 = vadd.xlane.f32.xlu0 %v3153
        %v3155 = vpop.xlane.xlu0 %3154
        %v3156 = vrcp.pop 32.0
        %v3157 = vmul.f32 %v3155, %v3156
        %v3158 = vsub.f32 %v3148, %v3157
        %v3159 = vmul.f32 %v3158, %v3158
        %3161 = vrot.lane.b32.xlu0 %v3159, 96
        %v3162 = vpop.permute.xlu0 %3161
        %v3164 = vsel %vm670, %v3162, 0.0
        %3165 = vadd.xlane.f32.xlu0 %v3164
        %v3166 = vpop.xlane.xlu0 %3165
        %v3167 = vmul.f32 %v3166, %v3156
        %v3168 = vadd.f32 %v3167, 1e-06
        %v3169 = vrsqrt.pop %v3168
        %v3170 = vmul.f32 %v3158, %v3169
        %v3171 = vld [vmem:[%s13] sm:$0x1]
        %v3173 = vlaneseq
        %v3174 = vshrl.u32 %v3173, 7
        %v3175 = vsub.s32 0, %v3174
        %v3176 = vrot.slane %v3171, %v3175
        %3177 = vrot.lane.b32.xlu0 %v3176, 32
        %v3178 = vpop.permute.xlu0 %3177
        %v3180 = vmul.f32 %v3170, %v3178
        %v3181 = vld [vmem:[%s14] sm:$0x1]
        %v3183 = vlaneseq
        %v3184 = vshrl.u32 %v3183, 7
        %v3185 = vsub.s32 0, %v3184
        %v3186 = vrot.slane %v3181, %v3185
        %3187 = vrot.lane.b32.xlu0 %v3186, 32
        %v3188 = vpop.permute.xlu0 %3187
        %v3190 = vadd.f32 %v3180, %v3188
        %3192 = vrot.lane.b32.xlu0 %v3190, 96
        %v3193 = vpop.permute.xlu0 %3192
        %3195 = vst.msk [vmem:[%s651] sm:$0xff] %vm670, %v3193
        %s3196 = sand.u32 %s380, 1
        %s3197 = scalar_lea.sflag [#allocation4], %s3196
        %s3198 = sand.u32 %s380, 1
        %s3199 = smul.addr %s3198, 8
        %s3200 = scalar_lea.vmem [#allocation14], %s3199
        // Predicated region
        $region109: #{tpu_custom_call.1} parent=79 // pred_check
          %p3201 = pneg %p390
        $region110: #{tpu_custom_call.1} parent=79 // pred_check_branch
          %3203 = sbr.rel (%p3201) target = $region112
        $region111: #{tpu_custom_call.1} parent=79 // pred_region
          %s3205 = ssub.s32 128, 128
          %3206 = vsyncadd %s3197, %s3205
          %s3207 = smul.addr %s37, 128
          %s3208 = scalar_lea.hbm %s15, %s3207
          %s3210 = sshll.u32 %s3200, 4
          %s3211 = int_to_ptr.vmem [resolvable:$true] %s3210
          %3213 = dma.vmem_to_hbm [thread:$0]  %s3211, 128, %s3208, %s3197
        $region112: #{tpu_custom_call.1} parent=79 // pred_fallthru
          _
      $region80: #{tpu_custom_call.1} parent=5 // pred_fallthru
        _
      %p3214 = scmp.le.s32.totalorder 2, %s32
      // Predicated region
      $region113: #{tpu_custom_call.1} parent=5 // pred_check
        %p3215 = pneg %p3214
      $region114: #{tpu_custom_call.1} parent=5 // pred_check_branch
        %3217 = sbr.rel (%p3215) target = $region116
      $region115: #{tpu_custom_call.1} parent=5 // pred_region
        %s3218 = ssub.s32 %s32, 2
        // Predicated region
        $region117: #{tpu_custom_call.1} parent=115 // pred_check
          %p3219 = pneg %p396
        $region118: #{tpu_custom_call.1} parent=115 // pred_check_branch
          %3221 = sbr.rel (%p3219) target = $region120
        $region119: #{tpu_custom_call.1} parent=115 // pred_region
          %s3222 = sand.u32 %s381, 1
          %s3223 = scalar_lea.sflag [#allocation4], %s3222
          %s3224 = sand.u32 %s381, 1
          %s3225 = smul.addr %s3224, 8
          %s3226 = scalar_lea.vmem [#allocation14], %s3225
          %3227 = dma.done %s3223, 128
        $region120: #{tpu_custom_call.1} parent=115 // pred_fallthru
          _
      $region116: #{tpu_custom_call.1} parent=5 // pred_fallthru
        _
    $region6: #{tpu_custom_call.1} parent=1 // loop_footer
      %s36 = sadd.s32 1, %s32
    $region7: #{tpu_custom_call.1} parent=1 // loop_footer_branch
      %31 = sbr.rel target = $region3
    $region8: #{tpu_custom_call.1} parent=1 // loop_exit
      _
    %3228 = vsyncpa [#allocation3], 1
    %s3229 = scalar_lea.sflag [#allocation3], 1
    %3230 = vsyncpa %s3229, 1
    %3231 = vsyncpa [#allocation6], 1
    %s3232 = scalar_lea.sflag [#allocation6], 1
    %3233 = vsyncpa %s3232, 1
    %3234 = vsyncpa [#allocation9], 1
    %3235 = vsyncpa [#allocation12], 1
    %3236 = vsyncpa [#allocation4], 1
    %s3237 = scalar_lea.sflag [#allocation4], 1
    %3238 = vsyncpa %s3237, 1

// kernel: tpu_custom_call.1
$region0: #{tpu_custom_call.1}
  #allocation0 [shape = 'u32[]', space=smem, size = 0x4, offset = 0x4, fixed_abs, tag = 'smem constant byte address 0x4 - core index']
  #allocation1 [shape = 'u32[144,128]{1,0:T(1,128)}', space=vmem, size = 0x12000, scoped, tag = 'internal scratch']
  %s0 = inlined_call_operand.hbm [shape: f32[16,32], index: 0, kind: input, shape index: {}]
  %s1 = inlined_call_operand.hbm [shape: f32[16,32], index: 1, kind: input, shape index: {}]
  %s2 = inlined_call_operand.hbm [shape: f32[16,32], index: 2, kind: input, shape index: {}]
  %s3 = inlined_call_operand.vmem [shape: s32[16,8], index: 3, kind: input, shape index: {}]
  %s4 = inlined_call_operand.hbm [shape: f32[32,64], index: 4, kind: input, shape index: {}]
  %s5 = inlined_call_operand.vmem [shape: f32[1,64], index: 5, kind: input, shape index: {}]
  %s6 = inlined_call_operand.vmem [shape: f32[32,32], index: 6, kind: input, shape index: {}]
  %s7 = inlined_call_operand.vmem [shape: f32[1,32], index: 7, kind: input, shape index: {}]
  %s8 = inlined_call_operand.hbm [shape: f32[32,32], index: 8, kind: input, shape index: {}]
  %s9 = inlined_call_operand.vmem [shape: f32[1,32], index: 9, kind: input, shape index: {}]
  %s10 = inlined_call_operand.hbm [shape: f32[32,128], index: 10, kind: input, shape index: {}]
  %s11 = inlined_call_operand.hbm [shape: f32[32,32], index: 11, kind: input, shape index: {}]
  %s12 = inlined_call_operand.vmem [shape: f32[1,32], index: 12, kind: input, shape index: {}]
  %s13 = inlined_call_operand.vmem [shape: f32[1,32], index: 13, kind: input, shape index: {}]
  %s14 = inlined_call_operand.vmem [shape: f32[1,32], index: 14, kind: input, shape index: {}]
  %s15 = inlined_call_operand.hbm [shape: f32[16,32], index: 15, kind: output, shape index: {}]
  %s16 = sld [smem:[#allocation0]]
  $region121: #{tpu_custom_call.1} parent=0
    _
  %s18 = ssub.s32 1, %s16
  %s19 = scalar_select 0, %s18, %s16
  $region1: #{tpu_custom_call.1} parent=0
    #allocation2 [shape = 'u8[8192]{0}', space=vmem, size = 0x2000, scoped, tag = 'input window, operand 0']
    #allocation3 [shape = 's32[2]{0}', space=sflag, size = 0x8, scoped, tag = 'scoped memory for tpu_custom_call.1']
    #allocation4 [shape = 's32[2]{0}', space=sflag, size = 0x8, scoped, tag = 'scoped memory for tpu_custom_call.1']
    #allocation5 [shape = 'u8[8192]{0}', space=vmem, size = 0x2000, scoped, tag = 'input window, operand 1']
    #allocation6 [shape = 's32[2]{0}', space=sflag, size = 0x8, scoped, tag = 'scoped memory for tpu_custom_call.1']
    #allocation7 [shape = 'u8[8192]{0}', space=vmem, size = 0x2000, scoped, tag = 'input window, operand 2']
    #allocation8 [shape = 'u8[16384]{0}', space=vmem, size = 0x4000, scoped, tag = 'input window, operand 4, single buffered']
    #allocation9 [shape = 's32[1]{0}', space=sflag, size = 0x4, scoped, tag = 'scoped memory for tpu_custom_call.1']
    #allocation10 [shape = 'u8[16384]{0}', space=vmem, size = 0x4000, scoped, tag = 'input window, operand 8, single buffered']
    #allocation11 [shape = 'u8[16384]{0}', space=vmem, size = 0x4000, scoped, tag = 'input window, operand 10, single buffered']
    #allocation12 [shape = 's32[1]{0}', space=sflag, size = 0x4, scoped, tag = 'scoped memory for tpu_custom_call.1']
    #allocation13 [shape = 'u8[16384]{0}', space=vmem, size = 0x4000, scoped, tag = 'input window, operand 11, single buffered']
    #allocation14 [shape = 'u8[8192]{0}', space=vmem, size = 0x2000, scoped, tag = 'output window, operand 0']
    %20 = vsyncpa [#allocation3], 0
    %s21 = scalar_lea.sflag [#allocation3], 1
    %22 = vsyncpa %s21, 0
    %23 = vsyncpa [#allocation6], 0
    %s24 = scalar_lea.sflag [#allocation6], 1
    %25 = vsyncpa %s24, 0
    %26 = vsyncpa [#allocation9], 0
    %27 = vsyncpa [#allocation12], 0
    %28 = vsyncpa [#allocation4], 0
    %s29 = scalar_lea.sflag [#allocation4], 1
    %30 = vsyncpa %s29, 0
    loop: start=0, step=1, limit=4
    $region2: #{tpu_custom_call.1} parent=1 // loop_pre_header
      _
    $region3: #{tpu_custom_call.1} parent=1 // loop_header
      %s32 = sphi 0, %s36
      %p33 = scmp.ge.s32.totalorder %s32, 4
      %s42 = sphi 0, %s44
      %s45 = sphi 0, %s42
      %s46 = sphi 0, %s45
      %s62 = sphi 0, %s46
      %s68 = sphi 0, %s70
      %s71 = sphi 0, %s68
      %s72 = sphi 0, %s71
      %s88 = sphi 0, %s72
      %s94 = sphi 0, %s96
      %s97 = sphi 0, %s94
      %s98 = sphi 0, %s97
      %s114 = sphi 0, %s98
      %s120 = sphi 0, %s122
      %s123 = sphi 0, %s120
      %s124 = sphi 0, %s123
      %s140 = sphi 0, %s124
      %s144 = sphi 0, %s144
      %s146 = sphi 0, %s144
      %s147 = sphi 0, %s146
      %s161 = sphi 0, %s147
      %s165 = sphi 0, %s165
      %s167 = sphi 0, %s165
      %s168 = sphi 0, %s167
      %s182 = sphi 0, %s168
      %s186 = sphi 0, %s186
      %s188 = sphi 0, %s186
      %s189 = sphi 0, %s188
      %s203 = sphi 0, %s189
      %s207 = sphi 0, %s207
      %s209 = sphi 0, %s207
      %s210 = sphi 0, %s209
      %s224 = sphi 0, %s210
      %s228 = sphi 0, %s228
      %s230 = sphi 0, %s228
      %s231 = sphi 0, %s230
      %s245 = sphi 0, %s231
      %s249 = sphi 0, %s249
      %s251 = sphi 0, %s249
      %s252 = sphi 0, %s251
      %s266 = sphi 0, %s252
      %s270 = sphi 0, %s270
      %s272 = sphi 0, %s270
      %s273 = sphi 0, %s272
      %s287 = sphi 0, %s273
      %s291 = sphi 0, %s291
      %s293 = sphi 0, %s291
      %s294 = sphi 0, %s293
      %s308 = sphi 0, %s294
      %s312 = sphi 0, %s312
      %s314 = sphi 0, %s312
      %s315 = sphi 0, %s314
      %s329 = sphi 0, %s315
      %s333 = sphi 0, %s333
      %s335 = sphi 0, %s333
      %s336 = sphi 0, %s335
      %s350 = sphi 0, %s336
      %s354 = sphi 0, %s354
      %s356 = sphi 0, %s354
      %s357 = sphi 0, %s356
      %s371 = sphi 0, %s357
      %s377 = sphi 0, %s379
      %s380 = sphi 0, %s377
      %s381 = sphi 0, %s380
      %s397 = sphi 0, %s381
    $region4: #{tpu_custom_call.1} parent=1 // loop_header_branch
      %35 = sbr.rel (%p33) target = $region8
    $region5: #{tpu_custom_call.1} parent=1 // loop_body
      %s37 = ssub.s32 %s32, 1
      %s38 = ssub.s32 %s32, 2
      %s39 = sadd.s32 %s32, 1
      %s40 = ssub.s32 %s32, %s39
      %p41 = scmp.eq.s32.totalorder %s40, 0
      %s43 = sadd.s32 %s42, 1
      %s44 = scalar_select %p41, %s42, %s43
      %p47 = pneg %p41
      %p48 = scmp.eq.s32.totalorder %s32, 1
      %p49 = por %p47, %p48
      %p50 = scmp.ne.s32.totalorder %s42, %s45
      %p51 = scmp.eq.s32.totalorder %s32, 0
      %p52 = por %p50, %p51
      %p53 = scmp.ne.s32.totalorder %s42, %s45
      %p54 = scmp.eq.s32.totalorder %s37, 1
      %p55 = por %p53, %p54
      %p56 = scmp.ne.s32.totalorder %s45, %s46
      %p57 = scmp.eq.s32.totalorder %s37, 0
      %p58 = por %p56, %p57
      %p59 = scmp.ne.s32.totalorder %s45, %s46
      %p60 = scmp.eq.s32.totalorder %s38, 1
      %p61 = por %p59, %p60
      %p63 = scmp.ne.s32.totalorder %s46, %s62
      %p64 = scmp.eq.s32.totalorder %s38, 0
      %p65 = por %p63, %p64
      %s66 = ssub.s32 %s32, %s39
      %p67 = scmp.eq.s32.totalorder %s66, 0
      %s69 = sadd.s32 %s68, 1
      %s70 = scalar_select %p67, %s68, %s69
      %p73 = pneg %p67
      %p74 = scmp.eq.s32.totalorder %s32, 1
      %p75 = por %p73, %p74
      %p76 = scmp.ne.s32.totalorder %s68, %s71
      %p77 = scmp.eq.s32.totalorder %s32, 0
      %p78 = por %p76, %p77
      %p79 = scmp.ne.s32.totalorder %s68, %s71
      %p80 = scmp.eq.s32.totalorder %s37, 1
      %p81 = por %p79, %p80
      %p82 = scmp.ne.s32.totalorder %s71, %s72
      %p83 = scmp.eq.s32.totalorder %s37, 0
      %p84 = por %p82, %p83
      %p85 = scmp.ne.s32.totalorder %s71, %s72
      %p86 = scmp.eq.s32.totalorder %s38, 1
      %p87 = por %p85, %p86
      %p89 = scmp.ne.s32.totalorder %s72, %s88
      %p90 = scmp.eq.s32.totalorder %s38, 0
      %p91 = por %p89, %p90
      %s92 = ssub.s32 %s32, %s39
      %p93 = scmp.eq.s32.totalorder %s92, 0
      %s95 = sadd.s32 %s94, 1
      %s96 = scalar_select %p93, %s94, %s95
      %p99 = pneg %p93
      %p100 = scmp.eq.s32.totalorder %s32, 1
      %p101 = por %p99, %p100
      %p102 = scmp.ne.s32.totalorder %s94, %s97
      %p103 = scmp.eq.s32.totalorder %s32, 0
      %p104 = por %p102, %p103
      %p105 = scmp.ne.s32.totalorder %s94, %s97
      %p106 = scmp.eq.s32.totalorder %s37, 1
      %p107 = por %p105, %p106
      %p108 = scmp.ne.s32.totalorder %s97, %s98
      %p109 = scmp.eq.s32.totalorder %s37, 0
      %p110 = por %p108, %p109
      %p111 = scmp.ne.s32.totalorder %s97, %s98
      %p112 = scmp.eq.s32.totalorder %s38, 1
      %p113 = por %p111, %p112
      %p115 = scmp.ne.s32.totalorder %s98, %s114
      %p116 = scmp.eq.s32.totalorder %s38, 0
      %p117 = por %p115, %p116
      %s118 = ssub.s32 %s32, %s39
      %p119 = scmp.eq.s32.totalorder %s118, 0
      %s121 = sadd.s32 %s120, 1
      %s122 = scalar_select %p119, %s120, %s121
      %p125 = pneg %p119
      %p126 = scmp.eq.s32.totalorder %s32, 1
      %p127 = por %p125, %p126
      %p128 = scmp.ne.s32.totalorder %s120, %s123
      %p129 = scmp.eq.s32.totalorder %s32, 0
      %p130 = por %p128, %p129
      %p131 = scmp.ne.s32.totalorder %s120, %s123
      %p132 = scmp.eq.s32.totalorder %s37, 1
      %p133 = por %p131, %p132
      %p134 = scmp.ne.s32.totalorder %s123, %s124
      %p135 = scmp.eq.s32.totalorder %s37, 0
      %p136 = por %p134, %p135
      %p137 = scmp.ne.s32.totalorder %s123, %s124
      %p138 = scmp.eq.s32.totalorder %s38, 1
      %p139 = por %p137, %p138
      %p141 = scmp.ne.s32.totalorder %s124, %s140
      %p142 = scmp.eq.s32.totalorder %s38, 0
      %p143 = por %p141, %p142
      %s145 = sadd.s32 %s144, 1
      %p148 = scmp.eq.s32.totalorder %s32, 1
      %p149 = scmp.ne.s32.totalorder %s144, %s146
      %p150 = scmp.eq.s32.totalorder %s32, 0
      %p151 = por %p149, %p150
      %p152 = scmp.ne.s32.totalorder %s144, %s146
      %p153 = scmp.eq.s32.totalorder %s37, 1
      %p154 = por %p152, %p153
      %p155 = scmp.ne.s32.totalorder %s146, %s147
      %p156 = scmp.eq.s32.totalorder %s37, 0
      %p157 = por %p155, %p156
      %p158 = scmp.ne.s32.totalorder %s146, %s147
      %p159 = scmp.eq.s32.totalorder %s38, 1
      %p160 = por %p158, %p159
      %p162 = scmp.ne.s32.totalorder %s147, %s161
      %p163 = scmp.eq.s32.totalorder %s38, 0
      %p164 = por %p162, %p163
      %s166 = sadd.s32 %s165, 1
      %p169 = scmp.eq.s32.totalorder %s32, 1
      %p170 = scmp.ne.s32.totalorder %s165, %s167
      %p171 = scmp.eq.s32.totalorder %s32, 0
      %p172 = por %p170, %p171
      %p173 = scmp.ne.s32.totalorder %s165, %s167
      %p174 = scmp.eq.s32.totalorder %s37, 1
      %p175 = por %p173, %p174
      %p176 = scmp.ne.s32.totalorder %s167, %s168
      %p177 = scmp.eq.s32.totalorder %s37, 0
      %p178 = por %p176, %p177
      %p179 = scmp.ne.s32.totalorder %s167, %s168
      %p180 = scmp.eq.s32.totalorder %s38, 1
      %p181 = por %p179, %p180
      %p183 = scmp.ne.s32.totalorder %s168, %s182
      %p184 = scmp.eq.s32.totalorder %s38, 0
      %p185 = por %p183, %p184
      %s187 = sadd.s32 %s186, 1
      %p190 = scmp.eq.s32.totalorder %s32, 1
      %p191 = scmp.ne.s32.totalorder %s186, %s188
      %p192 = scmp.eq.s32.totalorder %s32, 0
      %p193 = por %p191, %p192
      %p194 = scmp.ne.s32.totalorder %s186, %s188
      %p195 = scmp.eq.s32.totalorder %s37, 1
      %p196 = por %p194, %p195
      %p197 = scmp.ne.s32.totalorder %s188, %s189
      %p198 = scmp.eq.s32.totalorder %s37, 0
      %p199 = por %p197, %p198
      %p200 = scmp.ne.s32.totalorder %s188, %s189
      %p201 = scmp.eq.s32.totalorder %s38, 1
      %p202 = por %p200, %p201
      %p204 = scmp.ne.s32.totalorder %s189, %s203
      %p205 = scmp.eq.s32.totalorder %s38, 0
      %p206 = por %p204, %p205
      %s208 = sadd.s32 %s207, 1
      %p211 = scmp.eq.s32.totalorder %s32, 1
      %p212 = scmp.ne.s32.totalorder %s207, %s209
      %p213 = scmp.eq.s32.totalorder %s32, 0
      %p214 = por %p212, %p213
      %p215 = scmp.ne.s32.totalorder %s207, %s209
      %p216 = scmp.eq.s32.totalorder %s37, 1
      %p217 = por %p215, %p216
      %p218 = scmp.ne.s32.totalorder %s209, %s210
      %p219 = scmp.eq.s32.totalorder %s37, 0
      %p220 = por %p218, %p219
      %p221 = scmp.ne.s32.totalorder %s209, %s210
      %p222 = scmp.eq.s32.totalorder %s38, 1
      %p223 = por %p221, %p222
      %p225 = scmp.ne.s32.totalorder %s210, %s224
      %p226 = scmp.eq.s32.totalorder %s38, 0
      %p227 = por %p225, %p226
      %s229 = sadd.s32 %s228, 1
      %p232 = scmp.eq.s32.totalorder %s32, 1
      %p233 = scmp.ne.s32.totalorder %s228, %s230
      %p234 = scmp.eq.s32.totalorder %s32, 0
      %p235 = por %p233, %p234
      %p236 = scmp.ne.s32.totalorder %s228, %s230
      %p237 = scmp.eq.s32.totalorder %s37, 1
      %p238 = por %p236, %p237
      %p239 = scmp.ne.s32.totalorder %s230, %s231
      %p240 = scmp.eq.s32.totalorder %s37, 0
      %p241 = por %p239, %p240
      %p242 = scmp.ne.s32.totalorder %s230, %s231
      %p243 = scmp.eq.s32.totalorder %s38, 1
      %p244 = por %p242, %p243
      %p246 = scmp.ne.s32.totalorder %s231, %s245
      %p247 = scmp.eq.s32.totalorder %s38, 0
      %p248 = por %p246, %p247
      %s250 = sadd.s32 %s249, 1
      %p253 = scmp.eq.s32.totalorder %s32, 1
      %p254 = scmp.ne.s32.totalorder %s249, %s251
      %p255 = scmp.eq.s32.totalorder %s32, 0
      %p256 = por %p254, %p255
      %p257 = scmp.ne.s32.totalorder %s249, %s251
      %p258 = scmp.eq.s32.totalorder %s37, 1
      %p259 = por %p257, %p258
      %p260 = scmp.ne.s32.totalorder %s251, %s252
      %p261 = scmp.eq.s32.totalorder %s37, 0
      %p262 = por %p260, %p261
      %p263 = scmp.ne.s32.totalorder %s251, %s252
      %p264 = scmp.eq.s32.totalorder %s38, 1
      %p265 = por %p263, %p264
      %p267 = scmp.ne.s32.totalorder %s252, %s266
      %p268 = scmp.eq.s32.totalorder %s38, 0
      %p269 = por %p267, %p268
      %s271 = sadd.s32 %s270, 1
      %p274 = scmp.eq.s32.totalorder %s32, 1
      %p275 = scmp.ne.s32.totalorder %s270, %s272
      %p276 = scmp.eq.s32.totalorder %s32, 0
      %p277 = por %p275, %p276
      %p278 = scmp.ne.s32.totalorder %s270, %s272
      %p279 = scmp.eq.s32.totalorder %s37, 1
      %p280 = por %p278, %p279
      %p281 = scmp.ne.s32.totalorder %s272, %s273
      %p282 = scmp.eq.s32.totalorder %s37, 0
      %p283 = por %p281, %p282
      %p284 = scmp.ne.s32.totalorder %s272, %s273
      %p285 = scmp.eq.s32.totalorder %s38, 1
      %p286 = por %p284, %p285
      %p288 = scmp.ne.s32.totalorder %s273, %s287
      %p289 = scmp.eq.s32.totalorder %s38, 0
      %p290 = por %p288, %p289
      %s292 = sadd.s32 %s291, 1
      %p295 = scmp.eq.s32.totalorder %s32, 1
      %p296 = scmp.ne.s32.totalorder %s291, %s293
      %p297 = scmp.eq.s32.totalorder %s32, 0
      %p298 = por %p296, %p297
      %p299 = scmp.ne.s32.totalorder %s291, %s293
      %p300 = scmp.eq.s32.totalorder %s37, 1
      %p301 = por %p299, %p300
      %p302 = scmp.ne.s32.totalorder %s293, %s294
      %p303 = scmp.eq.s32.totalorder %s37, 0
      %p304 = por %p302, %p303
      %p305 = scmp.ne.s32.totalorder %s293, %s294
      %p306 = scmp.eq.s32.totalorder %s38, 1
      %p307 = por %p305, %p306
      %p309 = scmp.ne.s32.totalorder %s294, %s308
      %p310 = scmp.eq.s32.totalorder %s38, 0
      %p311 = por %p309, %p310
      %s313 = sadd.s32 %s312, 1
      %p316 = scmp.eq.s32.totalorder %s32, 1
      %p317 = scmp.ne.s32.totalorder %s312, %s314
      %p318 = scmp.eq.s32.totalorder %s32, 0
      %p319 = por %p317, %p318
      %p320 = scmp.ne.s32.totalorder %s312, %s314
      %p321 = scmp.eq.s32.totalorder %s37, 1
      %p322 = por %p320, %p321
      %p323 = scmp.ne.s32.totalorder %s314, %s315
      %p324 = scmp.eq.s32.totalorder %s37, 0
      %p325 = por %p323, %p324
      %p326 = scmp.ne.s32.totalorder %s314, %s315
      %p327 = scmp.eq.s32.totalorder %s38, 1
      %p328 = por %p326, %p327
      %p330 = scmp.ne.s32.totalorder %s315, %s329
      %p331 = scmp.eq.s32.totalorder %s38, 0
      %p332 = por %p330, %p331
      %s334 = sadd.s32 %s333, 1
      %p337 = scmp.eq.s32.totalorder %s32, 1
      %p338 = scmp.ne.s32.totalorder %s333, %s335
      %p339 = scmp.eq.s32.totalorder %s32, 0
      %p340 = por %p338, %p339
      %p341 = scmp.ne.s32.totalorder %s333, %s335
      %p342 = scmp.eq.s32.totalorder %s37, 1
      %p343 = por %p341, %p342
      %p344 = scmp.ne.s32.totalorder %s335, %s336
      %p345 = scmp.eq.s32.totalorder %s37, 0
      %p346 = por %p344, %p345
      %p347 = scmp.ne.s32.totalorder %s335, %s336
      %p348 = scmp.eq.s32.totalorder %s38, 1
      %p349 = por %p347, %p348
      %p351 = scmp.ne.s32.totalorder %s336, %s350
      %p352 = scmp.eq.s32.totalorder %s38, 0
      %p353 = por %p351, %p352
      %s355 = sadd.s32 %s354, 1
      %p358 = scmp.eq.s32.totalorder %s32, 1
      %p359 = scmp.ne.s32.totalorder %s354, %s356
      %p360 = scmp.eq.s32.totalorder %s32, 0
      %p361 = por %p359, %p360
      %p362 = scmp.ne.s32.totalorder %s354, %s356
      %p363 = scmp.eq.s32.totalorder %s37, 1
      %p364 = por %p362, %p363
      %p365 = scmp.ne.s32.totalorder %s356, %s357
      %p366 = scmp.eq.s32.totalorder %s37, 0
      %p367 = por %p365, %p366
      %p368 = scmp.ne.s32.totalorder %s356, %s357
      %p369 = scmp.eq.s32.totalorder %s38, 1
      %p370 = por %p368, %p369
      %p372 = scmp.ne.s32.totalorder %s357, %s371
      %p373 = scmp.eq.s32.totalorder %s38, 0
      %p374 = por %p372, %p373
      %s375 = ssub.s32 %s32, %s39
      %p376 = scmp.eq.s32.totalorder %s375, 0
      %s378 = sadd.s32 %s377, 1
      %s379 = scalar_select %p376, %s377, %s378
      %p382 = pneg %p376
      %p383 = scmp.eq.s32.totalorder %s32, 1
      %p384 = por %p382, %p383
      %p385 = scmp.ne.s32.totalorder %s377, %s380
      %p386 = scmp.eq.s32.totalorder %s32, 0
      %p387 = por %p385, %p386
      %p388 = scmp.ne.s32.totalorder %s377, %s380
      %p389 = scmp.eq.s32.totalorder %s37, 1
      %p390 = por %p388, %p389
      %p391 = scmp.ne.s32.totalorder %s380, %s381
      %p392 = scmp.eq.s32.totalorder %s37, 0
      %p393 = por %p391, %p392
      %p394 = scmp.ne.s32.totalorder %s380, %s381
      %p395 = scmp.eq.s32.totalorder %s38, 1
      %p396 = por %p394, %p395
      %p398 = scmp.ne.s32.totalorder %s381, %s397
      %p399 = scmp.eq.s32.totalorder %s38, 0
      %p400 = por %p398, %p399
      %p401 = scmp.le.s32.totalorder 1, %s32
      %p402 = scmp.lt.s32.totalorder %s32, 3
      %p403 = pnand %p401, %p402
      %p404 = pneg %p403
      // Predicated region
      $region9: #{tpu_custom_call.1} parent=5 // pred_check
        _
      $region10: #{tpu_custom_call.1} parent=5 // pred_check_branch
        %406 = sbr.rel (%p403) target = $region12
      $region11: #{tpu_custom_call.1} parent=5 // pred_region
        %s407 = ssub.s32 %s32, 1
        // Predicated region
        $region13: #{tpu_custom_call.1} parent=11 // pred_check
          %p408 = pneg %p157
        $region14: #{tpu_custom_call.1} parent=11 // pred_check_branch
          %410 = sbr.rel (%p408) target = $region16
        $region15: #{tpu_custom_call.1} parent=11 // pred_region
          %s412 = ssub.s32 512, 512
          %413 = vsyncadd [#allocation9], %s412
          %s414 = sshll.u32 [#allocation8], 4
          %s415 = int_to_ptr.vmem [resolvable:$true] %s414
          %420 = dma.hbm_to_vmem [thread:$0]  %s4, 512, %s415, [#allocation9], 128, 128, 8
        $region16: #{tpu_custom_call.1} parent=11 // pred_fallthru
          _
        // Predicated region
        $region17: #{tpu_custom_call.1} parent=11 // pred_check
          %p421 = pneg %p178
        $region18: #{tpu_custom_call.1} parent=11 // pred_check_branch
          %423 = sbr.rel (%p421) target = $region20
        $region19: #{tpu_custom_call.1} parent=11 // pred_region
          _
        $region20: #{tpu_custom_call.1} parent=11 // pred_fallthru
          _
        // Predicated region
        $region21: #{tpu_custom_call.1} parent=11 // pred_check
          %p424 = pneg %p199
        $region22: #{tpu_custom_call.1} parent=11 // pred_check_branch
          %426 = sbr.rel (%p424) target = $region24
        $region23: #{tpu_custom_call.1} parent=11 // pred_region
          _
        $region24: #{tpu_custom_call.1} parent=11 // pred_fallthru
          _
        // Predicated region
        $region25: #{tpu_custom_call.1} parent=11 // pred_check
          %p427 = pneg %p220
        $region26: #{tpu_custom_call.1} parent=11 // pred_check_branch
          %429 = sbr.rel (%p427) target = $region28
        $region27: #{tpu_custom_call.1} parent=11 // pred_region
          _
        $region28: #{tpu_custom_call.1} parent=11 // pred_fallthru
          _
        // Predicated region
        $region29: #{tpu_custom_call.1} parent=11 // pred_check
          %p430 = pneg %p241
        $region30: #{tpu_custom_call.1} parent=11 // pred_check_branch
          %432 = sbr.rel (%p430) target = $region32
        $region31: #{tpu_custom_call.1} parent=11 // pred_region
          %s434 = ssub.s32 512, 512
          %435 = vsyncadd [#allocation9], %s434
          %s436 = sshll.u32 [#allocation10], 4
          %s437 = int_to_ptr.vmem [resolvable:$true] %s436
          %442 = dma.hbm_to_vmem [thread:$0]  %s8, 512, %s437, [#allocation9], 128, 128, 8
        $region32: #{tpu_custom_call.1} parent=11 // pred_fallthru
          _
        // Predicated region
        $region33: #{tpu_custom_call.1} parent=11 // pred_check
          %p443 = pneg %p262
        $region34: #{tpu_custom_call.1} parent=11 // pred_check_branch
          %445 = sbr.rel (%p443) target = $region36
        $region35: #{tpu_custom_call.1} parent=11 // pred_region
          _
        $region36: #{tpu_custom_call.1} parent=11 // pred_fallthru
          _
        // Predicated region
        $region37: #{tpu_custom_call.1} parent=11 // pred_check
          %p446 = pneg %p283
        $region38: #{tpu_custom_call.1} parent=11 // pred_check_branch
          %448 = sbr.rel (%p446) target = $region40
        $region39: #{tpu_custom_call.1} parent=11 // pred_region
          %s450 = ssub.s32 512, 512
          %451 = vsyncadd [#allocation12], %s450
          %s452 = sshll.u32 [#allocation11], 4
          %s453 = int_to_ptr.vmem [resolvable:$true] %s452
          %458 = dma.hbm_to_vmem [thread:$0]  %s10, 512, %s453, [#allocation12], 128, 128, 8
        $region40: #{tpu_custom_call.1} parent=11 // pred_fallthru
          _
        // Predicated region
        $region41: #{tpu_custom_call.1} parent=11 // pred_check
          %p459 = pneg %p304
        $region42: #{tpu_custom_call.1} parent=11 // pred_check_branch
          %461 = sbr.rel (%p459) target = $region44
        $region43: #{tpu_custom_call.1} parent=11 // pred_region
          %s463 = ssub.s32 512, 512
          %464 = vsyncadd [#allocation12], %s463
          %s465 = sshll.u32 [#allocation13], 4
          %s466 = int_to_ptr.vmem [resolvable:$true] %s465
          %471 = dma.hbm_to_vmem [thread:$0]  %s11, 512, %s466, [#allocation12], 128, 128, 8
        $region44: #{tpu_custom_call.1} parent=11 // pred_fallthru
          _
        // Predicated region
        $region45: #{tpu_custom_call.1} parent=11 // pred_check
          %p472 = pneg %p325
        $region46: #{tpu_custom_call.1} parent=11 // pred_check_branch
          %474 = sbr.rel (%p472) target = $region48
        $region47: #{tpu_custom_call.1} parent=11 // pred_region
          _
        $region48: #{tpu_custom_call.1} parent=11 // pred_fallthru
          _
        // Predicated region
        $region49: #{tpu_custom_call.1} parent=11 // pred_check
          %p475 = pneg %p346
        $region50: #{tpu_custom_call.1} parent=11 // pred_check_branch
          %477 = sbr.rel (%p475) target = $region52
        $region51: #{tpu_custom_call.1} parent=11 // pred_region
          _
        $region52: #{tpu_custom_call.1} parent=11 // pred_fallthru
          _
        // Predicated region
        $region53: #{tpu_custom_call.1} parent=11 // pred_check
          %p478 = pneg %p367
        $region54: #{tpu_custom_call.1} parent=11 // pred_check_branch
          %480 = sbr.rel (%p478) target = $region56
        $region55: #{tpu_custom_call.1} parent=11 // pred_region
          _
        $region56: #{tpu_custom_call.1} parent=11 // pred_fallthru
          _
      $region12: #{tpu_custom_call.1} parent=5 // pred_fallthru
        _
      %p481 = scmp.lt.s32.totalorder %s32, 2
      // Predicated region
      $region57: #{tpu_custom_call.1} parent=5 // pred_check
        %p482 = pneg %p481
      $region58: #{tpu_custom_call.1} parent=5 // pred_check_branch
        %484 = sbr.rel (%p482) target = $region60
      $region59: #{tpu_custom_call.1} parent=5 // pred_region
        // Predicated region
        $region61: #{tpu_custom_call.1} parent=59 // pred_check
          %p485 = pneg %p52
        $region62: #{tpu_custom_call.1} parent=59 // pred_check_branch
          %487 = sbr.rel (%p485) target = $region64
        $region63: #{tpu_custom_call.1} parent=59 // pred_region
          %s488 = sand.u32 %s42, 1
          %s489 = scalar_lea.sflag [#allocation3], %s488
          %s490 = sand.u32 %s42, 1
          %s491 = smul.addr %s490, 8
          %s492 = scalar_lea.vmem [#allocation2], %s491
          %s494 = ssub.s32 128, 128
          %495 = vsyncadd %s489, %s494
          %s496 = smul.addr %s32, 128
          %s497 = scalar_lea.hbm %s0, %s496
          %s499 = sshll.u32 %s492, 4
          %s500 = int_to_ptr.vmem [resolvable:$true] %s499
          %502 = dma.hbm_to_vmem [thread:$0]  %s497, 128, %s500, %s489
        $region64: #{tpu_custom_call.1} parent=59 // pred_fallthru
          _
        // Predicated region
        $region65: #{tpu_custom_call.1} parent=59 // pred_check
          %p503 = pneg %p78
        $region66: #{tpu_custom_call.1} parent=59 // pred_check_branch
          %505 = sbr.rel (%p503) target = $region68
        $region67: #{tpu_custom_call.1} parent=59 // pred_region
          %s506 = sand.u32 %s32, 1
          %s507 = scalar_lea.sflag [#allocation6], %s506
          %s508 = sand.u32 %s68, 1
          %s509 = smul.addr %s508, 8
          %s510 = scalar_lea.vmem [#allocation5], %s509
          %s512 = ssub.s32 128, 128
          %513 = vsyncadd %s507, %s512
          %s514 = smul.addr %s32, 128
          %s515 = scalar_lea.hbm %s1, %s514
          %s517 = sshll.u32 %s510, 4
          %s518 = int_to_ptr.vmem [resolvable:$true] %s517
          %520 = dma.hbm_to_vmem [thread:$0]  %s515, 128, %s518, %s507
        $region68: #{tpu_custom_call.1} parent=59 // pred_fallthru
          _
        // Predicated region
        $region69: #{tpu_custom_call.1} parent=59 // pred_check
          %p521 = pneg %p104
        $region70: #{tpu_custom_call.1} parent=59 // pred_check_branch
          %523 = sbr.rel (%p521) target = $region72
        $region71: #{tpu_custom_call.1} parent=59 // pred_region
          %s524 = sand.u32 %s32, 1
          %s525 = scalar_lea.sflag [#allocation6], %s524
          %s526 = sand.u32 %s94, 1
          %s527 = smul.addr %s526, 8
          %s528 = scalar_lea.vmem [#allocation7], %s527
          %s530 = ssub.s32 128, 128
          %531 = vsyncadd %s525, %s530
          %s532 = smul.addr %s32, 128
          %s533 = scalar_lea.hbm %s2, %s532
          %s535 = sshll.u32 %s528, 4
          %s536 = int_to_ptr.vmem [resolvable:$true] %s535
          %538 = dma.hbm_to_vmem [thread:$0]  %s533, 128, %s536, %s525
        $region72: #{tpu_custom_call.1} parent=59 // pred_fallthru
          _
        // Predicated region
        $region73: #{tpu_custom_call.1} parent=59 // pred_check
          %p539 = pneg %p130
        $region74: #{tpu_custom_call.1} parent=59 // pred_check_branch
          %541 = sbr.rel (%p539) target = $region76
        $region75: #{tpu_custom_call.1} parent=59 // pred_region
          %p542 = scmp.lt.s32.totalorder %s32, 1
          %s543 = scalar_select %p542, %s32, 1
          %s544 = smul.addr %s543, 8
          %s545 = scalar_lea.vmem %s3, %s544
        $region76: #{tpu_custom_call.1} parent=59 // pred_fallthru
          _
      $region60: #{tpu_custom_call.1} parent=5 // pred_fallthru
        _
      %p546 = scmp.le.s32.totalorder 1, %s32
      %p547 = scmp.lt.s32.totalorder %s32, 3
      %p548 = pnand %p546, %p547
      %p549 = pneg %p548
      // Predicated region
      $region77: #{tpu_custom_call.1} parent=5 // pred_check
        _
      $region78: #{tpu_custom_call.1} parent=5 // pred_check_branch
        %551 = sbr.rel (%p548) target = $region80
      $region79: #{tpu_custom_call.1} parent=5 // pred_region
        %s552 = ssub.s32 %s32, 1
        %s553 = sand.u32 %s45, 1
        %s554 = scalar_lea.sflag [#allocation3], %s553
        %s555 = sand.u32 %s45, 1
        %s556 = smul.addr %s555, 8
        %s557 = scalar_lea.vmem [#allocation2], %s556
        // Predicated region
        $region81: #{tpu_custom_call.1} parent=79 // pred_check
          %p558 = pneg %p58
        $region82: #{tpu_custom_call.1} parent=79 // pred_check_branch
          %560 = sbr.rel (%p558) target = $region84
        $region83: #{tpu_custom_call.1} parent=79 // pred_region
          %561 = dma.done %s554, 128
        $region84: #{tpu_custom_call.1} parent=79 // pred_fallthru
          _
        %s562 = sand.u32 %s37, 1
        %s563 = scalar_lea.sflag [#allocation6], %s562
        %s564 = sand.u32 %s71, 1
        %s565 = smul.addr %s564, 8
        %s566 = scalar_lea.vmem [#allocation5], %s565
        // Predicated region
        $region85: #{tpu_custom_call.1} parent=79 // pred_check
          %p567 = pneg %p84
        $region86: #{tpu_custom_call.1} parent=79 // pred_check_branch
          %569 = sbr.rel (%p567) target = $region88
        $region87: #{tpu_custom_call.1} parent=79 // pred_region
          %570 = dma.done %s563, 128
        $region88: #{tpu_custom_call.1} parent=79 // pred_fallthru
          _
        %s571 = sand.u32 %s37, 1
        %s572 = scalar_lea.sflag [#allocation6], %s571
        %s573 = sand.u32 %s97, 1
        %s574 = smul.addr %s573, 8
        %s575 = scalar_lea.vmem [#allocation7], %s574
        // Predicated region
        $region89: #{tpu_custom_call.1} parent=79 // pred_check
          %p576 = pneg %p110
        $region90: #{tpu_custom_call.1} parent=79 // pred_check_branch
          %578 = sbr.rel (%p576) target = $region92
        $region91: #{tpu_custom_call.1} parent=79 // pred_region
          %579 = dma.done %s572, 128
        $region92: #{tpu_custom_call.1} parent=79 // pred_fallthru
          _
        // Predicated region
        $region93: #{tpu_custom_call.1} parent=79 // pred_check
          %p580 = pneg %p157
        $region94: #{tpu_custom_call.1} parent=79 // pred_check_branch
          %582 = sbr.rel (%p580) target = $region96
        $region95: #{tpu_custom_call.1} parent=79 // pred_region
          %583 = dma.done [#allocation9], 512
        $region96: #{tpu_custom_call.1} parent=79 // pred_fallthru
          _
        // Predicated region
        $region97: #{tpu_custom_call.1} parent=79 // pred_check
          %p584 = pneg %p241
        $region98: #{tpu_custom_call.1} parent=79 // pred_check_branch
          %586 = sbr.rel (%p584) target = $region100
        $region99: #{tpu_custom_call.1} parent=79 // pred_region
          %587 = dma.done [#allocation9], 512
        $region100: #{tpu_custom_call.1} parent=79 // pred_fallthru
          _
        // Predicated region
        $region101: #{tpu_custom_call.1} parent=79 // pred_check
          %p588 = pneg %p283
        $region102: #{tpu_custom_call.1} parent=79 // pred_check_branch
          %590 = sbr.rel (%p588) target = $region104
        $region103: #{tpu_custom_call.1} parent=79 // pred_region
          %591 = dma.done [#allocation12], 512
        $region104: #{tpu_custom_call.1} parent=79 // pred_fallthru
          _
        // Predicated region
        $region105: #{tpu_custom_call.1} parent=79 // pred_check
          %p592 = pneg %p304
        $region106: #{tpu_custom_call.1} parent=79 // pred_check_branch
          %594 = sbr.rel (%p592) target = $region108
        $region107: #{tpu_custom_call.1} parent=79 // pred_region
          %595 = dma.done [#allocation12], 512
        $region108: #{tpu_custom_call.1} parent=79 // pred_fallthru
          _
        %s596 = sand.u32 %s45, 1
        %s597 = scalar_lea.sflag [#allocation3], %s596
        %s598 = sand.u32 %s45, 1
        %s599 = smul.addr %s598, 8
        %s600 = scalar_lea.vmem [#allocation2], %s599
        %p601 = pneg %p58
        %p602 = pneg %p55
        %s603 = sand.u32 %s37, 1
        %s604 = scalar_lea.sflag [#allocation6], %s603
        %s605 = sand.u32 %s71, 1
        %s606 = smul.addr %s605, 8
        %s607 = scalar_lea.vmem [#allocation5], %s606
        %p608 = pneg %p84
        %p609 = pneg %p81
        %s610 = sand.u32 %s37, 1
        %s611 = scalar_lea.sflag [#allocation6], %s610
        %s612 = sand.u32 %s97, 1
        %s613 = smul.addr %s612, 8
        %s614 = scalar_lea.vmem [#allocation7], %s613
        %p615 = pneg %p110
        %p616 = pneg %p107
        %p617 = scmp.lt.s32.totalorder %s37, 1
        %s618 = scalar_select %p617, %s37, 1
        %s619 = smul.addr %s618, 8
        %s620 = scalar_lea.vmem %s3, %s619
        %p621 = pneg %p136
        %p622 = pneg %p133
        %p623 = pneg %p157
        %p624 = pneg %p154
        %p625 = pneg %p178
        %p626 = pneg %p175
        %p627 = pneg %p199
        %p628 = pneg %p196
        %p629 = pneg %p220
        %p630 = pneg %p217
        %p631 = pneg %p241
        %p632 = pneg %p238
        %p633 = pneg %p262
        %p634 = pneg %p259
        %p635 = pneg %p283
        %p636 = pneg %p280
        %p637 = pneg %p304
        %p638 = pneg %p301
        %p639 = pneg %p325
        %p640 = pneg %p322
        %p641 = pneg %p346
        %p642 = pneg %p343
        %p643 = pneg %p367
        %p644 = pneg %p364
        %p645 = pneg %p393
        %p646 = pneg %p390
        %s647 = sand.u32 %s380, 1
        %s648 = scalar_lea.sflag [#allocation4], %s647
        %s649 = sand.u32 %s380, 1
        %s650 = smul.addr %s649, 8
        %s651 = scalar_lea.vmem [#allocation14], %s650
        %p652 = scmp.lt.s32.totalorder %s37, 1
        %s653 = scalar_select %p652, %s37, 1
        %s654 = smul.addr %s653, 8
        %s655 = scalar_lea.vmem %s3, %s654
        %v656 = vld [vmem:[%s557] sm:$0xff]
        %v657 = vld [vmem:[%s566] sm:$0xff]
        %v658 = vld [vmem:[%s575] sm:$0xff]
        %v659 = vld [vmem:[#allocation8] sm:$0xff]
        %v660 = vld [vmem:[#allocation8 + $0x8] sm:$0xff]
        %v661 = vld [vmem:[#allocation8 + $0x10] sm:$0xff]
        %v662 = vld [vmem:[#allocation8 + $0x18] sm:$0xff]
        %v663 = vld [vmem:[%s5] sm:$0x1]
        %v665 = vlaneseq
        %v666 = vshrl.u32 %v665, 7
        %v667 = vsub.s32 0, %v666
        %v668 = vrot.slane %v663, %v667
        %vm670 = vcmask 261120
        %v672 = vsel %vm670, %v656, 0
        %674 = vmatprep.subr.mxu0 0.0
        %675 = vmatpush1.msra.mxu0 0.0
        %676 = vmatprep.subr.mxu0 0.0
        %677 = vmatpush1.msra.mxu0 0.0
        %678 = vmatprep.subr.mxu0 0.0
        %679 = vmatpush1.msra.mxu0 0.0
        %680 = vmatprep.subr.mxu0 0.0
        %681 = vmatpush1.msra.mxu0 0.0
        %682 = vmatprep.subr.mxu0 0.0
        %683 = vmatpush1.msra.mxu0 0.0
        %684 = vmatprep.subr.mxu0 0.0
        %685 = vmatpush1.msra.mxu0 0.0
        %686 = vmatprep.subr.mxu0 0.0
        %687 = vmatpush1.msra.mxu0 0.0
        %688 = vmatprep.subr.mxu0 0.0
        %689 = vmatpush1.msra.mxu0 0.0
        %690 = vmatprep.subr.mxu0 0.0
        %691 = vmatpush1.msra.mxu0 0.0
        %692 = vmatprep.subr.mxu0 0.0
        %693 = vmatpush1.msra.mxu0 0.0
        %694 = vmatprep.subr.mxu0 0.0
        %695 = vmatpush1.msra.mxu0 0.0
        %696 = vmatprep.subr.mxu0 0.0
        %697 = vmatpush1.msra.mxu0 0.0
        %698 = vmatprep.subr.mxu0 0.0
        %699 = vmatpush1.msra.mxu0 %v662
        %700 = vmatprep.subr.mxu0 0.0
        %701 = vmatpush1.msra.mxu0 %v661
        %702 = vmatprep.subr.mxu0 0.0
        %703 = vmatpush1.msra.mxu0 %v660
        %704 = vmatprep.subr.mxu0 0.0
        %705 = vmatpush1.msra.mxu0 %v659
        %706 = vmatprep.subr.mxu0 0.0
        %707 = vmatpush2.msra.mxu0 0.0
        %708 = vmatprep.subr.mxu0 0.0
        %709 = vmatpush2.msra.mxu0 0.0
        %710 = vmatprep.subr.mxu0 0.0
        %711 = vmatpush2.msra.mxu0 0.0
        %712 = vmatprep.subr.mxu0 0.0
        %713 = vmatpush2.msra.mxu0 0.0
        %714 = vmatprep.subr.mxu0 0.0
        %715 = vmatpush2.msra.mxu0 0.0
        %716 = vmatprep.subr.mxu0 0.0
        %717 = vmatpush2.msra.mxu0 0.0
        %718 = vmatprep.subr.mxu0 0.0
        %719 = vmatpush2.msra.mxu0 0.0
        %720 = vmatprep.subr.mxu0 0.0
        %721 = vmatpush2.msra.mxu0 0.0
        %722 = vmatprep.subr.mxu0 0.0
        %723 = vmatpush2.msra.mxu0 0.0
        %724 = vmatprep.subr.mxu0 0.0
        %725 = vmatpush2.msra.mxu0 0.0
        %726 = vmatprep.subr.mxu0 0.0
        %727 = vmatpush2.msra.mxu0 0.0
        %728 = vmatprep.subr.mxu0 0.0
        %729 = vmatpush2.msra.mxu0 0.0
        %730 = vmatprep.subr.mxu0 0.0
        %731 = vmatpush2.msra.mxu0 0.0
        %732 = vmatprep.subr.mxu0 0.0
        %733 = vmatpush2.msra.mxu0 0.0
        %734 = vmatprep.subr.mxu0 0.0
        %735 = vmatpush2.msra.mxu0 0.0
        %736 = vmatprep.subr.mxu0 0.0
        %737 = vmatpush2.msra.mxu0 0.0
        %738 = vmatprep.mubr.f32.mxu0 0.0
        %739 = vmatmul.mubr.f32.gmra.mxu0 %v672
        %v740 = vpop.f32.mrf.mxu0
        %v741 = vadd.f32 %v668, %v740
        %v742 = vpop.f32.mrf.mxu0
        %743 = vdwg.mxu0
        %v744 = vld [vmem:[%s12] sm:$0x1]
        %v746 = vlaneseq
        %v747 = vshrl.u32 %v746, 7
        %v748 = vsub.s32 0, %v747
        %v749 = vrot.slane %v744, %v748
        %750 = vrot.lane.b32.xlu0 %v749, 32
        %v751 = vpop.permute.xlu0 %750
        %v753 = vadd.f32 %v741, %v751
        %v754 = vld [vmem:[%s6] sm:$0xff]
        %v755 = vld [vmem:[%s6 + $0x8] sm:$0xff]
        %v756 = vld [vmem:[%s6 + $0x10] sm:$0xff]
        %v757 = vld [vmem:[%s6 + $0x18] sm:$0xff]
        %v758 = vld [vmem:[%s7] sm:$0x1]
        %v760 = vlaneseq
        %v761 = vshrl.u32 %v760, 7
        %v762 = vsub.s32 0, %v761
        %v763 = vrot.slane %v758, %v762
        %v766 = vsel %vm670, %v657, 0
        %768 = vmatprep.subr.mxu0 0.0
        %769 = vmatpush1.msra.mxu0 0.0
        %770 = vmatprep.subr.mxu0 0.0
        %771 = vmatpush1.msra.mxu0 0.0
        %772 = vmatprep.subr.mxu0 0.0
        %773 = vmatpush1.msra.mxu0 0.0
        %774 = vmatprep.subr.mxu0 0.0
        %775 = vmatpush1.msra.mxu0 0.0
        %776 = vmatprep.subr.mxu0 0.0
        %777 = vmatpush1.msra.mxu0 0.0
        %778 = vmatprep.subr.mxu0 0.0
        %779 = vmatpush1.msra.mxu0 0.0
        %780 = vmatprep.subr.mxu0 0.0
        %781 = vmatpush1.msra.mxu0 0.0
        %782 = vmatprep.subr.mxu0 0.0
        %783 = vmatpush1.msra.mxu0 0.0
        %784 = vmatprep.subr.mxu0 0.0
        %785 = vmatpush1.msra.mxu0 0.0
        %786 = vmatprep.subr.mxu0 0.0
        %787 = vmatpush1.msra.mxu0 0.0
        %788 = vmatprep.subr.mxu0 0.0
        %789 = vmatpush1.msra.mxu0 0.0
        %790 = vmatprep.subr.mxu0 0.0
        %791 = vmatpush1.msra.mxu0 0.0
        %792 = vmatprep.subr.mxu0 0.0
        %793 = vmatpush1.msra.mxu0 %v757
        %794 = vmatprep.subr.mxu0 0.0
        %795 = vmatpush1.msra.mxu0 %v756
        %796 = vmatprep.subr.mxu0 0.0
        %797 = vmatpush1.msra.mxu0 %v755
        %798 = vmatprep.subr.mxu0 0.0
        %799 = vmatpush1.msra.mxu0 %v754
        %800 = vmatprep.subr.mxu0 0.0
        %801 = vmatpush2.msra.mxu0 0.0
        %802 = vmatprep.subr.mxu0 0.0
        %803 = vmatpush2.msra.mxu0 0.0
        %804 = vmatprep.subr.mxu0 0.0
        %805 = vmatpush2.msra.mxu0 0.0
        %806 = vmatprep.subr.mxu0 0.0
        %807 = vmatpush2.msra.mxu0 0.0
        %808 = vmatprep.subr.mxu0 0.0
        %809 = vmatpush2.msra.mxu0 0.0
        %810 = vmatprep.subr.mxu0 0.0
        %811 = vmatpush2.msra.mxu0 0.0
        %812 = vmatprep.subr.mxu0 0.0
        %813 = vmatpush2.msra.mxu0 0.0
        %814 = vmatprep.subr.mxu0 0.0
        %815 = vmatpush2.msra.mxu0 0.0
        %816 = vmatprep.subr.mxu0 0.0
        %817 = vmatpush2.msra.mxu0 0.0
        %818 = vmatprep.subr.mxu0 0.0
        %819 = vmatpush2.msra.mxu0 0.0
        %820 = vmatprep.subr.mxu0 0.0
        %821 = vmatpush2.msra.mxu0 0.0
        %822 = vmatprep.subr.mxu0 0.0
        %823 = vmatpush2.msra.mxu0 0.0
        %824 = vmatprep.subr.mxu0 0.0
        %825 = vmatpush2.msra.mxu0 0.0
        %826 = vmatprep.subr.mxu0 0.0
        %827 = vmatpush2.msra.mxu0 0.0
        %828 = vmatprep.subr.mxu0 0.0
        %829 = vmatpush2.msra.mxu0 0.0
        %830 = vmatprep.subr.mxu0 0.0
        %831 = vmatpush2.msra.mxu0 0.0
        %832 = vmatprep.mubr.f32.mxu0 0.0
        %833 = vmatmul.mubr.f32.gmra.mxu0 %v766
        %v834 = vpop.f32.mrf.mxu0
        %v835 = vadd.f32 %v763, %v834
        %v836 = vpop.f32.mrf.mxu0
        %837 = vdwg.mxu0
        %v838 = vld [vmem:[#allocation10] sm:$0xff]
        %v839 = vld [vmem:[#allocation10 + $0x8] sm:$0xff]
        %v840 = vld [vmem:[#allocation10 + $0x10] sm:$0xff]
        %v841 = vld [vmem:[#allocation10 + $0x18] sm:$0xff]
        %v842 = vld [vmem:[%s9] sm:$0x1]
        %v844 = vlaneseq
        %v845 = vshrl.u32 %v844, 7
        %v846 = vsub.s32 0, %v845
        %v847 = vrot.slane %v842, %v846
        %v850 = vsel %vm670, %v658, 0
        %852 = vmatprep.subr.mxu0 0.0
        %853 = vmatpush1.msra.mxu0 0.0
        %854 = vmatprep.subr.mxu0 0.0
        %855 = vmatpush1.msra.mxu0 0.0
        %856 = vmatprep.subr.mxu0 0.0
        %857 = vmatpush1.msra.mxu0 0.0
        %858 = vmatprep.subr.mxu0 0.0
        %859 = vmatpush1.msra.mxu0 0.0
        %860 = vmatprep.subr.mxu0 0.0
        %861 = vmatpush1.msra.mxu0 0.0
        %862 = vmatprep.subr.mxu0 0.0
        %863 = vmatpush1.msra.mxu0 0.0
        %864 = vmatprep.subr.mxu0 0.0
        %865 = vmatpush1.msra.mxu0 0.0
        %866 = vmatprep.subr.mxu0 0.0
        %867 = vmatpush1.msra.mxu0 0.0
        %868 = vmatprep.subr.mxu0 0.0
        %869 = vmatpush1.msra.mxu0 0.0
        %870 = vmatprep.subr.mxu0 0.0
        %871 = vmatpush1.msra.mxu0 0.0
        %872 = vmatprep.subr.mxu0 0.0
        %873 = vmatpush1.msra.mxu0 0.0
        %874 = vmatprep.subr.mxu0 0.0
        %875 = vmatpush1.msra.mxu0 0.0
        %876 = vmatprep.subr.mxu0 0.0
        %877 = vmatpush1.msra.mxu0 %v841
        %878 = vmatprep.subr.mxu0 0.0
        %879 = vmatpush1.msra.mxu0 %v840
        %880 = vmatprep.subr.mxu0 0.0
        %881 = vmatpush1.msra.mxu0 %v839
        %882 = vmatprep.subr.mxu0 0.0
        %883 = vmatpush1.msra.mxu0 %v838
        %884 = vmatprep.subr.mxu0 0.0
        %885 = vmatpush2.msra.mxu0 0.0
        %886 = vmatprep.subr.mxu0 0.0
        %887 = vmatpush2.msra.mxu0 0.0
        %888 = vmatprep.subr.mxu0 0.0
        %889 = vmatpush2.msra.mxu0 0.0
        %890 = vmatprep.subr.mxu0 0.0
        %891 = vmatpush2.msra.mxu0 0.0
        %892 = vmatprep.subr.mxu0 0.0
        %893 = vmatpush2.msra.mxu0 0.0
        %894 = vmatprep.subr.mxu0 0.0
        %895 = vmatpush2.msra.mxu0 0.0
        %896 = vmatprep.subr.mxu0 0.0
        %897 = vmatpush2.msra.mxu0 0.0
        %898 = vmatprep.subr.mxu0 0.0
        %899 = vmatpush2.msra.mxu0 0.0
        %900 = vmatprep.subr.mxu0 0.0
        %901 = vmatpush2.msra.mxu0 0.0
        %902 = vmatprep.subr.mxu0 0.0
        %903 = vmatpush2.msra.mxu0 0.0
        %904 = vmatprep.subr.mxu0 0.0
        %905 = vmatpush2.msra.mxu0 0.0
        %906 = vmatprep.subr.mxu0 0.0
        %907 = vmatpush2.msra.mxu0 0.0
        %908 = vmatprep.subr.mxu0 0.0
        %909 = vmatpush2.msra.mxu0 0.0
        %910 = vmatprep.subr.mxu0 0.0
        %911 = vmatpush2.msra.mxu0 0.0
        %912 = vmatprep.subr.mxu0 0.0
        %913 = vmatpush2.msra.mxu0 0.0
        %914 = vmatprep.subr.mxu0 0.0
        %915 = vmatpush2.msra.mxu0 0.0
        %916 = vmatprep.mubr.f32.mxu0 0.0
        %917 = vmatmul.mubr.f32.gmra.mxu0 %v850
        %v918 = vpop.f32.mrf.mxu0
        %v919 = vadd.f32 %v847, %v918
        %v920 = vpop.f32.mrf.mxu0
        %921 = vdwg.mxu0
        %v922 = vld [vmem:[#allocation11] sm:$0xff]
        %v923 = vld [vmem:[#allocation11 + $0x8] sm:$0xff]
        %v924 = vld [vmem:[#allocation11 + $0x10] sm:$0xff]
        %v925 = vld [vmem:[#allocation11 + $0x18] sm:$0xff]
        %v927 = vsel %vm670, %v741, 0
        %929 = vmatprep.subr.mxu0 0.0
        %930 = vmatpush1.msra.mxu0 0.0
        %931 = vmatprep.subr.mxu0 0.0
        %932 = vmatpush1.msra.mxu0 0.0
        %933 = vmatprep.subr.mxu0 0.0
        %934 = vmatpush1.msra.mxu0 0.0
        %935 = vmatprep.subr.mxu0 0.0
        %936 = vmatpush1.msra.mxu0 0.0
        %937 = vmatprep.subr.mxu0 0.0
        %938 = vmatpush1.msra.mxu0 0.0
        %939 = vmatprep.subr.mxu0 0.0
        %940 = vmatpush1.msra.mxu0 0.0
        %941 = vmatprep.subr.mxu0 0.0
        %942 = vmatpush1.msra.mxu0 0.0
        %943 = vmatprep.subr.mxu0 0.0
        %944 = vmatpush1.msra.mxu0 0.0
        %945 = vmatprep.subr.mxu0 0.0
        %946 = vmatpush1.msra.mxu0 0.0
        %947 = vmatprep.subr.mxu0 0.0
        %948 = vmatpush1.msra.mxu0 0.0
        %949 = vmatprep.subr.mxu0 0.0
        %950 = vmatpush1.msra.mxu0 0.0
        %951 = vmatprep.subr.mxu0 0.0
        %952 = vmatpush1.msra.mxu0 0.0
        %953 = vmatprep.subr.mxu0 0.0
        %954 = vmatpush1.msra.mxu0 %v925
        %955 = vmatprep.subr.mxu0 0.0
        %956 = vmatpush1.msra.mxu0 %v924
        %957 = vmatprep.subr.mxu0 0.0
        %958 = vmatpush1.msra.mxu0 %v923
        %959 = vmatprep.subr.mxu0 0.0
        %960 = vmatpush1.msra.mxu0 %v922
        %961 = vmatprep.subr.mxu0 0.0
        %962 = vmatpush2.msra.mxu0 0.0
        %963 = vmatprep.subr.mxu0 0.0
        %964 = vmatpush2.msra.mxu0 0.0
        %965 = vmatprep.subr.mxu0 0.0
        %966 = vmatpush2.msra.mxu0 0.0
        %967 = vmatprep.subr.mxu0 0.0
        %968 = vmatpush2.msra.mxu0 0.0
        %969 = vmatprep.subr.mxu0 0.0
        %970 = vmatpush2.msra.mxu0 0.0
        %971 = vmatprep.subr.mxu0 0.0
        %972 = vmatpush2.msra.mxu0 0.0
        %973 = vmatprep.subr.mxu0 0.0
        %974 = vmatpush2.msra.mxu0 0.0
        %975 = vmatprep.subr.mxu0 0.0
        %976 = vmatpush2.msra.mxu0 0.0
        %977 = vmatprep.subr.mxu0 0.0
        %978 = vmatpush2.msra.mxu0 0.0
        %979 = vmatprep.subr.mxu0 0.0
        %980 = vmatpush2.msra.mxu0 0.0
        %981 = vmatprep.subr.mxu0 0.0
        %982 = vmatpush2.msra.mxu0 0.0
        %983 = vmatprep.subr.mxu0 0.0
        %984 = vmatpush2.msra.mxu0 0.0
        %985 = vmatprep.subr.mxu0 0.0
        %986 = vmatpush2.msra.mxu0 0.0
        %987 = vmatprep.subr.mxu0 0.0
        %988 = vmatpush2.msra.mxu0 0.0
        %989 = vmatprep.subr.mxu0 0.0
        %990 = vmatpush2.msra.mxu0 0.0
        %991 = vmatprep.subr.mxu0 0.0
        %992 = vmatpush2.msra.mxu0 0.0
        %993 = vmatprep.mubr.f32.mxu0 0.0
        %994 = vmatmul.mubr.f32.gmra.mxu0 %v927
        %v995 = vpop.f32.mrf.mxu0
        %v996 = vadd.f32 0.0, %v995
        %v997 = vpop.f32.mrf.mxu0
        %998 = vdwg.mxu0
        %1000 = vrot.lane.b32.xlu0 %v996, 96
        %v1001 = vpop.permute.xlu0 %1000
        %1003 = vrot.lane.b32.xlu0 %v996, 64
        %v1004 = vpop.permute.xlu0 %1003
        %1006 = vrot.lane.b32.xlu0 %v996, 32
        %v1007 = vpop.permute.xlu0 %1006
        %v1009 = vcombine.low %v996, %v1004
        %v1010 = vcombine.high %v996, %v1004
        %v1012 = vunpack.c.l.s4 1983009808
        %v1013 = vunpack.c.0.s8 %v1012
        %v1014 = vlaneseq
        %v1015 = vshrl.u32 %v1014, 7
        %v1016 = vsub.s32 %v1013, %v1015
        %v1017 = vrot.slane %v1009, %v1016
        %v1019 = vunpack.c.l.s4 1983009808
        %v1020 = vunpack.c.0.s8 %v1019
        %v1021 = vlaneseq
        %v1022 = vshrl.u32 %v1021, 7
        %v1023 = vsub.s32 %v1020, %v1022
        %v1024 = vrot.slane %v1010, %v1023
        %v1025 = vcombine.low %v1001, %v1007
        %v1026 = vcombine.high %v1001, %v1007
        %v1028 = vunpack.c.l.s4 1983009808
        %v1029 = vunpack.c.0.s8 %v1028
        %v1030 = vlaneseq
        %v1031 = vshrl.u32 %v1030, 7
        %v1032 = vsub.s32 %v1029, %v1031
        %v1033 = vrot.slane %v1025, %v1032
        %v1035 = vunpack.c.l.s4 1983009808
        %v1036 = vunpack.c.0.s8 %v1035
        %v1037 = vlaneseq
        %v1038 = vshrl.u32 %v1037, 7
        %v1039 = vsub.s32 %v1036, %v1038
        %v1040 = vrot.slane %v1026, %v1039
        %v1041 = vcombine.low %v1017, %v1033
        %v1042 = vcombine.high %v1017, %v1033
        %v1044 = vunpack.c.l.s4 1934713408
        %v1045 = vunpack.c.0.s8 %v1044
        %v1046 = vlaneseq
        %v1047 = vshrl.u32 %v1046, 7
        %v1048 = vsub.s32 %v1045, %v1047
        %v1049 = vrot.slane %v1041, %v1048
        %v1051 = vunpack.c.l.s4 1934713408
        %v1052 = vunpack.c.0.s8 %v1051
        %v1053 = vlaneseq
        %v1054 = vshrl.u32 %v1053, 7
        %v1055 = vsub.s32 %v1052, %v1054
        %v1056 = vrot.slane %v1042, %v1055
        %v1057 = vcombine.low %v1024, %v1040
        %v1058 = vcombine.high %v1024, %v1040
        %v1060 = vunpack.c.l.s4 1934713408
        %v1061 = vunpack.c.0.s8 %v1060
        %v1062 = vlaneseq
        %v1063 = vshrl.u32 %v1062, 7
        %v1064 = vsub.s32 %v1061, %v1063
        %v1065 = vrot.slane %v1057, %v1064
        %v1067 = vunpack.c.l.s4 1934713408
        %v1068 = vunpack.c.0.s8 %v1067
        %v1069 = vlaneseq
        %v1070 = vshrl.u32 %v1069, 7
        %v1071 = vsub.s32 %v1068, %v1070
        %v1072 = vrot.slane %v1058, %v1071
        %v1073 = vcombine.high %v1049, 0.0
        %v1074 = vcombine.high %v1056, 0.0
        %v1075 = vcombine.high %v1065, 0.0
        %v1076 = vcombine.high %v1072, 0.0
        %v1077 = vld [vmem:[%s655] sm:$0xff]
        %v1078 = vlaneseq
        %v1079 = vand.u32 %v1078, 127
        %v1080 = vlaneseq
        %v1081 = vshrl.u32 %v1080, 7
        %v1082 = vsub.s32 0, %v1081
        %v1083 = vrot.slane %v1077, %v1082
        %1085 = vbcast.lane.b32.xlu0 %v1083, 256
        %v1086 = vpop.permute.xlu0 %1085
        %v1087 = vlaneseq
        %v1088 = vshrl.u32 %v1087, 7
        %v1089 = vsub.s32 1, %v1088
        %v1090 = vrot.slane %v1077, %v1089
        %1092 = vbcast.lane.b32.xlu0 %v1090, 256
        %v1093 = vpop.permute.xlu0 %1092
        %v1094 = vlaneseq
        %v1095 = vshrl.u32 %v1094, 7
        %v1096 = vsub.s32 2, %v1095
        %v1097 = vrot.slane %v1077, %v1096
        %1099 = vbcast.lane.b32.xlu0 %v1097, 256
        %v1100 = vpop.permute.xlu0 %1099
        %v1101 = vlaneseq
        %v1102 = vshrl.u32 %v1101, 7
        %v1103 = vsub.s32 3, %v1102
        %v1104 = vrot.slane %v1077, %v1103
        %1106 = vbcast.lane.b32.xlu0 %v1104, 256
        %v1107 = vpop.permute.xlu0 %1106
        %v1108 = vlaneseq
        %v1109 = vshrl.u32 %v1108, 7
        %v1110 = vsub.s32 4, %v1109
        %v1111 = vrot.slane %v1077, %v1110
        %1113 = vbcast.lane.b32.xlu0 %v1111, 256
        %v1114 = vpop.permute.xlu0 %1113
        %v1115 = vlaneseq
        %v1116 = vshrl.u32 %v1115, 7
        %v1117 = vsub.s32 5, %v1116
        %v1118 = vrot.slane %v1077, %v1117
        %1120 = vbcast.lane.b32.xlu0 %v1118, 256
        %v1121 = vpop.permute.xlu0 %1120
        %v1122 = vlaneseq
        %v1123 = vshrl.u32 %v1122, 7
        %v1124 = vsub.s32 6, %v1123
        %v1125 = vrot.slane %v1077, %v1124
        %1127 = vbcast.lane.b32.xlu0 %v1125, 256
        %v1128 = vpop.permute.xlu0 %1127
        %v1129 = vlaneseq
        %v1130 = vshrl.u32 %v1129, 7
        %v1131 = vsub.s32 7, %v1130
        %v1132 = vrot.slane %v1077, %v1131
        %1134 = vbcast.lane.b32.xlu0 %v1132, 256
        %v1135 = vpop.permute.xlu0 %1134
        %vm1136 = vcmp.eq.s32.totalorder %v1086, %v1079
        %vm1137 = vcmp.eq.s32.totalorder %v1093, %v1079
        %vm1138 = vcmp.eq.s32.totalorder %v1100, %v1079
        %vm1139 = vcmp.eq.s32.totalorder %v1107, %v1079
        %vm1140 = vcmp.eq.s32.totalorder %v1114, %v1079
        %vm1141 = vcmp.eq.s32.totalorder %v1121, %v1079
        %vm1142 = vcmp.eq.s32.totalorder %v1128, %v1079
        %vm1143 = vcmp.eq.s32.totalorder %v1135, %v1079
        %v1144 = vsel %vm1136, 1, 0
        %v1145 = vsel %vm1137, 1, 0
        %v1146 = vsel %vm1138, 1, 0
        %v1147 = vsel %vm1139, 1, 0
        %v1148 = vsel %vm1140, 1, 0
        %v1149 = vsel %vm1141, 1, 0
        %v1150 = vsel %vm1142, 1, 0
        %v1151 = vsel %vm1143, 1, 0
        %v1152 = vcvt.s32.f32 %v1144
        %v1153 = vcvt.s32.f32 %v1145
        %v1154 = vcvt.s32.f32 %v1146
        %v1155 = vcvt.s32.f32 %v1147
        %v1156 = vcvt.s32.f32 %v1148
        %v1157 = vcvt.s32.f32 %v1149
        %v1158 = vcvt.s32.f32 %v1150
        %v1159 = vcvt.s32.f32 %v1151
        %v1161 = vsel %vm670, %v1049, 0
        %v1164 = vsel %vm670, %v1152, 0
        %1166 = vmatprep.subr.mxu0 0.0
        %1167 = vmatpush1.xpose.msra.mxu0 0.0
        %1168 = vmatprep.subr.mxu0 0.0
        %1169 = vmatpush1.xpose.msra.mxu0 0.0
        %1170 = vmatprep.subr.mxu0 0.0
        %1171 = vmatpush1.xpose.msra.mxu0 0.0
        %1172 = vmatprep.subr.mxu0 0.0
        %1173 = vmatpush1.xpose.msra.mxu0 0.0
        %1174 = vmatprep.subr.mxu0 0.0
        %1175 = vmatpush1.xpose.msra.mxu0 0.0
        %1176 = vmatprep.subr.mxu0 0.0
        %1177 = vmatpush1.xpose.msra.mxu0 0.0
        %1178 = vmatprep.subr.mxu0 0.0
        %1179 = vmatpush1.xpose.msra.mxu0 0.0
        %1180 = vmatprep.subr.mxu0 0.0
        %1181 = vmatpush1.xpose.msra.mxu0 0.0
        %1182 = vmatprep.subr.mxu0 0.0
        %1183 = vmatpush1.xpose.msra.mxu0 0.0
        %1184 = vmatprep.subr.mxu0 0.0
        %1185 = vmatpush1.xpose.msra.mxu0 0.0
        %1186 = vmatprep.subr.mxu0 0.0
        %1187 = vmatpush1.xpose.msra.mxu0 0.0
        %1188 = vmatprep.subr.mxu0 0.0
        %1189 = vmatpush1.xpose.msra.mxu0 0.0
        %1190 = vmatprep.subr.mxu0 0.0
        %1191 = vmatpush1.xpose.msra.mxu0 0.0
        %1192 = vmatprep.subr.mxu0 0.0
        %1193 = vmatpush1.xpose.msra.mxu0 0.0
        %1194 = vmatprep.subr.mxu0 0.0
        %1195 = vmatpush1.xpose.msra.mxu0 0.0
        %1196 = vmatprep.subr.mxu0 0.0
        %1197 = vmatpush1.xpose.msra.mxu0 %v1164
        %1198 = vmatprep.subr.mxu0 0.0
        %1199 = vmatpush2.xpose.msra.mxu0 0.0
        %1200 = vmatprep.subr.mxu0 0.0
        %1201 = vmatpush2.xpose.msra.mxu0 0.0
        %1202 = vmatprep.subr.mxu0 0.0
        %1203 = vmatpush2.xpose.msra.mxu0 0.0
        %1204 = vmatprep.subr.mxu0 0.0
        %1205 = vmatpush2.xpose.msra.mxu0 0.0
        %1206 = vmatprep.subr.mxu0 0.0
        %1207 = vmatpush2.xpose.msra.mxu0 0.0
        %1208 = vmatprep.subr.mxu0 0.0
        %1209 = vmatpush2.xpose.msra.mxu0 0.0
        %1210 = vmatprep.subr.mxu0 0.0
        %1211 = vmatpush2.xpose.msra.mxu0 0.0
        %1212 = vmatprep.subr.mxu0 0.0
        %1213 = vmatpush2.xpose.msra.mxu0 0.0
        %1214 = vmatprep.subr.mxu0 0.0
        %1215 = vmatpush2.xpose.msra.mxu0 0.0
        %1216 = vmatprep.subr.mxu0 0.0
        %1217 = vmatpush2.xpose.msra.mxu0 0.0
        %1218 = vmatprep.subr.mxu0 0.0
        %1219 = vmatpush2.xpose.msra.mxu0 0.0
        %1220 = vmatprep.subr.mxu0 0.0
        %1221 = vmatpush2.xpose.msra.mxu0 0.0
        %1222 = vmatprep.subr.mxu0 0.0
        %1223 = vmatpush2.xpose.msra.mxu0 0.0
        %1224 = vmatprep.subr.mxu0 0.0
        %1225 = vmatpush2.xpose.msra.mxu0 0.0
        %1226 = vmatprep.subr.mxu0 0.0
        %1227 = vmatpush2.xpose.msra.mxu0 0.0
        %1228 = vmatprep.subr.mxu0 0.0
        %1229 = vmatpush2.xpose.msra.mxu0 0.0
        %1230 = vmatprep.mubr.f32.mxu0 0.0
        %1231 = vmatmul.mubr.f32.gmra.mxu0 %v1161
        %v1232 = vpop.f32.mrf.mxu0
        %v1233 = vadd.f32 0.0, %v1232
        %v1234 = vpop.f32.mrf.mxu0
        %1235 = vdwg.mxu0
        %v1237 = vsel %vm670, %v1073, 0
        %v1240 = vsel %vm670, %v1153, 0
        %1242 = vmatprep.subr.mxu0 0.0
        %1243 = vmatpush1.xpose.msra.mxu0 0.0
        %1244 = vmatprep.subr.mxu0 0.0
        %1245 = vmatpush1.xpose.msra.mxu0 0.0
        %1246 = vmatprep.subr.mxu0 0.0
        %1247 = vmatpush1.xpose.msra.mxu0 0.0
        %1248 = vmatprep.subr.mxu0 0.0
        %1249 = vmatpush1.xpose.msra.mxu0 0.0
        %1250 = vmatprep.subr.mxu0 0.0
        %1251 = vmatpush1.xpose.msra.mxu0 0.0
        %1252 = vmatprep.subr.mxu0 0.0
        %1253 = vmatpush1.xpose.msra.mxu0 0.0
        %1254 = vmatprep.subr.mxu0 0.0
        %1255 = vmatpush1.xpose.msra.mxu0 0.0
        %1256 = vmatprep.subr.mxu0 0.0
        %1257 = vmatpush1.xpose.msra.mxu0 0.0
        %1258 = vmatprep.subr.mxu0 0.0
        %1259 = vmatpush1.xpose.msra.mxu0 0.0
        %1260 = vmatprep.subr.mxu0 0.0
        %1261 = vmatpush1.xpose.msra.mxu0 0.0
        %1262 = vmatprep.subr.mxu0 0.0
        %1263 = vmatpush1.xpose.msra.mxu0 0.0
        %1264 = vmatprep.subr.mxu0 0.0
        %1265 = vmatpush1.xpose.msra.mxu0 0.0
        %1266 = vmatprep.subr.mxu0 0.0
        %1267 = vmatpush1.xpose.msra.mxu0 0.0
        %1268 = vmatprep.subr.mxu0 0.0
        %1269 = vmatpush1.xpose.msra.mxu0 0.0
        %1270 = vmatprep.subr.mxu0 0.0
        %1271 = vmatpush1.xpose.msra.mxu0 0.0
        %1272 = vmatprep.subr.mxu0 0.0
        %1273 = vmatpush1.xpose.msra.mxu0 %v1240
        %1274 = vmatprep.subr.mxu0 0.0
        %1275 = vmatpush2.xpose.msra.mxu0 0.0
        %1276 = vmatprep.subr.mxu0 0.0
        %1277 = vmatpush2.xpose.msra.mxu0 0.0
        %1278 = vmatprep.subr.mxu0 0.0
        %1279 = vmatpush2.xpose.msra.mxu0 0.0
        %1280 = vmatprep.subr.mxu0 0.0
        %1281 = vmatpush2.xpose.msra.mxu0 0.0
        %1282 = vmatprep.subr.mxu0 0.0
        %1283 = vmatpush2.xpose.msra.mxu0 0.0
        %1284 = vmatprep.subr.mxu0 0.0
        %1285 = vmatpush2.xpose.msra.mxu0 0.0
        %1286 = vmatprep.subr.mxu0 0.0
        %1287 = vmatpush2.xpose.msra.mxu0 0.0
        %1288 = vmatprep.subr.mxu0 0.0
        %1289 = vmatpush2.xpose.msra.mxu0 0.0
        %1290 = vmatprep.subr.mxu0 0.0
        %1291 = vmatpush2.xpose.msra.mxu0 0.0
        %1292 = vmatprep.subr.mxu0 0.0
        %1293 = vmatpush2.xpose.msra.mxu0 0.0
        %1294 = vmatprep.subr.mxu0 0.0
        %1295 = vmatpush2.xpose.msra.mxu0 0.0
        %1296 = vmatprep.subr.mxu0 0.0
        %1297 = vmatpush2.xpose.msra.mxu0 0.0
        %1298 = vmatprep.subr.mxu0 0.0
        %1299 = vmatpush2.xpose.msra.mxu0 0.0
        %1300 = vmatprep.subr.mxu0 0.0
        %1301 = vmatpush2.xpose.msra.mxu0 0.0
        %1302 = vmatprep.subr.mxu0 0.0
        %1303 = vmatpush2.xpose.msra.mxu0 0.0
        %1304 = vmatprep.subr.mxu0 0.0
        %1305 = vmatpush2.xpose.msra.mxu0 0.0
        %1306 = vmatprep.mubr.f32.mxu0 0.0
        %1307 = vmatmul.mubr.f32.gmra.mxu0 %v1237
        %v1308 = vpop.f32.mrf.mxu0
        %v1309 = vadd.f32 0.0, %v1308
        %v1310 = vpop.f32.mrf.mxu0
        %1311 = vdwg.mxu0
        %v1313 = vsel %vm670, %v1056, 0
        %v1316 = vsel %vm670, %v1154, 0
        %1318 = vmatprep.subr.mxu0 0.0
        %1319 = vmatpush1.xpose.msra.mxu0 0.0
        %1320 = vmatprep.subr.mxu0 0.0
        %1321 = vmatpush1.xpose.msra.mxu0 0.0
        %1322 = vmatprep.subr.mxu0 0.0
        %1323 = vmatpush1.xpose.msra.mxu0 0.0
        %1324 = vmatprep.subr.mxu0 0.0
        %1325 = vmatpush1.xpose.msra.mxu0 0.0
        %1326 = vmatprep.subr.mxu0 0.0
        %1327 = vmatpush1.xpose.msra.mxu0 0.0
        %1328 = vmatprep.subr.mxu0 0.0
        %1329 = vmatpush1.xpose.msra.mxu0 0.0
        %1330 = vmatprep.subr.mxu0 0.0
        %1331 = vmatpush1.xpose.msra.mxu0 0.0
        %1332 = vmatprep.subr.mxu0 0.0
        %1333 = vmatpush1.xpose.msra.mxu0 0.0
        %1334 = vmatprep.subr.mxu0 0.0
        %1335 = vmatpush1.xpose.msra.mxu0 0.0
        %1336 = vmatprep.subr.mxu0 0.0
        %1337 = vmatpush1.xpose.msra.mxu0 0.0
        %1338 = vmatprep.subr.mxu0 0.0
        %1339 = vmatpush1.xpose.msra.mxu0 0.0
        %1340 = vmatprep.subr.mxu0 0.0
        %1341 = vmatpush1.xpose.msra.mxu0 0.0
        %1342 = vmatprep.subr.mxu0 0.0
        %1343 = vmatpush1.xpose.msra.mxu0 0.0
        %1344 = vmatprep.subr.mxu0 0.0
        %1345 = vmatpush1.xpose.msra.mxu0 0.0
        %1346 = vmatprep.subr.mxu0 0.0
        %1347 = vmatpush1.xpose.msra.mxu0 0.0
        %1348 = vmatprep.subr.mxu0 0.0
        %1349 = vmatpush1.xpose.msra.mxu0 %v1316
        %1350 = vmatprep.subr.mxu0 0.0
        %1351 = vmatpush2.xpose.msra.mxu0 0.0
        %1352 = vmatprep.subr.mxu0 0.0
        %1353 = vmatpush2.xpose.msra.mxu0 0.0
        %1354 = vmatprep.subr.mxu0 0.0
        %1355 = vmatpush2.xpose.msra.mxu0 0.0
        %1356 = vmatprep.subr.mxu0 0.0
        %1357 = vmatpush2.xpose.msra.mxu0 0.0
        %1358 = vmatprep.subr.mxu0 0.0
        %1359 = vmatpush2.xpose.msra.mxu0 0.0
        %1360 = vmatprep.subr.mxu0 0.0
        %1361 = vmatpush2.xpose.msra.mxu0 0.0
        %1362 = vmatprep.subr.mxu0 0.0
        %1363 = vmatpush2.xpose.msra.mxu0 0.0
        %1364 = vmatprep.subr.mxu0 0.0
        %1365 = vmatpush2.xpose.msra.mxu0 0.0
        %1366 = vmatprep.subr.mxu0 0.0
        %1367 = vmatpush2.xpose.msra.mxu0 0.0
        %1368 = vmatprep.subr.mxu0 0.0
        %1369 = vmatpush2.xpose.msra.mxu0 0.0
        %1370 = vmatprep.subr.mxu0 0.0
        %1371 = vmatpush2.xpose.msra.mxu0 0.0
        %1372 = vmatprep.subr.mxu0 0.0
        %1373 = vmatpush2.xpose.msra.mxu0 0.0
        %1374 = vmatprep.subr.mxu0 0.0
        %1375 = vmatpush2.xpose.msra.mxu0 0.0
        %1376 = vmatprep.subr.mxu0 0.0
        %1377 = vmatpush2.xpose.msra.mxu0 0.0
        %1378 = vmatprep.subr.mxu0 0.0
        %1379 = vmatpush2.xpose.msra.mxu0 0.0
        %1380 = vmatprep.subr.mxu0 0.0
        %1381 = vmatpush2.xpose.msra.mxu0 0.0
        %1382 = vmatprep.mubr.f32.mxu0 0.0
        %1383 = vmatmul.mubr.f32.gmra.mxu0 %v1313
        %v1384 = vpop.f32.mrf.mxu0
        %v1385 = vadd.f32 0.0, %v1384
        %v1386 = vpop.f32.mrf.mxu0
        %1387 = vdwg.mxu0
        %v1389 = vsel %vm670, %v1074, 0
        %v1392 = vsel %vm670, %v1155, 0
        %1394 = vmatprep.subr.mxu0 0.0
        %1395 = vmatpush1.xpose.msra.mxu0 0.0
        %1396 = vmatprep.subr.mxu0 0.0
        %1397 = vmatpush1.xpose.msra.mxu0 0.0
        %1398 = vmatprep.subr.mxu0 0.0
        %1399 = vmatpush1.xpose.msra.mxu0 0.0
        %1400 = vmatprep.subr.mxu0 0.0
        %1401 = vmatpush1.xpose.msra.mxu0 0.0
        %1402 = vmatprep.subr.mxu0 0.0
        %1403 = vmatpush1.xpose.msra.mxu0 0.0
        %1404 = vmatprep.subr.mxu0 0.0
        %1405 = vmatpush1.xpose.msra.mxu0 0.0
        %1406 = vmatprep.subr.mxu0 0.0
        %1407 = vmatpush1.xpose.msra.mxu0 0.0
        %1408 = vmatprep.subr.mxu0 0.0
        %1409 = vmatpush1.xpose.msra.mxu0 0.0
        %1410 = vmatprep.subr.mxu0 0.0
        %1411 = vmatpush1.xpose.msra.mxu0 0.0
        %1412 = vmatprep.subr.mxu0 0.0
        %1413 = vmatpush1.xpose.msra.mxu0 0.0
        %1414 = vmatprep.subr.mxu0 0.0
        %1415 = vmatpush1.xpose.msra.mxu0 0.0
        %1416 = vmatprep.subr.mxu0 0.0
        %1417 = vmatpush1.xpose.msra.mxu0 0.0
        %1418 = vmatprep.subr.mxu0 0.0
        %1419 = vmatpush1.xpose.msra.mxu0 0.0
        %1420 = vmatprep.subr.mxu0 0.0
        %1421 = vmatpush1.xpose.msra.mxu0 0.0
        %1422 = vmatprep.subr.mxu0 0.0
        %1423 = vmatpush1.xpose.msra.mxu0 0.0
        %1424 = vmatprep.subr.mxu0 0.0
        %1425 = vmatpush1.xpose.msra.mxu0 %v1392
        %1426 = vmatprep.subr.mxu0 0.0
        %1427 = vmatpush2.xpose.msra.mxu0 0.0
        %1428 = vmatprep.subr.mxu0 0.0
        %1429 = vmatpush2.xpose.msra.mxu0 0.0
        %1430 = vmatprep.subr.mxu0 0.0
        %1431 = vmatpush2.xpose.msra.mxu0 0.0
        %1432 = vmatprep.subr.mxu0 0.0
        %1433 = vmatpush2.xpose.msra.mxu0 0.0
        %1434 = vmatprep.subr.mxu0 0.0
        %1435 = vmatpush2.xpose.msra.mxu0 0.0
        %1436 = vmatprep.subr.mxu0 0.0
        %1437 = vmatpush2.xpose.msra.mxu0 0.0
        %1438 = vmatprep.subr.mxu0 0.0
        %1439 = vmatpush2.xpose.msra.mxu0 0.0
        %1440 = vmatprep.subr.mxu0 0.0
        %1441 = vmatpush2.xpose.msra.mxu0 0.0
        %1442 = vmatprep.subr.mxu0 0.0
        %1443 = vmatpush2.xpose.msra.mxu0 0.0
        %1444 = vmatprep.subr.mxu0 0.0
        %1445 = vmatpush2.xpose.msra.mxu0 0.0
        %1446 = vmatprep.subr.mxu0 0.0
        %1447 = vmatpush2.xpose.msra.mxu0 0.0
        %1448 = vmatprep.subr.mxu0 0.0
        %1449 = vmatpush2.xpose.msra.mxu0 0.0
        %1450 = vmatprep.subr.mxu0 0.0
        %1451 = vmatpush2.xpose.msra.mxu0 0.0
        %1452 = vmatprep.subr.mxu0 0.0
        %1453 = vmatpush2.xpose.msra.mxu0 0.0
        %1454 = vmatprep.subr.mxu0 0.0
        %1455 = vmatpush2.xpose.msra.mxu0 0.0
        %1456 = vmatprep.subr.mxu0 0.0
        %1457 = vmatpush2.xpose.msra.mxu0 0.0
        %1458 = vmatprep.mubr.f32.mxu0 0.0
        %1459 = vmatmul.mubr.f32.gmra.mxu0 %v1389
        %v1460 = vpop.f32.mrf.mxu0
        %v1461 = vadd.f32 0.0, %v1460
        %v1462 = vpop.f32.mrf.mxu0
        %1463 = vdwg.mxu0
        %v1465 = vsel %vm670, %v1065, 0
        %v1468 = vsel %vm670, %v1156, 0
        %1470 = vmatprep.subr.mxu0 0.0
        %1471 = vmatpush1.xpose.msra.mxu0 0.0
        %1472 = vmatprep.subr.mxu0 0.0
        %1473 = vmatpush1.xpose.msra.mxu0 0.0
        %1474 = vmatprep.subr.mxu0 0.0
        %1475 = vmatpush1.xpose.msra.mxu0 0.0
        %1476 = vmatprep.subr.mxu0 0.0
        %1477 = vmatpush1.xpose.msra.mxu0 0.0
        %1478 = vmatprep.subr.mxu0 0.0
        %1479 = vmatpush1.xpose.msra.mxu0 0.0
        %1480 = vmatprep.subr.mxu0 0.0
        %1481 = vmatpush1.xpose.msra.mxu0 0.0
        %1482 = vmatprep.subr.mxu0 0.0
        %1483 = vmatpush1.xpose.msra.mxu0 0.0
        %1484 = vmatprep.subr.mxu0 0.0
        %1485 = vmatpush1.xpose.msra.mxu0 0.0
        %1486 = vmatprep.subr.mxu0 0.0
        %1487 = vmatpush1.xpose.msra.mxu0 0.0
        %1488 = vmatprep.subr.mxu0 0.0
        %1489 = vmatpush1.xpose.msra.mxu0 0.0
        %1490 = vmatprep.subr.mxu0 0.0
        %1491 = vmatpush1.xpose.msra.mxu0 0.0
        %1492 = vmatprep.subr.mxu0 0.0
        %1493 = vmatpush1.xpose.msra.mxu0 0.0
        %1494 = vmatprep.subr.mxu0 0.0
        %1495 = vmatpush1.xpose.msra.mxu0 0.0
        %1496 = vmatprep.subr.mxu0 0.0
        %1497 = vmatpush1.xpose.msra.mxu0 0.0
        %1498 = vmatprep.subr.mxu0 0.0
        %1499 = vmatpush1.xpose.msra.mxu0 0.0
        %1500 = vmatprep.subr.mxu0 0.0
        %1501 = vmatpush1.xpose.msra.mxu0 %v1468
        %1502 = vmatprep.subr.mxu0 0.0
        %1503 = vmatpush2.xpose.msra.mxu0 0.0
        %1504 = vmatprep.subr.mxu0 0.0
        %1505 = vmatpush2.xpose.msra.mxu0 0.0
        %1506 = vmatprep.subr.mxu0 0.0
        %1507 = vmatpush2.xpose.msra.mxu0 0.0
        %1508 = vmatprep.subr.mxu0 0.0
        %1509 = vmatpush2.xpose.msra.mxu0 0.0
        %1510 = vmatprep.subr.mxu0 0.0
        %1511 = vmatpush2.xpose.msra.mxu0 0.0
        %1512 = vmatprep.subr.mxu0 0.0
        %1513 = vmatpush2.xpose.msra.mxu0 0.0
        %1514 = vmatprep.subr.mxu0 0.0
        %1515 = vmatpush2.xpose.msra.mxu0 0.0
        %1516 = vmatprep.subr.mxu0 0.0
        %1517 = vmatpush2.xpose.msra.mxu0 0.0
        %1518 = vmatprep.subr.mxu0 0.0
        %1519 = vmatpush2.xpose.msra.mxu0 0.0
        %1520 = vmatprep.subr.mxu0 0.0
        %1521 = vmatpush2.xpose.msra.mxu0 0.0
        %1522 = vmatprep.subr.mxu0 0.0
        %1523 = vmatpush2.xpose.msra.mxu0 0.0
        %1524 = vmatprep.subr.mxu0 0.0
        %1525 = vmatpush2.xpose.msra.mxu0 0.0
        %1526 = vmatprep.subr.mxu0 0.0
        %1527 = vmatpush2.xpose.msra.mxu0 0.0
        %1528 = vmatprep.subr.mxu0 0.0
        %1529 = vmatpush2.xpose.msra.mxu0 0.0
        %1530 = vmatprep.subr.mxu0 0.0
        %1531 = vmatpush2.xpose.msra.mxu0 0.0
        %1532 = vmatprep.subr.mxu0 0.0
        %1533 = vmatpush2.xpose.msra.mxu0 0.0
        %1534 = vmatprep.mubr.f32.mxu0 0.0
        %1535 = vmatmul.mubr.f32.gmra.mxu0 %v1465
        %v1536 = vpop.f32.mrf.mxu0
        %v1537 = vadd.f32 0.0, %v1536
        %v1538 = vpop.f32.mrf.mxu0
        %1539 = vdwg.mxu0
        %v1541 = vsel %vm670, %v1075, 0
        %v1544 = vsel %vm670, %v1157, 0
        %1546 = vmatprep.subr.mxu0 0.0
        %1547 = vmatpush1.xpose.msra.mxu0 0.0
        %1548 = vmatprep.subr.mxu0 0.0
        %1549 = vmatpush1.xpose.msra.mxu0 0.0
        %1550 = vmatprep.subr.mxu0 0.0
        %1551 = vmatpush1.xpose.msra.mxu0 0.0
        %1552 = vmatprep.subr.mxu0 0.0
        %1553 = vmatpush1.xpose.msra.mxu0 0.0
        %1554 = vmatprep.subr.mxu0 0.0
        %1555 = vmatpush1.xpose.msra.mxu0 0.0
        %1556 = vmatprep.subr.mxu0 0.0
        %1557 = vmatpush1.xpose.msra.mxu0 0.0
        %1558 = vmatprep.subr.mxu0 0.0
        %1559 = vmatpush1.xpose.msra.mxu0 0.0
        %1560 = vmatprep.subr.mxu0 0.0
        %1561 = vmatpush1.xpose.msra.mxu0 0.0
        %1562 = vmatprep.subr.mxu0 0.0
        %1563 = vmatpush1.xpose.msra.mxu0 0.0
        %1564 = vmatprep.subr.mxu0 0.0
        %1565 = vmatpush1.xpose.msra.mxu0 0.0
        %1566 = vmatprep.subr.mxu0 0.0
        %1567 = vmatpush1.xpose.msra.mxu0 0.0
        %1568 = vmatprep.subr.mxu0 0.0
        %1569 = vmatpush1.xpose.msra.mxu0 0.0
        %1570 = vmatprep.subr.mxu0 0.0
        %1571 = vmatpush1.xpose.msra.mxu0 0.0
        %1572 = vmatprep.subr.mxu0 0.0
        %1573 = vmatpush1.xpose.msra.mxu0 0.0
        %1574 = vmatprep.subr.mxu0 0.0
        %1575 = vmatpush1.xpose.msra.mxu0 0.0
        %1576 = vmatprep.subr.mxu0 0.0
        %1577 = vmatpush1.xpose.msra.mxu0 %v1544
        %1578 = vmatprep.subr.mxu0 0.0
        %1579 = vmatpush2.xpose.msra.mxu0 0.0
        %1580 = vmatprep.subr.mxu0 0.0
        %1581 = vmatpush2.xpose.msra.mxu0 0.0
        %1582 = vmatprep.subr.mxu0 0.0
        %1583 = vmatpush2.xpose.msra.mxu0 0.0
        %1584 = vmatprep.subr.mxu0 0.0
        %1585 = vmatpush2.xpose.msra.mxu0 0.0
        %1586 = vmatprep.subr.mxu0 0.0
        %1587 = vmatpush2.xpose.msra.mxu0 0.0
        %1588 = vmatprep.subr.mxu0 0.0
        %1589 = vmatpush2.xpose.msra.mxu0 0.0
        %1590 = vmatprep.subr.mxu0 0.0
        %1591 = vmatpush2.xpose.msra.mxu0 0.0
        %1592 = vmatprep.subr.mxu0 0.0
        %1593 = vmatpush2.xpose.msra.mxu0 0.0
        %1594 = vmatprep.subr.mxu0 0.0
        %1595 = vmatpush2.xpose.msra.mxu0 0.0
        %1596 = vmatprep.subr.mxu0 0.0
        %1597 = vmatpush2.xpose.msra.mxu0 0.0
        %1598 = vmatprep.subr.mxu0 0.0
        %1599 = vmatpush2.xpose.msra.mxu0 0.0
        %1600 = vmatprep.subr.mxu0 0.0
        %1601 = vmatpush2.xpose.msra.mxu0 0.0
        %1602 = vmatprep.subr.mxu0 0.0
        %1603 = vmatpush2.xpose.msra.mxu0 0.0
        %1604 = vmatprep.subr.mxu0 0.0
        %1605 = vmatpush2.xpose.msra.mxu0 0.0
        %1606 = vmatprep.subr.mxu0 0.0
        %1607 = vmatpush2.xpose.msra.mxu0 0.0
        %1608 = vmatprep.subr.mxu0 0.0
        %1609 = vmatpush2.xpose.msra.mxu0 0.0
        %1610 = vmatprep.mubr.f32.mxu0 0.0
        %1611 = vmatmul.mubr.f32.gmra.mxu0 %v1541
        %v1612 = vpop.f32.mrf.mxu0
        %v1613 = vadd.f32 0.0, %v1612
        %v1614 = vpop.f32.mrf.mxu0
        %1615 = vdwg.mxu0
        %v1617 = vsel %vm670, %v1072, 0
        %v1620 = vsel %vm670, %v1158, 0
        %1622 = vmatprep.subr.mxu0 0.0
        %1623 = vmatpush1.xpose.msra.mxu0 0.0
        %1624 = vmatprep.subr.mxu0 0.0
        %1625 = vmatpush1.xpose.msra.mxu0 0.0
        %1626 = vmatprep.subr.mxu0 0.0
        %1627 = vmatpush1.xpose.msra.mxu0 0.0
        %1628 = vmatprep.subr.mxu0 0.0
        %1629 = vmatpush1.xpose.msra.mxu0 0.0
        %1630 = vmatprep.subr.mxu0 0.0
        %1631 = vmatpush1.xpose.msra.mxu0 0.0
        %1632 = vmatprep.subr.mxu0 0.0
        %1633 = vmatpush1.xpose.msra.mxu0 0.0
        %1634 = vmatprep.subr.mxu0 0.0
        %1635 = vmatpush1.xpose.msra.mxu0 0.0
        %1636 = vmatprep.subr.mxu0 0.0
        %1637 = vmatpush1.xpose.msra.mxu0 0.0
        %1638 = vmatprep.subr.mxu0 0.0
        %1639 = vmatpush1.xpose.msra.mxu0 0.0
        %1640 = vmatprep.subr.mxu0 0.0
        %1641 = vmatpush1.xpose.msra.mxu0 0.0
        %1642 = vmatprep.subr.mxu0 0.0
        %1643 = vmatpush1.xpose.msra.mxu0 0.0
        %1644 = vmatprep.subr.mxu0 0.0
        %1645 = vmatpush1.xpose.msra.mxu0 0.0
        %1646 = vmatprep.subr.mxu0 0.0
        %1647 = vmatpush1.xpose.msra.mxu0 0.0
        %1648 = vmatprep.subr.mxu0 0.0
        %1649 = vmatpush1.xpose.msra.mxu0 0.0
        %1650 = vmatprep.subr.mxu0 0.0
        %1651 = vmatpush1.xpose.msra.mxu0 0.0
        %1652 = vmatprep.subr.mxu0 0.0
        %1653 = vmatpush1.xpose.msra.mxu0 %v1620
        %1654 = vmatprep.subr.mxu0 0.0
        %1655 = vmatpush2.xpose.msra.mxu0 0.0
        %1656 = vmatprep.subr.mxu0 0.0
        %1657 = vmatpush2.xpose.msra.mxu0 0.0
        %1658 = vmatprep.subr.mxu0 0.0
        %1659 = vmatpush2.xpose.msra.mxu0 0.0
        %1660 = vmatprep.subr.mxu0 0.0
        %1661 = vmatpush2.xpose.msra.mxu0 0.0
        %1662 = vmatprep.subr.mxu0 0.0
        %1663 = vmatpush2.xpose.msra.mxu0 0.0
        %1664 = vmatprep.subr.mxu0 0.0
        %1665 = vmatpush2.xpose.msra.mxu0 0.0
        %1666 = vmatprep.subr.mxu0 0.0
        %1667 = vmatpush2.xpose.msra.mxu0 0.0
        %1668 = vmatprep.subr.mxu0 0.0
        %1669 = vmatpush2.xpose.msra.mxu0 0.0
        %1670 = vmatprep.subr.mxu0 0.0
        %1671 = vmatpush2.xpose.msra.mxu0 0.0
        %1672 = vmatprep.subr.mxu0 0.0
        %1673 = vmatpush2.xpose.msra.mxu0 0.0
        %1674 = vmatprep.subr.mxu0 0.0
        %1675 = vmatpush2.xpose.msra.mxu0 0.0
        %1676 = vmatprep.subr.mxu0 0.0
        %1677 = vmatpush2.xpose.msra.mxu0 0.0
        %1678 = vmatprep.subr.mxu0 0.0
        %1679 = vmatpush2.xpose.msra.mxu0 0.0
        %1680 = vmatprep.subr.mxu0 0.0
        %1681 = vmatpush2.xpose.msra.mxu0 0.0
        %1682 = vmatprep.subr.mxu0 0.0
        %1683 = vmatpush2.xpose.msra.mxu0 0.0
        %1684 = vmatprep.subr.mxu0 0.0
        %1685 = vmatpush2.xpose.msra.mxu0 0.0
        %1686 = vmatprep.mubr.f32.mxu0 0.0
        %1687 = vmatmul.mubr.f32.gmra.mxu0 %v1617
        %v1688 = vpop.f32.mrf.mxu0
        %v1689 = vadd.f32 0.0, %v1688
        %v1690 = vpop.f32.mrf.mxu0
        %1691 = vdwg.mxu0
        %v1693 = vsel %vm670, %v1076, 0
        %v1696 = vsel %vm670, %v1159, 0
        %1698 = vmatprep.subr.mxu0 0.0
        %1699 = vmatpush1.xpose.msra.mxu0 0.0
        %1700 = vmatprep.subr.mxu0 0.0
        %1701 = vmatpush1.xpose.msra.mxu0 0.0
        %1702 = vmatprep.subr.mxu0 0.0
        %1703 = vmatpush1.xpose.msra.mxu0 0.0
        %1704 = vmatprep.subr.mxu0 0.0
        %1705 = vmatpush1.xpose.msra.mxu0 0.0
        %1706 = vmatprep.subr.mxu0 0.0
        %1707 = vmatpush1.xpose.msra.mxu0 0.0
        %1708 = vmatprep.subr.mxu0 0.0
        %1709 = vmatpush1.xpose.msra.mxu0 0.0
        %1710 = vmatprep.subr.mxu0 0.0
        %1711 = vmatpush1.xpose.msra.mxu0 0.0
        %1712 = vmatprep.subr.mxu0 0.0
        %1713 = vmatpush1.xpose.msra.mxu0 0.0
        %1714 = vmatprep.subr.mxu0 0.0
        %1715 = vmatpush1.xpose.msra.mxu0 0.0
        %1716 = vmatprep.subr.mxu0 0.0
        %1717 = vmatpush1.xpose.msra.mxu0 0.0
        %1718 = vmatprep.subr.mxu0 0.0
        %1719 = vmatpush1.xpose.msra.mxu0 0.0
        %1720 = vmatprep.subr.mxu0 0.0
        %1721 = vmatpush1.xpose.msra.mxu0 0.0
        %1722 = vmatprep.subr.mxu0 0.0
        %1723 = vmatpush1.xpose.msra.mxu0 0.0
        %1724 = vmatprep.subr.mxu0 0.0
        %1725 = vmatpush1.xpose.msra.mxu0 0.0
        %1726 = vmatprep.subr.mxu0 0.0
        %1727 = vmatpush1.xpose.msra.mxu0 0.0
        %1728 = vmatprep.subr.mxu0 0.0
        %1729 = vmatpush1.xpose.msra.mxu0 %v1696
        %1730 = vmatprep.subr.mxu0 0.0
        %1731 = vmatpush2.xpose.msra.mxu0 0.0
        %1732 = vmatprep.subr.mxu0 0.0
        %1733 = vmatpush2.xpose.msra.mxu0 0.0
        %1734 = vmatprep.subr.mxu0 0.0
        %1735 = vmatpush2.xpose.msra.mxu0 0.0
        %1736 = vmatprep.subr.mxu0 0.0
        %1737 = vmatpush2.xpose.msra.mxu0 0.0
        %1738 = vmatprep.subr.mxu0 0.0
        %1739 = vmatpush2.xpose.msra.mxu0 0.0
        %1740 = vmatprep.subr.mxu0 0.0
        %1741 = vmatpush2.xpose.msra.mxu0 0.0
        %1742 = vmatprep.subr.mxu0 0.0
        %1743 = vmatpush2.xpose.msra.mxu0 0.0
        %1744 = vmatprep.subr.mxu0 0.0
        %1745 = vmatpush2.xpose.msra.mxu0 0.0
        %1746 = vmatprep.subr.mxu0 0.0
        %1747 = vmatpush2.xpose.msra.mxu0 0.0
        %1748 = vmatprep.subr.mxu0 0.0
        %1749 = vmatpush2.xpose.msra.mxu0 0.0
        %1750 = vmatprep.subr.mxu0 0.0
        %1751 = vmatpush2.xpose.msra.mxu0 0.0
        %1752 = vmatprep.subr.mxu0 0.0
        %1753 = vmatpush2.xpose.msra.mxu0 0.0
        %1754 = vmatprep.subr.mxu0 0.0
        %1755 = vmatpush2.xpose.msra.mxu0 0.0
        %1756 = vmatprep.subr.mxu0 0.0
        %1757 = vmatpush2.xpose.msra.mxu0 0.0
        %1758 = vmatprep.subr.mxu0 0.0
        %1759 = vmatpush2.xpose.msra.mxu0 0.0
        %1760 = vmatprep.subr.mxu0 0.0
        %1761 = vmatpush2.xpose.msra.mxu0 0.0
        %1762 = vmatprep.mubr.f32.mxu0 0.0
        %1763 = vmatmul.mubr.f32.gmra.mxu0 %v1693
        %v1764 = vpop.f32.mrf.mxu0
        %v1765 = vadd.f32 0.0, %v1764
        %v1766 = vpop.f32.mrf.mxu0
        %1767 = vdwg.mxu0
        %1768 = vrot.lane.b32.xlu0 %v741, 120
        %v1769 = vpop.permute.xlu0 %1768
        %1771 = vrot.lane.b32.xlu0 %v741, 112
        %v1772 = vpop.permute.xlu0 %1771
        %1774 = vrot.lane.b32.xlu0 %v741, 104
        %v1775 = vpop.permute.xlu0 %1774
        %v1777 = vcombine.low %v741, %v1772
        %v1778 = vcombine.high %v741, %v1772
        %v1780 = vunpack.c.l.s4 1983009808
        %v1781 = vunpack.c.0.s8 %v1780
        %v1782 = vlaneseq
        %v1783 = vshrl.u32 %v1782, 7
        %v1784 = vsub.s32 %v1781, %v1783
        %v1785 = vrot.slane %v1777, %v1784
        %v1787 = vunpack.c.l.s4 1983009808
        %v1788 = vunpack.c.0.s8 %v1787
        %v1789 = vlaneseq
        %v1790 = vshrl.u32 %v1789, 7
        %v1791 = vsub.s32 %v1788, %v1790
        %v1792 = vrot.slane %v1778, %v1791
        %v1793 = vcombine.low %v1769, %v1775
        %v1794 = vcombine.high %v1769, %v1775
        %v1796 = vunpack.c.l.s4 1983009808
        %v1797 = vunpack.c.0.s8 %v1796
        %v1798 = vlaneseq
        %v1799 = vshrl.u32 %v1798, 7
        %v1800 = vsub.s32 %v1797, %v1799
        %v1801 = vrot.slane %v1793, %v1800
        %v1803 = vunpack.c.l.s4 1983009808
        %v1804 = vunpack.c.0.s8 %v1803
        %v1805 = vlaneseq
        %v1806 = vshrl.u32 %v1805, 7
        %v1807 = vsub.s32 %v1804, %v1806
        %v1808 = vrot.slane %v1794, %v1807
        %v1809 = vcombine.low %v1785, %v1801
        %v1810 = vcombine.high %v1785, %v1801
        %v1812 = vunpack.c.l.s4 1934713408
        %v1813 = vunpack.c.0.s8 %v1812
        %v1814 = vlaneseq
        %v1815 = vshrl.u32 %v1814, 7
        %v1816 = vsub.s32 %v1813, %v1815
        %v1817 = vrot.slane %v1809, %v1816
        %v1819 = vunpack.c.l.s4 1934713408
        %v1820 = vunpack.c.0.s8 %v1819
        %v1821 = vlaneseq
        %v1822 = vshrl.u32 %v1821, 7
        %v1823 = vsub.s32 %v1820, %v1822
        %v1824 = vrot.slane %v1810, %v1823
        %v1825 = vcombine.low %v1792, %v1808
        %v1826 = vcombine.high %v1792, %v1808
        %v1828 = vunpack.c.l.s4 1934713408
        %v1829 = vunpack.c.0.s8 %v1828
        %v1830 = vlaneseq
        %v1831 = vshrl.u32 %v1830, 7
        %v1832 = vsub.s32 %v1829, %v1831
        %v1833 = vrot.slane %v1825, %v1832
        %v1835 = vunpack.c.l.s4 1934713408
        %v1836 = vunpack.c.0.s8 %v1835
        %v1837 = vlaneseq
        %v1838 = vshrl.u32 %v1837, 7
        %v1839 = vsub.s32 %v1836, %v1838
        %v1840 = vrot.slane %v1826, %v1839
        %v1841 = vcombine.high %v1817, 0.0
        %v1842 = vcombine.high %v1824, 0.0
        %v1843 = vcombine.high %v1833, 0.0
        %v1844 = vcombine.high %v1840, 0.0
        %v1845 = vcombine.low %v1817, %v1824
        %v1847 = vunpack.c.l.s4 1983009808
        %v1848 = vunpack.c.0.s8 %v1847
        %v1849 = vlaneseq
        %v1850 = vshrl.u32 %v1849, 7
        %v1851 = vsub.s32 %v1848, %v1850
        %v1852 = vrot.slane %v1845, %v1851
        %v1853 = vcombine.low %v1841, %v1842
        %v1855 = vunpack.c.l.s4 1983009808
        %v1856 = vunpack.c.0.s8 %v1855
        %v1857 = vlaneseq
        %v1858 = vshrl.u32 %v1857, 7
        %v1859 = vsub.s32 %v1856, %v1858
        %v1860 = vrot.slane %v1853, %v1859
        %v1861 = vcombine.low %v1833, %v1840
        %v1863 = vunpack.c.l.s4 1983009808
        %v1864 = vunpack.c.0.s8 %v1863
        %v1865 = vlaneseq
        %v1866 = vshrl.u32 %v1865, 7
        %v1867 = vsub.s32 %v1864, %v1866
        %v1868 = vrot.slane %v1861, %v1867
        %v1869 = vcombine.low %v1843, %v1844
        %v1871 = vunpack.c.l.s4 1983009808
        %v1872 = vunpack.c.0.s8 %v1871
        %v1873 = vlaneseq
        %v1874 = vshrl.u32 %v1873, 7
        %v1875 = vsub.s32 %v1872, %v1874
        %v1876 = vrot.slane %v1869, %v1875
        %v1877 = vcombine.low %v1852, %v1860
        %v1878 = vcombine.high %v1852, %v1860
        %v1880 = vunpack.c.l.s4 1934713408
        %v1881 = vunpack.c.0.s8 %v1880
        %v1882 = vlaneseq
        %v1883 = vshrl.u32 %v1882, 7
        %v1884 = vsub.s32 %v1881, %v1883
        %v1885 = vrot.slane %v1877, %v1884
        %v1887 = vunpack.c.l.s4 1934713408
        %v1888 = vunpack.c.0.s8 %v1887
        %v1889 = vlaneseq
        %v1890 = vshrl.u32 %v1889, 7
        %v1891 = vsub.s32 %v1888, %v1890
        %v1892 = vrot.slane %v1878, %v1891
        %v1893 = vcombine.low %v1868, %v1876
        %v1894 = vcombine.high %v1868, %v1876
        %v1896 = vunpack.c.l.s4 1934713408
        %v1897 = vunpack.c.0.s8 %v1896
        %v1898 = vlaneseq
        %v1899 = vshrl.u32 %v1898, 7
        %v1900 = vsub.s32 %v1897, %v1899
        %v1901 = vrot.slane %v1893, %v1900
        %v1903 = vunpack.c.l.s4 1934713408
        %v1904 = vunpack.c.0.s8 %v1903
        %v1905 = vlaneseq
        %v1906 = vshrl.u32 %v1905, 7
        %v1907 = vsub.s32 %v1904, %v1906
        %v1908 = vrot.slane %v1894, %v1907
        %v1909 = vcombine.low %v1885, %v1901
        %v1910 = vcombine.high %v1885, %v1901
        %v1911 = vcombine.low %v1892, %v1908
        %v1912 = vcombine.high %v1892, %v1908
        %1914 = vrot.lane.b32.xlu0 %v835, 120
        %v1915 = vpop.permute.xlu0 %1914
        %1917 = vrot.lane.b32.xlu0 %v835, 112
        %v1918 = vpop.permute.xlu0 %1917
        %1920 = vrot.lane.b32.xlu0 %v835, 104
        %v1921 = vpop.permute.xlu0 %1920
        %v1923 = vcombine.low %v835, %v1918
        %v1924 = vcombine.high %v835, %v1918
        %v1926 = vunpack.c.l.s4 1983009808
        %v1927 = vunpack.c.0.s8 %v1926
        %v1928 = vlaneseq
        %v1929 = vshrl.u32 %v1928, 7
        %v1930 = vsub.s32 %v1927, %v1929
        %v1931 = vrot.slane %v1923, %v1930
        %v1933 = vunpack.c.l.s4 1983009808
        %v1934 = vunpack.c.0.s8 %v1933
        %v1935 = vlaneseq
        %v1936 = vshrl.u32 %v1935, 7
        %v1937 = vsub.s32 %v1934, %v1936
        %v1938 = vrot.slane %v1924, %v1937
        %v1939 = vcombine.low %v1915, %v1921
        %v1940 = vcombine.high %v1915, %v1921
        %v1942 = vunpack.c.l.s4 1983009808
        %v1943 = vunpack.c.0.s8 %v1942
        %v1944 = vlaneseq
        %v1945 = vshrl.u32 %v1944, 7
        %v1946 = vsub.s32 %v1943, %v1945
        %v1947 = vrot.slane %v1939, %v1946
        %v1949 = vunpack.c.l.s4 1983009808
        %v1950 = vunpack.c.0.s8 %v1949
        %v1951 = vlaneseq
        %v1952 = vshrl.u32 %v1951, 7
        %v1953 = vsub.s32 %v1950, %v1952
        %v1954 = vrot.slane %v1940, %v1953
        %v1955 = vcombine.low %v1931, %v1947
        %v1956 = vcombine.high %v1931, %v1947
        %v1958 = vunpack.c.l.s4 1934713408
        %v1959 = vunpack.c.0.s8 %v1958
        %v1960 = vlaneseq
        %v1961 = vshrl.u32 %v1960, 7
        %v1962 = vsub.s32 %v1959, %v1961
        %v1963 = vrot.slane %v1955, %v1962
        %v1965 = vunpack.c.l.s4 1934713408
        %v1966 = vunpack.c.0.s8 %v1965
        %v1967 = vlaneseq
        %v1968 = vshrl.u32 %v1967, 7
        %v1969 = vsub.s32 %v1966, %v1968
        %v1970 = vrot.slane %v1956, %v1969
        %v1971 = vcombine.low %v1938, %v1954
        %v1972 = vcombine.high %v1938, %v1954
        %v1974 = vunpack.c.l.s4 1934713408
        %v1975 = vunpack.c.0.s8 %v1974
        %v1976 = vlaneseq
        %v1977 = vshrl.u32 %v1976, 7
        %v1978 = vsub.s32 %v1975, %v1977
        %v1979 = vrot.slane %v1971, %v1978
        %v1981 = vunpack.c.l.s4 1934713408
        %v1982 = vunpack.c.0.s8 %v1981
        %v1983 = vlaneseq
        %v1984 = vshrl.u32 %v1983, 7
        %v1985 = vsub.s32 %v1982, %v1984
        %v1986 = vrot.slane %v1972, %v1985
        %v1987 = vcombine.high %v1963, 0.0
        %v1988 = vcombine.high %v1970, 0.0
        %v1989 = vcombine.high %v1979, 0.0
        %v1990 = vcombine.high %v1986, 0.0
        %v1991 = vcombine.low %v1963, %v1970
        %v1993 = vunpack.c.l.s4 1983009808
        %v1994 = vunpack.c.0.s8 %v1993
        %v1995 = vlaneseq
        %v1996 = vshrl.u32 %v1995, 7
        %v1997 = vsub.s32 %v1994, %v1996
        %v1998 = vrot.slane %v1991, %v1997
        %v1999 = vcombine.low %v1987, %v1988
        %v2001 = vunpack.c.l.s4 1983009808
        %v2002 = vunpack.c.0.s8 %v2001
        %v2003 = vlaneseq
        %v2004 = vshrl.u32 %v2003, 7
        %v2005 = vsub.s32 %v2002, %v2004
        %v2006 = vrot.slane %v1999, %v2005
        %v2007 = vcombine.low %v1979, %v1986
        %v2009 = vunpack.c.l.s4 1983009808
        %v2010 = vunpack.c.0.s8 %v2009
        %v2011 = vlaneseq
        %v2012 = vshrl.u32 %v2011, 7
        %v2013 = vsub.s32 %v2010, %v2012
        %v2014 = vrot.slane %v2007, %v2013
        %v2015 = vcombine.low %v1989, %v1990
        %v2017 = vunpack.c.l.s4 1983009808
        %v2018 = vunpack.c.0.s8 %v2017
        %v2019 = vlaneseq
        %v2020 = vshrl.u32 %v2019, 7
        %v2021 = vsub.s32 %v2018, %v2020
        %v2022 = vrot.slane %v2015, %v2021
        %v2023 = vcombine.low %v1998, %v2006
        %v2024 = vcombine.high %v1998, %v2006
        %v2026 = vunpack.c.l.s4 1934713408
        %v2027 = vunpack.c.0.s8 %v2026
        %v2028 = vlaneseq
        %v2029 = vshrl.u32 %v2028, 7
        %v2030 = vsub.s32 %v2027, %v2029
        %v2031 = vrot.slane %v2023, %v2030
        %v2033 = vunpack.c.l.s4 1934713408
        %v2034 = vunpack.c.0.s8 %v2033
        %v2035 = vlaneseq
        %v2036 = vshrl.u32 %v2035, 7
        %v2037 = vsub.s32 %v2034, %v2036
        %v2038 = vrot.slane %v2024, %v2037
        %v2039 = vcombine.low %v2014, %v2022
        %v2040 = vcombine.high %v2014, %v2022
        %v2042 = vunpack.c.l.s4 1934713408
        %v2043 = vunpack.c.0.s8 %v2042
        %v2044 = vlaneseq
        %v2045 = vshrl.u32 %v2044, 7
        %v2046 = vsub.s32 %v2043, %v2045
        %v2047 = vrot.slane %v2039, %v2046
        %v2049 = vunpack.c.l.s4 1934713408
        %v2050 = vunpack.c.0.s8 %v2049
        %v2051 = vlaneseq
        %v2052 = vshrl.u32 %v2051, 7
        %v2053 = vsub.s32 %v2050, %v2052
        %v2054 = vrot.slane %v2040, %v2053
        %v2055 = vcombine.low %v2031, %v2047
        %v2056 = vcombine.high %v2031, %v2047
        %v2057 = vcombine.low %v2038, %v2054
        %v2058 = vcombine.high %v2038, %v2054
        %2060 = vrot.lane.b32.xlu0 %v919, 120
        %v2061 = vpop.permute.xlu0 %2060
        %2063 = vrot.lane.b32.xlu0 %v919, 112
        %v2064 = vpop.permute.xlu0 %2063
        %2066 = vrot.lane.b32.xlu0 %v919, 104
        %v2067 = vpop.permute.xlu0 %2066
        %v2069 = vcombine.low %v919, %v2064
        %v2070 = vcombine.high %v919, %v2064
        %v2072 = vunpack.c.l.s4 1983009808
        %v2073 = vunpack.c.0.s8 %v2072
        %v2074 = vlaneseq
        %v2075 = vshrl.u32 %v2074, 7
        %v2076 = vsub.s32 %v2073, %v2075
        %v2077 = vrot.slane %v2069, %v2076
        %v2079 = vunpack.c.l.s4 1983009808
        %v2080 = vunpack.c.0.s8 %v2079
        %v2081 = vlaneseq
        %v2082 = vshrl.u32 %v2081, 7
        %v2083 = vsub.s32 %v2080, %v2082
        %v2084 = vrot.slane %v2070, %v2083
        %v2085 = vcombine.low %v2061, %v2067
        %v2086 = vcombine.high %v2061, %v2067
        %v2088 = vunpack.c.l.s4 1983009808
        %v2089 = vunpack.c.0.s8 %v2088
        %v2090 = vlaneseq
        %v2091 = vshrl.u32 %v2090, 7
        %v2092 = vsub.s32 %v2089, %v2091
        %v2093 = vrot.slane %v2085, %v2092
        %v2095 = vunpack.c.l.s4 1983009808
        %v2096 = vunpack.c.0.s8 %v2095
        %v2097 = vlaneseq
        %v2098 = vshrl.u32 %v2097, 7
        %v2099 = vsub.s32 %v2096, %v2098
        %v2100 = vrot.slane %v2086, %v2099
        %v2101 = vcombine.low %v2077, %v2093
        %v2102 = vcombine.high %v2077, %v2093
        %v2104 = vunpack.c.l.s4 1934713408
        %v2105 = vunpack.c.0.s8 %v2104
        %v2106 = vlaneseq
        %v2107 = vshrl.u32 %v2106, 7
        %v2108 = vsub.s32 %v2105, %v2107
        %v2109 = vrot.slane %v2101, %v2108
        %v2111 = vunpack.c.l.s4 1934713408
        %v2112 = vunpack.c.0.s8 %v2111
        %v2113 = vlaneseq
        %v2114 = vshrl.u32 %v2113, 7
        %v2115 = vsub.s32 %v2112, %v2114
        %v2116 = vrot.slane %v2102, %v2115
        %v2117 = vcombine.low %v2084, %v2100
        %v2118 = vcombine.high %v2084, %v2100
        %v2120 = vunpack.c.l.s4 1934713408
        %v2121 = vunpack.c.0.s8 %v2120
        %v2122 = vlaneseq
        %v2123 = vshrl.u32 %v2122, 7
        %v2124 = vsub.s32 %v2121, %v2123
        %v2125 = vrot.slane %v2117, %v2124
        %v2127 = vunpack.c.l.s4 1934713408
        %v2128 = vunpack.c.0.s8 %v2127
        %v2129 = vlaneseq
        %v2130 = vshrl.u32 %v2129, 7
        %v2131 = vsub.s32 %v2128, %v2130
        %v2132 = vrot.slane %v2118, %v2131
        %v2133 = vcombine.high %v2109, 0.0
        %v2134 = vcombine.high %v2116, 0.0
        %v2135 = vcombine.high %v2125, 0.0
        %v2136 = vcombine.high %v2132, 0.0
        %v2137 = vcombine.low %v2109, %v2116
        %v2139 = vunpack.c.l.s4 1983009808
        %v2140 = vunpack.c.0.s8 %v2139
        %v2141 = vlaneseq
        %v2142 = vshrl.u32 %v2141, 7
        %v2143 = vsub.s32 %v2140, %v2142
        %v2144 = vrot.slane %v2137, %v2143
        %v2145 = vcombine.low %v2133, %v2134
        %v2147 = vunpack.c.l.s4 1983009808
        %v2148 = vunpack.c.0.s8 %v2147
        %v2149 = vlaneseq
        %v2150 = vshrl.u32 %v2149, 7
        %v2151 = vsub.s32 %v2148, %v2150
        %v2152 = vrot.slane %v2145, %v2151
        %v2153 = vcombine.low %v2125, %v2132
        %v2155 = vunpack.c.l.s4 1983009808
        %v2156 = vunpack.c.0.s8 %v2155
        %v2157 = vlaneseq
        %v2158 = vshrl.u32 %v2157, 7
        %v2159 = vsub.s32 %v2156, %v2158
        %v2160 = vrot.slane %v2153, %v2159
        %v2161 = vcombine.low %v2135, %v2136
        %v2163 = vunpack.c.l.s4 1983009808
        %v2164 = vunpack.c.0.s8 %v2163
        %v2165 = vlaneseq
        %v2166 = vshrl.u32 %v2165, 7
        %v2167 = vsub.s32 %v2164, %v2166
        %v2168 = vrot.slane %v2161, %v2167
        %v2169 = vcombine.low %v2144, %v2152
        %v2170 = vcombine.high %v2144, %v2152
        %v2172 = vunpack.c.l.s4 1934713408
        %v2173 = vunpack.c.0.s8 %v2172
        %v2174 = vlaneseq
        %v2175 = vshrl.u32 %v2174, 7
        %v2176 = vsub.s32 %v2173, %v2175
        %v2177 = vrot.slane %v2169, %v2176
        %v2179 = vunpack.c.l.s4 1934713408
        %v2180 = vunpack.c.0.s8 %v2179
        %v2181 = vlaneseq
        %v2182 = vshrl.u32 %v2181, 7
        %v2183 = vsub.s32 %v2180, %v2182
        %v2184 = vrot.slane %v2170, %v2183
        %v2185 = vcombine.low %v2160, %v2168
        %v2186 = vcombine.high %v2160, %v2168
        %v2188 = vunpack.c.l.s4 1934713408
        %v2189 = vunpack.c.0.s8 %v2188
        %v2190 = vlaneseq
        %v2191 = vshrl.u32 %v2190, 7
        %v2192 = vsub.s32 %v2189, %v2191
        %v2193 = vrot.slane %v2185, %v2192
        %v2195 = vunpack.c.l.s4 1934713408
        %v2196 = vunpack.c.0.s8 %v2195
        %v2197 = vlaneseq
        %v2198 = vshrl.u32 %v2197, 7
        %v2199 = vsub.s32 %v2196, %v2198
        %v2200 = vrot.slane %v2186, %v2199
        %v2201 = vcombine.low %v2177, %v2193
        %v2202 = vcombine.high %v2177, %v2193
        %v2203 = vcombine.low %v2184, %v2200
        %v2204 = vcombine.high %v2184, %v2200
        %v2205 = vcombine.low %v1233, %v1385
        %v2207 = vunpack.c.l.s4 1983009808
        %v2208 = vunpack.c.0.s8 %v2207
        %v2209 = vlaneseq
        %v2210 = vshrl.u32 %v2209, 7
        %v2211 = vsub.s32 %v2208, %v2210
        %v2212 = vrot.slane %v2205, %v2211
        %v2213 = vcombine.low %v1309, %v1461
        %v2215 = vunpack.c.l.s4 1983009808
        %v2216 = vunpack.c.0.s8 %v2215
        %v2217 = vlaneseq
        %v2218 = vshrl.u32 %v2217, 7
        %v2219 = vsub.s32 %v2216, %v2218
        %v2220 = vrot.slane %v2213, %v2219
        %v2221 = vcombine.low %v1537, %v1689
        %v2223 = vunpack.c.l.s4 1983009808
        %v2224 = vunpack.c.0.s8 %v2223
        %v2225 = vlaneseq
        %v2226 = vshrl.u32 %v2225, 7
        %v2227 = vsub.s32 %v2224, %v2226
        %v2228 = vrot.slane %v2221, %v2227
        %v2229 = vcombine.low %v1613, %v1765
        %v2231 = vunpack.c.l.s4 1983009808
        %v2232 = vunpack.c.0.s8 %v2231
        %v2233 = vlaneseq
        %v2234 = vshrl.u32 %v2233, 7
        %v2235 = vsub.s32 %v2232, %v2234
        %v2236 = vrot.slane %v2229, %v2235
        %v2237 = vcombine.low %v2212, %v2220
        %v2238 = vcombine.high %v2212, %v2220
        %v2240 = vunpack.c.l.s4 1934713408
        %v2241 = vunpack.c.0.s8 %v2240
        %v2242 = vlaneseq
        %v2243 = vshrl.u32 %v2242, 7
        %v2244 = vsub.s32 %v2241, %v2243
        %v2245 = vrot.slane %v2237, %v2244
        %v2247 = vunpack.c.l.s4 1934713408
        %v2248 = vunpack.c.0.s8 %v2247
        %v2249 = vlaneseq
        %v2250 = vshrl.u32 %v2249, 7
        %v2251 = vsub.s32 %v2248, %v2250
        %v2252 = vrot.slane %v2238, %v2251
        %v2253 = vcombine.low %v2228, %v2236
        %v2254 = vcombine.high %v2228, %v2236
        %v2256 = vunpack.c.l.s4 1934713408
        %v2257 = vunpack.c.0.s8 %v2256
        %v2258 = vlaneseq
        %v2259 = vshrl.u32 %v2258, 7
        %v2260 = vsub.s32 %v2257, %v2259
        %v2261 = vrot.slane %v2253, %v2260
        %v2263 = vunpack.c.l.s4 1934713408
        %v2264 = vunpack.c.0.s8 %v2263
        %v2265 = vlaneseq
        %v2266 = vshrl.u32 %v2265, 7
        %v2267 = vsub.s32 %v2264, %v2266
        %v2268 = vrot.slane %v2254, %v2267
        %v2269 = vcombine.low %v2245, %v2261
        %v2270 = vcombine.high %v2245, %v2261
        %v2271 = vcombine.low %v2252, %v2268
        %v2272 = vcombine.high %v2252, %v2268
        %vm2273 = vcmask 64512
        %v2275 = vsel %vm2273, %v1909, 0
        %v2278 = vsel %vm2273, %v2055, 0
        %2280 = vmatprep.subr.mxu0 0.0
        %2281 = vmatpush1.xpose.msra.mxu0 0.0
        %2282 = vmatprep.subr.mxu0 0.0
        %2283 = vmatpush1.xpose.msra.mxu0 0.0
        %2284 = vmatprep.subr.mxu0 0.0
        %2285 = vmatpush1.xpose.msra.mxu0 0.0
        %2286 = vmatprep.subr.mxu0 0.0
        %2287 = vmatpush1.xpose.msra.mxu0 0.0
        %2288 = vmatprep.subr.mxu0 0.0
        %2289 = vmatpush1.xpose.msra.mxu0 0.0
        %2290 = vmatprep.subr.mxu0 0.0
        %2291 = vmatpush1.xpose.msra.mxu0 0.0
        %2292 = vmatprep.subr.mxu0 0.0
        %2293 = vmatpush1.xpose.msra.mxu0 0.0
        %2294 = vmatprep.subr.mxu0 0.0
        %2295 = vmatpush1.xpose.msra.mxu0 0.0
        %2296 = vmatprep.subr.mxu0 0.0
        %2297 = vmatpush1.xpose.msra.mxu0 0.0
        %2298 = vmatprep.subr.mxu0 0.0
        %2299 = vmatpush1.xpose.msra.mxu0 0.0
        %2300 = vmatprep.subr.mxu0 0.0
        %2301 = vmatpush1.xpose.msra.mxu0 0.0
        %2302 = vmatprep.subr.mxu0 0.0
        %2303 = vmatpush1.xpose.msra.mxu0 0.0
        %2304 = vmatprep.subr.mxu0 0.0
        %2305 = vmatpush1.xpose.msra.mxu0 0.0
        %2306 = vmatprep.subr.mxu0 0.0
        %2307 = vmatpush1.xpose.msra.mxu0 0.0
        %2308 = vmatprep.subr.mxu0 0.0
        %2309 = vmatpush1.xpose.msra.mxu0 0.0
        %2310 = vmatprep.subr.mxu0 0.0
        %2311 = vmatpush1.xpose.msra.mxu0 %v2278
        %2312 = vmatprep.subr.mxu0 0.0
        %2313 = vmatpush2.xpose.msra.mxu0 0.0
        %2314 = vmatprep.subr.mxu0 0.0
        %2315 = vmatpush2.xpose.msra.mxu0 0.0
        %2316 = vmatprep.subr.mxu0 0.0
        %2317 = vmatpush2.xpose.msra.mxu0 0.0
        %2318 = vmatprep.subr.mxu0 0.0
        %2319 = vmatpush2.xpose.msra.mxu0 0.0
        %2320 = vmatprep.subr.mxu0 0.0
        %2321 = vmatpush2.xpose.msra.mxu0 0.0
        %2322 = vmatprep.subr.mxu0 0.0
        %2323 = vmatpush2.xpose.msra.mxu0 0.0
        %2324 = vmatprep.subr.mxu0 0.0
        %2325 = vmatpush2.xpose.msra.mxu0 0.0
        %2326 = vmatprep.subr.mxu0 0.0
        %2327 = vmatpush2.xpose.msra.mxu0 0.0
        %2328 = vmatprep.subr.mxu0 0.0
        %2329 = vmatpush2.xpose.msra.mxu0 0.0
        %2330 = vmatprep.subr.mxu0 0.0
        %2331 = vmatpush2.xpose.msra.mxu0 0.0
        %2332 = vmatprep.subr.mxu0 0.0
        %2333 = vmatpush2.xpose.msra.mxu0 0.0
        %2334 = vmatprep.subr.mxu0 0.0
        %2335 = vmatpush2.xpose.msra.mxu0 0.0
        %2336 = vmatprep.subr.mxu0 0.0
        %2337 = vmatpush2.xpose.msra.mxu0 0.0
        %2338 = vmatprep.subr.mxu0 0.0
        %2339 = vmatpush2.xpose.msra.mxu0 0.0
        %2340 = vmatprep.subr.mxu0 0.0
        %2341 = vmatpush2.xpose.msra.mxu0 0.0
        %2342 = vmatprep.subr.mxu0 0.0
        %2343 = vmatpush2.xpose.msra.mxu0 0.0
        %2344 = vmatprep.mubr.f32.mxu0 0.0
        %2345 = vmatmul.mubr.f32.gmra.mxu0 %v2275
        %v2346 = vpop.f32.mrf.mxu0
        %v2347 = vadd.f32 %v2269, %v2346
        %v2348 = vpop.f32.mrf.mxu0
        %2349 = vdwg.mxu0
        %v2351 = vsel %vm2273, %v1910, 0
        %v2354 = vsel %vm2273, %v2056, 0
        %2356 = vmatprep.subr.mxu0 0.0
        %2357 = vmatpush1.xpose.msra.mxu0 0.0
        %2358 = vmatprep.subr.mxu0 0.0
        %2359 = vmatpush1.xpose.msra.mxu0 0.0
        %2360 = vmatprep.subr.mxu0 0.0
        %2361 = vmatpush1.xpose.msra.mxu0 0.0
        %2362 = vmatprep.subr.mxu0 0.0
        %2363 = vmatpush1.xpose.msra.mxu0 0.0
        %2364 = vmatprep.subr.mxu0 0.0
        %2365 = vmatpush1.xpose.msra.mxu0 0.0
        %2366 = vmatprep.subr.mxu0 0.0
        %2367 = vmatpush1.xpose.msra.mxu0 0.0
        %2368 = vmatprep.subr.mxu0 0.0
        %2369 = vmatpush1.xpose.msra.mxu0 0.0
        %2370 = vmatprep.subr.mxu0 0.0
        %2371 = vmatpush1.xpose.msra.mxu0 0.0
        %2372 = vmatprep.subr.mxu0 0.0
        %2373 = vmatpush1.xpose.msra.mxu0 0.0
        %2374 = vmatprep.subr.mxu0 0.0
        %2375 = vmatpush1.xpose.msra.mxu0 0.0
        %2376 = vmatprep.subr.mxu0 0.0
        %2377 = vmatpush1.xpose.msra.mxu0 0.0
        %2378 = vmatprep.subr.mxu0 0.0
        %2379 = vmatpush1.xpose.msra.mxu0 0.0
        %2380 = vmatprep.subr.mxu0 0.0
        %2381 = vmatpush1.xpose.msra.mxu0 0.0
        %2382 = vmatprep.subr.mxu0 0.0
        %2383 = vmatpush1.xpose.msra.mxu0 0.0
        %2384 = vmatprep.subr.mxu0 0.0
        %2385 = vmatpush1.xpose.msra.mxu0 0.0
        %2386 = vmatprep.subr.mxu0 0.0
        %2387 = vmatpush1.xpose.msra.mxu0 %v2354
        %2388 = vmatprep.subr.mxu0 0.0
        %2389 = vmatpush2.xpose.msra.mxu0 0.0
        %2390 = vmatprep.subr.mxu0 0.0
        %2391 = vmatpush2.xpose.msra.mxu0 0.0
        %2392 = vmatprep.subr.mxu0 0.0
        %2393 = vmatpush2.xpose.msra.mxu0 0.0
        %2394 = vmatprep.subr.mxu0 0.0
        %2395 = vmatpush2.xpose.msra.mxu0 0.0
        %2396 = vmatprep.subr.mxu0 0.0
        %2397 = vmatpush2.xpose.msra.mxu0 0.0
        %2398 = vmatprep.subr.mxu0 0.0
        %2399 = vmatpush2.xpose.msra.mxu0 0.0
        %2400 = vmatprep.subr.mxu0 0.0
        %2401 = vmatpush2.xpose.msra.mxu0 0.0
        %2402 = vmatprep.subr.mxu0 0.0
        %2403 = vmatpush2.xpose.msra.mxu0 0.0
        %2404 = vmatprep.subr.mxu0 0.0
        %2405 = vmatpush2.xpose.msra.mxu0 0.0
        %2406 = vmatprep.subr.mxu0 0.0
        %2407 = vmatpush2.xpose.msra.mxu0 0.0
        %2408 = vmatprep.subr.mxu0 0.0
        %2409 = vmatpush2.xpose.msra.mxu0 0.0
        %2410 = vmatprep.subr.mxu0 0.0
        %2411 = vmatpush2.xpose.msra.mxu0 0.0
        %2412 = vmatprep.subr.mxu0 0.0
        %2413 = vmatpush2.xpose.msra.mxu0 0.0
        %2414 = vmatprep.subr.mxu0 0.0
        %2415 = vmatpush2.xpose.msra.mxu0 0.0
        %2416 = vmatprep.subr.mxu0 0.0
        %2417 = vmatpush2.xpose.msra.mxu0 0.0
        %2418 = vmatprep.subr.mxu0 0.0
        %2419 = vmatpush2.xpose.msra.mxu0 0.0
        %2420 = vmatprep.mubr.f32.mxu0 0.0
        %2421 = vmatmul.mubr.f32.gmra.mxu0 %v2351
        %v2422 = vpop.f32.mrf.mxu0
        %v2423 = vadd.f32 %v2270, %v2422
        %v2424 = vpop.f32.mrf.mxu0
        %2425 = vdwg.mxu0
        %v2427 = vsel %vm2273, %v1911, 0
        %v2430 = vsel %vm2273, %v2057, 0
        %2432 = vmatprep.subr.mxu0 0.0
        %2433 = vmatpush1.xpose.msra.mxu0 0.0
        %2434 = vmatprep.subr.mxu0 0.0
        %2435 = vmatpush1.xpose.msra.mxu0 0.0
        %2436 = vmatprep.subr.mxu0 0.0
        %2437 = vmatpush1.xpose.msra.mxu0 0.0
        %2438 = vmatprep.subr.mxu0 0.0
        %2439 = vmatpush1.xpose.msra.mxu0 0.0
        %2440 = vmatprep.subr.mxu0 0.0
        %2441 = vmatpush1.xpose.msra.mxu0 0.0
        %2442 = vmatprep.subr.mxu0 0.0
        %2443 = vmatpush1.xpose.msra.mxu0 0.0
        %2444 = vmatprep.subr.mxu0 0.0
        %2445 = vmatpush1.xpose.msra.mxu0 0.0
        %2446 = vmatprep.subr.mxu0 0.0
        %2447 = vmatpush1.xpose.msra.mxu0 0.0
        %2448 = vmatprep.subr.mxu0 0.0
        %2449 = vmatpush1.xpose.msra.mxu0 0.0
        %2450 = vmatprep.subr.mxu0 0.0
        %2451 = vmatpush1.xpose.msra.mxu0 0.0
        %2452 = vmatprep.subr.mxu0 0.0
        %2453 = vmatpush1.xpose.msra.mxu0 0.0
        %2454 = vmatprep.subr.mxu0 0.0
        %2455 = vmatpush1.xpose.msra.mxu0 0.0
        %2456 = vmatprep.subr.mxu0 0.0
        %2457 = vmatpush1.xpose.msra.mxu0 0.0
        %2458 = vmatprep.subr.mxu0 0.0
        %2459 = vmatpush1.xpose.msra.mxu0 0.0
        %2460 = vmatprep.subr.mxu0 0.0
        %2461 = vmatpush1.xpose.msra.mxu0 0.0
        %2462 = vmatprep.subr.mxu0 0.0
        %2463 = vmatpush1.xpose.msra.mxu0 %v2430
        %2464 = vmatprep.subr.mxu0 0.0
        %2465 = vmatpush2.xpose.msra.mxu0 0.0
        %2466 = vmatprep.subr.mxu0 0.0
        %2467 = vmatpush2.xpose.msra.mxu0 0.0
        %2468 = vmatprep.subr.mxu0 0.0
        %2469 = vmatpush2.xpose.msra.mxu0 0.0
        %2470 = vmatprep.subr.mxu0 0.0
        %2471 = vmatpush2.xpose.msra.mxu0 0.0
        %2472 = vmatprep.subr.mxu0 0.0
        %2473 = vmatpush2.xpose.msra.mxu0 0.0
        %2474 = vmatprep.subr.mxu0 0.0
        %2475 = vmatpush2.xpose.msra.mxu0 0.0
        %2476 = vmatprep.subr.mxu0 0.0
        %2477 = vmatpush2.xpose.msra.mxu0 0.0
        %2478 = vmatprep.subr.mxu0 0.0
        %2479 = vmatpush2.xpose.msra.mxu0 0.0
        %2480 = vmatprep.subr.mxu0 0.0
        %2481 = vmatpush2.xpose.msra.mxu0 0.0
        %2482 = vmatprep.subr.mxu0 0.0
        %2483 = vmatpush2.xpose.msra.mxu0 0.0
        %2484 = vmatprep.subr.mxu0 0.0
        %2485 = vmatpush2.xpose.msra.mxu0 0.0
        %2486 = vmatprep.subr.mxu0 0.0
        %2487 = vmatpush2.xpose.msra.mxu0 0.0
        %2488 = vmatprep.subr.mxu0 0.0
        %2489 = vmatpush2.xpose.msra.mxu0 0.0
        %2490 = vmatprep.subr.mxu0 0.0
        %2491 = vmatpush2.xpose.msra.mxu0 0.0
        %2492 = vmatprep.subr.mxu0 0.0
        %2493 = vmatpush2.xpose.msra.mxu0 0.0
        %2494 = vmatprep.subr.mxu0 0.0
        %2495 = vmatpush2.xpose.msra.mxu0 0.0
        %2496 = vmatprep.mubr.f32.mxu0 0.0
        %2497 = vmatmul.mubr.f32.gmra.mxu0 %v2427
        %v2498 = vpop.f32.mrf.mxu0
        %v2499 = vadd.f32 %v2271, %v2498
        %v2500 = vpop.f32.mrf.mxu0
        %2501 = vdwg.mxu0
        %v2503 = vsel %vm2273, %v1912, 0
        %v2506 = vsel %vm2273, %v2058, 0
        %2508 = vmatprep.subr.mxu0 0.0
        %2509 = vmatpush1.xpose.msra.mxu0 0.0
        %2510 = vmatprep.subr.mxu0 0.0
        %2511 = vmatpush1.xpose.msra.mxu0 0.0
        %2512 = vmatprep.subr.mxu0 0.0
        %2513 = vmatpush1.xpose.msra.mxu0 0.0
        %2514 = vmatprep.subr.mxu0 0.0
        %2515 = vmatpush1.xpose.msra.mxu0 0.0
        %2516 = vmatprep.subr.mxu0 0.0
        %2517 = vmatpush1.xpose.msra.mxu0 0.0
        %2518 = vmatprep.subr.mxu0 0.0
        %2519 = vmatpush1.xpose.msra.mxu0 0.0
        %2520 = vmatprep.subr.mxu0 0.0
        %2521 = vmatpush1.xpose.msra.mxu0 0.0
        %2522 = vmatprep.subr.mxu0 0.0
        %2523 = vmatpush1.xpose.msra.mxu0 0.0
        %2524 = vmatprep.subr.mxu0 0.0
        %2525 = vmatpush1.xpose.msra.mxu0 0.0
        %2526 = vmatprep.subr.mxu0 0.0
        %2527 = vmatpush1.xpose.msra.mxu0 0.0
        %2528 = vmatprep.subr.mxu0 0.0
        %2529 = vmatpush1.xpose.msra.mxu0 0.0
        %2530 = vmatprep.subr.mxu0 0.0
        %2531 = vmatpush1.xpose.msra.mxu0 0.0
        %2532 = vmatprep.subr.mxu0 0.0
        %2533 = vmatpush1.xpose.msra.mxu0 0.0
        %2534 = vmatprep.subr.mxu0 0.0
        %2535 = vmatpush1.xpose.msra.mxu0 0.0
        %2536 = vmatprep.subr.mxu0 0.0
        %2537 = vmatpush1.xpose.msra.mxu0 0.0
        %2538 = vmatprep.subr.mxu0 0.0
        %2539 = vmatpush1.xpose.msra.mxu0 %v2506
        %2540 = vmatprep.subr.mxu0 0.0
        %2541 = vmatpush2.xpose.msra.mxu0 0.0
        %2542 = vmatprep.subr.mxu0 0.0
        %2543 = vmatpush2.xpose.msra.mxu0 0.0
        %2544 = vmatprep.subr.mxu0 0.0
        %2545 = vmatpush2.xpose.msra.mxu0 0.0
        %2546 = vmatprep.subr.mxu0 0.0
        %2547 = vmatpush2.xpose.msra.mxu0 0.0
        %2548 = vmatprep.subr.mxu0 0.0
        %2549 = vmatpush2.xpose.msra.mxu0 0.0
        %2550 = vmatprep.subr.mxu0 0.0
        %2551 = vmatpush2.xpose.msra.mxu0 0.0
        %2552 = vmatprep.subr.mxu0 0.0
        %2553 = vmatpush2.xpose.msra.mxu0 0.0
        %2554 = vmatprep.subr.mxu0 0.0
        %2555 = vmatpush2.xpose.msra.mxu0 0.0
        %2556 = vmatprep.subr.mxu0 0.0
        %2557 = vmatpush2.xpose.msra.mxu0 0.0
        %2558 = vmatprep.subr.mxu0 0.0
        %2559 = vmatpush2.xpose.msra.mxu0 0.0
        %2560 = vmatprep.subr.mxu0 0.0
        %2561 = vmatpush2.xpose.msra.mxu0 0.0
        %2562 = vmatprep.subr.mxu0 0.0
        %2563 = vmatpush2.xpose.msra.mxu0 0.0
        %2564 = vmatprep.subr.mxu0 0.0
        %2565 = vmatpush2.xpose.msra.mxu0 0.0
        %2566 = vmatprep.subr.mxu0 0.0
        %2567 = vmatpush2.xpose.msra.mxu0 0.0
        %2568 = vmatprep.subr.mxu0 0.0
        %2569 = vmatpush2.xpose.msra.mxu0 0.0
        %2570 = vmatprep.subr.mxu0 0.0
        %2571 = vmatpush2.xpose.msra.mxu0 0.0
        %2572 = vmatprep.mubr.f32.mxu0 0.0
        %2573 = vmatmul.mubr.f32.gmra.mxu0 %v2503
        %v2574 = vpop.f32.mrf.mxu0
        %v2575 = vadd.f32 %v2272, %v2574
        %v2576 = vpop.f32.mrf.mxu0
        %2577 = vdwg.mxu0
        %v2578 = vsel %vm2273, %v2347, -inf
        %2579 = vmax.xlane.f32.xlu0 %v2578
        %v2580 = vpop.xlane.xlu0 %2579
        %v2581 = vsel %vm2273, %v2423, -inf
        %2582 = vmax.xlane.f32.xlu0 %v2581
        %v2583 = vpop.xlane.xlu0 %2582
        %v2584 = vsel %vm2273, %v2499, -inf
        %2585 = vmax.xlane.f32.xlu0 %v2584
        %v2586 = vpop.xlane.xlu0 %2585
        %v2587 = vsel %vm2273, %v2575, -inf
        %2588 = vmax.xlane.f32.xlu0 %v2587
        %v2589 = vpop.xlane.xlu0 %2588
        %v2590 = vsub.f32 %v2347, %v2580
        %v2591 = vsub.f32 %v2423, %v2583
        %v2592 = vsub.f32 %v2499, %v2586
        %v2593 = vsub.f32 %v2575, %v2589
        %v2594 = vmul.f32 %v2590, 1.442695
        %v2595 = vpow.pop %v2594
        %v2596 = vmul.f32 %v2591, 1.442695
        %v2597 = vpow.pop %v2596
        %v2598 = vmul.f32 %v2592, 1.442695
        %v2599 = vpow.pop %v2598
        %v2600 = vmul.f32 %v2593, 1.442695
        %v2601 = vpow.pop %v2600
        %v2602 = vsel %vm2273, %v2595, 0.0
        %2603 = vadd.xlane.f32.xlu0 %v2602
        %v2604 = vpop.xlane.xlu0 %2603
        %v2605 = vsel %vm2273, %v2597, 0.0
        %2606 = vadd.xlane.f32.xlu0 %v2605
        %v2607 = vpop.xlane.xlu0 %2606
        %v2608 = vsel %vm2273, %v2599, 0.0
        %2609 = vadd.xlane.f32.xlu0 %v2608
        %v2610 = vpop.xlane.xlu0 %2609
        %v2611 = vsel %vm2273, %v2601, 0.0
        %2612 = vadd.xlane.f32.xlu0 %v2611
        %v2613 = vpop.xlane.xlu0 %2612
        %v2614 = vrcp.pop %v2604
        %v2615 = vmul.f32 %v2595, %v2614
        %v2616 = vrcp.pop %v2607
        %v2617 = vmul.f32 %v2597, %v2616
        %v2618 = vrcp.pop %v2610
        %v2619 = vmul.f32 %v2599, %v2618
        %v2620 = vrcp.pop %v2613
        %v2621 = vmul.f32 %v2601, %v2620
        %v2623 = vsel %vm2273, %v2615, 0
        %2625 = vmatprep.subr.mxu0 0.0
        %2626 = vmatpush1.msra.mxu0 0.0
        %2627 = vmatprep.subr.mxu0 0.0
        %2628 = vmatpush1.msra.mxu0 0.0
        %2629 = vmatprep.subr.mxu0 0.0
        %2630 = vmatpush1.msra.mxu0 0.0
        %2631 = vmatprep.subr.mxu0 0.0
        %2632 = vmatpush1.msra.mxu0 0.0
        %2633 = vmatprep.subr.mxu0 0.0
        %2634 = vmatpush1.msra.mxu0 0.0
        %2635 = vmatprep.subr.mxu0 0.0
        %2636 = vmatpush1.msra.mxu0 0.0
        %2637 = vmatprep.subr.mxu0 0.0
        %2638 = vmatpush1.msra.mxu0 0.0
        %2639 = vmatprep.subr.mxu0 0.0
        %2640 = vmatpush1.msra.mxu0 0.0
        %2641 = vmatprep.subr.mxu0 0.0
        %2642 = vmatpush1.msra.mxu0 0.0
        %2643 = vmatprep.subr.mxu0 0.0
        %2644 = vmatpush1.msra.mxu0 0.0
        %2645 = vmatprep.subr.mxu0 0.0
        %2646 = vmatpush1.msra.mxu0 0.0
        %2647 = vmatprep.subr.mxu0 0.0
        %2648 = vmatpush1.msra.mxu0 0.0
        %2649 = vmatprep.subr.mxu0 0.0
        %2650 = vmatpush1.msra.mxu0 0.0
        %2651 = vmatprep.subr.mxu0 0.0
        %2652 = vmatpush1.msra.mxu0 0.0
        %2653 = vmatprep.subr.mxu0 0.0
        %2654 = vmatpush1.msra.mxu0 0.0
        %2655 = vmatprep.subr.mxu0 0.0
        %2656 = vmatpush1.msra.mxu0 %v2201
        %2657 = vmatprep.subr.mxu0 0.0
        %2658 = vmatpush2.msra.mxu0 0.0
        %2659 = vmatprep.subr.mxu0 0.0
        %2660 = vmatpush2.msra.mxu0 0.0
        %2661 = vmatprep.subr.mxu0 0.0
        %2662 = vmatpush2.msra.mxu0 0.0
        %2663 = vmatprep.subr.mxu0 0.0
        %2664 = vmatpush2.msra.mxu0 0.0
        %2665 = vmatprep.subr.mxu0 0.0
        %2666 = vmatpush2.msra.mxu0 0.0
        %2667 = vmatprep.subr.mxu0 0.0
        %2668 = vmatpush2.msra.mxu0 0.0
        %2669 = vmatprep.subr.mxu0 0.0
        %2670 = vmatpush2.msra.mxu0 0.0
        %2671 = vmatprep.subr.mxu0 0.0
        %2672 = vmatpush2.msra.mxu0 0.0
        %2673 = vmatprep.subr.mxu0 0.0
        %2674 = vmatpush2.msra.mxu0 0.0
        %2675 = vmatprep.subr.mxu0 0.0
        %2676 = vmatpush2.msra.mxu0 0.0
        %2677 = vmatprep.subr.mxu0 0.0
        %2678 = vmatpush2.msra.mxu0 0.0
        %2679 = vmatprep.subr.mxu0 0.0
        %2680 = vmatpush2.msra.mxu0 0.0
        %2681 = vmatprep.subr.mxu0 0.0
        %2682 = vmatpush2.msra.mxu0 0.0
        %2683 = vmatprep.subr.mxu0 0.0
        %2684 = vmatpush2.msra.mxu0 0.0
        %2685 = vmatprep.subr.mxu0 0.0
        %2686 = vmatpush2.msra.mxu0 0.0
        %2687 = vmatprep.subr.mxu0 0.0
        %2688 = vmatpush2.msra.mxu0 0.0
        %2689 = vmatprep.mubr.f32.mxu0 0.0
        %2690 = vmatmul.mubr.f32.gmra.mxu0 %v2623
        %v2691 = vpop.f32.mrf.mxu0
        %v2692 = vadd.f32 0.0, %v2691
        %v2693 = vpop.f32.mrf.mxu0
        %2694 = vdwg.mxu0
        %v2696 = vsel %vm2273, %v2617, 0
        %2698 = vmatprep.subr.mxu0 0.0
        %2699 = vmatpush1.msra.mxu0 0.0
        %2700 = vmatprep.subr.mxu0 0.0
        %2701 = vmatpush1.msra.mxu0 0.0
        %2702 = vmatprep.subr.mxu0 0.0
        %2703 = vmatpush1.msra.mxu0 0.0
        %2704 = vmatprep.subr.mxu0 0.0
        %2705 = vmatpush1.msra.mxu0 0.0
        %2706 = vmatprep.subr.mxu0 0.0
        %2707 = vmatpush1.msra.mxu0 0.0
        %2708 = vmatprep.subr.mxu0 0.0
        %2709 = vmatpush1.msra.mxu0 0.0
        %2710 = vmatprep.subr.mxu0 0.0
        %2711 = vmatpush1.msra.mxu0 0.0
        %2712 = vmatprep.subr.mxu0 0.0
        %2713 = vmatpush1.msra.mxu0 0.0
        %2714 = vmatprep.subr.mxu0 0.0
        %2715 = vmatpush1.msra.mxu0 0.0
        %2716 = vmatprep.subr.mxu0 0.0
        %2717 = vmatpush1.msra.mxu0 0.0
        %2718 = vmatprep.subr.mxu0 0.0
        %2719 = vmatpush1.msra.mxu0 0.0
        %2720 = vmatprep.subr.mxu0 0.0
        %2721 = vmatpush1.msra.mxu0 0.0
        %2722 = vmatprep.subr.mxu0 0.0
        %2723 = vmatpush1.msra.mxu0 0.0
        %2724 = vmatprep.subr.mxu0 0.0
        %2725 = vmatpush1.msra.mxu0 0.0
        %2726 = vmatprep.subr.mxu0 0.0
        %2727 = vmatpush1.msra.mxu0 0.0
        %2728 = vmatprep.subr.mxu0 0.0
        %2729 = vmatpush1.msra.mxu0 %v2202
        %2730 = vmatprep.subr.mxu0 0.0
        %2731 = vmatpush2.msra.mxu0 0.0
        %2732 = vmatprep.subr.mxu0 0.0
        %2733 = vmatpush2.msra.mxu0 0.0
        %2734 = vmatprep.subr.mxu0 0.0
        %2735 = vmatpush2.msra.mxu0 0.0
        %2736 = vmatprep.subr.mxu0 0.0
        %2737 = vmatpush2.msra.mxu0 0.0
        %2738 = vmatprep.subr.mxu0 0.0
        %2739 = vmatpush2.msra.mxu0 0.0
        %2740 = vmatprep.subr.mxu0 0.0
        %2741 = vmatpush2.msra.mxu0 0.0
        %2742 = vmatprep.subr.mxu0 0.0
        %2743 = vmatpush2.msra.mxu0 0.0
        %2744 = vmatprep.subr.mxu0 0.0
        %2745 = vmatpush2.msra.mxu0 0.0
        %2746 = vmatprep.subr.mxu0 0.0
        %2747 = vmatpush2.msra.mxu0 0.0
        %2748 = vmatprep.subr.mxu0 0.0
        %2749 = vmatpush2.msra.mxu0 0.0
        %2750 = vmatprep.subr.mxu0 0.0
        %2751 = vmatpush2.msra.mxu0 0.0
        %2752 = vmatprep.subr.mxu0 0.0
        %2753 = vmatpush2.msra.mxu0 0.0
        %2754 = vmatprep.subr.mxu0 0.0
        %2755 = vmatpush2.msra.mxu0 0.0
        %2756 = vmatprep.subr.mxu0 0.0
        %2757 = vmatpush2.msra.mxu0 0.0
        %2758 = vmatprep.subr.mxu0 0.0
        %2759 = vmatpush2.msra.mxu0 0.0
        %2760 = vmatprep.subr.mxu0 0.0
        %2761 = vmatpush2.msra.mxu0 0.0
        %2762 = vmatprep.mubr.f32.mxu0 0.0
        %2763 = vmatmul.mubr.f32.gmra.mxu0 %v2696
        %v2764 = vpop.f32.mrf.mxu0
        %v2765 = vadd.f32 0.0, %v2764
        %v2766 = vpop.f32.mrf.mxu0
        %2767 = vdwg.mxu0
        %v2769 = vsel %vm2273, %v2619, 0
        %2771 = vmatprep.subr.mxu0 0.0
        %2772 = vmatpush1.msra.mxu0 0.0
        %2773 = vmatprep.subr.mxu0 0.0
        %2774 = vmatpush1.msra.mxu0 0.0
        %2775 = vmatprep.subr.mxu0 0.0
        %2776 = vmatpush1.msra.mxu0 0.0
        %2777 = vmatprep.subr.mxu0 0.0
        %2778 = vmatpush1.msra.mxu0 0.0
        %2779 = vmatprep.subr.mxu0 0.0
        %2780 = vmatpush1.msra.mxu0 0.0
        %2781 = vmatprep.subr.mxu0 0.0
        %2782 = vmatpush1.msra.mxu0 0.0
        %2783 = vmatprep.subr.mxu0 0.0
        %2784 = vmatpush1.msra.mxu0 0.0
        %2785 = vmatprep.subr.mxu0 0.0
        %2786 = vmatpush1.msra.mxu0 0.0
        %2787 = vmatprep.subr.mxu0 0.0
        %2788 = vmatpush1.msra.mxu0 0.0
        %2789 = vmatprep.subr.mxu0 0.0
        %2790 = vmatpush1.msra.mxu0 0.0
        %2791 = vmatprep.subr.mxu0 0.0
        %2792 = vmatpush1.msra.mxu0 0.0
        %2793 = vmatprep.subr.mxu0 0.0
        %2794 = vmatpush1.msra.mxu0 0.0
        %2795 = vmatprep.subr.mxu0 0.0
        %2796 = vmatpush1.msra.mxu0 0.0
        %2797 = vmatprep.subr.mxu0 0.0
        %2798 = vmatpush1.msra.mxu0 0.0
        %2799 = vmatprep.subr.mxu0 0.0
        %2800 = vmatpush1.msra.mxu0 0.0
        %2801 = vmatprep.subr.mxu0 0.0
        %2802 = vmatpush1.msra.mxu0 %v2203
        %2803 = vmatprep.subr.mxu0 0.0
        %2804 = vmatpush2.msra.mxu0 0.0
        %2805 = vmatprep.subr.mxu0 0.0
        %2806 = vmatpush2.msra.mxu0 0.0
        %2807 = vmatprep.subr.mxu0 0.0
        %2808 = vmatpush2.msra.mxu0 0.0
        %2809 = vmatprep.subr.mxu0 0.0
        %2810 = vmatpush2.msra.mxu0 0.0
        %2811 = vmatprep.subr.mxu0 0.0
        %2812 = vmatpush2.msra.mxu0 0.0
        %2813 = vmatprep.subr.mxu0 0.0
        %2814 = vmatpush2.msra.mxu0 0.0
        %2815 = vmatprep.subr.mxu0 0.0
        %2816 = vmatpush2.msra.mxu0 0.0
        %2817 = vmatprep.subr.mxu0 0.0
        %2818 = vmatpush2.msra.mxu0 0.0
        %2819 = vmatprep.subr.mxu0 0.0
        %2820 = vmatpush2.msra.mxu0 0.0
        %2821 = vmatprep.subr.mxu0 0.0
        %2822 = vmatpush2.msra.mxu0 0.0
        %2823 = vmatprep.subr.mxu0 0.0
        %2824 = vmatpush2.msra.mxu0 0.0
        %2825 = vmatprep.subr.mxu0 0.0
        %2826 = vmatpush2.msra.mxu0 0.0
        %2827 = vmatprep.subr.mxu0 0.0
        %2828 = vmatpush2.msra.mxu0 0.0
        %2829 = vmatprep.subr.mxu0 0.0
        %2830 = vmatpush2.msra.mxu0 0.0
        %2831 = vmatprep.subr.mxu0 0.0
        %2832 = vmatpush2.msra.mxu0 0.0
        %2833 = vmatprep.subr.mxu0 0.0
        %2834 = vmatpush2.msra.mxu0 0.0
        %2835 = vmatprep.mubr.f32.mxu0 0.0
        %2836 = vmatmul.mubr.f32.gmra.mxu0 %v2769
        %v2837 = vpop.f32.mrf.mxu0
        %v2838 = vadd.f32 0.0, %v2837
        %v2839 = vpop.f32.mrf.mxu0
        %2840 = vdwg.mxu0
        %v2842 = vsel %vm2273, %v2621, 0
        %2844 = vmatprep.subr.mxu0 0.0
        %2845 = vmatpush1.msra.mxu0 0.0
        %2846 = vmatprep.subr.mxu0 0.0
        %2847 = vmatpush1.msra.mxu0 0.0
        %2848 = vmatprep.subr.mxu0 0.0
        %2849 = vmatpush1.msra.mxu0 0.0
        %2850 = vmatprep.subr.mxu0 0.0
        %2851 = vmatpush1.msra.mxu0 0.0
        %2852 = vmatprep.subr.mxu0 0.0
        %2853 = vmatpush1.msra.mxu0 0.0
        %2854 = vmatprep.subr.mxu0 0.0
        %2855 = vmatpush1.msra.mxu0 0.0
        %2856 = vmatprep.subr.mxu0 0.0
        %2857 = vmatpush1.msra.mxu0 0.0
        %2858 = vmatprep.subr.mxu0 0.0
        %2859 = vmatpush1.msra.mxu0 0.0
        %2860 = vmatprep.subr.mxu0 0.0
        %2861 = vmatpush1.msra.mxu0 0.0
        %2862 = vmatprep.subr.mxu0 0.0
        %2863 = vmatpush1.msra.mxu0 0.0
        %2864 = vmatprep.subr.mxu0 0.0
        %2865 = vmatpush1.msra.mxu0 0.0
        %2866 = vmatprep.subr.mxu0 0.0
        %2867 = vmatpush1.msra.mxu0 0.0
        %2868 = vmatprep.subr.mxu0 0.0
        %2869 = vmatpush1.msra.mxu0 0.0
        %2870 = vmatprep.subr.mxu0 0.0
        %2871 = vmatpush1.msra.mxu0 0.0
        %2872 = vmatprep.subr.mxu0 0.0
        %2873 = vmatpush1.msra.mxu0 0.0
        %2874 = vmatprep.subr.mxu0 0.0
        %2875 = vmatpush1.msra.mxu0 %v2204
        %2876 = vmatprep.subr.mxu0 0.0
        %2877 = vmatpush2.msra.mxu0 0.0
        %2878 = vmatprep.subr.mxu0 0.0
        %2879 = vmatpush2.msra.mxu0 0.0
        %2880 = vmatprep.subr.mxu0 0.0
        %2881 = vmatpush2.msra.mxu0 0.0
        %2882 = vmatprep.subr.mxu0 0.0
        %2883 = vmatpush2.msra.mxu0 0.0
        %2884 = vmatprep.subr.mxu0 0.0
        %2885 = vmatpush2.msra.mxu0 0.0
        %2886 = vmatprep.subr.mxu0 0.0
        %2887 = vmatpush2.msra.mxu0 0.0
        %2888 = vmatprep.subr.mxu0 0.0
        %2889 = vmatpush2.msra.mxu0 0.0
        %2890 = vmatprep.subr.mxu0 0.0
        %2891 = vmatpush2.msra.mxu0 0.0
        %2892 = vmatprep.subr.mxu0 0.0
        %2893 = vmatpush2.msra.mxu0 0.0
        %2894 = vmatprep.subr.mxu0 0.0
        %2895 = vmatpush2.msra.mxu0 0.0
        %2896 = vmatprep.subr.mxu0 0.0
        %2897 = vmatpush2.msra.mxu0 0.0
        %2898 = vmatprep.subr.mxu0 0.0
        %2899 = vmatpush2.msra.mxu0 0.0
        %2900 = vmatprep.subr.mxu0 0.0
        %2901 = vmatpush2.msra.mxu0 0.0
        %2902 = vmatprep.subr.mxu0 0.0
        %2903 = vmatpush2.msra.mxu0 0.0
        %2904 = vmatprep.subr.mxu0 0.0
        %2905 = vmatpush2.msra.mxu0 0.0
        %2906 = vmatprep.subr.mxu0 0.0
        %2907 = vmatpush2.msra.mxu0 0.0
        %2908 = vmatprep.mubr.f32.mxu0 0.0
        %2909 = vmatmul.mubr.f32.gmra.mxu0 %v2842
        %v2910 = vpop.f32.mrf.mxu0
        %v2911 = vadd.f32 0.0, %v2910
        %v2912 = vpop.f32.mrf.mxu0
        %2913 = vdwg.mxu0
        %v2914 = vcombine.low %v2692, %v2838
        %v2915 = vcombine.high %v2692, %v2838
        %v2917 = vunpack.c.l.s4 1983009808
        %v2918 = vunpack.c.0.s8 %v2917
        %v2919 = vlaneseq
        %v2920 = vshrl.u32 %v2919, 7
        %v2921 = vsub.s32 %v2918, %v2920
        %v2922 = vrot.slane %v2914, %v2921
        %v2924 = vunpack.c.l.s4 1983009808
        %v2925 = vunpack.c.0.s8 %v2924
        %v2926 = vlaneseq
        %v2927 = vshrl.u32 %v2926, 7
        %v2928 = vsub.s32 %v2925, %v2927
        %v2929 = vrot.slane %v2915, %v2928
        %v2930 = vcombine.low %v2765, %v2911
        %v2931 = vcombine.high %v2765, %v2911
        %v2933 = vunpack.c.l.s4 1983009808
        %v2934 = vunpack.c.0.s8 %v2933
        %v2935 = vlaneseq
        %v2936 = vshrl.u32 %v2935, 7
        %v2937 = vsub.s32 %v2934, %v2936
        %v2938 = vrot.slane %v2930, %v2937
        %v2940 = vunpack.c.l.s4 1983009808
        %v2941 = vunpack.c.0.s8 %v2940
        %v2942 = vlaneseq
        %v2943 = vshrl.u32 %v2942, 7
        %v2944 = vsub.s32 %v2941, %v2943
        %v2945 = vrot.slane %v2931, %v2944
        %v2946 = vcombine.low %v2922, %v2938
        %v2947 = vcombine.high %v2922, %v2938
        %v2949 = vunpack.c.l.s4 1934713408
        %v2950 = vunpack.c.0.s8 %v2949
        %v2951 = vlaneseq
        %v2952 = vshrl.u32 %v2951, 7
        %v2953 = vsub.s32 %v2950, %v2952
        %v2954 = vrot.slane %v2946, %v2953
        %v2956 = vunpack.c.l.s4 1934713408
        %v2957 = vunpack.c.0.s8 %v2956
        %v2958 = vlaneseq
        %v2959 = vshrl.u32 %v2958, 7
        %v2960 = vsub.s32 %v2957, %v2959
        %v2961 = vrot.slane %v2947, %v2960
        %v2962 = vcombine.low %v2929, %v2945
        %v2963 = vcombine.high %v2929, %v2945
        %v2965 = vunpack.c.l.s4 1934713408
        %v2966 = vunpack.c.0.s8 %v2965
        %v2967 = vlaneseq
        %v2968 = vshrl.u32 %v2967, 7
        %v2969 = vsub.s32 %v2966, %v2968
        %v2970 = vrot.slane %v2962, %v2969
        %v2972 = vunpack.c.l.s4 1934713408
        %v2973 = vunpack.c.0.s8 %v2972
        %v2974 = vlaneseq
        %v2975 = vshrl.u32 %v2974, 7
        %v2976 = vsub.s32 %v2973, %v2975
        %v2977 = vrot.slane %v2963, %v2976
        %v2978 = vcombine.high %v2954, 0.0
        %v2979 = vcombine.high %v2961, 0.0
        %v2980 = vcombine.high %v2970, 0.0
        %v2981 = vcombine.high %v2977, 0.0
        %v2982 = vcombine.low %v2954, %v2961
        %v2984 = vunpack.c.l.s4 1983009808
        %v2985 = vunpack.c.0.s8 %v2984
        %v2986 = vlaneseq
        %v2987 = vshrl.u32 %v2986, 7
        %v2988 = vsub.s32 %v2985, %v2987
        %v2989 = vrot.slane %v2982, %v2988
        %v2990 = vcombine.low %v2978, %v2979
        %v2992 = vunpack.c.l.s4 1983009808
        %v2993 = vunpack.c.0.s8 %v2992
        %v2994 = vlaneseq
        %v2995 = vshrl.u32 %v2994, 7
        %v2996 = vsub.s32 %v2993, %v2995
        %v2997 = vrot.slane %v2990, %v2996
        %v2998 = vcombine.low %v2970, %v2977
        %v3000 = vunpack.c.l.s4 1983009808
        %v3001 = vunpack.c.0.s8 %v3000
        %v3002 = vlaneseq
        %v3003 = vshrl.u32 %v3002, 7
        %v3004 = vsub.s32 %v3001, %v3003
        %v3005 = vrot.slane %v2998, %v3004
        %v3006 = vcombine.low %v2980, %v2981
        %v3008 = vunpack.c.l.s4 1983009808
        %v3009 = vunpack.c.0.s8 %v3008
        %v3010 = vlaneseq
        %v3011 = vshrl.u32 %v3010, 7
        %v3012 = vsub.s32 %v3009, %v3011
        %v3013 = vrot.slane %v3006, %v3012
        %v3014 = vcombine.low %v2989, %v2997
        %v3015 = vcombine.high %v2989, %v2997
        %v3017 = vunpack.c.l.s4 1934713408
        %v3018 = vunpack.c.0.s8 %v3017
        %v3019 = vlaneseq
        %v3020 = vshrl.u32 %v3019, 7
        %v3021 = vsub.s32 %v3018, %v3020
        %v3022 = vrot.slane %v3014, %v3021
        %v3024 = vunpack.c.l.s4 1934713408
        %v3025 = vunpack.c.0.s8 %v3024
        %v3026 = vlaneseq
        %v3027 = vshrl.u32 %v3026, 7
        %v3028 = vsub.s32 %v3025, %v3027
        %v3029 = vrot.slane %v3015, %v3028
        %v3030 = vcombine.low %v3005, %v3013
        %v3031 = vcombine.high %v3005, %v3013
        %v3033 = vunpack.c.l.s4 1934713408
        %v3034 = vunpack.c.0.s8 %v3033
        %v3035 = vlaneseq
        %v3036 = vshrl.u32 %v3035, 7
        %v3037 = vsub.s32 %v3034, %v3036
        %v3038 = vrot.slane %v3030, %v3037
        %v3040 = vunpack.c.l.s4 1934713408
        %v3041 = vunpack.c.0.s8 %v3040
        %v3042 = vlaneseq
        %v3043 = vshrl.u32 %v3042, 7
        %v3044 = vsub.s32 %v3041, %v3043
        %v3045 = vrot.slane %v3031, %v3044
        %v3046 = vcombine.low %v3022, %v3038
        %v3047 = vcombine.high %v3022, %v3038
        %v3048 = vcombine.low %v3029, %v3045
        %v3049 = vcombine.high %v3029, %v3045
        %3051 = vrot.lane.b32.xlu0 %v3047, 8
        %v3052 = vpop.permute.xlu0 %3051
        %3055 = vrot.lane.b32.xlu0 %v3048, 16
        %v3056 = vpop.permute.xlu0 %3055
        %3059 = vrot.lane.b32.xlu0 %v3049, 24
        %v3060 = vpop.permute.xlu0 %3059
        %v3062 = vsel %vm2273, %v3046, %v3052
        %vm3063 = vcmask 130048
        %v3064 = vsel %vm3063, %v3062, %v3056
        %vm3065 = vcmask 195584
        %v3066 = vsel %vm3065, %v3064, %v3060
        %v3067 = vld [vmem:[#allocation13] sm:$0xff]
        %v3068 = vld [vmem:[#allocation13 + $0x8] sm:$0xff]
        %v3069 = vld [vmem:[#allocation13 + $0x10] sm:$0xff]
        %v3070 = vld [vmem:[#allocation13 + $0x18] sm:$0xff]
        %v3072 = vsel %vm670, %v3066, 0
        %3074 = vmatprep.subr.mxu0 0.0
        %3075 = vmatpush1.msra.mxu0 0.0
        %3076 = vmatprep.subr.mxu0 0.0
        %3077 = vmatpush1.msra.mxu0 0.0
        %3078 = vmatprep.subr.mxu0 0.0
        %3079 = vmatpush1.msra.mxu0 0.0
        %3080 = vmatprep.subr.mxu0 0.0
        %3081 = vmatpush1.msra.mxu0 0.0
        %3082 = vmatprep.subr.mxu0 0.0
        %3083 = vmatpush1.msra.mxu0 0.0
        %3084 = vmatprep.subr.mxu0 0.0
        %3085 = vmatpush1.msra.mxu0 0.0
        %3086 = vmatprep.subr.mxu0 0.0
        %3087 = vmatpush1.msra.mxu0 0.0
        %3088 = vmatprep.subr.mxu0 0.0
        %3089 = vmatpush1.msra.mxu0 0.0
        %3090 = vmatprep.subr.mxu0 0.0
        %3091 = vmatpush1.msra.mxu0 0.0
        %3092 = vmatprep.subr.mxu0 0.0
        %3093 = vmatpush1.msra.mxu0 0.0
        %3094 = vmatprep.subr.mxu0 0.0
        %3095 = vmatpush1.msra.mxu0 0.0
        %3096 = vmatprep.subr.mxu0 0.0
        %3097 = vmatpush1.msra.mxu0 0.0
        %3098 = vmatprep.subr.mxu0 0.0
        %3099 = vmatpush1.msra.mxu0 %v3070
        %3100 = vmatprep.subr.mxu0 0.0
        %3101 = vmatpush1.msra.mxu0 %v3069
        %3102 = vmatprep.subr.mxu0 0.0
        %3103 = vmatpush1.msra.mxu0 %v3068
        %3104 = vmatprep.subr.mxu0 0.0
        %3105 = vmatpush1.msra.mxu0 %v3067
        %3106 = vmatprep.subr.mxu0 0.0
        %3107 = vmatpush2.msra.mxu0 0.0
        %3108 = vmatprep.subr.mxu0 0.0
        %3109 = vmatpush2.msra.mxu0 0.0
        %3110 = vmatprep.subr.mxu0 0.0
        %3111 = vmatpush2.msra.mxu0 0.0
        %3112 = vmatprep.subr.mxu0 0.0
        %3113 = vmatpush2.msra.mxu0 0.0
        %3114 = vmatprep.subr.mxu0 0.0
        %3115 = vmatpush2.msra.mxu0 0.0
        %3116 = vmatprep.subr.mxu0 0.0
        %3117 = vmatpush2.msra.mxu0 0.0
        %3118 = vmatprep.subr.mxu0 0.0
        %3119 = vmatpush2.msra.mxu0 0.0
        %3120 = vmatprep.subr.mxu0 0.0
        %3121 = vmatpush2.msra.mxu0 0.0
        %3122 = vmatprep.subr.mxu0 0.0
        %3123 = vmatpush2.msra.mxu0 0.0
        %3124 = vmatprep.subr.mxu0 0.0
        %3125 = vmatpush2.msra.mxu0 0.0
        %3126 = vmatprep.subr.mxu0 0.0
        %3127 = vmatpush2.msra.mxu0 0.0
        %3128 = vmatprep.subr.mxu0 0.0
        %3129 = vmatpush2.msra.mxu0 0.0
        %3130 = vmatprep.subr.mxu0 0.0
        %3131 = vmatpush2.msra.mxu0 0.0
        %3132 = vmatprep.subr.mxu0 0.0
        %3133 = vmatpush2.msra.mxu0 0.0
        %3134 = vmatprep.subr.mxu0 0.0
        %3135 = vmatpush2.msra.mxu0 0.0
        %3136 = vmatprep.subr.mxu0 0.0
        %3137 = vmatpush2.msra.mxu0 0.0
        %3138 = vmatprep.mubr.f32.mxu0 0.0
        %3139 = vmatmul.mubr.f32.gmra.mxu0 %v3072
        %v3140 = vpop.f32.mrf.mxu0
        %v3141 = vadd.f32 0.0, %v3140
        %v3142 = vpop.f32.mrf.mxu0
        %3143 = vdwg.mxu0
        %3145 = vrot.lane.b32.xlu0 %v3141, 32
        %v3146 = vpop.permute.xlu0 %3145
        %v3148 = vadd.f32 %v753, %v3146
        %3150 = vrot.lane.b32.xlu0 %v3148, 96
        %v3151 = vpop.permute.xlu0 %3150
        %v3153 = vsel %vm670, %v3151, 0.0
        %3154 = vadd.xlane.f32.xlu0 %v3153
        %v3155 = vpop.xlane.xlu0 %3154
        %v3156 = vrcp.pop 32.0
        %v3157 = vmul.f32 %v3155, %v3156
        %v3158 = vsub.f32 %v3148, %v3157
        %v3159 = vmul.f32 %v3158, %v3158
        %3161 = vrot.lane.b32.xlu0 %v3159, 96
        %v3162 = vpop.permute.xlu0 %3161
        %v3164 = vsel %vm670, %v3162, 0.0
        %3165 = vadd.xlane.f32.xlu0 %v3164
        %v3166 = vpop.xlane.xlu0 %3165
        %v3167 = vmul.f32 %v3166, %v3156
        %v3168 = vadd.f32 %v3167, 1e-06
        %v3169 = vrsqrt.pop %v3168
        %v3170 = vmul.f32 %v3158, %v3169
        %v3171 = vld [vmem:[%s13] sm:$0x1]
        %v3173 = vlaneseq
        %v3174 = vshrl.u32 %v3173, 7
        %v3175 = vsub.s32 0, %v3174
        %v3176 = vrot.slane %v3171, %v3175
        %3177 = vrot.lane.b32.xlu0 %v3176, 32
        %v3178 = vpop.permute.xlu0 %3177
        %v3180 = vmul.f32 %v3170, %v3178
        %v3181 = vld [vmem:[%s14] sm:$0x1]
        %v3183 = vlaneseq
        %v3184 = vshrl.u32 %v3183, 7
        %v3185 = vsub.s32 0, %v3184
        %v3186 = vrot.slane %v3181, %v3185
        %3187 = vrot.lane.b32.xlu0 %v3186, 32
        %v3188 = vpop.permute.xlu0 %3187
        %v3190 = vadd.f32 %v3180, %v3188
        %3192 = vrot.lane.b32.xlu0 %v3190, 96
        %v3193 = vpop.permute.xlu0 %3192
        %3195 = vst.msk [vmem:[%s651] sm:$0xff] %vm670, %v3193
        %s3196 = sand.u32 %s380, 1
        %s3197 = scalar_lea.sflag [#allocation4], %s3196
        %s3198 = sand.u32 %s380, 1
        %s3199 = smul.addr %s3198, 8
        %s3200 = scalar_lea.vmem [#allocation14], %s3199
        // Predicated region
        $region109: #{tpu_custom_call.1} parent=79 // pred_check
          %p3201 = pneg %p390
        $region110: #{tpu_custom_call.1} parent=79 // pred_check_branch
          %3203 = sbr.rel (%p3201) target = $region112
        $region111: #{tpu_custom_call.1} parent=79 // pred_region
          %s3205 = ssub.s32 128, 128
          %3206 = vsyncadd %s3197, %s3205
          %s3207 = smul.addr %s37, 128
          %s3208 = scalar_lea.hbm %s15, %s3207
          %s3210 = sshll.u32 %s3200, 4
          %s3211 = int_to_ptr.vmem [resolvable:$true] %s3210
          %3213 = dma.vmem_to_hbm [thread:$0]  %s3211, 128, %s3208, %s3197
        $region112: #{tpu_custom_call.1} parent=79 // pred_fallthru
          _
      $region80: #{tpu_custom_call.1} parent=5 // pred_fallthru
        _
      %p3214 = scmp.le.s32.totalorder 2, %s32
      // Predicated region
      $region113: #{tpu_custom_call.1} parent=5 // pred_check
        %p3215 = pneg %p3214
      $region114: #{tpu_custom_call.1} parent=5 // pred_check_branch
        %3217 = sbr.rel (%p3215) target = $region116
      $region115: #{tpu_custom_call.1} parent=5 // pred_region
        %s3218 = ssub.s32 %s32, 2
        // Predicated region
        $region117: #{tpu_custom_call.1} parent=115 // pred_check
          %p3219 = pneg %p396
        $region118: #{tpu_custom_call.1} parent=115 // pred_check_branch
          %3221 = sbr.rel (%p3219) target = $region120
        $region119: #{tpu_custom_call.1} parent=115 // pred_region
          %s3222 = sand.u32 %s381, 1
          %s3223 = scalar_lea.sflag [#allocation4], %s3222
          %s3224 = sand.u32 %s381, 1
          %s3225 = smul.addr %s3224, 8
          %s3226 = scalar_lea.vmem [#allocation14], %s3225
          %3227 = dma.done %s3223, 128
        $region120: #{tpu_custom_call.1} parent=115 // pred_fallthru
          _
      $region116: #{tpu_custom_call.1} parent=5 // pred_fallthru
        _
    $region6: #{tpu_custom_call.1} parent=1 // loop_footer
      %s36 = sadd.s32 1, %s32
    $region7: #{tpu_custom_call.1} parent=1 // loop_footer_branch
      %31 = sbr.rel target = $region3
    $region8: #{tpu_custom_call.1} parent=1 // loop_exit
      _
    %3228 = vsyncpa [#allocation3], 1
    %s3229 = scalar_lea.sflag [#allocation3], 1
    %3230 = vsyncpa %s3229, 1
    %3231 = vsyncpa [#allocation6], 1
    %s3232 = scalar_lea.sflag [#allocation6], 1
    %3233 = vsyncpa %s3232, 1
    %3234 = vsyncpa [#allocation9], 1
    %3235 = vsyncpa [#allocation12], 1
    %3236 = vsyncpa [#allocation4], 1
    %s3237 = scalar_lea.sflag [#allocation4], 1
    %3238 = vsyncpa %s3237, 1

// kernel: tpu_custom_call.1
$region0: #{tpu_custom_call.1}
  #allocation0 [shape = 'u32[]', space=smem, size = 0x4, offset = 0x4, fixed_abs, tag = 'smem constant byte address 0x4 - core index']
  #allocation1 [shape = 'u32[144,128]{1,0:T(1,128)}', space=vmem, size = 0x12000, scoped, tag = 'internal scratch']
  %s0 = inlined_call_operand.hbm [shape: f32[16,32], index: 0, kind: input, shape index: {}]
  %s1 = inlined_call_operand.hbm [shape: f32[16,32], index: 1, kind: input, shape index: {}]
  %s2 = inlined_call_operand.hbm [shape: f32[16,32], index: 2, kind: input, shape index: {}]
  %s3 = inlined_call_operand.vmem [shape: s32[16,8], index: 3, kind: input, shape index: {}]
  %s4 = inlined_call_operand.hbm [shape: f32[32,64], index: 4, kind: input, shape index: {}]
  %s5 = inlined_call_operand.vmem [shape: f32[1,64], index: 5, kind: input, shape index: {}]
  %s6 = inlined_call_operand.vmem [shape: f32[32,32], index: 6, kind: input, shape index: {}]
  %s7 = inlined_call_operand.vmem [shape: f32[1,32], index: 7, kind: input, shape index: {}]
  %s8 = inlined_call_operand.hbm [shape: f32[32,32], index: 8, kind: input, shape index: {}]
  %s9 = inlined_call_operand.vmem [shape: f32[1,32], index: 9, kind: input, shape index: {}]
  %s10 = inlined_call_operand.hbm [shape: f32[32,128], index: 10, kind: input, shape index: {}]
  %s11 = inlined_call_operand.hbm [shape: f32[32,32], index: 11, kind: input, shape index: {}]
  %s12 = inlined_call_operand.vmem [shape: f32[1,32], index: 12, kind: input, shape index: {}]
  %s13 = inlined_call_operand.vmem [shape: f32[1,32], index: 13, kind: input, shape index: {}]
  %s14 = inlined_call_operand.vmem [shape: f32[1,32], index: 14, kind: input, shape index: {}]
  %s15 = inlined_call_operand.hbm [shape: f32[16,32], index: 15, kind: output, shape index: {}]
  %s16 = sld [smem:[#allocation0]]
  $region121: #{tpu_custom_call.1} parent=0
    _
  %s18 = ssub.s32 1, %s16
  %s19 = scalar_select 0, %s18, %s16
  $region1: #{tpu_custom_call.1} parent=0
    #allocation2 [shape = 'u8[8192]{0}', space=vmem, size = 0x2000, scoped, tag = 'input window, operand 0']
    #allocation3 [shape = 's32[2]{0}', space=sflag, size = 0x8, scoped, tag = 'scoped memory for tpu_custom_call.1']
    #allocation4 [shape = 's32[2]{0}', space=sflag, size = 0x8, scoped, tag = 'scoped memory for tpu_custom_call.1']
    #allocation5 [shape = 'u8[8192]{0}', space=vmem, size = 0x2000, scoped, tag = 'input window, operand 1']
    #allocation6 [shape = 's32[2]{0}', space=sflag, size = 0x8, scoped, tag = 'scoped memory for tpu_custom_call.1']
    #allocation7 [shape = 'u8[8192]{0}', space=vmem, size = 0x2000, scoped, tag = 'input window, operand 2']
    #allocation8 [shape = 'u8[16384]{0}', space=vmem, size = 0x4000, scoped, tag = 'input window, operand 4, single buffered']
    #allocation9 [shape = 's32[1]{0}', space=sflag, size = 0x4, scoped, tag = 'scoped memory for tpu_custom_call.1']
    #allocation10 [shape = 'u8[16384]{0}', space=vmem, size = 0x4000, scoped, tag = 'input window, operand 8, single buffered']
    #allocation11 [shape = 'u8[16384]{0}', space=vmem, size = 0x4000, scoped, tag = 'input window, operand 10, single buffered']
    #allocation12 [shape = 's32[1]{0}', space=sflag, size = 0x4, scoped, tag = 'scoped memory for tpu_custom_call.1']
    #allocation13 [shape = 'u8[16384]{0}', space=vmem, size = 0x4000, scoped, tag = 'input window, operand 11, single buffered']
    #allocation14 [shape = 'u8[8192]{0}', space=vmem, size = 0x2000, scoped, tag = 'output window, operand 0']
    %20 = vsyncpa [#allocation3], 0
    %s21 = scalar_lea.sflag [#allocation3], 1
    %22 = vsyncpa %s21, 0
    %23 = vsyncpa [#allocation6], 0
    %s24 = scalar_lea.sflag [#allocation6], 1
    %25 = vsyncpa %s24, 0
    %26 = vsyncpa [#allocation9], 0
    %27 = vsyncpa [#allocation12], 0
    %28 = vsyncpa [#allocation4], 0
    %s29 = scalar_lea.sflag [#allocation4], 1
    %30 = vsyncpa %s29, 0
    loop: start=0, step=1, limit=4
    $region2: #{tpu_custom_call.1} parent=1 // loop_pre_header
      _
    $region3: #{tpu_custom_call.1} parent=1 // loop_header
      %s32 = sphi 0, %s36
      %p33 = scmp.ge.s32.totalorder %s32, 4
      %s42 = sphi 0, %s44
      %s45 = sphi 0, %s42
      %s46 = sphi 0, %s45
      %s62 = sphi 0, %s46
      %s68 = sphi 0, %s70
      %s71 = sphi 0, %s68
      %s72 = sphi 0, %s71
      %s88 = sphi 0, %s72
      %s94 = sphi 0, %s96
      %s97 = sphi 0, %s94
      %s98 = sphi 0, %s97
      %s114 = sphi 0, %s98
      %s120 = sphi 0, %s122
      %s123 = sphi 0, %s120
      %s124 = sphi 0, %s123
      %s140 = sphi 0, %s124
      %s144 = sphi 0, %s144
      %s146 = sphi 0, %s144
      %s147 = sphi 0, %s146
      %s161 = sphi 0, %s147
      %s165 = sphi 0, %s165
      %s167 = sphi 0, %s165
      %s168 = sphi 0, %s167
      %s182 = sphi 0, %s168
      %s186 = sphi 0, %s186
      %s188 = sphi 0, %s186
      %s189 = sphi 0, %s188
      %s203 = sphi 0, %s189
      %s207 = sphi 0, %s207
      %s209 = sphi 0, %s207
      %s210 = sphi 0, %s209
      %s224 = sphi 0, %s210
      %s228 = sphi 0, %s228
      %s230 = sphi 0, %s228
      %s231 = sphi 0, %s230
      %s245 = sphi 0, %s231
      %s249 = sphi 0, %s249
      %s251 = sphi 0, %s249
      %s252 = sphi 0, %s251
      %s266 = sphi 0, %s252
      %s270 = sphi 0, %s270
      %s272 = sphi 0, %s270
      %s273 = sphi 0, %s272
      %s287 = sphi 0, %s273
      %s291 = sphi 0, %s291
      %s293 = sphi 0, %s291
      %s294 = sphi 0, %s293
      %s308 = sphi 0, %s294
      %s312 = sphi 0, %s312
      %s314 = sphi 0, %s312
      %s315 = sphi 0, %s314
      %s329 = sphi 0, %s315
      %s333 = sphi 0, %s333
      %s335 = sphi 0, %s333
      %s336 = sphi 0, %s335
      %s350 = sphi 0, %s336
      %s354 = sphi 0, %s354
      %s356 = sphi 0, %s354
      %s357 = sphi 0, %s356
      %s371 = sphi 0, %s357
      %s377 = sphi 0, %s379
      %s380 = sphi 0, %s377
      %s381 = sphi 0, %s380
      %s397 = sphi 0, %s381
    $region4: #{tpu_custom_call.1} parent=1 // loop_header_branch
      %35 = sbr.rel (%p33) target = $region8
    $region5: #{tpu_custom_call.1} parent=1 // loop_body
      %s37 = ssub.s32 %s32, 1
      %s38 = ssub.s32 %s32, 2
      %s39 = sadd.s32 %s32, 1
      %s40 = ssub.s32 %s32, %s39
      %p41 = scmp.eq.s32.totalorder %s40, 0
      %s43 = sadd.s32 %s42, 1
      %s44 = scalar_select %p41, %s42, %s43
      %p47 = pneg %p41
      %p48 = scmp.eq.s32.totalorder %s32, 1
      %p49 = por %p47, %p48
      %p50 = scmp.ne.s32.totalorder %s42, %s45
      %p51 = scmp.eq.s32.totalorder %s32, 0
      %p52 = por %p50, %p51
      %p53 = scmp.ne.s32.totalorder %s42, %s45
      %p54 = scmp.eq.s32.totalorder %s37, 1
      %p55 = por %p53, %p54
      %p56 = scmp.ne.s32.totalorder %s45, %s46
      %p57 = scmp.eq.s32.totalorder %s37, 0
      %p58 = por %p56, %p57
      %p59 = scmp.ne.s32.totalorder %s45, %s46
      %p60 = scmp.eq.s32.totalorder %s38, 1
      %p61 = por %p59, %p60
      %p63 = scmp.ne.s32.totalorder %s46, %s62
      %p64 = scmp.eq.s32.totalorder %s38, 0
      %p65 = por %p63, %p64
      %s66 = ssub.s32 %s32, %s39
      %p67 = scmp.eq.s32.totalorder %s66, 0
      %s69 = sadd.s32 %s68, 1
      %s70 = scalar_select %p67, %s68, %s69
      %p73 = pneg %p67
      %p74 = scmp.eq.s32.totalorder %s32, 1
      %p75 = por %p73, %p74
      %p76 = scmp.ne.s32.totalorder %s68, %s71
      %p77 = scmp.eq.s32.totalorder %s32, 0
      %p78 = por %p76, %p77
      %p79 = scmp.ne.s32.totalorder %s68, %s71
      %p80 = scmp.eq.s32.totalorder %s37, 1
      %p81 = por %p79, %p80
      %p82 = scmp.ne.s32.totalorder %s71, %s72
      %p83 = scmp.eq.s32.totalorder %s37, 0
      %p84 = por %p82, %p83
      %p85 = scmp.ne.s32.totalorder %s71, %s72
      %p86 = scmp.eq.s32.totalorder %s38, 1
      %p87 = por %p85, %p86
      %p89 = scmp.ne.s32.totalorder %s72, %s88
      %p90 = scmp.eq.s32.totalorder %s38, 0
      %p91 = por %p89, %p90
      %s92 = ssub.s32 %s32, %s39
      %p93 = scmp.eq.s32.totalorder %s92, 0
      %s95 = sadd.s32 %s94, 1
      %s96 = scalar_select %p93, %s94, %s95
      %p99 = pneg %p93
      %p100 = scmp.eq.s32.totalorder %s32, 1
      %p101 = por %p99, %p100
      %p102 = scmp.ne.s32.totalorder %s94, %s97
      %p103 = scmp.eq.s32.totalorder %s32, 0
      %p104 = por %p102, %p103
      %p105 = scmp.ne.s32.totalorder %s94, %s97
      %p106 = scmp.eq.s32.totalorder %s37, 1
      %p107 = por %p105, %p106
      %p108 = scmp.ne.s32.totalorder %s97, %s98
      %p109 = scmp.eq.s32.totalorder %s37, 0
      %p110 = por %p108, %p109
      %p111 = scmp.ne.s32.totalorder %s97, %s98
      %p112 = scmp.eq.s32.totalorder %s38, 1
      %p113 = por %p111, %p112
      %p115 = scmp.ne.s32.totalorder %s98, %s114
      %p116 = scmp.eq.s32.totalorder %s38, 0
      %p117 = por %p115, %p116
      %s118 = ssub.s32 %s32, %s39
      %p119 = scmp.eq.s32.totalorder %s118, 0
      %s121 = sadd.s32 %s120, 1
      %s122 = scalar_select %p119, %s120, %s121
      %p125 = pneg %p119
      %p126 = scmp.eq.s32.totalorder %s32, 1
      %p127 = por %p125, %p126
      %p128 = scmp.ne.s32.totalorder %s120, %s123
      %p129 = scmp.eq.s32.totalorder %s32, 0
      %p130 = por %p128, %p129
      %p131 = scmp.ne.s32.totalorder %s120, %s123
      %p132 = scmp.eq.s32.totalorder %s37, 1
      %p133 = por %p131, %p132
      %p134 = scmp.ne.s32.totalorder %s123, %s124
      %p135 = scmp.eq.s32.totalorder %s37, 0
      %p136 = por %p134, %p135
      %p137 = scmp.ne.s32.totalorder %s123, %s124
      %p138 = scmp.eq.s32.totalorder %s38, 1
      %p139 = por %p137, %p138
      %p141 = scmp.ne.s32.totalorder %s124, %s140
      %p142 = scmp.eq.s32.totalorder %s38, 0
      %p143 = por %p141, %p142
      %s145 = sadd.s32 %s144, 1
      %p148 = scmp.eq.s32.totalorder %s32, 1
      %p149 = scmp.ne.s32.totalorder %s144, %s146
      %p150 = scmp.eq.s32.totalorder %s32, 0
      %p151 = por %p149, %p150
      %p152 = scmp.ne.s32.totalorder %s144, %s146
      %p153 = scmp.eq.s32.totalorder %s37, 1
      %p154 = por %p152, %p153
      %p155 = scmp.ne.s32.totalorder %s146, %s147
      %p156 = scmp.eq.s32.totalorder %s37, 0
      %p157 = por %p155, %p156
      %p158 = scmp.ne.s32.totalorder %s146, %s147
      %p159 = scmp.eq.s32.totalorder %s38, 1
      %p160 = por %p158, %p159
      %p162 = scmp.ne.s32.totalorder %s147, %s161
      %p163 = scmp.eq.s32.totalorder %s38, 0
      %p164 = por %p162, %p163
      %s166 = sadd.s32 %s165, 1
      %p169 = scmp.eq.s32.totalorder %s32, 1
      %p170 = scmp.ne.s32.totalorder %s165, %s167
      %p171 = scmp.eq.s32.totalorder %s32, 0
      %p172 = por %p170, %p171
      %p173 = scmp.ne.s32.totalorder %s165, %s167
      %p174 = scmp.eq.s32.totalorder %s37, 1
      %p175 = por %p173, %p174
      %p176 = scmp.ne.s32.totalorder %s167, %s168
      %p177 = scmp.eq.s32.totalorder %s37, 0
      %p178 = por %p176, %p177
      %p179 = scmp.ne.s32.totalorder %s167, %s168
      %p180 = scmp.eq.s32.totalorder %s38, 1
      %p181 = por %p179, %p180
      %p183 = scmp.ne.s32.totalorder %s168, %s182
      %p184 = scmp.eq.s32.totalorder %s38, 0
      %p185 = por %p183, %p184
      %s187 = sadd.s32 %s186, 1
      %p190 = scmp.eq.s32.totalorder %s32, 1
      %p191 = scmp.ne.s32.totalorder %s186, %s188
      %p192 = scmp.eq.s32.totalorder %s32, 0
      %p193 = por %p191, %p192
      %p194 = scmp.ne.s32.totalorder %s186, %s188
      %p195 = scmp.eq.s32.totalorder %s37, 1
      %p196 = por %p194, %p195
      %p197 = scmp.ne.s32.totalorder %s188, %s189
      %p198 = scmp.eq.s32.totalorder %s37, 0
      %p199 = por %p197, %p198
      %p200 = scmp.ne.s32.totalorder %s188, %s189
      %p201 = scmp.eq.s32.totalorder %s38, 1
      %p202 = por %p200, %p201
      %p204 = scmp.ne.s32.totalorder %s189, %s203
      %p205 = scmp.eq.s32.totalorder %s38, 0
      %p206 = por %p204, %p205
      %s208 = sadd.s32 %s207, 1
      %p211 = scmp.eq.s32.totalorder %s32, 1
      %p212 = scmp.ne.s32.totalorder %s207, %s209
      %p213 = scmp.eq.s32.totalorder %s32, 0
      %p214 = por %p212, %p213
      %p215 = scmp.ne.s32.totalorder %s207, %s209
      %p216 = scmp.eq.s32.totalorder %s37, 1
      %p217 = por %p215, %p216
      %p218 = scmp.ne.s32.totalorder %s209, %s210
      %p219 = scmp.eq.s32.totalorder %s37, 0
      %p220 = por %p218, %p219
      %p221 = scmp.ne.s32.totalorder %s209, %s210
      %p222 = scmp.eq.s32.totalorder %s38, 1
      %p223 = por %p221, %p222
      %p225 = scmp.ne.s32.totalorder %s210, %s224
      %p226 = scmp.eq.s32.totalorder %s38, 0
      %p227 = por %p225, %p226
      %s229 = sadd.s32 %s228, 1
      %p232 = scmp.eq.s32.totalorder %s32, 1
      %p233 = scmp.ne.s32.totalorder %s228, %s230
      %p234 = scmp.eq.s32.totalorder %s32, 0
      %p235 = por %p233, %p234
      %p236 = scmp.ne.s32.totalorder %s228, %s230
      %p237 = scmp.eq.s32.totalorder %s37, 1
      %p238 = por %p236, %p237
      %p239 = scmp.ne.s32.totalorder %s230, %s231
      %p240 = scmp.eq.s32.totalorder %s37, 0
      %p241 = por %p239, %p240
      %p242 = scmp.ne.s32.totalorder %s230, %s231
      %p243 = scmp.eq.s32.totalorder %s38, 1
      %p244 = por %p242, %p243
      %p246 = scmp.ne.s32.totalorder %s231, %s245
      %p247 = scmp.eq.s32.totalorder %s38, 0
      %p248 = por %p246, %p247
      %s250 = sadd.s32 %s249, 1
      %p253 = scmp.eq.s32.totalorder %s32, 1
      %p254 = scmp.ne.s32.totalorder %s249, %s251
      %p255 = scmp.eq.s32.totalorder %s32, 0
      %p256 = por %p254, %p255
      %p257 = scmp.ne.s32.totalorder %s249, %s251
      %p258 = scmp.eq.s32.totalorder %s37, 1
      %p259 = por %p257, %p258
      %p260 = scmp.ne.s32.totalorder %s251, %s252
      %p261 = scmp.eq.s32.totalorder %s37, 0
      %p262 = por %p260, %p261
      %p263 = scmp.ne.s32.totalorder %s251, %s252
      %p264 = scmp.eq.s32.totalorder %s38, 1
      %p265 = por %p263, %p264
      %p267 = scmp.ne.s32.totalorder %s252, %s266
      %p268 = scmp.eq.s32.totalorder %s38, 0
      %p269 = por %p267, %p268
      %s271 = sadd.s32 %s270, 1
      %p274 = scmp.eq.s32.totalorder %s32, 1
      %p275 = scmp.ne.s32.totalorder %s270, %s272
      %p276 = scmp.eq.s32.totalorder %s32, 0
      %p277 = por %p275, %p276
      %p278 = scmp.ne.s32.totalorder %s270, %s272
      %p279 = scmp.eq.s32.totalorder %s37, 1
      %p280 = por %p278, %p279
      %p281 = scmp.ne.s32.totalorder %s272, %s273
      %p282 = scmp.eq.s32.totalorder %s37, 0
      %p283 = por %p281, %p282
      %p284 = scmp.ne.s32.totalorder %s272, %s273
      %p285 = scmp.eq.s32.totalorder %s38, 1
      %p286 = por %p284, %p285
      %p288 = scmp.ne.s32.totalorder %s273, %s287
      %p289 = scmp.eq.s32.totalorder %s38, 0
      %p290 = por %p288, %p289
      %s292 = sadd.s32 %s291, 1
      %p295 = scmp.eq.s32.totalorder %s32, 1
      %p296 = scmp.ne.s32.totalorder %s291, %s293
      %p297 = scmp.eq.s32.totalorder %s32, 0
      %p298 = por %p296, %p297
      %p299 = scmp.ne.s32.totalorder %s291, %s293
      %p300 = scmp.eq.s32.totalorder %s37, 1
      %p301 = por %p299, %p300
      %p302 = scmp.ne.s32.totalorder %s293, %s294
      %p303 = scmp.eq.s32.totalorder %s37, 0
      %p304 = por %p302, %p303
      %p305 = scmp.ne.s32.totalorder %s293, %s294
      %p306 = scmp.eq.s32.totalorder %s38, 1
      %p307 = por %p305, %p306
      %p309 = scmp.ne.s32.totalorder %s294, %s308
      %p310 = scmp.eq.s32.totalorder %s38, 0
      %p311 = por %p309, %p310
      %s313 = sadd.s32 %s312, 1
      %p316 = scmp.eq.s32.totalorder %s32, 1
      %p317 = scmp.ne.s32.totalorder %s312, %s314
      %p318 = scmp.eq.s32.totalorder %s32, 0
      %p319 = por %p317, %p318
      %p320 = scmp.ne.s32.totalorder %s312, %s314
      %p321 = scmp.eq.s32.totalorder %s37, 1
      %p322 = por %p320, %p321
      %p323 = scmp.ne.s32.totalorder %s314, %s315
      %p324 = scmp.eq.s32.totalorder %s37, 0
      %p325 = por %p323, %p324
      %p326 = scmp.ne.s32.totalorder %s314, %s315
      %p327 = scmp.eq.s32.totalorder %s38, 1
      %p328 = por %p326, %p327
      %p330 = scmp.ne.s32.totalorder %s315, %s329
      %p331 = scmp.eq.s32.totalorder %s38, 0
      %p332 = por %p330, %p331
      %s334 = sadd.s32 %s333, 1
      %p337 = scmp.eq.s32.totalorder %s32, 1
      %p338 = scmp.ne.s32.totalorder %s333, %s335
      %p339 = scmp.eq.s32.totalorder %s32, 0
      %p340 = por %p338, %p339
      %p341 = scmp.ne.s32.totalorder %s333, %s335
      %p342 = scmp.eq.s32.totalorder %s37, 1
      %p343 = por %p341, %p342
      %p344 = scmp.ne.s32.totalorder %s335, %s336
      %p345 = scmp.eq.s32.totalorder %s37, 0
      %p346 = por %p344, %p345
      %p347 = scmp.ne.s32.totalorder %s335, %s336
      %p348 = scmp.eq.s32.totalorder %s38, 1
      %p349 = por %p347, %p348
      %p351 = scmp.ne.s32.totalorder %s336, %s350
      %p352 = scmp.eq.s32.totalorder %s38, 0
      %p353 = por %p351, %p352
      %s355 = sadd.s32 %s354, 1
      %p358 = scmp.eq.s32.totalorder %s32, 1
      %p359 = scmp.ne.s32.totalorder %s354, %s356
      %p360 = scmp.eq.s32.totalorder %s32, 0
      %p361 = por %p359, %p360
      %p362 = scmp.ne.s32.totalorder %s354, %s356
      %p363 = scmp.eq.s32.totalorder %s37, 1
      %p364 = por %p362, %p363
      %p365 = scmp.ne.s32.totalorder %s356, %s357
      %p366 = scmp.eq.s32.totalorder %s37, 0
      %p367 = por %p365, %p366
      %p368 = scmp.ne.s32.totalorder %s356, %s357
      %p369 = scmp.eq.s32.totalorder %s38, 1
      %p370 = por %p368, %p369
      %p372 = scmp.ne.s32.totalorder %s357, %s371
      %p373 = scmp.eq.s32.totalorder %s38, 0
      %p374 = por %p372, %p373
      %s375 = ssub.s32 %s32, %s39
      %p376 = scmp.eq.s32.totalorder %s375, 0
      %s378 = sadd.s32 %s377, 1
      %s379 = scalar_select %p376, %s377, %s378
      %p382 = pneg %p376
      %p383 = scmp.eq.s32.totalorder %s32, 1
      %p384 = por %p382, %p383
      %p385 = scmp.ne.s32.totalorder %s377, %s380
      %p386 = scmp.eq.s32.totalorder %s32, 0
      %p387 = por %p385, %p386
      %p388 = scmp.ne.s32.totalorder %s377, %s380
      %p389 = scmp.eq.s32.totalorder %s37, 1
      %p390 = por %p388, %p389
      %p391 = scmp.ne.s32.totalorder %s380, %s381
      %p392 = scmp.eq.s32.totalorder %s37, 0
      %p393 = por %p391, %p392
      %p394 = scmp.ne.s32.totalorder %s380, %s381
      %p395 = scmp.eq.s32.totalorder %s38, 1
      %p396 = por %p394, %p395
      %p398 = scmp.ne.s32.totalorder %s381, %s397
      %p399 = scmp.eq.s32.totalorder %s38, 0
      %p400 = por %p398, %p399
      %p401 = scmp.le.s32.totalorder 1, %s32
      %p402 = scmp.lt.s32.totalorder %s32, 3
      %p403 = pnand %p401, %p402
      %p404 = pneg %p403
      // Predicated region
      $region9: #{tpu_custom_call.1} parent=5 // pred_check
        _
      $region10: #{tpu_custom_call.1} parent=5 // pred_check_branch
        %406 = sbr.rel (%p403) target = $region12
      $region11: #{tpu_custom_call.1} parent=5 // pred_region
        %s407 = ssub.s32 %s32, 1
        // Predicated region
        $region13: #{tpu_custom_call.1} parent=11 // pred_check
          %p408 = pneg %p157
        $region14: #{tpu_custom_call.1} parent=11 // pred_check_branch
          %410 = sbr.rel (%p408) target = $region16
        $region15: #{tpu_custom_call.1} parent=11 // pred_region
          %s412 = ssub.s32 512, 512
          %413 = vsyncadd [#allocation9], %s412
          %s414 = sshll.u32 [#allocation8], 4
          %s415 = int_to_ptr.vmem [resolvable:$true] %s414
          %420 = dma.hbm_to_vmem [thread:$0]  %s4, 512, %s415, [#allocation9], 128, 128, 8
        $region16: #{tpu_custom_call.1} parent=11 // pred_fallthru
          _
        // Predicated region
        $region17: #{tpu_custom_call.1} parent=11 // pred_check
          %p421 = pneg %p178
        $region18: #{tpu_custom_call.1} parent=11 // pred_check_branch
          %423 = sbr.rel (%p421) target = $region20
        $region19: #{tpu_custom_call.1} parent=11 // pred_region
          _
        $region20: #{tpu_custom_call.1} parent=11 // pred_fallthru
          _
        // Predicated region
        $region21: #{tpu_custom_call.1} parent=11 // pred_check
          %p424 = pneg %p199
        $region22: #{tpu_custom_call.1} parent=11 // pred_check_branch
          %426 = sbr.rel (%p424) target = $region24
        $region23: #{tpu_custom_call.1} parent=11 // pred_region
          _
        $region24: #{tpu_custom_call.1} parent=11 // pred_fallthru
          _
        // Predicated region
        $region25: #{tpu_custom_call.1} parent=11 // pred_check
          %p427 = pneg %p220
        $region26: #{tpu_custom_call.1} parent=11 // pred_check_branch
          %429 = sbr.rel (%p427) target = $region28
        $region27: #{tpu_custom_call.1} parent=11 // pred_region
          _
        $region28: #{tpu_custom_call.1} parent=11 // pred_fallthru
          _
        // Predicated region
        $region29: #{tpu_custom_call.1} parent=11 // pred_check
          %p430 = pneg %p241
        $region30: #{tpu_custom_call.1} parent=11 // pred_check_branch
          %432 = sbr.rel (%p430) target = $region32
        $region31: #{tpu_custom_call.1} parent=11 // pred_region
          %s434 = ssub.s32 512, 512
          %435 = vsyncadd [#allocation9], %s434
          %s436 = sshll.u32 [#allocation10], 4
          %s437 = int_to_ptr.vmem [resolvable:$true] %s436
          %442 = dma.hbm_to_vmem [thread:$0]  %s8, 512, %s437, [#allocation9], 128, 128, 8
        $region32: #{tpu_custom_call.1} parent=11 // pred_fallthru
          _
        // Predicated region
        $region33: #{tpu_custom_call.1} parent=11 // pred_check
          %p443 = pneg %p262
        $region34: #{tpu_custom_call.1} parent=11 // pred_check_branch
          %445 = sbr.rel (%p443) target = $region36
        $region35: #{tpu_custom_call.1} parent=11 // pred_region
          _
        $region36: #{tpu_custom_call.1} parent=11 // pred_fallthru
          _
        // Predicated region
        $region37: #{tpu_custom_call.1} parent=11 // pred_check
          %p446 = pneg %p283
        $region38: #{tpu_custom_call.1} parent=11 // pred_check_branch
          %448 = sbr.rel (%p446) target = $region40
        $region39: #{tpu_custom_call.1} parent=11 // pred_region
          %s450 = ssub.s32 512, 512
          %451 = vsyncadd [#allocation12], %s450
          %s452 = sshll.u32 [#allocation11], 4
          %s453 = int_to_ptr.vmem [resolvable:$true] %s452
          %458 = dma.hbm_to_vmem [thread:$0]  %s10, 512, %s453, [#allocation12], 128, 128, 8
        $region40: #{tpu_custom_call.1} parent=11 // pred_fallthru
          _
        // Predicated region
        $region41: #{tpu_custom_call.1} parent=11 // pred_check
          %p459 = pneg %p304
        $region42: #{tpu_custom_call.1} parent=11 // pred_check_branch
          %461 = sbr.rel (%p459) target = $region44
        $region43: #{tpu_custom_call.1} parent=11 // pred_region
          %s463 = ssub.s32 512, 512
          %464 = vsyncadd [#allocation12], %s463
          %s465 = sshll.u32 [#allocation13], 4
          %s466 = int_to_ptr.vmem [resolvable:$true] %s465
          %471 = dma.hbm_to_vmem [thread:$0]  %s11, 512, %s466, [#allocation12], 128, 128, 8
        $region44: #{tpu_custom_call.1} parent=11 // pred_fallthru
          _
        // Predicated region
        $region45: #{tpu_custom_call.1} parent=11 // pred_check
          %p472 = pneg %p325
        $region46: #{tpu_custom_call.1} parent=11 // pred_check_branch
          %474 = sbr.rel (%p472) target = $region48
        $region47: #{tpu_custom_call.1} parent=11 // pred_region
          _
        $region48: #{tpu_custom_call.1} parent=11 // pred_fallthru
          _
        // Predicated region
        $region49: #{tpu_custom_call.1} parent=11 // pred_check
          %p475 = pneg %p346
        $region50: #{tpu_custom_call.1} parent=11 // pred_check_branch
          %477 = sbr.rel (%p475) target = $region52
        $region51: #{tpu_custom_call.1} parent=11 // pred_region
          _
        $region52: #{tpu_custom_call.1} parent=11 // pred_fallthru
          _
        // Predicated region
        $region53: #{tpu_custom_call.1} parent=11 // pred_check
          %p478 = pneg %p367
        $region54: #{tpu_custom_call.1} parent=11 // pred_check_branch
          %480 = sbr.rel (%p478) target = $region56
        $region55: #{tpu_custom_call.1} parent=11 // pred_region
          _
        $region56: #{tpu_custom_call.1} parent=11 // pred_fallthru
          _
      $region12: #{tpu_custom_call.1} parent=5 // pred_fallthru
        _
      %p481 = scmp.lt.s32.totalorder %s32, 2
      // Predicated region
      $region57: #{tpu_custom_call.1} parent=5 // pred_check
        %p482 = pneg %p481
      $region58: #{tpu_custom_call.1} parent=5 // pred_check_branch
        %484 = sbr.rel (%p482) target = $region60
      $region59: #{tpu_custom_call.1} parent=5 // pred_region
        // Predicated region
        $region61: #{tpu_custom_call.1} parent=59 // pred_check
          %p485 = pneg %p52
        $region62: #{tpu_custom_call.1} parent=59 // pred_check_branch
          %487 = sbr.rel (%p485) target = $region64
        $region63: #{tpu_custom_call.1} parent=59 // pred_region
          %s488 = sand.u32 %s42, 1
          %s489 = scalar_lea.sflag [#allocation3], %s488
          %s490 = sand.u32 %s42, 1
          %s491 = smul.addr %s490, 8
          %s492 = scalar_lea.vmem [#allocation2], %s491
          %s494 = ssub.s32 128, 128
          %495 = vsyncadd %s489, %s494
          %s496 = smul.addr %s32, 128
          %s497 = scalar_lea.hbm %s0, %s496
          %s499 = sshll.u32 %s492, 4
          %s500 = int_to_ptr.vmem [resolvable:$true] %s499
          %502 = dma.hbm_to_vmem [thread:$0]  %s497, 128, %s500, %s489
        $region64: #{tpu_custom_call.1} parent=59 // pred_fallthru
          _
        // Predicated region
        $region65: #{tpu_custom_call.1} parent=59 // pred_check
          %p503 = pneg %p78
        $region66: #{tpu_custom_call.1} parent=59 // pred_check_branch
          %505 = sbr.rel (%p503) target = $region68
        $region67: #{tpu_custom_call.1} parent=59 // pred_region
          %s506 = sand.u32 %s32, 1
          %s507 = scalar_lea.sflag [#allocation6], %s506
          %s508 = sand.u32 %s68, 1
          %s509 = smul.addr %s508, 8
          %s510 = scalar_lea.vmem [#allocation5], %s509
          %s512 = ssub.s32 128, 128
          %513 = vsyncadd %s507, %s512
          %s514 = smul.addr %s32, 128
          %s515 = scalar_lea.hbm %s1, %s514
          %s517 = sshll.u32 %s510, 4
          %s518 = int_to_ptr.vmem [resolvable:$true] %s517
          %520 = dma.hbm_to_vmem [thread:$0]  %s515, 128, %s518, %s507
        $region68: #{tpu_custom_call.1} parent=59 // pred_fallthru
          _
        // Predicated region
        $region69: #{tpu_custom_call.1} parent=59 // pred_check
          %p521 = pneg %p104
        $region70: #{tpu_custom_call.1} parent=59 // pred_check_branch
          %523 = sbr.rel (%p521) target = $region72
        $region71: #{tpu_custom_call.1} parent=59 // pred_region
          %s524 = sand.u32 %s32, 1
          %s525 = scalar_lea.sflag [#allocation6], %s524
          %s526 = sand.u32 %s94, 1
          %s527 = smul.addr %s526, 8
          %s528 = scalar_lea.vmem [#allocation7], %s527
          %s530 = ssub.s32 128, 128
          %531 = vsyncadd %s525, %s530
          %s532 = smul.addr %s32, 128
          %s533 = scalar_lea.hbm %s2, %s532
          %s535 = sshll.u32 %s528, 4
          %s536 = int_to_ptr.vmem [resolvable:$true] %s535
          %538 = dma.hbm_to_vmem [thread:$0]  %s533, 128, %s536, %s525
        $region72: #{tpu_custom_call.1} parent=59 // pred_fallthru
          _
        // Predicated region
        $region73: #{tpu_custom_call.1} parent=59 // pred_check
          %p539 = pneg %p130
        $region74: #{tpu_custom_call.1} parent=59 // pred_check_branch
          %541 = sbr.rel (%p539) target = $region76
        $region75: #{tpu_custom_call.1} parent=59 // pred_region
          %p542 = scmp.lt.s32.totalorder %s32, 1
          %s543 = scalar_select %p542, %s32, 1
          %s544 = smul.addr %s543, 8
          %s545 = scalar_lea.vmem %s3, %s544
        $region76: #{tpu_custom_call.1} parent=59 // pred_fallthru
          _
      $region60: #{tpu_custom_call.1} parent=5 // pred_fallthru
        _
      %p546 = scmp.le.s32.totalorder 1, %s32
      %p547 = scmp.lt.s32.totalorder %s32, 3
      %p548 = pnand %p546, %p547
      %p549 = pneg %p548
      // Predicated region
      $region77: #{tpu_custom_call.1} parent=5 // pred_check
        _
      $region78: #{tpu_custom_call.1} parent=5 // pred_check_branch
        %551 = sbr.rel (%p548) target = $region80
      $region79: #{tpu_custom_call.1} parent=5 // pred_region
        %s552 = ssub.s32 %s32, 1
        %s553 = sand.u32 %s45, 1
        %s554 = scalar_lea.sflag [#allocation3], %s553
        %s555 = sand.u32 %s45, 1
        %s556 = smul.addr %s555, 8
        %s557 = scalar_lea.vmem [#allocation2], %s556
        // Predicated region
        $region81: #{tpu_custom_call.1} parent=79 // pred_check
          %p558 = pneg %p58
        $region82: #{tpu_custom_call.1} parent=79 // pred_check_branch
          %560 = sbr.rel (%p558) target = $region84
        $region83: #{tpu_custom_call.1} parent=79 // pred_region
          %561 = dma.done %s554, 128
        $region84: #{tpu_custom_call.1} parent=79 // pred_fallthru
          _
        %s562 = sand.u32 %s37, 1
        %s563 = scalar_lea.sflag [#allocation6], %s562
        %s564 = sand.u32 %s71, 1
        %s565 = smul.addr %s564, 8
        %s566 = scalar_lea.vmem [#allocation5], %s565
        // Predicated region
        $region85: #{tpu_custom_call.1} parent=79 // pred_check
          %p567 = pneg %p84
        $region86: #{tpu_custom_call.1} parent=79 // pred_check_branch
          %569 = sbr.rel (%p567) target = $region88
        $region87: #{tpu_custom_call.1} parent=79 // pred_region
          %570 = dma.done %s563, 128
        $region88: #{tpu_custom_call.1} parent=79 // pred_fallthru
          _
        %s571 = sand.u32 %s37, 1
        %s572 = scalar_lea.sflag [#allocation6], %s571
        %s573 = sand.u32 %s97, 1
        %s574 = smul.addr %s573, 8
        %s575 = scalar_lea.vmem [#allocation7], %s574
        // Predicated region
        $region89: #{tpu_custom_call.1} parent=79 // pred_check
          %p576 = pneg %p110
        $region90: #{tpu_custom_call.1} parent=79 // pred_check_branch
          %578 = sbr.rel (%p576) target = $region92
        $region91: #{tpu_custom_call.1} parent=79 // pred_region
          %579 = dma.done %s572, 128
        $region92: #{tpu_custom_call.1} parent=79 // pred_fallthru
          _
        // Predicated region
        $region93: #{tpu_custom_call.1} parent=79 // pred_check
          %p580 = pneg %p157
        $region94: #{tpu_custom_call.1} parent=79 // pred_check_branch
          %582 = sbr.rel (%p580) target = $region96
        $region95: #{tpu_custom_call.1} parent=79 // pred_region
          %583 = dma.done [#allocation9], 512
        $region96: #{tpu_custom_call.1} parent=79 // pred_fallthru
          _
        // Predicated region
        $region97: #{tpu_custom_call.1} parent=79 // pred_check
          %p584 = pneg %p241
        $region98: #{tpu_custom_call.1} parent=79 // pred_check_branch
          %586 = sbr.rel (%p584) target = $region100
        $region99: #{tpu_custom_call.1} parent=79 // pred_region
          %587 = dma.done [#allocation9], 512
        $region100: #{tpu_custom_call.1} parent=79 // pred_fallthru
          _
        // Predicated region
        $region101: #{tpu_custom_call.1} parent=79 // pred_check
          %p588 = pneg %p283
        $region102: #{tpu_custom_call.1} parent=79 // pred_check_branch
          %590 = sbr.rel (%p588) target = $region104
        $region103: #{tpu_custom_call.1} parent=79 // pred_region
          %591 = dma.done [#allocation12], 512
        $region104: #{tpu_custom_call.1} parent=79 // pred_fallthru
          _
        // Predicated region
        $region105: #{tpu_custom_call.1} parent=79 // pred_check
          %p592 = pneg %p304
        $region106: #{tpu_custom_call.1} parent=79 // pred_check_branch
          %594 = sbr.rel (%p592) target = $region108
        $region107: #{tpu_custom_call.1} parent=79 // pred_region
          %595 = dma.done [#allocation12], 512
        $region108: #{tpu_custom_call.1} parent=79 // pred_fallthru
          _
        %s596 = sand.u32 %s45, 1
        %s597 = scalar_lea.sflag [#allocation3], %s596
        %s598 = sand.u32 %s45, 1
        %s599 = smul.addr %s598, 8
        %s600 = scalar_lea.vmem [#allocation2], %s599
        %p601 = pneg %p58
        %p602 = pneg %p55
        %s603 = sand.u32 %s37, 1
        %s604 = scalar_lea.sflag [#allocation6], %s603
        %s605 = sand.u32 %s71, 1
        %s606 = smul.addr %s605, 8
        %s607 = scalar_lea.vmem [#allocation5], %s606
        %p608 = pneg %p84
        %p609 = pneg %p81
        %s610 = sand.u32 %s37, 1
        %s611 = scalar_lea.sflag [#allocation6], %s610
        %s612 = sand.u32 %s97, 1
        %s613 = smul.addr %s612, 8
        %s614 = scalar_lea.vmem [#allocation7], %s613
        %p615 = pneg %p110
        %p616 = pneg %p107
        %p617 = scmp.lt.s32.totalorder %s37, 1
        %s618 = scalar_select %p617, %s37, 1
        %s619 = smul.addr %s618, 8
        %s620 = scalar_lea.vmem %s3, %s619
        %p621 = pneg %p136
        %p622 = pneg %p133
        %p623 = pneg %p157
        %p624 = pneg %p154
        %p625 = pneg %p178
        %p626 = pneg %p175
        %p627 = pneg %p199
        %p628 = pneg %p196
        %p629 = pneg %p220
        %p630 = pneg %p217
        %p631 = pneg %p241
        %p632 = pneg %p238
        %p633 = pneg %p262
        %p634 = pneg %p259
        %p635 = pneg %p283
        %p636 = pneg %p280
        %p637 = pneg %p304
        %p638 = pneg %p301
        %p639 = pneg %p325
        %p640 = pneg %p322
        %p641 = pneg %p346
        %p642 = pneg %p343
        %p643 = pneg %p367
        %p644 = pneg %p364
        %p645 = pneg %p393
        %p646 = pneg %p390
        %s647 = sand.u32 %s380, 1
        %s648 = scalar_lea.sflag [#allocation4], %s647
        %s649 = sand.u32 %s380, 1
        %s650 = smul.addr %s649, 8
        %s651 = scalar_lea.vmem [#allocation14], %s650
        %p652 = scmp.lt.s32.totalorder %s37, 1
        %s653 = scalar_select %p652, %s37, 1
        %s654 = smul.addr %s653, 8
        %s655 = scalar_lea.vmem %s3, %s654
        %v656 = vld [vmem:[%s557] sm:$0xff]
        %v657 = vld [vmem:[%s566] sm:$0xff]
        %v658 = vld [vmem:[%s575] sm:$0xff]
        %v659 = vld [vmem:[#allocation8] sm:$0xff]
        %v660 = vld [vmem:[#allocation8 + $0x8] sm:$0xff]
        %v661 = vld [vmem:[#allocation8 + $0x10] sm:$0xff]
        %v662 = vld [vmem:[#allocation8 + $0x18] sm:$0xff]
        %v663 = vld [vmem:[%s5] sm:$0x1]
        %v665 = vlaneseq
        %v666 = vshrl.u32 %v665, 7
        %v667 = vsub.s32 0, %v666
        %v668 = vrot.slane %v663, %v667
        %vm670 = vcmask 261120
        %v672 = vsel %vm670, %v656, 0
        %674 = vmatprep.subr.mxu0 0.0
        %675 = vmatpush1.msra.mxu0 0.0
        %676 = vmatprep.subr.mxu0 0.0
        %677 = vmatpush1.msra.mxu0 0.0
        %678 = vmatprep.subr.mxu0 0.0
        %679 = vmatpush1.msra.mxu0 0.0
        %680 = vmatprep.subr.mxu0 0.0
        %681 = vmatpush1.msra.mxu0 0.0
        %682 = vmatprep.subr.mxu0 0.0
        %683 = vmatpush1.msra.mxu0 0.0
        %684 = vmatprep.subr.mxu0 0.0
        %685 = vmatpush1.msra.mxu0 0.0
        %686 = vmatprep.subr.mxu0 0.0
        %687 = vmatpush1.msra.mxu0 0.0
        %688 = vmatprep.subr.mxu0 0.0
        %689 = vmatpush1.msra.mxu0 0.0
        %690 = vmatprep.subr.mxu0 0.0
        %691 = vmatpush1.msra.mxu0 0.0
        %692 = vmatprep.subr.mxu0 0.0
        %693 = vmatpush1.msra.mxu0 0.0
        %694 = vmatprep.subr.mxu0 0.0
        %695 = vmatpush1.msra.mxu0 0.0
        %696 = vmatprep.subr.mxu0 0.0
        %697 = vmatpush1.msra.mxu0 0.0
        %698 = vmatprep.subr.mxu0 0.0
        %699 = vmatpush1.msra.mxu0 %v662
        %700 = vmatprep.subr.mxu0 0.0
        %701 = vmatpush1.msra.mxu0 %v661
        %702 = vmatprep.subr.mxu0 0.0
        %703 = vmatpush1.msra.mxu0 %v660
        %704 = vmatprep.subr.mxu0 0.0
        %705 = vmatpush1.msra.mxu0 %v659
        %706 = vmatprep.subr.mxu0 0.0
        %707 = vmatpush2.msra.mxu0 0.0
        %708 = vmatprep.subr.mxu0 0.0
        %709 = vmatpush2.msra.mxu0 0.0
        %710 = vmatprep.subr.mxu0 0.0
        %711 = vmatpush2.msra.mxu0 0.0
        %712 = vmatprep.subr.mxu0 0.0
        %713 = vmatpush2.msra.mxu0 0.0
        %714 = vmatprep.subr.mxu0 0.0
        %715 = vmatpush2.msra.mxu0 0.0
        %716 = vmatprep.subr.mxu0 0.0
        %717 = vmatpush2.msra.mxu0 0.0
        %718 = vmatprep.subr.mxu0 0.0
        %719 = vmatpush2.msra.mxu0 0.0
        %720 = vmatprep.subr.mxu0 0.0
        %721 = vmatpush2.msra.mxu0 0.0
        %722 = vmatprep.subr.mxu0 0.0
        %723 = vmatpush2.msra.mxu0 0.0
        %724 = vmatprep.subr.mxu0 0.0
        %725 = vmatpush2.msra.mxu0 0.0
        %726 = vmatprep.subr.mxu0 0.0
        %727 = vmatpush2.msra.mxu0 0.0
        %728 = vmatprep.subr.mxu0 0.0
        %729 = vmatpush2.msra.mxu0 0.0
        %730 = vmatprep.subr.mxu0 0.0
        %731 = vmatpush2.msra.mxu0 0.0
        %732 = vmatprep.subr.mxu0 0.0
        %733 = vmatpush2.msra.mxu0 0.0
        %734 = vmatprep.subr.mxu0 0.0
        %735 = vmatpush2.msra.mxu0 0.0
        %736 = vmatprep.subr.mxu0 0.0
        %737 = vmatpush2.msra.mxu0 0.0
        %738 = vmatprep.mubr.f32.mxu0 0.0
        %739 = vmatmul.mubr.f32.gmra.mxu0 %v672
        %v740 = vpop.f32.mrf.mxu0
        %v741 = vadd.f32 %v668, %v740
        %v742 = vpop.f32.mrf.mxu0
        %743 = vdwg.mxu0
        %v744 = vld [vmem:[%s12] sm:$0x1]
        %v746 = vlaneseq
        %v747 = vshrl.u32 %v746, 7
        %v748 = vsub.s32 0, %v747
        %v749 = vrot.slane %v744, %v748
        %750 = vrot.lane.b32.xlu0 %v749, 32
        %v751 = vpop.permute.xlu0 %750
        %v753 = vadd.f32 %v741, %v751
        %v754 = vld [vmem:[%s6] sm:$0xff]
        %v755 = vld [vmem:[%s6 + $0x8] sm:$0xff]
        %v756 = vld [vmem:[%s6 + $0x10] sm:$0xff]
        %v757 = vld [vmem:[%s6 + $0x18] sm:$0xff]
        %v758 = vld [vmem:[%s7] sm:$0x1]
        %v760 = vlaneseq
        %v761 = vshrl.u32 %v760, 7
        %v762 = vsub.s32 0, %v761
        %v763 = vrot.slane %v758, %v762
        %v766 = vsel %vm670, %v657, 0
        %768 = vmatprep.subr.mxu0 0.0
        %769 = vmatpush1.msra.mxu0 0.0
        %770 = vmatprep.subr.mxu0 0.0
        %771 = vmatpush1.msra.mxu0 0.0
        %772 = vmatprep.subr.mxu0 0.0
        %773 = vmatpush1.msra.mxu0 0.0
        %774 = vmatprep.subr.mxu0 0.0
        %775 = vmatpush1.msra.mxu0 0.0
        %776 = vmatprep.subr.mxu0 0.0
        %777 = vmatpush1.msra.mxu0 0.0
        %778 = vmatprep.subr.mxu0 0.0
        %779 = vmatpush1.msra.mxu0 0.0
        %780 = vmatprep.subr.mxu0 0.0
        %781 = vmatpush1.msra.mxu0 0.0
        %782 = vmatprep.subr.mxu0 0.0
        %783 = vmatpush1.msra.mxu0 0.0
        %784 = vmatprep.subr.mxu0 0.0
        %785 = vmatpush1.msra.mxu0 0.0
        %786 = vmatprep.subr.mxu0 0.0
        %787 = vmatpush1.msra.mxu0 0.0
        %788 = vmatprep.subr.mxu0 0.0
        %789 = vmatpush1.msra.mxu0 0.0
        %790 = vmatprep.subr.mxu0 0.0
        %791 = vmatpush1.msra.mxu0 0.0
        %792 = vmatprep.subr.mxu0 0.0
        %793 = vmatpush1.msra.mxu0 %v757
        %794 = vmatprep.subr.mxu0 0.0
        %795 = vmatpush1.msra.mxu0 %v756
        %796 = vmatprep.subr.mxu0 0.0
        %797 = vmatpush1.msra.mxu0 %v755
        %798 = vmatprep.subr.mxu0 0.0
        %799 = vmatpush1.msra.mxu0 %v754
        %800 = vmatprep.subr.mxu0 0.0
        %801 = vmatpush2.msra.mxu0 0.0
        %802 = vmatprep.subr.mxu0 0.0
        %803 = vmatpush2.msra.mxu0 0.0
        %804 = vmatprep.subr.mxu0 0.0
        %805 = vmatpush2.msra.mxu0 0.0
        %806 = vmatprep.subr.mxu0 0.0
        %807 = vmatpush2.msra.mxu0 0.0
        %808 = vmatprep.subr.mxu0 0.0
        %809 = vmatpush2.msra.mxu0 0.0
        %810 = vmatprep.subr.mxu0 0.0
        %811 = vmatpush2.msra.mxu0 0.0
        %812 = vmatprep.subr.mxu0 0.0
        %813 = vmatpush2.msra.mxu0 0.0
        %814 = vmatprep.subr.mxu0 0.0
        %815 = vmatpush2.msra.mxu0 0.0
        %816 = vmatprep.subr.mxu0 0.0
        %817 = vmatpush2.msra.mxu0 0.0
        %818 = vmatprep.subr.mxu0 0.0
        %819 = vmatpush2.msra.mxu0 0.0
        %820 = vmatprep.subr.mxu0 0.0
        %821 = vmatpush2.msra.mxu0 0.0
        %822 = vmatprep.subr.mxu0 0.0
        %823 = vmatpush2.msra.mxu0 0.0
        %824 = vmatprep.subr.mxu0 0.0
        %825 = vmatpush2.msra.mxu0 0.0
        %826 = vmatprep.subr.mxu0 0.0
        %827 = vmatpush2.msra.mxu0 0.0
        %828 = vmatprep.subr.mxu0 0.0
        %829 = vmatpush2.msra.mxu0 0.0
        %830 = vmatprep.subr.mxu0 0.0
        %831 = vmatpush2.msra.mxu0 0.0
        %832 = vmatprep.mubr.f32.mxu0 0.0
        %833 = vmatmul.mubr.f32.gmra.mxu0 %v766
        %v834 = vpop.f32.mrf.mxu0
        %v835 = vadd.f32 %v763, %v834
        %v836 = vpop.f32.mrf.mxu0
        %837 = vdwg.mxu0
        %v838 = vld [vmem:[#allocation10] sm:$0xff]
        %v839 = vld [vmem:[#allocation10 + $0x8] sm:$0xff]
        %v840 = vld [vmem:[#allocation10 + $0x10] sm:$0xff]
        %v841 = vld [vmem:[#allocation10 + $0x18] sm:$0xff]
        %v842 = vld [vmem:[%s9] sm:$0x1]
        %v844 = vlaneseq
        %v845 = vshrl.u32 %v844, 7
        %v846 = vsub.s32 0, %v845
        %v847 = vrot.slane %v842, %v846
        %v850 = vsel %vm670, %v658, 0
        %852 = vmatprep.subr.mxu0 0.0
        %853 = vmatpush1.msra.mxu0 0.0
        %854 = vmatprep.subr.mxu0 0.0
        %855 = vmatpush1.msra.mxu0 0.0
        %856 = vmatprep.subr.mxu0 0.0
        %857 = vmatpush1.msra.mxu0 0.0
        %858 = vmatprep.subr.mxu0 0.0
        %859 = vmatpush1.msra.mxu0 0.0
        %860 = vmatprep.subr.mxu0 0.0
        %861 = vmatpush1.msra.mxu0 0.0
        %862 = vmatprep.subr.mxu0 0.0
        %863 = vmatpush1.msra.mxu0 0.0
        %864 = vmatprep.subr.mxu0 0.0
        %865 = vmatpush1.msra.mxu0 0.0
        %866 = vmatprep.subr.mxu0 0.0
        %867 = vmatpush1.msra.mxu0 0.0
        %868 = vmatprep.subr.mxu0 0.0
        %869 = vmatpush1.msra.mxu0 0.0
        %870 = vmatprep.subr.mxu0 0.0
        %871 = vmatpush1.msra.mxu0 0.0
        %872 = vmatprep.subr.mxu0 0.0
        %873 = vmatpush1.msra.mxu0 0.0
        %874 = vmatprep.subr.mxu0 0.0
        %875 = vmatpush1.msra.mxu0 0.0
        %876 = vmatprep.subr.mxu0 0.0
        %877 = vmatpush1.msra.mxu0 %v841
        %878 = vmatprep.subr.mxu0 0.0
        %879 = vmatpush1.msra.mxu0 %v840
        %880 = vmatprep.subr.mxu0 0.0
        %881 = vmatpush1.msra.mxu0 %v839
        %882 = vmatprep.subr.mxu0 0.0
        %883 = vmatpush1.msra.mxu0 %v838
        %884 = vmatprep.subr.mxu0 0.0
        %885 = vmatpush2.msra.mxu0 0.0
        %886 = vmatprep.subr.mxu0 0.0
        %887 = vmatpush2.msra.mxu0 0.0
        %888 = vmatprep.subr.mxu0 0.0
        %889 = vmatpush2.msra.mxu0 0.0
        %890 = vmatprep.subr.mxu0 0.0
        %891 = vmatpush2.msra.mxu0 0.0
        %892 = vmatprep.subr.mxu0 0.0
        %893 = vmatpush2.msra.mxu0 0.0
        %894 = vmatprep.subr.mxu0 0.0
        %895 = vmatpush2.msra.mxu0 0.0
        %896 = vmatprep.subr.mxu0 0.0
        %897 = vmatpush2.msra.mxu0 0.0
        %898 = vmatprep.subr.mxu0 0.0
        %899 = vmatpush2.msra.mxu0 0.0
        %900 = vmatprep.subr.mxu0 0.0
        %901 = vmatpush2.msra.mxu0 0.0
        %902 = vmatprep.subr.mxu0 0.0
        %903 = vmatpush2.msra.mxu0 0.0
        %904 = vmatprep.subr.mxu0 0.0
        %905 = vmatpush2.msra.mxu0 0.0
        %906 = vmatprep.subr.mxu0 0.0
        %907 = vmatpush2.msra.mxu0 0.0
        %908 = vmatprep.subr.mxu0 0.0
        %909 = vmatpush2.msra.mxu0 0.0
        %910 = vmatprep.subr.mxu0 0.0
        %911 = vmatpush2.msra.mxu0 0.0
        %912 = vmatprep.subr.mxu0 0.0
        %913 = vmatpush2.msra.mxu0 0.0
        %914 = vmatprep.subr.mxu0 0.0
        %915 = vmatpush2.msra.mxu0 0.0
        %916 = vmatprep.mubr.f32.mxu0 0.0
        %917 = vmatmul.mubr.f32.gmra.mxu0 %v850
        %v918 = vpop.f32.mrf.mxu0
        %v919 = vadd.f32 %v847, %v918
        %v920 = vpop.f32.mrf.mxu0
        %921 = vdwg.mxu0
        %v922 = vld [vmem:[#allocation11] sm:$0xff]
        %v923 = vld [vmem:[#allocation11 + $0x8] sm:$0xff]
        %v924 = vld [vmem:[#allocation11 + $0x10] sm:$0xff]
        %v925 = vld [vmem:[#allocation11 + $0x18] sm:$0xff]
        %v927 = vsel %vm670, %v741, 0
        %929 = vmatprep.subr.mxu0 0.0
        %930 = vmatpush1.msra.mxu0 0.0
        %931 = vmatprep.subr.mxu0 0.0
        %932 = vmatpush1.msra.mxu0 0.0
        %933 = vmatprep.subr.mxu0 0.0
        %934 = vmatpush1.msra.mxu0 0.0
        %935 = vmatprep.subr.mxu0 0.0
        %936 = vmatpush1.msra.mxu0 0.0
        %937 = vmatprep.subr.mxu0 0.0
        %938 = vmatpush1.msra.mxu0 0.0
        %939 = vmatprep.subr.mxu0 0.0
        %940 = vmatpush1.msra.mxu0 0.0
        %941 = vmatprep.subr.mxu0 0.0
        %942 = vmatpush1.msra.mxu0 0.0
        %943 = vmatprep.subr.mxu0 0.0
        %944 = vmatpush1.msra.mxu0 0.0
        %945 = vmatprep.subr.mxu0 0.0
        %946 = vmatpush1.msra.mxu0 0.0
        %947 = vmatprep.subr.mxu0 0.0
        %948 = vmatpush1.msra.mxu0 0.0
        %949 = vmatprep.subr.mxu0 0.0
        %950 = vmatpush1.msra.mxu0 0.0
        %951 = vmatprep.subr.mxu0 0.0
        %952 = vmatpush1.msra.mxu0 0.0
        %953 = vmatprep.subr.mxu0 0.0
        %954 = vmatpush1.msra.mxu0 %v925
        %955 = vmatprep.subr.mxu0 0.0
        %956 = vmatpush1.msra.mxu0 %v924
        %957 = vmatprep.subr.mxu0 0.0
        %958 = vmatpush1.msra.mxu0 %v923
        %959 = vmatprep.subr.mxu0 0.0
        %960 = vmatpush1.msra.mxu0 %v922
        %961 = vmatprep.subr.mxu0 0.0
        %962 = vmatpush2.msra.mxu0 0.0
        %963 = vmatprep.subr.mxu0 0.0
        %964 = vmatpush2.msra.mxu0 0.0
        %965 = vmatprep.subr.mxu0 0.0
        %966 = vmatpush2.msra.mxu0 0.0
        %967 = vmatprep.subr.mxu0 0.0
        %968 = vmatpush2.msra.mxu0 0.0
        %969 = vmatprep.subr.mxu0 0.0
        %970 = vmatpush2.msra.mxu0 0.0
        %971 = vmatprep.subr.mxu0 0.0
        %972 = vmatpush2.msra.mxu0 0.0
        %973 = vmatprep.subr.mxu0 0.0
        %974 = vmatpush2.msra.mxu0 0.0
        %975 = vmatprep.subr.mxu0 0.0
        %976 = vmatpush2.msra.mxu0 0.0
        %977 = vmatprep.subr.mxu0 0.0
        %978 = vmatpush2.msra.mxu0 0.0
        %979 = vmatprep.subr.mxu0 0.0
        %980 = vmatpush2.msra.mxu0 0.0
        %981 = vmatprep.subr.mxu0 0.0
        %982 = vmatpush2.msra.mxu0 0.0
        %983 = vmatprep.subr.mxu0 0.0
        %984 = vmatpush2.msra.mxu0 0.0
        %985 = vmatprep.subr.mxu0 0.0
        %986 = vmatpush2.msra.mxu0 0.0
        %987 = vmatprep.subr.mxu0 0.0
        %988 = vmatpush2.msra.mxu0 0.0
        %989 = vmatprep.subr.mxu0 0.0
        %990 = vmatpush2.msra.mxu0 0.0
        %991 = vmatprep.subr.mxu0 0.0
        %992 = vmatpush2.msra.mxu0 0.0
        %993 = vmatprep.mubr.f32.mxu0 0.0
        %994 = vmatmul.mubr.f32.gmra.mxu0 %v927
        %v995 = vpop.f32.mrf.mxu0
        %v996 = vadd.f32 0.0, %v995
        %v997 = vpop.f32.mrf.mxu0
        %998 = vdwg.mxu0
        %1000 = vrot.lane.b32.xlu0 %v996, 96
        %v1001 = vpop.permute.xlu0 %1000
        %1003 = vrot.lane.b32.xlu0 %v996, 64
        %v1004 = vpop.permute.xlu0 %1003
        %1006 = vrot.lane.b32.xlu0 %v996, 32
        %v1007 = vpop.permute.xlu0 %1006
        %v1009 = vcombine.low %v996, %v1004
        %v1010 = vcombine.high %v996, %v1004
        %v1012 = vunpack.c.l.s4 1983009808
        %v1013 = vunpack.c.0.s8 %v1012
        %v1014 = vlaneseq
        %v1015 = vshrl.u32 %v1014, 7
        %v1016 = vsub.s32 %v1013, %v1015
        %v1017 = vrot.slane %v1009, %v1016
        %v1019 = vunpack.c.l.s4 1983009808
        %v1020 = vunpack.c.0.s8 %v1019
        %v1021 = vlaneseq
        %v1022 = vshrl.u32 %v1021, 7
        %v1023 = vsub.s32 %v1020, %v1022
        %v1024 = vrot.slane %v1010, %v1023
        %v1025 = vcombine.low %v1001, %v1007
        %v1026 = vcombine.high %v1001, %v1007
        %v1028 = vunpack.c.l.s4 1983009808
        %v1029 = vunpack.c.0.s8 %v1028
        %v1030 = vlaneseq
        %v1031 = vshrl.u32 %v1030, 7
        %v1032 = vsub.s32 %v1029, %v1031
        %v1033 = vrot.slane %v1025, %v1032
        %v1035 = vunpack.c.l.s4 1983009808
        %v1036 = vunpack.c.0.s8 %v1035
        %v1037 = vlaneseq
        %v1038 = vshrl.u32 %v1037, 7
        %v1039 = vsub.s32 %v1036, %v1038
        %v1040 = vrot.slane %v1026, %v1039
        %v1041 = vcombine.low %v1017, %v1033
        %v1042 = vcombine.high %v1017, %v1033
        %v1044 = vunpack.c.l.s4 1934713408
        %v1045 = vunpack.c.0.s8 %v1044
        %v1046 = vlaneseq
        %v1047 = vshrl.u32 %v1046, 7
        %v1048 = vsub.s32 %v1045, %v1047
        %v1049 = vrot.slane %v1041, %v1048
        %v1051 = vunpack.c.l.s4 1934713408
        %v1052 = vunpack.c.0.s8 %v1051
        %v1053 = vlaneseq
        %v1054 = vshrl.u32 %v1053, 7
        %v1055 = vsub.s32 %v1052, %v1054
        %v1056 = vrot.slane %v1042, %v1055
        %v1057 = vcombine.low %v1024, %v1040
        %v1058 = vcombine.high %v1024, %v1040
        %v1060 = vunpack.c.l.s4 1934713408
        %v1061 = vunpack.c.0.s8 %v1060
        %v1062 = vlaneseq
        %v1063 = vshrl.u32 %v1062, 7
        %v1064 = vsub.s32 %v1061, %v1063
        %v1065 = vrot.slane %v1057, %v1064
        %v1067 = vunpack.c.l.s4 1934713408
        %v1068 = vunpack.c.0.s8 %v1067
        %v1069 = vlaneseq
        %v1070 = vshrl.u32 %v1069, 7
        %v1071 = vsub.s32 %v1068, %v1070
        %v1072 = vrot.slane %v1058, %v1071
        %v1073 = vcombine.high %v1049, 0.0
        %v1074 = vcombine.high %v1056, 0.0
        %v1075 = vcombine.high %v1065, 0.0
        %v1076 = vcombine.high %v1072, 0.0
        %v1077 = vld [vmem:[%s655] sm:$0xff]
        %v1078 = vlaneseq
        %v1079 = vand.u32 %v1078, 127
        %v1080 = vlaneseq
        %v1081 = vshrl.u32 %v1080, 7
        %v1082 = vsub.s32 0, %v1081
        %v1083 = vrot.slane %v1077, %v1082
        %1085 = vbcast.lane.b32.xlu0 %v1083, 256
        %v1086 = vpop.permute.xlu0 %1085
        %v1087 = vlaneseq
        %v1088 = vshrl.u32 %v1087, 7
        %v1089 = vsub.s32 1, %v1088
        %v1090 = vrot.slane %v1077, %v1089
        %1092 = vbcast.lane.b32.xlu0 %v1090, 256
        %v1093 = vpop.permute.xlu0 %1092
        %v1094 = vlaneseq
        %v1095 = vshrl.u32 %v1094, 7
        %v1096 = vsub.s32 2, %v1095
        %v1097 = vrot.slane %v1077, %v1096
        %1099 = vbcast.lane.b32.xlu0 %v1097, 256
        %v1100 = vpop.permute.xlu0 %1099
        %v1101 = vlaneseq
        %v1102 = vshrl.u32 %v1101, 7
        %v1103 = vsub.s32 3, %v1102
        %v1104 = vrot.slane %v1077, %v1103
        %1106 = vbcast.lane.b32.xlu0 %v1104, 256
        %v1107 = vpop.permute.xlu0 %1106
        %v1108 = vlaneseq
        %v1109 = vshrl.u32 %v1108, 7
        %v1110 = vsub.s32 4, %v1109
        %v1111 = vrot.slane %v1077, %v1110
        %1113 = vbcast.lane.b32.xlu0 %v1111, 256
        %v1114 = vpop.permute.xlu0 %1113
        %v1115 = vlaneseq
        %v1116 = vshrl.u32 %v1115, 7
        %v1117 = vsub.s32 5, %v1116
        %v1118 = vrot.slane %v1077, %v1117
        %1120 = vbcast.lane.b32.xlu0 %v1118, 256
        %v1121 = vpop.permute.xlu0 %1120
        %v1122 = vlaneseq
        %v1123 = vshrl.u32 %v1122, 7
        %v1124 = vsub.s32 6, %v1123
        %v1125 = vrot.slane %v1077, %v1124
        %1127 = vbcast.lane.b32.xlu0 %v1125, 256
        %v1128 = vpop.permute.xlu0 %1127
        %v1129 = vlaneseq
        %v1130 = vshrl.u32 %v1129, 7
        %v1131 = vsub.s32 7, %v1130
        %v1132 = vrot.slane %v1077, %v1131
        %1134 = vbcast.lane.b32.xlu0 %v1132, 256
        %v1135 = vpop.permute.xlu0 %1134
        %vm1136 = vcmp.eq.s32.totalorder %v1086, %v1079
        %vm1137 = vcmp.eq.s32.totalorder %v1093, %v1079
        %vm1138 = vcmp.eq.s32.totalorder %v1100, %v1079
        %vm1139 = vcmp.eq.s32.totalorder %v1107, %v1079
        %vm1140 = vcmp.eq.s32.totalorder %v1114, %v1079
        %vm1141 = vcmp.eq.s32.totalorder %v1121, %v1079
        %vm1142 = vcmp.eq.s32.totalorder %v1128, %v1079
        %vm1143 = vcmp.eq.s32.totalorder %v1135, %v1079
        %v1144 = vsel %vm1136, 1, 0
        %v1145 = vsel %vm1137, 1, 0
        %v1146 = vsel %vm1138, 1, 0
        %v1147 = vsel %vm1139, 1, 0
        %v1148 = vsel %vm1140, 1, 0
        %v1149 = vsel %vm1141, 1, 0
        %v1150 = vsel %vm1142, 1, 0
        %v1151 = vsel %vm1143, 1, 0
        %v1152 = vcvt.s32.f32 %v1144
        %v1153 = vcvt.s32.f32 %v1145
        %v1154 = vcvt.s32.f32 %v1146
        %v1155 = vcvt.s32.f32 %v1147
        %v1156 = vcvt.s32.f32 %v1148
        %v1157 = vcvt.s32.f32 %v1149
        %v1158 = vcvt.s32.f32 %v1150
        %v1159 = vcvt.s32.f32 %v1151
        %v1161 = vsel %vm670, %v1049, 0
        %v1164 = vsel %vm670, %v1152, 0
        %1166 = vmatprep.subr.mxu0 0.0
        %1167 = vmatpush1.xpose.msra.mxu0 0.0
        %1168 = vmatprep.subr.mxu0 0.0
        %1169 = vmatpush1.xpose.msra.mxu0 0.0
        %1170 = vmatprep.subr.mxu0 0.0
        %1171 = vmatpush1.xpose.msra.mxu0 0.0
        %1172 = vmatprep.subr.mxu0 0.0
        %1173 = vmatpush1.xpose.msra.mxu0 0.0
        %1174 = vmatprep.subr.mxu0 0.0
        %1175 = vmatpush1.xpose.msra.mxu0 0.0
        %1176 = vmatprep.subr.mxu0 0.0
        %1177 = vmatpush1.xpose.msra.mxu0 0.0
        %1178 = vmatprep.subr.mxu0 0.0
        %1179 = vmatpush1.xpose.msra.mxu0 0.0
        %1180 = vmatprep.subr.mxu0 0.0
        %1181 = vmatpush1.xpose.msra.mxu0 0.0
        %1182 = vmatprep.subr.mxu0 0.0
        %1183 = vmatpush1.xpose.msra.mxu0 0.0
        %1184 = vmatprep.subr.mxu0 0.0
        %1185 = vmatpush1.xpose.msra.mxu0 0.0
        %1186 = vmatprep.subr.mxu0 0.0
        %1187 = vmatpush1.xpose.msra.mxu0 0.0
        %1188 = vmatprep.subr.mxu0 0.0
        %1189 = vmatpush1.xpose.msra.mxu0 0.0
        %1190 = vmatprep.subr.mxu0 0.0
        %1191 = vmatpush1.xpose.msra.mxu0 0.0
        %1192 = vmatprep.subr.mxu0 0.0
        %1193 = vmatpush1.xpose.msra.mxu0 0.0
        %1194 = vmatprep.subr.mxu0 0.0
        %1195 = vmatpush1.xpose.msra.mxu0 0.0
        %1196 = vmatprep.subr.mxu0 0.0
        %1197 = vmatpush1.xpose.msra.mxu0 %v1164
        %1198 = vmatprep.subr.mxu0 0.0
        %1199 = vmatpush2.xpose.msra.mxu0 0.0
        %1200 = vmatprep.subr.mxu0 0.0
        %1201 = vmatpush2.xpose.msra.mxu0 0.0
        %1202 = vmatprep.subr.mxu0 0.0
        %1203 = vmatpush2.xpose.msra.mxu0 0.0
        %1204 = vmatprep.subr.mxu0 0.0
        %1205 = vmatpush2.xpose.msra.mxu0 0.0
        %1206 = vmatprep.subr.mxu0 0.0
        %1207 = vmatpush2.xpose.msra.mxu0 0.0
        %1208 = vmatprep.subr.mxu0 0.0
        %1209 = vmatpush2.xpose.msra.mxu0 0.0
        %1210 = vmatprep.subr.mxu0 0.0
        %1211 = vmatpush2.xpose.msra.mxu0 0.0
        %1212 = vmatprep.subr.mxu0 0.0
        %1213 = vmatpush2.xpose.msra.mxu0 0.0
        %1214 = vmatprep.subr.mxu0 0.0
        %1215 = vmatpush2.xpose.msra.mxu0 0.0
        %1216 = vmatprep.subr.mxu0 0.0
        %1217 = vmatpush2.xpose.msra.mxu0 0.0
        %1218 = vmatprep.subr.mxu0 0.0
        %1219 = vmatpush2.xpose.msra.mxu0 0.0
        %1220 = vmatprep.subr.mxu0 0.0
        %1221 = vmatpush2.xpose.msra.mxu0 0.0
        %1222 = vmatprep.subr.mxu0 0.0
        %1223 = vmatpush2.xpose.msra.mxu0 0.0
        %1224 = vmatprep.subr.mxu0 0.0
        %1225 = vmatpush2.xpose.msra.mxu0 0.0
        %1226 = vmatprep.subr.mxu0 0.0
        %1227 = vmatpush2.xpose.msra.mxu0 0.0
        %1228 = vmatprep.subr.mxu0 0.0
        %1229 = vmatpush2.xpose.msra.mxu0 0.0
        %1230 = vmatprep.mubr.f32.mxu0 0.0
        %1231 = vmatmul.mubr.f32.gmra.mxu0 %v1161
        %v1232 = vpop.f32.mrf.mxu0
        %v1233 = vadd.f32 0.0, %v1232
        %v1234 = vpop.f32.mrf.mxu0
        %1235 = vdwg.mxu0
        %v1237 = vsel %vm670, %v1073, 0
        %v1240 = vsel %vm670, %v1153, 0
        %1242 = vmatprep.subr.mxu0 0.0
        %1243 = vmatpush1.xpose.msra.mxu0 0.0
        %1244 = vmatprep.subr.mxu0 0.0
        %1245 = vmatpush1.xpose.msra.mxu0 0.0
        %1246 = vmatprep.subr.mxu0 0.0
        %1247 = vmatpush1.xpose.msra.mxu0 0.0
        %1248 = vmatprep.subr.mxu0 0.0
        %1249 = vmatpush1.xpose.msra.mxu0 0.0
        %1250 = vmatprep.subr.mxu0 0.0
        %1251 = vmatpush1.xpose.msra.mxu0 0.0
        %1252 = vmatprep.subr.mxu0 0.0
        %1253 = vmatpush1.xpose.msra.mxu0 0.0
        %1254 = vmatprep.subr.mxu0 0.0
        %1255 = vmatpush1.xpose.msra.mxu0 0.0
        %1256 = vmatprep.subr.mxu0 0.0
        %1257 = vmatpush1.xpose.msra.mxu0 0.0
        %1258 = vmatprep.subr.mxu0 0.0
        %1259 = vmatpush1.xpose.msra.mxu0 0.0
        %1260 = vmatprep.subr.mxu0 0.0
        %1261 = vmatpush1.xpose.msra.mxu0 0.0
        %1262 = vmatprep.subr.mxu0 0.0
        %1263 = vmatpush1.xpose.msra.mxu0 0.0
        %1264 = vmatprep.subr.mxu0 0.0
        %1265 = vmatpush1.xpose.msra.mxu0 0.0
        %1266 = vmatprep.subr.mxu0 0.0
        %1267 = vmatpush1.xpose.msra.mxu0 0.0
        %1268 = vmatprep.subr.mxu0 0.0
        %1269 = vmatpush1.xpose.msra.mxu0 0.0
        %1270 = vmatprep.subr.mxu0 0.0
        %1271 = vmatpush1.xpose.msra.mxu0 0.0
        %1272 = vmatprep.subr.mxu0 0.0
        %1273 = vmatpush1.xpose.msra.mxu0 %v1240
        %1274 = vmatprep.subr.mxu0 0.0
        %1275 = vmatpush2.xpose.msra.mxu0 0.0
        %1276 = vmatprep.subr.mxu0 0.0
        %1277 = vmatpush2.xpose.msra.mxu0 0.0
        %1278 = vmatprep.subr.mxu0 0.0
        %1279 = vmatpush2.xpose.msra.mxu0 0.0
        %1280 = vmatprep.subr.mxu0 0.0
        %1281 = vmatpush2.xpose.msra.mxu0 0.0
        %1282 = vmatprep.subr.mxu0 0.0
        %1283 = vmatpush2.xpose.msra.mxu0 0.0
        %1284 = vmatprep.subr.mxu0 0.0
        %1285 = vmatpush2.xpose.msra.mxu0 0.0
        %1286 = vmatprep.subr.mxu0 0.0
        %1287 = vmatpush2.xpose.msra.mxu0 0.0
        %1288 = vmatprep.subr.mxu0 0.0
        %1289 = vmatpush2.xpose.msra.mxu0 0.0
        %1290 = vmatprep.subr.mxu0 0.0
        %1291 = vmatpush2.xpose.msra.mxu0 0.0
        %1292 = vmatprep.subr.mxu0 0.0
        %1293 = vmatpush2.xpose.msra.mxu0 0.0
        %1294 = vmatprep.subr.mxu0 0.0
        %1295 = vmatpush2.xpose.msra.mxu0 0.0
        %1296 = vmatprep.subr.mxu0 0.0
        %1297 = vmatpush2.xpose.msra.mxu0 0.0
        %1298 = vmatprep.subr.mxu0 0.0
        %1299 = vmatpush2.xpose.msra.mxu0 0.0
        %1300 = vmatprep.subr.mxu0 0.0
        %1301 = vmatpush2.xpose.msra.mxu0 0.0
        %1302 = vmatprep.subr.mxu0 0.0
        %1303 = vmatpush2.xpose.msra.mxu0 0.0
        %1304 = vmatprep.subr.mxu0 0.0
        %1305 = vmatpush2.xpose.msra.mxu0 0.0
        %1306 = vmatprep.mubr.f32.mxu0 0.0
        %1307 = vmatmul.mubr.f32.gmra.mxu0 %v1237
        %v1308 = vpop.f32.mrf.mxu0
        %v1309 = vadd.f32 0.0, %v1308
        %v1310 = vpop.f32.mrf.mxu0
        %1311 = vdwg.mxu0
        %v1313 = vsel %vm670, %v1056, 0
        %v1316 = vsel %vm670, %v1154, 0
        %1318 = vmatprep.subr.mxu0 0.0
        %1319 = vmatpush1.xpose.msra.mxu0 0.0
        %1320 = vmatprep.subr.mxu0 0.0
        %1321 = vmatpush1.xpose.msra.mxu0 0.0
        %1322 = vmatprep.subr.mxu0 0.0
        %1323 = vmatpush1.xpose.msra.mxu0 0.0
        %1324 = vmatprep.subr.mxu0 0.0
        %1325 = vmatpush1.xpose.msra.mxu0 0.0
        %1326 = vmatprep.subr.mxu0 0.0
        %1327 = vmatpush1.xpose.msra.mxu0 0.0
        %1328 = vmatprep.subr.mxu0 0.0
        %1329 = vmatpush1.xpose.msra.mxu0 0.0
        %1330 = vmatprep.subr.mxu0 0.0
        %1331 = vmatpush1.xpose.msra.mxu0 0.0
        %1332 = vmatprep.subr.mxu0 0.0
        %1333 = vmatpush1.xpose.msra.mxu0 0.0
        %1334 = vmatprep.subr.mxu0 0.0
        %1335 = vmatpush1.xpose.msra.mxu0 0.0
        %1336 = vmatprep.subr.mxu0 0.0
        %1337 = vmatpush1.xpose.msra.mxu0 0.0
        %1338 = vmatprep.subr.mxu0 0.0
        %1339 = vmatpush1.xpose.msra.mxu0 0.0
        %1340 = vmatprep.subr.mxu0 0.0
        %1341 = vmatpush1.xpose.msra.mxu0 0.0
        %1342 = vmatprep.subr.mxu0 0.0
        %1343 = vmatpush1.xpose.msra.mxu0 0.0
        %1344 = vmatprep.subr.mxu0 0.0
        %1345 = vmatpush1.xpose.msra.mxu0 0.0
        %1346 = vmatprep.subr.mxu0 0.0
        %1347 = vmatpush1.xpose.msra.mxu0 0.0
        %1348 = vmatprep.subr.mxu0 0.0
        %1349 = vmatpush1.xpose.msra.mxu0 %v1316
        %1350 = vmatprep.subr.mxu0 0.0
        %1351 = vmatpush2.xpose.msra.mxu0 0.0
        %1352 = vmatprep.subr.mxu0 0.0
        %1353 = vmatpush2.xpose.msra.mxu0 0.0
        %1354 = vmatprep.subr.mxu0 0.0
        %1355 = vmatpush2.xpose.msra.mxu0 0.0
        %1356 = vmatprep.subr.mxu0 0.0
        %1357 = vmatpush2.xpose.msra.mxu0 0.0
        %1358 = vmatprep.subr.mxu0 0.0
        %1359 = vmatpush2.xpose.msra.mxu0 0.0
        %1360 = vmatprep.subr.mxu0 0.0
        %1361 = vmatpush2.xpose.msra.mxu0 0.0
        %1362 = vmatprep.subr.mxu0 0.0
        %1363 = vmatpush2.xpose.msra.mxu0 0.0
        %1364 = vmatprep.subr.mxu0 0.0
        %1365 = vmatpush2.xpose.msra.mxu0 0.0
        %1366 = vmatprep.subr.mxu0 0.0
        %1367 = vmatpush2.xpose.msra.mxu0 0.0
        %1368 = vmatprep.subr.mxu0 0.0
        %1369 = vmatpush2.xpose.msra.mxu0 0.0
        %1370 = vmatprep.subr.mxu0 0.0
        %1371 = vmatpush2.xpose.msra.mxu0 0.0
        %1372 = vmatprep.subr.mxu0 0.0
        %1373 = vmatpush2.xpose.msra.mxu0 0.0
        %1374 = vmatprep.subr.mxu0 0.0
        %1375 = vmatpush2.xpose.msra.mxu0 0.0
        %1376 = vmatprep.subr.mxu0 0.0
        %1377 = vmatpush2.xpose.msra.mxu0 0.0
        %1378 = vmatprep.subr.mxu0 0.0
        %1379 = vmatpush2.xpose.msra.mxu0 0.0
        %1380 = vmatprep.subr.mxu0 0.0
        %1381 = vmatpush2.xpose.msra.mxu0 0.0
        %1382 = vmatprep.mubr.f32.mxu0 0.0
        %1383 = vmatmul.mubr.f32.gmra.mxu0 %v1313
        %v1384 = vpop.f32.mrf.mxu0
        %v1385 = vadd.f32 0.0, %v1384
        %v1386 = vpop.f32.mrf.mxu0
        %1387 = vdwg.mxu0
        %v1389 = vsel %vm670, %v1074, 0
        %v1392 = vsel %vm670, %v1155, 0
        %1394 = vmatprep.subr.mxu0 0.0
        %1395 = vmatpush1.xpose.msra.mxu0 0.0
        %1396 = vmatprep.subr.mxu0 0.0
        %1397 = vmatpush1.xpose.msra.mxu0 0.0
        %1398 = vmatprep.subr.mxu0 0.0
        %1399 = vmatpush1.xpose.msra.mxu0 0.0
        %1400 = vmatprep.subr.mxu0 0.0
        %1401 = vmatpush1.xpose.msra.mxu0 0.0
        %1402 = vmatprep.subr.mxu0 0.0
        %1403 = vmatpush1.xpose.msra.mxu0 0.0
        %1404 = vmatprep.subr.mxu0 0.0
        %1405 = vmatpush1.xpose.msra.mxu0 0.0
        %1406 = vmatprep.subr.mxu0 0.0
        %1407 = vmatpush1.xpose.msra.mxu0 0.0
        %1408 = vmatprep.subr.mxu0 0.0
        %1409 = vmatpush1.xpose.msra.mxu0 0.0
        %1410 = vmatprep.subr.mxu0 0.0
        %1411 = vmatpush1.xpose.msra.mxu0 0.0
        %1412 = vmatprep.subr.mxu0 0.0
        %1413 = vmatpush1.xpose.msra.mxu0 0.0
        %1414 = vmatprep.subr.mxu0 0.0
        %1415 = vmatpush1.xpose.msra.mxu0 0.0
        %1416 = vmatprep.subr.mxu0 0.0
        %1417 = vmatpush1.xpose.msra.mxu0 0.0
        %1418 = vmatprep.subr.mxu0 0.0
        %1419 = vmatpush1.xpose.msra.mxu0 0.0
        %1420 = vmatprep.subr.mxu0 0.0
        %1421 = vmatpush1.xpose.msra.mxu0 0.0
        %1422 = vmatprep.subr.mxu0 0.0
        %1423 = vmatpush1.xpose.msra.mxu0 0.0
        %1424 = vmatprep.subr.mxu0 0.0
        %1425 = vmatpush1.xpose.msra.mxu0 %v1392
        %1426 = vmatprep.subr.mxu0 0.0
        %1427 = vmatpush2.xpose.msra.mxu0 0.0
        %1428 = vmatprep.subr.mxu0 0.0
        %1429 = vmatpush2.xpose.msra.mxu0 0.0
        %1430 = vmatprep.subr.mxu0 0.0
        %1431 = vmatpush2.xpose.msra.mxu0 0.0
        %1432 = vmatprep.subr.mxu0 0.0
        %1433 = vmatpush2.xpose.msra.mxu0 0.0
        %1434 = vmatprep.subr.mxu0 0.0
        %1435 = vmatpush2.xpose.msra.mxu0 0.0
        %1436 = vmatprep.subr.mxu0 0.0
        %1437 = vmatpush2.xpose.msra.mxu0 0.0
        %1438 = vmatprep.subr.mxu0 0.0
        %1439 = vmatpush2.xpose.msra.mxu0 0.0
        %1440 = vmatprep.subr.mxu0 0.0
        %1441 = vmatpush2.xpose.msra.mxu0 0.0
        %1442 = vmatprep.subr.mxu0 0.0
        %1443 = vmatpush2.xpose.msra.mxu0 0.0
        %1444 = vmatprep.subr.mxu0 0.0
        %1445 = vmatpush2.xpose.msra.mxu0 0.0
        %1446 = vmatprep.subr.mxu0 0.0
        %1447 = vmatpush2.xpose.msra.mxu0 0.0
        %1448 = vmatprep.subr.mxu0 0.0
        %1449 = vmatpush2.xpose.msra.mxu0 0.0
        %1450 = vmatprep.subr.mxu0 0.0
        %1451 = vmatpush2.xpose.msra.mxu0 0.0
        %1452 = vmatprep.subr.mxu0 0.0
        %1453 = vmatpush2.xpose.msra.mxu0 0.0
        %1454 = vmatprep.subr.mxu0 0.0
        %1455 = vmatpush2.xpose.msra.mxu0 0.0
        %1456 = vmatprep.subr.mxu0 0.0
        %1457 = vmatpush2.xpose.msra.mxu0 0.0
        %1458 = vmatprep.mubr.f32.mxu0 0.0
        %1459 = vmatmul.mubr.f32.gmra.mxu0 %v1389
        %v1460 = vpop.f32.mrf.mxu0
        %v1461 = vadd.f32 0.0, %v1460
        %v1462 = vpop.f32.mrf.mxu0
        %1463 = vdwg.mxu0
        %v1465 = vsel %vm670, %v1065, 0
        %v1468 = vsel %vm670, %v1156, 0
        %1470 = vmatprep.subr.mxu0 0.0
        %1471 = vmatpush1.xpose.msra.mxu0 0.0
        %1472 = vmatprep.subr.mxu0 0.0
        %1473 = vmatpush1.xpose.msra.mxu0 0.0
        %1474 = vmatprep.subr.mxu0 0.0
        %1475 = vmatpush1.xpose.msra.mxu0 0.0
        %1476 = vmatprep.subr.mxu0 0.0
        %1477 = vmatpush1.xpose.msra.mxu0 0.0
        %1478 = vmatprep.subr.mxu0 0.0
        %1479 = vmatpush1.xpose.msra.mxu0 0.0
        %1480 = vmatprep.subr.mxu0 0.0
        %1481 = vmatpush1.xpose.msra.mxu0 0.0
        %1482 = vmatprep.subr.mxu0 0.0
        %1483 = vmatpush1.xpose.msra.mxu0 0.0
        %1484 = vmatprep.subr.mxu0 0.0
        %1485 = vmatpush1.xpose.msra.mxu0 0.0
        %1486 = vmatprep.subr.mxu0 0.0
        %1487 = vmatpush1.xpose.msra.mxu0 0.0
        %1488 = vmatprep.subr.mxu0 0.0
        %1489 = vmatpush1.xpose.msra.mxu0 0.0
        %1490 = vmatprep.subr.mxu0 0.0
        %1491 = vmatpush1.xpose.msra.mxu0 0.0
        %1492 = vmatprep.subr.mxu0 0.0
        %1493 = vmatpush1.xpose.msra.mxu0 0.0
        %1494 = vmatprep.subr.mxu0 0.0
        %1495 = vmatpush1.xpose.msra.mxu0 0.0
        %1496 = vmatprep.subr.mxu0 0.0
        %1497 = vmatpush1.xpose.msra.mxu0 0.0
        %1498 = vmatprep.subr.mxu0 0.0
        %1499 = vmatpush1.xpose.msra.mxu0 0.0
        %1500 = vmatprep.subr.mxu0 0.0
        %1501 = vmatpush1.xpose.msra.mxu0 %v1468
        %1502 = vmatprep.subr.mxu0 0.0
        %1503 = vmatpush2.xpose.msra.mxu0 0.0
        %1504 = vmatprep.subr.mxu0 0.0
        %1505 = vmatpush2.xpose.msra.mxu0 0.0
        %1506 = vmatprep.subr.mxu0 0.0
        %1507 = vmatpush2.xpose.msra.mxu0 0.0
        %1508 = vmatprep.subr.mxu0 0.0
        %1509 = vmatpush2.xpose.msra.mxu0 0.0
        %1510 = vmatprep.subr.mxu0 0.0
        %1511 = vmatpush2.xpose.msra.mxu0 0.0
        %1512 = vmatprep.subr.mxu0 0.0
        %1513 = vmatpush2.xpose.msra.mxu0 0.0
        %1514 = vmatprep.subr.mxu0 0.0
        %1515 = vmatpush2.xpose.msra.mxu0 0.0
        %1516 = vmatprep.subr.mxu0 0.0
        %1517 = vmatpush2.xpose.msra.mxu0 0.0
        %1518 = vmatprep.subr.mxu0 0.0
        %1519 = vmatpush2.xpose.msra.mxu0 0.0
        %1520 = vmatprep.subr.mxu0 0.0
        %1521 = vmatpush2.xpose.msra.mxu0 0.0
        %1522 = vmatprep.subr.mxu0 0.0
        %1523 = vmatpush2.xpose.msra.mxu0 0.0
        %1524 = vmatprep.subr.mxu0 0.0
        %1525 = vmatpush2.xpose.msra.mxu0 0.0
        %1526 = vmatprep.subr.mxu0 0.0
        %1527 = vmatpush2.xpose.msra.mxu0 0.0
        %1528 = vmatprep.subr.mxu0 0.0
        %1529 = vmatpush2.xpose.msra.mxu0 0.0
        %1530 = vmatprep.subr.mxu0 0.0
        %1531 = vmatpush2.xpose.msra.mxu0 0.0
        %1532 = vmatprep.subr.mxu0 0.0
        %1533 = vmatpush2.xpose.msra.mxu0 0.0
        %1534 = vmatprep.mubr.f32.mxu0 0.0
        %1535 = vmatmul.mubr.f32.gmra.mxu0 %v1465
        %v1536 = vpop.f32.mrf.mxu0
        %v1537 = vadd.f32 0.0, %v1536
        %v1538 = vpop.f32.mrf.mxu0
        %1539 = vdwg.mxu0
        %v1541 = vsel %vm670, %v1075, 0
        %v1544 = vsel %vm670, %v1157, 0
        %1546 = vmatprep.subr.mxu0 0.0
        %1547 = vmatpush1.xpose.msra.mxu0 0.0
        %1548 = vmatprep.subr.mxu0 0.0
        %1549 = vmatpush1.xpose.msra.mxu0 0.0
        %1550 = vmatprep.subr.mxu0 0.0
        %1551 = vmatpush1.xpose.msra.mxu0 0.0
        %1552 = vmatprep.subr.mxu0 0.0
        %1553 = vmatpush1.xpose.msra.mxu0 0.0
        %1554 = vmatprep.subr.mxu0 0.0
        %1555 = vmatpush1.xpose.msra.mxu0 0.0
        %1556 = vmatprep.subr.mxu0 0.0
        %1557 = vmatpush1.xpose.msra.mxu0 0.0
        %1558 = vmatprep.subr.mxu0 0.0
        %1559 = vmatpush1.xpose.msra.mxu0 0.0
        %1560 = vmatprep.subr.mxu0 0.0
        %1561 = vmatpush1.xpose.msra.mxu0 0.0
        %1562 = vmatprep.subr.mxu0 0.0
        %1563 = vmatpush1.xpose.msra.mxu0 0.0
        %1564 = vmatprep.subr.mxu0 0.0
        %1565 = vmatpush1.xpose.msra.mxu0 0.0
        %1566 = vmatprep.subr.mxu0 0.0
        %1567 = vmatpush1.xpose.msra.mxu0 0.0
        %1568 = vmatprep.subr.mxu0 0.0
        %1569 = vmatpush1.xpose.msra.mxu0 0.0
        %1570 = vmatprep.subr.mxu0 0.0
        %1571 = vmatpush1.xpose.msra.mxu0 0.0
        %1572 = vmatprep.subr.mxu0 0.0
        %1573 = vmatpush1.xpose.msra.mxu0 0.0
        %1574 = vmatprep.subr.mxu0 0.0
        %1575 = vmatpush1.xpose.msra.mxu0 0.0
        %1576 = vmatprep.subr.mxu0 0.0
        %1577 = vmatpush1.xpose.msra.mxu0 %v1544
        %1578 = vmatprep.subr.mxu0 0.0
        %1579 = vmatpush2.xpose.msra.mxu0 0.0
        %1580 = vmatprep.subr.mxu0 0.0
        %1581 = vmatpush2.xpose.msra.mxu0 0.0
        %1582 = vmatprep.subr.mxu0 0.0
        %1583 = vmatpush2.xpose.msra.mxu0 0.0
        %1584 = vmatprep.subr.mxu0 0.0
        %1585 = vmatpush2.xpose.msra.mxu0 0.0
        %1586 = vmatprep.subr.mxu0 0.0
        %1587 = vmatpush2.xpose.msra.mxu0 0.0
        %1588 = vmatprep.subr.mxu0 0.0
        %1589 = vmatpush2.xpose.msra.mxu0 0.0
        %1590 = vmatprep.subr.mxu0 0.0
        %1591 = vmatpush2.xpose.msra.mxu0 0.0
        %1592 = vmatprep.subr.mxu0 0.0
        %1593 = vmatpush2.xpose.msra.mxu0 0.0
        %1594 = vmatprep.subr.mxu0 0.0
        %1595 = vmatpush2.xpose.msra.mxu0 0.0
        %1596 = vmatprep.subr.mxu0 0.0
        %1597 = vmatpush2.xpose.msra.mxu0 0.0
        %1598 = vmatprep.subr.mxu0 0.0
        %1599 = vmatpush2.xpose.msra.mxu0 0.0
        %1600 = vmatprep.subr.mxu0 0.0
        %1601 = vmatpush2.xpose.msra.mxu0 0.0
        %1602 = vmatprep.subr.mxu0 0.0
        %1603 = vmatpush2.xpose.msra.mxu0 0.0
        %1604 = vmatprep.subr.mxu0 0.0
        %1605 = vmatpush2.xpose.msra.mxu0 0.0
        %1606 = vmatprep.subr.mxu0 0.0
        %1607 = vmatpush2.xpose.msra.mxu0 0.0
        %1608 = vmatprep.subr.mxu0 0.0
        %1609 = vmatpush2.xpose.msra.mxu0 0.0
        %1610 = vmatprep.mubr.f32.mxu0 0.0
        %1611 = vmatmul.mubr.f32.gmra.mxu0 %v1541
        %v1612 = vpop.f32.mrf.mxu0
        %v1613 = vadd.f32 0.0, %v1612
        %v1614 = vpop.f32.mrf.mxu0
        %1615 = vdwg.mxu0
        %v1617 = vsel %vm670, %v1072, 0
        %v1620 = vsel %vm670, %v1158, 0
        %1622 = vmatprep.subr.mxu0 0.0
        %1623 = vmatpush1.xpose.msra.mxu0 0.0
        %1624 = vmatprep.subr.mxu0 0.0
        %1625 = vmatpush1.xpose.msra.mxu0 0.0
        %1626 = vmatprep.subr.mxu0 0.0
        %1627 = vmatpush1.xpose.msra.mxu0 0.0
        %1628 = vmatprep.subr.mxu0 0.0
        %1629 = vmatpush1.xpose.msra.mxu0 0.0
        %1630 = vmatprep.subr.mxu0 0.0
        %1631 = vmatpush1.xpose.msra.mxu0 0.0
        %1632 = vmatprep.subr.mxu0 0.0
        %1633 = vmatpush1.xpose.msra.mxu0 0.0
        %1634 = vmatprep.subr.mxu0 0.0
        %1635 = vmatpush1.xpose.msra.mxu0 0.0
        %1636 = vmatprep.subr.mxu0 0.0
        %1637 = vmatpush1.xpose.msra.mxu0 0.0
        %1638 = vmatprep.subr.mxu0 0.0
        %1639 = vmatpush1.xpose.msra.mxu0 0.0
        %1640 = vmatprep.subr.mxu0 0.0
        %1641 = vmatpush1.xpose.msra.mxu0 0.0
        %1642 = vmatprep.subr.mxu0 0.0
        %1643 = vmatpush1.xpose.msra.mxu0 0.0
        %1644 = vmatprep.subr.mxu0 0.0
        %1645 = vmatpush1.xpose.msra.mxu0 0.0
        %1646 = vmatprep.subr.mxu0 0.0
        %1647 = vmatpush1.xpose.msra.mxu0 0.0
        %1648 = vmatprep.subr.mxu0 0.0
        %1649 = vmatpush1.xpose.msra.mxu0 0.0
        %1650 = vmatprep.subr.mxu0 0.0
        %1651 = vmatpush1.xpose.msra.mxu0 0.0
        %1652 = vmatprep.subr.mxu0 0.0
        %1653 = vmatpush1.xpose.msra.mxu0 %v1620
        %1654 = vmatprep.subr.mxu0 0.0
        %1655 = vmatpush2.xpose.msra.mxu0 0.0
        %1656 = vmatprep.subr.mxu0 0.0
        %1657 = vmatpush2.xpose.msra.mxu0 0.0
        %1658 = vmatprep.subr.mxu0 0.0
        %1659 = vmatpush2.xpose.msra.mxu0 0.0
        %1660 = vmatprep.subr.mxu0 0.0
        %1661 = vmatpush2.xpose.msra.mxu0 0.0
        %1662 = vmatprep.subr.mxu0 0.0
        %1663 = vmatpush2.xpose.msra.mxu0 0.0
        %1664 = vmatprep.subr.mxu0 0.0
        %1665 = vmatpush2.xpose.msra.mxu0 0.0
        %1666 = vmatprep.subr.mxu0 0.0
        %1667 = vmatpush2.xpose.msra.mxu0 0.0
        %1668 = vmatprep.subr.mxu0 0.0
        %1669 = vmatpush2.xpose.msra.mxu0 0.0
        %1670 = vmatprep.subr.mxu0 0.0
        %1671 = vmatpush2.xpose.msra.mxu0 0.0
        %1672 = vmatprep.subr.mxu0 0.0
        %1673 = vmatpush2.xpose.msra.mxu0 0.0
        %1674 = vmatprep.subr.mxu0 0.0
        %1675 = vmatpush2.xpose.msra.mxu0 0.0
        %1676 = vmatprep.subr.mxu0 0.0
        %1677 = vmatpush2.xpose.msra.mxu0 0.0
        %1678 = vmatprep.subr.mxu0 0.0
        %1679 = vmatpush2.xpose.msra.mxu0 0.0
        %1680 = vmatprep.subr.mxu0 0.0
        %1681 = vmatpush2.xpose.msra.mxu0 0.0
        %1682 = vmatprep.subr.mxu0 0.0
        %1683 = vmatpush2.xpose.msra.mxu0 0.0
        %1684 = vmatprep.subr.mxu0 0.0
        %1685 = vmatpush2.xpose.msra.mxu0 0.0
        %1686 = vmatprep.mubr.f32.mxu0 0.0
        %1687 = vmatmul.mubr.f32.gmra.mxu0 %v1617
        %v1688 = vpop.f32.mrf.mxu0
        %v1689 = vadd.f32 0.0, %v1688
        %v1690 = vpop.f32.mrf.mxu0
        %1691 = vdwg.mxu0
        %v1693 = vsel %vm670, %v1076, 0
        %v1696 = vsel %vm670, %v1159, 0
        %1698 = vmatprep.subr.mxu0 0.0
        %1699 = vmatpush1.xpose.msra.mxu0 0.0
        %1700 = vmatprep.subr.mxu0 0.0
        %1701 = vmatpush1.xpose.msra.mxu0 0.0
        %1702 = vmatprep.subr.mxu0 0.0
        %1703 = vmatpush1.xpose.msra.mxu0 0.0
        %1704 = vmatprep.subr.mxu0 0.0
        %1705 = vmatpush1.xpose.msra.mxu0 0.0
        %1706 = vmatprep.subr.mxu0 0.0
        %1707 = vmatpush1.xpose.msra.mxu0 0.0
        %1708 = vmatprep.subr.mxu0 0.0
        %1709 = vmatpush1.xpose.msra.mxu0 0.0
        %1710 = vmatprep.subr.mxu0 0.0
        %1711 = vmatpush1.xpose.msra.mxu0 0.0
        %1712 = vmatprep.subr.mxu0 0.0
        %1713 = vmatpush1.xpose.msra.mxu0 0.0
        %1714 = vmatprep.subr.mxu0 0.0
        %1715 = vmatpush1.xpose.msra.mxu0 0.0
        %1716 = vmatprep.subr.mxu0 0.0
        %1717 = vmatpush1.xpose.msra.mxu0 0.0
        %1718 = vmatprep.subr.mxu0 0.0
        %1719 = vmatpush1.xpose.msra.mxu0 0.0
        %1720 = vmatprep.subr.mxu0 0.0
        %1721 = vmatpush1.xpose.msra.mxu0 0.0
        %1722 = vmatprep.subr.mxu0 0.0
        %1723 = vmatpush1.xpose.msra.mxu0 0.0
        %1724 = vmatprep.subr.mxu0 0.0
        %1725 = vmatpush1.xpose.msra.mxu0 0.0
        %1726 = vmatprep.subr.mxu0 0.0
        %1727 = vmatpush1.xpose.msra.mxu0 0.0
        %1728 = vmatprep.subr.mxu0 0.0
        %1729 = vmatpush1.xpose.msra.mxu0 %v1696
        %1730 = vmatprep.subr.mxu0 0.0
        %1731 = vmatpush2.xpose.msra.mxu0 0.0
        %1732 = vmatprep.subr.mxu0 0.0
        %1733 = vmatpush2.xpose.msra.mxu0 0.0
        %1734 = vmatprep.subr.mxu0 0.0
        %1735 = vmatpush2.xpose.msra.mxu0 0.0
        %1736 = vmatprep.subr.mxu0 0.0
        %1737 = vmatpush2.xpose.msra.mxu0 0.0
        %1738 = vmatprep.subr.mxu0 0.0
        %1739 = vmatpush2.xpose.msra.mxu0 0.0
        %1740 = vmatprep.subr.mxu0 0.0
        %1741 = vmatpush2.xpose.msra.mxu0 0.0
        %1742 = vmatprep.subr.mxu0 0.0
        %1743 = vmatpush2.xpose.msra.mxu0 0.0
        %1744 = vmatprep.subr.mxu0 0.0
        %1745 = vmatpush2.xpose.msra.mxu0 0.0
        %1746 = vmatprep.subr.mxu0 0.0
        %1747 = vmatpush2.xpose.msra.mxu0 0.0
        %1748 = vmatprep.subr.mxu0 0.0
        %1749 = vmatpush2.xpose.msra.mxu0 0.0
        %1750 = vmatprep.subr.mxu0 0.0
        %1751 = vmatpush2.xpose.msra.mxu0 0.0
        %1752 = vmatprep.subr.mxu0 0.0
        %1753 = vmatpush2.xpose.msra.mxu0 0.0
        %1754 = vmatprep.subr.mxu0 0.0
        %1755 = vmatpush2.xpose.msra.mxu0 0.0
        %1756 = vmatprep.subr.mxu0 0.0
        %1757 = vmatpush2.xpose.msra.mxu0 0.0
        %1758 = vmatprep.subr.mxu0 0.0
        %1759 = vmatpush2.xpose.msra.mxu0 0.0
        %1760 = vmatprep.subr.mxu0 0.0
        %1761 = vmatpush2.xpose.msra.mxu0 0.0
        %1762 = vmatprep.mubr.f32.mxu0 0.0
        %1763 = vmatmul.mubr.f32.gmra.mxu0 %v1693
        %v1764 = vpop.f32.mrf.mxu0
        %v1765 = vadd.f32 0.0, %v1764
        %v1766 = vpop.f32.mrf.mxu0
        %1767 = vdwg.mxu0
        %v1776 = vrot.slane %v1309, 7
        %vm1777 = vcmask 1041409
        %v1778 = vsel %vm1777, %v1776, %v1233
        %v1779 = vrot.slane %v1385, 6
        %vm1780 = vcmask 1042434
        %v1781 = vsel %vm1780, %v1779, %v1778
        %v1782 = vrot.slane %v1461, 5
        %vm1783 = vcmask 1043459
        %v1784 = vsel %vm1783, %v1782, %v1781
        %v1785 = vrot.slane %v1537, 4
        %vm1786 = vcmask 1044484
        %v1787 = vsel %vm1786, %v1785, %v1784
        %v1788 = vrot.slane %v1613, 3
        %vm1789 = vcmask 1045509
        %v1790 = vsel %vm1789, %v1788, %v1787
        %v1791 = vrot.slane %v1689, 2
        %vm1792 = vcmask 1046534
        %v1793 = vsel %vm1792, %v1791, %v1790
        %v1794 = vrot.slane %v1765, 1
        %vm1795 = vcmask 1047559
        %v1796 = vsel %vm1795, %v1794, %v1793
        %vm1798 = vcmask 64512
        %v1799 = vsel %vm1798, %v741, 0
        %v1802 = vsel %vm1798, %v835, 0
        %1804 = vmatprep.subr.mxu0 0.0
        %1805 = vmatpush1.xpose.msra.mxu0 0.0
        %1806 = vmatprep.subr.mxu0 0.0
        %1807 = vmatpush1.xpose.msra.mxu0 0.0
        %1808 = vmatprep.subr.mxu0 0.0
        %1809 = vmatpush1.xpose.msra.mxu0 0.0
        %1810 = vmatprep.subr.mxu0 0.0
        %1811 = vmatpush1.xpose.msra.mxu0 0.0
        %1812 = vmatprep.subr.mxu0 0.0
        %1813 = vmatpush1.xpose.msra.mxu0 0.0
        %1814 = vmatprep.subr.mxu0 0.0
        %1815 = vmatpush1.xpose.msra.mxu0 0.0
        %1816 = vmatprep.subr.mxu0 0.0
        %1817 = vmatpush1.xpose.msra.mxu0 0.0
        %1818 = vmatprep.subr.mxu0 0.0
        %1819 = vmatpush1.xpose.msra.mxu0 0.0
        %1820 = vmatprep.subr.mxu0 0.0
        %1821 = vmatpush1.xpose.msra.mxu0 0.0
        %1822 = vmatprep.subr.mxu0 0.0
        %1823 = vmatpush1.xpose.msra.mxu0 0.0
        %1824 = vmatprep.subr.mxu0 0.0
        %1825 = vmatpush1.xpose.msra.mxu0 0.0
        %1826 = vmatprep.subr.mxu0 0.0
        %1827 = vmatpush1.xpose.msra.mxu0 0.0
        %1828 = vmatprep.subr.mxu0 0.0
        %1829 = vmatpush1.xpose.msra.mxu0 0.0
        %1830 = vmatprep.subr.mxu0 0.0
        %1831 = vmatpush1.xpose.msra.mxu0 0.0
        %1832 = vmatprep.subr.mxu0 0.0
        %1833 = vmatpush1.xpose.msra.mxu0 0.0
        %1834 = vmatprep.subr.mxu0 0.0
        %1835 = vmatpush1.xpose.msra.mxu0 %v1802
        %1836 = vmatprep.subr.mxu0 0.0
        %1837 = vmatpush2.xpose.msra.mxu0 0.0
        %1838 = vmatprep.subr.mxu0 0.0
        %1839 = vmatpush2.xpose.msra.mxu0 0.0
        %1840 = vmatprep.subr.mxu0 0.0
        %1841 = vmatpush2.xpose.msra.mxu0 0.0
        %1842 = vmatprep.subr.mxu0 0.0
        %1843 = vmatpush2.xpose.msra.mxu0 0.0
        %1844 = vmatprep.subr.mxu0 0.0
        %1845 = vmatpush2.xpose.msra.mxu0 0.0
        %1846 = vmatprep.subr.mxu0 0.0
        %1847 = vmatpush2.xpose.msra.mxu0 0.0
        %1848 = vmatprep.subr.mxu0 0.0
        %1849 = vmatpush2.xpose.msra.mxu0 0.0
        %1850 = vmatprep.subr.mxu0 0.0
        %1851 = vmatpush2.xpose.msra.mxu0 0.0
        %1852 = vmatprep.subr.mxu0 0.0
        %1853 = vmatpush2.xpose.msra.mxu0 0.0
        %1854 = vmatprep.subr.mxu0 0.0
        %1855 = vmatpush2.xpose.msra.mxu0 0.0
        %1856 = vmatprep.subr.mxu0 0.0
        %1857 = vmatpush2.xpose.msra.mxu0 0.0
        %1858 = vmatprep.subr.mxu0 0.0
        %1859 = vmatpush2.xpose.msra.mxu0 0.0
        %1860 = vmatprep.subr.mxu0 0.0
        %1861 = vmatpush2.xpose.msra.mxu0 0.0
        %1862 = vmatprep.subr.mxu0 0.0
        %1863 = vmatpush2.xpose.msra.mxu0 0.0
        %1864 = vmatprep.subr.mxu0 0.0
        %1865 = vmatpush2.xpose.msra.mxu0 0.0
        %1866 = vmatprep.subr.mxu0 0.0
        %1867 = vmatpush2.xpose.msra.mxu0 0.0
        %1868 = vmatprep.mubr.f32.mxu0 0.0
        %1869 = vmatmul.mubr.f32.gmra.mxu0 %v1799
        %v1870 = vpop.f32.mrf.mxu0
        %v1871 = vadd.f32 %v1796, %v1870
        %v1872 = vpop.f32.mrf.mxu0
        %1873 = vdwg.mxu0
        %v1874 = vsel %vm1798, %v1871, -inf
        %1875 = vmax.xlane.f32.xlu0 %v1874
        %v1876 = vpop.xlane.xlu0 %1875
        %v1877 = vsub.f32 %v1871, %v1876
        %v1878 = vmul.f32 %v1877, 1.442695
        %v1879 = vpow.pop %v1878
        %v1880 = vsel %vm1798, %v1879, 0.0
        %1881 = vadd.xlane.f32.xlu0 %v1880
        %v1882 = vpop.xlane.xlu0 %1881
        %v1883 = vrcp.pop %v1882
        %v1884 = vmul.f32 %v1879, %v1883
        %v1886 = vsel %vm1798, %v1884, 0
        %1888 = vmatprep.subr.mxu0 0.0
        %1889 = vmatpush1.msra.mxu0 0.0
        %1890 = vmatprep.subr.mxu0 0.0
        %1891 = vmatpush1.msra.mxu0 0.0
        %1892 = vmatprep.subr.mxu0 0.0
        %1893 = vmatpush1.msra.mxu0 0.0
        %1894 = vmatprep.subr.mxu0 0.0
        %1895 = vmatpush1.msra.mxu0 0.0
        %1896 = vmatprep.subr.mxu0 0.0
        %1897 = vmatpush1.msra.mxu0 0.0
        %1898 = vmatprep.subr.mxu0 0.0
        %1899 = vmatpush1.msra.mxu0 0.0
        %1900 = vmatprep.subr.mxu0 0.0
        %1901 = vmatpush1.msra.mxu0 0.0
        %1902 = vmatprep.subr.mxu0 0.0
        %1903 = vmatpush1.msra.mxu0 0.0
        %1904 = vmatprep.subr.mxu0 0.0
        %1905 = vmatpush1.msra.mxu0 0.0
        %1906 = vmatprep.subr.mxu0 0.0
        %1907 = vmatpush1.msra.mxu0 0.0
        %1908 = vmatprep.subr.mxu0 0.0
        %1909 = vmatpush1.msra.mxu0 0.0
        %1910 = vmatprep.subr.mxu0 0.0
        %1911 = vmatpush1.msra.mxu0 0.0
        %1912 = vmatprep.subr.mxu0 0.0
        %1913 = vmatpush1.msra.mxu0 0.0
        %1914 = vmatprep.subr.mxu0 0.0
        %1915 = vmatpush1.msra.mxu0 0.0
        %1916 = vmatprep.subr.mxu0 0.0
        %1917 = vmatpush1.msra.mxu0 0.0
        %1918 = vmatprep.subr.mxu0 0.0
        %1919 = vmatpush1.msra.mxu0 %v919
        %1920 = vmatprep.subr.mxu0 0.0
        %1921 = vmatpush2.msra.mxu0 0.0
        %1922 = vmatprep.subr.mxu0 0.0
        %1923 = vmatpush2.msra.mxu0 0.0
        %1924 = vmatprep.subr.mxu0 0.0
        %1925 = vmatpush2.msra.mxu0 0.0
        %1926 = vmatprep.subr.mxu0 0.0
        %1927 = vmatpush2.msra.mxu0 0.0
        %1928 = vmatprep.subr.mxu0 0.0
        %1929 = vmatpush2.msra.mxu0 0.0
        %1930 = vmatprep.subr.mxu0 0.0
        %1931 = vmatpush2.msra.mxu0 0.0
        %1932 = vmatprep.subr.mxu0 0.0
        %1933 = vmatpush2.msra.mxu0 0.0
        %1934 = vmatprep.subr.mxu0 0.0
        %1935 = vmatpush2.msra.mxu0 0.0
        %1936 = vmatprep.subr.mxu0 0.0
        %1937 = vmatpush2.msra.mxu0 0.0
        %1938 = vmatprep.subr.mxu0 0.0
        %1939 = vmatpush2.msra.mxu0 0.0
        %1940 = vmatprep.subr.mxu0 0.0
        %1941 = vmatpush2.msra.mxu0 0.0
        %1942 = vmatprep.subr.mxu0 0.0
        %1943 = vmatpush2.msra.mxu0 0.0
        %1944 = vmatprep.subr.mxu0 0.0
        %1945 = vmatpush2.msra.mxu0 0.0
        %1946 = vmatprep.subr.mxu0 0.0
        %1947 = vmatpush2.msra.mxu0 0.0
        %1948 = vmatprep.subr.mxu0 0.0
        %1949 = vmatpush2.msra.mxu0 0.0
        %1950 = vmatprep.subr.mxu0 0.0
        %1951 = vmatpush2.msra.mxu0 0.0
        %1952 = vmatprep.mubr.f32.mxu0 0.0
        %1953 = vmatmul.mubr.f32.gmra.mxu0 %v1886
        %v1954 = vpop.f32.mrf.mxu0
        %v1955 = vadd.f32 0.0, %v1954
        %v1956 = vpop.f32.mrf.mxu0
        %1957 = vdwg.mxu0
        %1958 = vrot.lane.b32.xlu0 %v741, 120
        %v1959 = vpop.permute.xlu0 %1958
        %1960 = vrot.lane.b32.xlu0 %v835, 120
        %v1961 = vpop.permute.xlu0 %1960
        %v1962 = vrot.slane %v1233, 1
        %v1963 = vsel %vm1777, %v1309, %v1962
        %v1964 = vrot.slane %v1385, 7
        %v1965 = vsel %vm1780, %v1964, %v1963
        %v1966 = vrot.slane %v1461, 6
        %v1967 = vsel %vm1783, %v1966, %v1965
        %v1968 = vrot.slane %v1537, 5
        %v1969 = vsel %vm1786, %v1968, %v1967
        %v1970 = vrot.slane %v1613, 4
        %v1971 = vsel %vm1789, %v1970, %v1969
        %v1972 = vrot.slane %v1689, 3
        %v1973 = vsel %vm1792, %v1972, %v1971
        %v1974 = vrot.slane %v1765, 2
        %v1975 = vsel %vm1795, %v1974, %v1973
        %v1977 = vsel %vm1798, %v1959, 0
        %v1979 = vsel %vm1798, %v1961, 0
        %1981 = vmatprep.subr.mxu0 0.0
        %1982 = vmatpush1.xpose.msra.mxu0 0.0
        %1983 = vmatprep.subr.mxu0 0.0
        %1984 = vmatpush1.xpose.msra.mxu0 0.0
        %1985 = vmatprep.subr.mxu0 0.0
        %1986 = vmatpush1.xpose.msra.mxu0 0.0
        %1987 = vmatprep.subr.mxu0 0.0
        %1988 = vmatpush1.xpose.msra.mxu0 0.0
        %1989 = vmatprep.subr.mxu0 0.0
        %1990 = vmatpush1.xpose.msra.mxu0 0.0
        %1991 = vmatprep.subr.mxu0 0.0
        %1992 = vmatpush1.xpose.msra.mxu0 0.0
        %1993 = vmatprep.subr.mxu0 0.0
        %1994 = vmatpush1.xpose.msra.mxu0 0.0
        %1995 = vmatprep.subr.mxu0 0.0
        %1996 = vmatpush1.xpose.msra.mxu0 0.0
        %1997 = vmatprep.subr.mxu0 0.0
        %1998 = vmatpush1.xpose.msra.mxu0 0.0
        %1999 = vmatprep.subr.mxu0 0.0
        %2000 = vmatpush1.xpose.msra.mxu0 0.0
        %2001 = vmatprep.subr.mxu0 0.0
        %2002 = vmatpush1.xpose.msra.mxu0 0.0
        %2003 = vmatprep.subr.mxu0 0.0
        %2004 = vmatpush1.xpose.msra.mxu0 0.0
        %2005 = vmatprep.subr.mxu0 0.0
        %2006 = vmatpush1.xpose.msra.mxu0 0.0
        %2007 = vmatprep.subr.mxu0 0.0
        %2008 = vmatpush1.xpose.msra.mxu0 0.0
        %2009 = vmatprep.subr.mxu0 0.0
        %2010 = vmatpush1.xpose.msra.mxu0 0.0
        %2011 = vmatprep.subr.mxu0 0.0
        %2012 = vmatpush1.xpose.msra.mxu0 %v1979
        %2013 = vmatprep.subr.mxu0 0.0
        %2014 = vmatpush2.xpose.msra.mxu0 0.0
        %2015 = vmatprep.subr.mxu0 0.0
        %2016 = vmatpush2.xpose.msra.mxu0 0.0
        %2017 = vmatprep.subr.mxu0 0.0
        %2018 = vmatpush2.xpose.msra.mxu0 0.0
        %2019 = vmatprep.subr.mxu0 0.0
        %2020 = vmatpush2.xpose.msra.mxu0 0.0
        %2021 = vmatprep.subr.mxu0 0.0
        %2022 = vmatpush2.xpose.msra.mxu0 0.0
        %2023 = vmatprep.subr.mxu0 0.0
        %2024 = vmatpush2.xpose.msra.mxu0 0.0
        %2025 = vmatprep.subr.mxu0 0.0
        %2026 = vmatpush2.xpose.msra.mxu0 0.0
        %2027 = vmatprep.subr.mxu0 0.0
        %2028 = vmatpush2.xpose.msra.mxu0 0.0
        %2029 = vmatprep.subr.mxu0 0.0
        %2030 = vmatpush2.xpose.msra.mxu0 0.0
        %2031 = vmatprep.subr.mxu0 0.0
        %2032 = vmatpush2.xpose.msra.mxu0 0.0
        %2033 = vmatprep.subr.mxu0 0.0
        %2034 = vmatpush2.xpose.msra.mxu0 0.0
        %2035 = vmatprep.subr.mxu0 0.0
        %2036 = vmatpush2.xpose.msra.mxu0 0.0
        %2037 = vmatprep.subr.mxu0 0.0
        %2038 = vmatpush2.xpose.msra.mxu0 0.0
        %2039 = vmatprep.subr.mxu0 0.0
        %2040 = vmatpush2.xpose.msra.mxu0 0.0
        %2041 = vmatprep.subr.mxu0 0.0
        %2042 = vmatpush2.xpose.msra.mxu0 0.0
        %2043 = vmatprep.subr.mxu0 0.0
        %2044 = vmatpush2.xpose.msra.mxu0 0.0
        %2045 = vmatprep.mubr.f32.mxu0 0.0
        %2046 = vmatmul.mubr.f32.gmra.mxu0 %v1977
        %v2047 = vpop.f32.mrf.mxu0
        %v2048 = vadd.f32 %v1975, %v2047
        %v2049 = vpop.f32.mrf.mxu0
        %2050 = vdwg.mxu0
        %v2051 = vsel %vm1798, %v2048, -inf
        %2052 = vmax.xlane.f32.xlu0 %v2051
        %v2053 = vpop.xlane.xlu0 %2052
        %v2054 = vsub.f32 %v2048, %v2053
        %v2055 = vmul.f32 %v2054, 1.442695
        %v2056 = vpow.pop %v2055
        %v2057 = vsel %vm1798, %v2056, 0.0
        %2058 = vadd.xlane.f32.xlu0 %v2057
        %v2059 = vpop.xlane.xlu0 %2058
        %v2060 = vrcp.pop %v2059
        %v2061 = vmul.f32 %v2056, %v2060
        %2063 = vrot.lane.b32.xlu0 %v919, 120
        %v2064 = vpop.permute.xlu0 %2063
        %v2067 = vsel %vm1798, %v2061, 0
        %2069 = vmatprep.subr.mxu0 0.0
        %2070 = vmatpush1.msra.mxu0 0.0
        %2071 = vmatprep.subr.mxu0 0.0
        %2072 = vmatpush1.msra.mxu0 0.0
        %2073 = vmatprep.subr.mxu0 0.0
        %2074 = vmatpush1.msra.mxu0 0.0
        %2075 = vmatprep.subr.mxu0 0.0
        %2076 = vmatpush1.msra.mxu0 0.0
        %2077 = vmatprep.subr.mxu0 0.0
        %2078 = vmatpush1.msra.mxu0 0.0
        %2079 = vmatprep.subr.mxu0 0.0
        %2080 = vmatpush1.msra.mxu0 0.0
        %2081 = vmatprep.subr.mxu0 0.0
        %2082 = vmatpush1.msra.mxu0 0.0
        %2083 = vmatprep.subr.mxu0 0.0
        %2084 = vmatpush1.msra.mxu0 0.0
        %2085 = vmatprep.subr.mxu0 0.0
        %2086 = vmatpush1.msra.mxu0 0.0
        %2087 = vmatprep.subr.mxu0 0.0
        %2088 = vmatpush1.msra.mxu0 0.0
        %2089 = vmatprep.subr.mxu0 0.0
        %2090 = vmatpush1.msra.mxu0 0.0
        %2091 = vmatprep.subr.mxu0 0.0
        %2092 = vmatpush1.msra.mxu0 0.0
        %2093 = vmatprep.subr.mxu0 0.0
        %2094 = vmatpush1.msra.mxu0 0.0
        %2095 = vmatprep.subr.mxu0 0.0
        %2096 = vmatpush1.msra.mxu0 0.0
        %2097 = vmatprep.subr.mxu0 0.0
        %2098 = vmatpush1.msra.mxu0 0.0
        %2099 = vmatprep.subr.mxu0 0.0
        %2100 = vmatpush1.msra.mxu0 %v2064
        %2101 = vmatprep.subr.mxu0 0.0
        %2102 = vmatpush2.msra.mxu0 0.0
        %2103 = vmatprep.subr.mxu0 0.0
        %2104 = vmatpush2.msra.mxu0 0.0
        %2105 = vmatprep.subr.mxu0 0.0
        %2106 = vmatpush2.msra.mxu0 0.0
        %2107 = vmatprep.subr.mxu0 0.0
        %2108 = vmatpush2.msra.mxu0 0.0
        %2109 = vmatprep.subr.mxu0 0.0
        %2110 = vmatpush2.msra.mxu0 0.0
        %2111 = vmatprep.subr.mxu0 0.0
        %2112 = vmatpush2.msra.mxu0 0.0
        %2113 = vmatprep.subr.mxu0 0.0
        %2114 = vmatpush2.msra.mxu0 0.0
        %2115 = vmatprep.subr.mxu0 0.0
        %2116 = vmatpush2.msra.mxu0 0.0
        %2117 = vmatprep.subr.mxu0 0.0
        %2118 = vmatpush2.msra.mxu0 0.0
        %2119 = vmatprep.subr.mxu0 0.0
        %2120 = vmatpush2.msra.mxu0 0.0
        %2121 = vmatprep.subr.mxu0 0.0
        %2122 = vmatpush2.msra.mxu0 0.0
        %2123 = vmatprep.subr.mxu0 0.0
        %2124 = vmatpush2.msra.mxu0 0.0
        %2125 = vmatprep.subr.mxu0 0.0
        %2126 = vmatpush2.msra.mxu0 0.0
        %2127 = vmatprep.subr.mxu0 0.0
        %2128 = vmatpush2.msra.mxu0 0.0
        %2129 = vmatprep.subr.mxu0 0.0
        %2130 = vmatpush2.msra.mxu0 0.0
        %2131 = vmatprep.subr.mxu0 0.0
        %2132 = vmatpush2.msra.mxu0 0.0
        %2133 = vmatprep.mubr.f32.mxu0 0.0
        %2134 = vmatmul.mubr.f32.gmra.mxu0 %v2067
        %v2135 = vpop.f32.mrf.mxu0
        %v2136 = vadd.f32 0.0, %v2135
        %v2137 = vpop.f32.mrf.mxu0
        %2138 = vdwg.mxu0
        %2139 = vrot.lane.b32.xlu0 %v741, 112
        %v2140 = vpop.permute.xlu0 %2139
        %2141 = vrot.lane.b32.xlu0 %v835, 112
        %v2142 = vpop.permute.xlu0 %2141
        %v2143 = vrot.slane %v1233, 2
        %v2144 = vrot.slane %v1309, 1
        %v2145 = vsel %vm1777, %v2144, %v2143
        %v2146 = vsel %vm1780, %v1385, %v2145
        %v2147 = vrot.slane %v1461, 7
        %v2148 = vsel %vm1783, %v2147, %v2146
        %v2149 = vrot.slane %v1537, 6
        %v2150 = vsel %vm1786, %v2149, %v2148
        %v2151 = vrot.slane %v1613, 5
        %v2152 = vsel %vm1789, %v2151, %v2150
        %v2153 = vrot.slane %v1689, 4
        %v2154 = vsel %vm1792, %v2153, %v2152
        %v2155 = vrot.slane %v1765, 3
        %v2156 = vsel %vm1795, %v2155, %v2154
        %v2158 = vsel %vm1798, %v2140, 0
        %v2160 = vsel %vm1798, %v2142, 0
        %2162 = vmatprep.subr.mxu0 0.0
        %2163 = vmatpush1.xpose.msra.mxu0 0.0
        %2164 = vmatprep.subr.mxu0 0.0
        %2165 = vmatpush1.xpose.msra.mxu0 0.0
        %2166 = vmatprep.subr.mxu0 0.0
        %2167 = vmatpush1.xpose.msra.mxu0 0.0
        %2168 = vmatprep.subr.mxu0 0.0
        %2169 = vmatpush1.xpose.msra.mxu0 0.0
        %2170 = vmatprep.subr.mxu0 0.0
        %2171 = vmatpush1.xpose.msra.mxu0 0.0
        %2172 = vmatprep.subr.mxu0 0.0
        %2173 = vmatpush1.xpose.msra.mxu0 0.0
        %2174 = vmatprep.subr.mxu0 0.0
        %2175 = vmatpush1.xpose.msra.mxu0 0.0
        %2176 = vmatprep.subr.mxu0 0.0
        %2177 = vmatpush1.xpose.msra.mxu0 0.0
        %2178 = vmatprep.subr.mxu0 0.0
        %2179 = vmatpush1.xpose.msra.mxu0 0.0
        %2180 = vmatprep.subr.mxu0 0.0
        %2181 = vmatpush1.xpose.msra.mxu0 0.0
        %2182 = vmatprep.subr.mxu0 0.0
        %2183 = vmatpush1.xpose.msra.mxu0 0.0
        %2184 = vmatprep.subr.mxu0 0.0
        %2185 = vmatpush1.xpose.msra.mxu0 0.0
        %2186 = vmatprep.subr.mxu0 0.0
        %2187 = vmatpush1.xpose.msra.mxu0 0.0
        %2188 = vmatprep.subr.mxu0 0.0
        %2189 = vmatpush1.xpose.msra.mxu0 0.0
        %2190 = vmatprep.subr.mxu0 0.0
        %2191 = vmatpush1.xpose.msra.mxu0 0.0
        %2192 = vmatprep.subr.mxu0 0.0
        %2193 = vmatpush1.xpose.msra.mxu0 %v2160
        %2194 = vmatprep.subr.mxu0 0.0
        %2195 = vmatpush2.xpose.msra.mxu0 0.0
        %2196 = vmatprep.subr.mxu0 0.0
        %2197 = vmatpush2.xpose.msra.mxu0 0.0
        %2198 = vmatprep.subr.mxu0 0.0
        %2199 = vmatpush2.xpose.msra.mxu0 0.0
        %2200 = vmatprep.subr.mxu0 0.0
        %2201 = vmatpush2.xpose.msra.mxu0 0.0
        %2202 = vmatprep.subr.mxu0 0.0
        %2203 = vmatpush2.xpose.msra.mxu0 0.0
        %2204 = vmatprep.subr.mxu0 0.0
        %2205 = vmatpush2.xpose.msra.mxu0 0.0
        %2206 = vmatprep.subr.mxu0 0.0
        %2207 = vmatpush2.xpose.msra.mxu0 0.0
        %2208 = vmatprep.subr.mxu0 0.0
        %2209 = vmatpush2.xpose.msra.mxu0 0.0
        %2210 = vmatprep.subr.mxu0 0.0
        %2211 = vmatpush2.xpose.msra.mxu0 0.0
        %2212 = vmatprep.subr.mxu0 0.0
        %2213 = vmatpush2.xpose.msra.mxu0 0.0
        %2214 = vmatprep.subr.mxu0 0.0
        %2215 = vmatpush2.xpose.msra.mxu0 0.0
        %2216 = vmatprep.subr.mxu0 0.0
        %2217 = vmatpush2.xpose.msra.mxu0 0.0
        %2218 = vmatprep.subr.mxu0 0.0
        %2219 = vmatpush2.xpose.msra.mxu0 0.0
        %2220 = vmatprep.subr.mxu0 0.0
        %2221 = vmatpush2.xpose.msra.mxu0 0.0
        %2222 = vmatprep.subr.mxu0 0.0
        %2223 = vmatpush2.xpose.msra.mxu0 0.0
        %2224 = vmatprep.subr.mxu0 0.0
        %2225 = vmatpush2.xpose.msra.mxu0 0.0
        %2226 = vmatprep.mubr.f32.mxu0 0.0
        %2227 = vmatmul.mubr.f32.gmra.mxu0 %v2158
        %v2228 = vpop.f32.mrf.mxu0
        %v2229 = vadd.f32 %v2156, %v2228
        %v2230 = vpop.f32.mrf.mxu0
        %2231 = vdwg.mxu0
        %v2232 = vsel %vm1798, %v2229, -inf
        %2233 = vmax.xlane.f32.xlu0 %v2232
        %v2234 = vpop.xlane.xlu0 %2233
        %v2235 = vsub.f32 %v2229, %v2234
        %v2236 = vmul.f32 %v2235, 1.442695
        %v2237 = vpow.pop %v2236
        %v2238 = vsel %vm1798, %v2237, 0.0
        %2239 = vadd.xlane.f32.xlu0 %v2238
        %v2240 = vpop.xlane.xlu0 %2239
        %v2241 = vrcp.pop %v2240
        %v2242 = vmul.f32 %v2237, %v2241
        %2243 = vrot.lane.b32.xlu0 %v919, 112
        %v2244 = vpop.permute.xlu0 %2243
        %v2247 = vsel %vm1798, %v2242, 0
        %2249 = vmatprep.subr.mxu0 0.0
        %2250 = vmatpush1.msra.mxu0 0.0
        %2251 = vmatprep.subr.mxu0 0.0
        %2252 = vmatpush1.msra.mxu0 0.0
        %2253 = vmatprep.subr.mxu0 0.0
        %2254 = vmatpush1.msra.mxu0 0.0
        %2255 = vmatprep.subr.mxu0 0.0
        %2256 = vmatpush1.msra.mxu0 0.0
        %2257 = vmatprep.subr.mxu0 0.0
        %2258 = vmatpush1.msra.mxu0 0.0
        %2259 = vmatprep.subr.mxu0 0.0
        %2260 = vmatpush1.msra.mxu0 0.0
        %2261 = vmatprep.subr.mxu0 0.0
        %2262 = vmatpush1.msra.mxu0 0.0
        %2263 = vmatprep.subr.mxu0 0.0
        %2264 = vmatpush1.msra.mxu0 0.0
        %2265 = vmatprep.subr.mxu0 0.0
        %2266 = vmatpush1.msra.mxu0 0.0
        %2267 = vmatprep.subr.mxu0 0.0
        %2268 = vmatpush1.msra.mxu0 0.0
        %2269 = vmatprep.subr.mxu0 0.0
        %2270 = vmatpush1.msra.mxu0 0.0
        %2271 = vmatprep.subr.mxu0 0.0
        %2272 = vmatpush1.msra.mxu0 0.0
        %2273 = vmatprep.subr.mxu0 0.0
        %2274 = vmatpush1.msra.mxu0 0.0
        %2275 = vmatprep.subr.mxu0 0.0
        %2276 = vmatpush1.msra.mxu0 0.0
        %2277 = vmatprep.subr.mxu0 0.0
        %2278 = vmatpush1.msra.mxu0 0.0
        %2279 = vmatprep.subr.mxu0 0.0
        %2280 = vmatpush1.msra.mxu0 %v2244
        %2281 = vmatprep.subr.mxu0 0.0
        %2282 = vmatpush2.msra.mxu0 0.0
        %2283 = vmatprep.subr.mxu0 0.0
        %2284 = vmatpush2.msra.mxu0 0.0
        %2285 = vmatprep.subr.mxu0 0.0
        %2286 = vmatpush2.msra.mxu0 0.0
        %2287 = vmatprep.subr.mxu0 0.0
        %2288 = vmatpush2.msra.mxu0 0.0
        %2289 = vmatprep.subr.mxu0 0.0
        %2290 = vmatpush2.msra.mxu0 0.0
        %2291 = vmatprep.subr.mxu0 0.0
        %2292 = vmatpush2.msra.mxu0 0.0
        %2293 = vmatprep.subr.mxu0 0.0
        %2294 = vmatpush2.msra.mxu0 0.0
        %2295 = vmatprep.subr.mxu0 0.0
        %2296 = vmatpush2.msra.mxu0 0.0
        %2297 = vmatprep.subr.mxu0 0.0
        %2298 = vmatpush2.msra.mxu0 0.0
        %2299 = vmatprep.subr.mxu0 0.0
        %2300 = vmatpush2.msra.mxu0 0.0
        %2301 = vmatprep.subr.mxu0 0.0
        %2302 = vmatpush2.msra.mxu0 0.0
        %2303 = vmatprep.subr.mxu0 0.0
        %2304 = vmatpush2.msra.mxu0 0.0
        %2305 = vmatprep.subr.mxu0 0.0
        %2306 = vmatpush2.msra.mxu0 0.0
        %2307 = vmatprep.subr.mxu0 0.0
        %2308 = vmatpush2.msra.mxu0 0.0
        %2309 = vmatprep.subr.mxu0 0.0
        %2310 = vmatpush2.msra.mxu0 0.0
        %2311 = vmatprep.subr.mxu0 0.0
        %2312 = vmatpush2.msra.mxu0 0.0
        %2313 = vmatprep.mubr.f32.mxu0 0.0
        %2314 = vmatmul.mubr.f32.gmra.mxu0 %v2247
        %v2315 = vpop.f32.mrf.mxu0
        %v2316 = vadd.f32 0.0, %v2315
        %v2317 = vpop.f32.mrf.mxu0
        %2318 = vdwg.mxu0
        %2319 = vrot.lane.b32.xlu0 %v741, 104
        %v2320 = vpop.permute.xlu0 %2319
        %2321 = vrot.lane.b32.xlu0 %v835, 104
        %v2322 = vpop.permute.xlu0 %2321
        %v2323 = vrot.slane %v1233, 3
        %v2324 = vrot.slane %v1309, 2
        %v2325 = vsel %vm1777, %v2324, %v2323
        %v2326 = vrot.slane %v1385, 1
        %v2327 = vsel %vm1780, %v2326, %v2325
        %v2328 = vsel %vm1783, %v1461, %v2327
        %v2329 = vrot.slane %v1537, 7
        %v2330 = vsel %vm1786, %v2329, %v2328
        %v2331 = vrot.slane %v1613, 6
        %v2332 = vsel %vm1789, %v2331, %v2330
        %v2333 = vrot.slane %v1689, 5
        %v2334 = vsel %vm1792, %v2333, %v2332
        %v2335 = vrot.slane %v1765, 4
        %v2336 = vsel %vm1795, %v2335, %v2334
        %v2338 = vsel %vm1798, %v2320, 0
        %v2340 = vsel %vm1798, %v2322, 0
        %2342 = vmatprep.subr.mxu0 0.0
        %2343 = vmatpush1.xpose.msra.mxu0 0.0
        %2344 = vmatprep.subr.mxu0 0.0
        %2345 = vmatpush1.xpose.msra.mxu0 0.0
        %2346 = vmatprep.subr.mxu0 0.0
        %2347 = vmatpush1.xpose.msra.mxu0 0.0
        %2348 = vmatprep.subr.mxu0 0.0
        %2349 = vmatpush1.xpose.msra.mxu0 0.0
        %2350 = vmatprep.subr.mxu0 0.0
        %2351 = vmatpush1.xpose.msra.mxu0 0.0
        %2352 = vmatprep.subr.mxu0 0.0
        %2353 = vmatpush1.xpose.msra.mxu0 0.0
        %2354 = vmatprep.subr.mxu0 0.0
        %2355 = vmatpush1.xpose.msra.mxu0 0.0
        %2356 = vmatprep.subr.mxu0 0.0
        %2357 = vmatpush1.xpose.msra.mxu0 0.0
        %2358 = vmatprep.subr.mxu0 0.0
        %2359 = vmatpush1.xpose.msra.mxu0 0.0
        %2360 = vmatprep.subr.mxu0 0.0
        %2361 = vmatpush1.xpose.msra.mxu0 0.0
        %2362 = vmatprep.subr.mxu0 0.0
        %2363 = vmatpush1.xpose.msra.mxu0 0.0
        %2364 = vmatprep.subr.mxu0 0.0
        %2365 = vmatpush1.xpose.msra.mxu0 0.0
        %2366 = vmatprep.subr.mxu0 0.0
        %2367 = vmatpush1.xpose.msra.mxu0 0.0
        %2368 = vmatprep.subr.mxu0 0.0
        %2369 = vmatpush1.xpose.msra.mxu0 0.0
        %2370 = vmatprep.subr.mxu0 0.0
        %2371 = vmatpush1.xpose.msra.mxu0 0.0
        %2372 = vmatprep.subr.mxu0 0.0
        %2373 = vmatpush1.xpose.msra.mxu0 %v2340
        %2374 = vmatprep.subr.mxu0 0.0
        %2375 = vmatpush2.xpose.msra.mxu0 0.0
        %2376 = vmatprep.subr.mxu0 0.0
        %2377 = vmatpush2.xpose.msra.mxu0 0.0
        %2378 = vmatprep.subr.mxu0 0.0
        %2379 = vmatpush2.xpose.msra.mxu0 0.0
        %2380 = vmatprep.subr.mxu0 0.0
        %2381 = vmatpush2.xpose.msra.mxu0 0.0
        %2382 = vmatprep.subr.mxu0 0.0
        %2383 = vmatpush2.xpose.msra.mxu0 0.0
        %2384 = vmatprep.subr.mxu0 0.0
        %2385 = vmatpush2.xpose.msra.mxu0 0.0
        %2386 = vmatprep.subr.mxu0 0.0
        %2387 = vmatpush2.xpose.msra.mxu0 0.0
        %2388 = vmatprep.subr.mxu0 0.0
        %2389 = vmatpush2.xpose.msra.mxu0 0.0
        %2390 = vmatprep.subr.mxu0 0.0
        %2391 = vmatpush2.xpose.msra.mxu0 0.0
        %2392 = vmatprep.subr.mxu0 0.0
        %2393 = vmatpush2.xpose.msra.mxu0 0.0
        %2394 = vmatprep.subr.mxu0 0.0
        %2395 = vmatpush2.xpose.msra.mxu0 0.0
        %2396 = vmatprep.subr.mxu0 0.0
        %2397 = vmatpush2.xpose.msra.mxu0 0.0
        %2398 = vmatprep.subr.mxu0 0.0
        %2399 = vmatpush2.xpose.msra.mxu0 0.0
        %2400 = vmatprep.subr.mxu0 0.0
        %2401 = vmatpush2.xpose.msra.mxu0 0.0
        %2402 = vmatprep.subr.mxu0 0.0
        %2403 = vmatpush2.xpose.msra.mxu0 0.0
        %2404 = vmatprep.subr.mxu0 0.0
        %2405 = vmatpush2.xpose.msra.mxu0 0.0
        %2406 = vmatprep.mubr.f32.mxu0 0.0
        %2407 = vmatmul.mubr.f32.gmra.mxu0 %v2338
        %v2408 = vpop.f32.mrf.mxu0
        %v2409 = vadd.f32 %v2336, %v2408
        %v2410 = vpop.f32.mrf.mxu0
        %2411 = vdwg.mxu0
        %v2412 = vsel %vm1798, %v2409, -inf
        %2413 = vmax.xlane.f32.xlu0 %v2412
        %v2414 = vpop.xlane.xlu0 %2413
        %v2415 = vsub.f32 %v2409, %v2414
        %v2416 = vmul.f32 %v2415, 1.442695
        %v2417 = vpow.pop %v2416
        %v2418 = vsel %vm1798, %v2417, 0.0
        %2419 = vadd.xlane.f32.xlu0 %v2418
        %v2420 = vpop.xlane.xlu0 %2419
        %v2421 = vrcp.pop %v2420
        %v2422 = vmul.f32 %v2417, %v2421
        %2423 = vrot.lane.b32.xlu0 %v919, 104
        %v2424 = vpop.permute.xlu0 %2423
        %v2427 = vsel %vm1798, %v2422, 0
        %2429 = vmatprep.subr.mxu0 0.0
        %2430 = vmatpush1.msra.mxu0 0.0
        %2431 = vmatprep.subr.mxu0 0.0
        %2432 = vmatpush1.msra.mxu0 0.0
        %2433 = vmatprep.subr.mxu0 0.0
        %2434 = vmatpush1.msra.mxu0 0.0
        %2435 = vmatprep.subr.mxu0 0.0
        %2436 = vmatpush1.msra.mxu0 0.0
        %2437 = vmatprep.subr.mxu0 0.0
        %2438 = vmatpush1.msra.mxu0 0.0
        %2439 = vmatprep.subr.mxu0 0.0
        %2440 = vmatpush1.msra.mxu0 0.0
        %2441 = vmatprep.subr.mxu0 0.0
        %2442 = vmatpush1.msra.mxu0 0.0
        %2443 = vmatprep.subr.mxu0 0.0
        %2444 = vmatpush1.msra.mxu0 0.0
        %2445 = vmatprep.subr.mxu0 0.0
        %2446 = vmatpush1.msra.mxu0 0.0
        %2447 = vmatprep.subr.mxu0 0.0
        %2448 = vmatpush1.msra.mxu0 0.0
        %2449 = vmatprep.subr.mxu0 0.0
        %2450 = vmatpush1.msra.mxu0 0.0
        %2451 = vmatprep.subr.mxu0 0.0
        %2452 = vmatpush1.msra.mxu0 0.0
        %2453 = vmatprep.subr.mxu0 0.0
        %2454 = vmatpush1.msra.mxu0 0.0
        %2455 = vmatprep.subr.mxu0 0.0
        %2456 = vmatpush1.msra.mxu0 0.0
        %2457 = vmatprep.subr.mxu0 0.0
        %2458 = vmatpush1.msra.mxu0 0.0
        %2459 = vmatprep.subr.mxu0 0.0
        %2460 = vmatpush1.msra.mxu0 %v2424
        %2461 = vmatprep.subr.mxu0 0.0
        %2462 = vmatpush2.msra.mxu0 0.0
        %2463 = vmatprep.subr.mxu0 0.0
        %2464 = vmatpush2.msra.mxu0 0.0
        %2465 = vmatprep.subr.mxu0 0.0
        %2466 = vmatpush2.msra.mxu0 0.0
        %2467 = vmatprep.subr.mxu0 0.0
        %2468 = vmatpush2.msra.mxu0 0.0
        %2469 = vmatprep.subr.mxu0 0.0
        %2470 = vmatpush2.msra.mxu0 0.0
        %2471 = vmatprep.subr.mxu0 0.0
        %2472 = vmatpush2.msra.mxu0 0.0
        %2473 = vmatprep.subr.mxu0 0.0
        %2474 = vmatpush2.msra.mxu0 0.0
        %2475 = vmatprep.subr.mxu0 0.0
        %2476 = vmatpush2.msra.mxu0 0.0
        %2477 = vmatprep.subr.mxu0 0.0
        %2478 = vmatpush2.msra.mxu0 0.0
        %2479 = vmatprep.subr.mxu0 0.0
        %2480 = vmatpush2.msra.mxu0 0.0
        %2481 = vmatprep.subr.mxu0 0.0
        %2482 = vmatpush2.msra.mxu0 0.0
        %2483 = vmatprep.subr.mxu0 0.0
        %2484 = vmatpush2.msra.mxu0 0.0
        %2485 = vmatprep.subr.mxu0 0.0
        %2486 = vmatpush2.msra.mxu0 0.0
        %2487 = vmatprep.subr.mxu0 0.0
        %2488 = vmatpush2.msra.mxu0 0.0
        %2489 = vmatprep.subr.mxu0 0.0
        %2490 = vmatpush2.msra.mxu0 0.0
        %2491 = vmatprep.subr.mxu0 0.0
        %2492 = vmatpush2.msra.mxu0 0.0
        %2493 = vmatprep.mubr.f32.mxu0 0.0
        %2494 = vmatmul.mubr.f32.gmra.mxu0 %v2427
        %v2495 = vpop.f32.mrf.mxu0
        %v2496 = vadd.f32 0.0, %v2495
        %v2497 = vpop.f32.mrf.mxu0
        %2498 = vdwg.mxu0
        %2500 = vrot.lane.b32.xlu0 %v2136, 8
        %v2501 = vpop.permute.xlu0 %2500
        %2504 = vrot.lane.b32.xlu0 %v2316, 16
        %v2505 = vpop.permute.xlu0 %2504
        %2508 = vrot.lane.b32.xlu0 %v2496, 24
        %v2509 = vpop.permute.xlu0 %2508
        %v2511 = vsel %vm1798, %v1955, %v2501
        %vm2512 = vcmask 130048
        %v2513 = vsel %vm2512, %v2511, %v2505
        %vm2514 = vcmask 195584
        %v2515 = vsel %vm2514, %v2513, %v2509
        %v2516 = vld [vmem:[#allocation13] sm:$0xff]
        %v2517 = vld [vmem:[#allocation13 + $0x8] sm:$0xff]
        %v2518 = vld [vmem:[#allocation13 + $0x10] sm:$0xff]
        %v2519 = vld [vmem:[#allocation13 + $0x18] sm:$0xff]
        %v2521 = vsel %vm670, %v2515, 0
        %2523 = vmatprep.subr.mxu0 0.0
        %2524 = vmatpush1.msra.mxu0 0.0
        %2525 = vmatprep.subr.mxu0 0.0
        %2526 = vmatpush1.msra.mxu0 0.0
        %2527 = vmatprep.subr.mxu0 0.0
        %2528 = vmatpush1.msra.mxu0 0.0
        %2529 = vmatprep.subr.mxu0 0.0
        %2530 = vmatpush1.msra.mxu0 0.0
        %2531 = vmatprep.subr.mxu0 0.0
        %2532 = vmatpush1.msra.mxu0 0.0
        %2533 = vmatprep.subr.mxu0 0.0
        %2534 = vmatpush1.msra.mxu0 0.0
        %2535 = vmatprep.subr.mxu0 0.0
        %2536 = vmatpush1.msra.mxu0 0.0
        %2537 = vmatprep.subr.mxu0 0.0
        %2538 = vmatpush1.msra.mxu0 0.0
        %2539 = vmatprep.subr.mxu0 0.0
        %2540 = vmatpush1.msra.mxu0 0.0
        %2541 = vmatprep.subr.mxu0 0.0
        %2542 = vmatpush1.msra.mxu0 0.0
        %2543 = vmatprep.subr.mxu0 0.0
        %2544 = vmatpush1.msra.mxu0 0.0
        %2545 = vmatprep.subr.mxu0 0.0
        %2546 = vmatpush1.msra.mxu0 0.0
        %2547 = vmatprep.subr.mxu0 0.0
        %2548 = vmatpush1.msra.mxu0 %v2519
        %2549 = vmatprep.subr.mxu0 0.0
        %2550 = vmatpush1.msra.mxu0 %v2518
        %2551 = vmatprep.subr.mxu0 0.0
        %2552 = vmatpush1.msra.mxu0 %v2517
        %2553 = vmatprep.subr.mxu0 0.0
        %2554 = vmatpush1.msra.mxu0 %v2516
        %2555 = vmatprep.subr.mxu0 0.0
        %2556 = vmatpush2.msra.mxu0 0.0
        %2557 = vmatprep.subr.mxu0 0.0
        %2558 = vmatpush2.msra.mxu0 0.0
        %2559 = vmatprep.subr.mxu0 0.0
        %2560 = vmatpush2.msra.mxu0 0.0
        %2561 = vmatprep.subr.mxu0 0.0
        %2562 = vmatpush2.msra.mxu0 0.0
        %2563 = vmatprep.subr.mxu0 0.0
        %2564 = vmatpush2.msra.mxu0 0.0
        %2565 = vmatprep.subr.mxu0 0.0
        %2566 = vmatpush2.msra.mxu0 0.0
        %2567 = vmatprep.subr.mxu0 0.0
        %2568 = vmatpush2.msra.mxu0 0.0
        %2569 = vmatprep.subr.mxu0 0.0
        %2570 = vmatpush2.msra.mxu0 0.0
        %2571 = vmatprep.subr.mxu0 0.0
        %2572 = vmatpush2.msra.mxu0 0.0
        %2573 = vmatprep.subr.mxu0 0.0
        %2574 = vmatpush2.msra.mxu0 0.0
        %2575 = vmatprep.subr.mxu0 0.0
        %2576 = vmatpush2.msra.mxu0 0.0
        %2577 = vmatprep.subr.mxu0 0.0
        %2578 = vmatpush2.msra.mxu0 0.0
        %2579 = vmatprep.subr.mxu0 0.0
        %2580 = vmatpush2.msra.mxu0 0.0
        %2581 = vmatprep.subr.mxu0 0.0
        %2582 = vmatpush2.msra.mxu0 0.0
        %2583 = vmatprep.subr.mxu0 0.0
        %2584 = vmatpush2.msra.mxu0 0.0
        %2585 = vmatprep.subr.mxu0 0.0
        %2586 = vmatpush2.msra.mxu0 0.0
        %2587 = vmatprep.mubr.f32.mxu0 0.0
        %2588 = vmatmul.mubr.f32.gmra.mxu0 %v2521
        %v2589 = vpop.f32.mrf.mxu0
        %v2590 = vadd.f32 0.0, %v2589
        %v2591 = vpop.f32.mrf.mxu0
        %2592 = vdwg.mxu0
        %2594 = vrot.lane.b32.xlu0 %v2590, 32
        %v2595 = vpop.permute.xlu0 %2594
        %v2597 = vadd.f32 %v753, %v2595
        %2599 = vrot.lane.b32.xlu0 %v2597, 96
        %v2600 = vpop.permute.xlu0 %2599
        %v2602 = vsel %vm670, %v2600, 0.0
        %2603 = vadd.xlane.f32.xlu0 %v2602
        %v2604 = vpop.xlane.xlu0 %2603
        %v2605 = vrcp.pop 32.0
        %v2606 = vmul.f32 %v2604, %v2605
        %v2607 = vsub.f32 %v2597, %v2606
        %v2608 = vmul.f32 %v2607, %v2607
        %2610 = vrot.lane.b32.xlu0 %v2608, 96
        %v2611 = vpop.permute.xlu0 %2610
        %v2613 = vsel %vm670, %v2611, 0.0
        %2614 = vadd.xlane.f32.xlu0 %v2613
        %v2615 = vpop.xlane.xlu0 %2614
        %v2616 = vmul.f32 %v2615, %v2605
        %v2617 = vadd.f32 %v2616, 1e-06
        %v2618 = vrsqrt.pop %v2617
        %v2619 = vmul.f32 %v2607, %v2618
        %v2620 = vld [vmem:[%s13] sm:$0x1]
        %v2622 = vlaneseq
        %v2623 = vshrl.u32 %v2622, 7
        %v2624 = vsub.s32 0, %v2623
        %v2625 = vrot.slane %v2620, %v2624
        %2626 = vrot.lane.b32.xlu0 %v2625, 32
        %v2627 = vpop.permute.xlu0 %2626
        %v2629 = vmul.f32 %v2619, %v2627
        %v2630 = vld [vmem:[%s14] sm:$0x1]
        %v2632 = vlaneseq
        %v2633 = vshrl.u32 %v2632, 7
        %v2634 = vsub.s32 0, %v2633
        %v2635 = vrot.slane %v2630, %v2634
        %2636 = vrot.lane.b32.xlu0 %v2635, 32
        %v2637 = vpop.permute.xlu0 %2636
        %v2639 = vadd.f32 %v2629, %v2637
        %2641 = vrot.lane.b32.xlu0 %v2639, 96
        %v2642 = vpop.permute.xlu0 %2641
        %2644 = vst.msk [vmem:[%s651] sm:$0xff] %vm670, %v2642
        %s2645 = sand.u32 %s380, 1
        %s2646 = scalar_lea.sflag [#allocation4], %s2645
        %s2647 = sand.u32 %s380, 1
        %s2648 = smul.addr %s2647, 8
        %s2649 = scalar_lea.vmem [#allocation14], %s2648
        // Predicated region
        $region109: #{tpu_custom_call.1} parent=79 // pred_check
          %p2650 = pneg %p390
        $region110: #{tpu_custom_call.1} parent=79 // pred_check_branch
          %2652 = sbr.rel (%p2650) target = $region112
        $region111: #{tpu_custom_call.1} parent=79 // pred_region
          %s2654 = ssub.s32 128, 128
          %2655 = vsyncadd %s2646, %s2654
          %s2656 = smul.addr %s37, 128
          %s2657 = scalar_lea.hbm %s15, %s2656
          %s2659 = sshll.u32 %s2649, 4
          %s2660 = int_to_ptr.vmem [resolvable:$true] %s2659
          %2662 = dma.vmem_to_hbm [thread:$0]  %s2660, 128, %s2657, %s2646
        $region112: #{tpu_custom_call.1} parent=79 // pred_fallthru
          _
      $region80: #{tpu_custom_call.1} parent=5 // pred_fallthru
        _
      %p2663 = scmp.le.s32.totalorder 2, %s32
      // Predicated region
      $region113: #{tpu_custom_call.1} parent=5 // pred_check
        %p2664 = pneg %p2663
      $region114: #{tpu_custom_call.1} parent=5 // pred_check_branch
        %2666 = sbr.rel (%p2664) target = $region116
      $region115: #{tpu_custom_call.1} parent=5 // pred_region
        %s2667 = ssub.s32 %s32, 2
        // Predicated region
        $region117: #{tpu_custom_call.1} parent=115 // pred_check
          %p2668 = pneg %p396
        $region118: #{tpu_custom_call.1} parent=115 // pred_check_branch
          %2670 = sbr.rel (%p2668) target = $region120
        $region119: #{tpu_custom_call.1} parent=115 // pred_region
          %s2671 = sand.u32 %s381, 1
          %s2672 = scalar_lea.sflag [#allocation4], %s2671
          %s2673 = sand.u32 %s381, 1
          %s2674 = smul.addr %s2673, 8
          %s2675 = scalar_lea.vmem [#allocation14], %s2674
          %2676 = dma.done %s2672, 128
        $region120: #{tpu_custom_call.1} parent=115 // pred_fallthru
          _
      $region116: #{tpu_custom_call.1} parent=5 // pred_fallthru
        _
    $region6: #{tpu_custom_call.1} parent=1 // loop_footer
      %s36 = sadd.s32 1, %s32
    $region7: #{tpu_custom_call.1} parent=1 // loop_footer_branch
      %31 = sbr.rel target = $region3
    $region8: #{tpu_custom_call.1} parent=1 // loop_exit
      _
    %2677 = vsyncpa [#allocation3], 1
    %s2678 = scalar_lea.sflag [#allocation3], 1
    %2679 = vsyncpa %s2678, 1
    %2680 = vsyncpa [#allocation6], 1
    %s2681 = scalar_lea.sflag [#allocation6], 1
    %2682 = vsyncpa %s2681, 1
    %2683 = vsyncpa [#allocation9], 1
    %2684 = vsyncpa [#allocation12], 1
    %2685 = vsyncpa [#allocation4], 1
    %s2686 = scalar_lea.sflag [#allocation4], 1
    %2687 = vsyncpa %s2686, 1

</llo_original>
